<compile_context>
chip_gen: v7x
topology: tpu7x:2x2x1
jax: 0.10.0
libtpu: 0.0.40
codegen_flags: <defaults>
</compile_context>

<pallas_src>
import math

import jax
import jax.numpy as jnp
from jax.experimental import pallas as pl
from jax.experimental.pallas import tpu as pltpu


def _round_up(x, m):
    return (x + m - 1) // m * m


def _vmem_limit_bytes():
    # Derive the scoped-VMEM budget from the actual part instead of one constant.
    try:
        cap = int(getattr(pltpu.get_tpu_info(), "vmem_capacity_bytes"))
    except Exception:
        cap = 64 * 1024 * 1024
    return max(32 * 1024 * 1024, min(3 * cap // 4, 96 * 1024 * 1024))


# -----------------------------------------------------------------------------
# Fused kernel: (upsampled) conv0 + capa1 + conv1 + capa2, one batch element
# per grid step.  Layout: [C, Lpad] with Lpad = Hp*Wpad, Wpad a multiple of 128
# (zero pad ring + lane slack included); the ring doubles as conv zero padding.
# -----------------------------------------------------------------------------
def _make_kernel(cout, wpad, lpad, lspan, lbuf, off0, n_interior, out_lanes):
    inv_cnt = 1.0 / float(n_interior)
    eps = 1e-5
    base = off0 - wpad                       # 128-aligned start of kw-copy window

    def conv3x3(read, w_ref):
        # 3 lane-shifted copies (kw = 0,1,2) stacked along the channel/sublane
        # axis -> contraction K = 3*C; then one GEMM per kh row where the kh
        # shift is a multiple of Wpad=128 lanes (free slice).
        r = jnp.concatenate([read(base - 1), read(base), read(base + 1)], axis=0)
        acc = jnp.zeros((cout, lpad), jnp.float32)
        for kh in range(3):
            acc = acc + jnp.dot(w_ref[kh], r[:, kh * wpad:kh * wpad + lpad],
                                preferred_element_type=jnp.float32)
        return acc

    def capa(acc, bias, nw, noise, scale, shift, mask):
        # NoiseLayer + ReLU + InstanceNorm2d(affine=False) + StyleMod, with the
        # normalize+stylemod chain folded into one per-channel affine y*a + b.
        y = jnp.maximum(acc + bias + nw * noise, 0.0)
        ym = y * mask                                    # ring/slack excluded from stats
        s1 = jnp.sum(ym, axis=1, keepdims=True)
        s2 = jnp.sum(ym * ym, axis=1, keepdims=True)
        mean = s1 * inv_cnt
        var = jnp.maximum(s2 * inv_cnt - mean * mean, 0.0)   # clamp single-pass var
        a = scale * jax.lax.rsqrt(var + eps)
        b = shift - mean * a
        return y * a + b

    def kernel(xbuf_ref, w0_ref, w1_ref, ch_ref, nz_ref, mask_ref, o_ref, ybuf_ref):
        mask = mask_ref[...]                             # [1, Lpad]
        ch = ch_ref[0]                                   # [Cout, 8] packed scalars

        # ---- conv0_up: 3x3 conv on the upsampled input (3 GEMMs, K = 3*Cin).
        acc = conv3x3(lambda s: xbuf_ref[0, :, s:s + lspan], w0_ref)

        # ---- capa1: bias + noise + ReLU + InstanceNorm + StyleMod.
        y = capa(acc, ch[:, 0:1], ch[:, 1:2], nz_ref[0, 0:1, :],
                 ch[:, 2:3], ch[:, 3:4], mask)

        # ---- stash y1 in VMEM (never touches HBM); ring zeroed via the mask
        # (it is conv1's zero padding), lane slack zeroed explicitly (cheap:
        # 2 aligned [Cout, 2*Wpad] stores per step).
        ybuf_ref[:, 0:off0] = jnp.zeros((cout, off0), ybuf_ref.dtype)
        ybuf_ref[:, off0 + lpad:lbuf] = jnp.zeros((cout, lbuf - off0 - lpad),
                                                  ybuf_ref.dtype)
        ybuf_ref[:, off0:off0 + lpad] = (y * mask).astype(ybuf_ref.dtype)

        # ---- conv1: 3x3 conv on y1 from VMEM (3 GEMMs, K = 3*Cout).
        acc2 = conv3x3(lambda s: ybuf_ref[:, s:s + lspan], w1_ref)

        # ---- capa2.
        y2 = capa(acc2, ch[:, 4:5], ch[:, 5:6], nz_ref[0, 1:2, :],
                  ch[:, 6:7], ch[:, 7:8], mask)

        # ---- lane-dense store: drop the top/bottom ring rows with one
        # 128-aligned slice; the narrow W-column crop happens on the host.
        o_ref[0] = y2[:, wpad:wpad + out_lanes].astype(o_ref.dtype)

    return kernel


# -----------------------------------------------------------------------------
# Wrapper: host-side (XLA) prep is only cheap layout glue + the hoisted
# StyleMod GEMMs; all heavy work happens in the single pallas_call.
# -----------------------------------------------------------------------------
def gsynthesis_block(x, dlatents_in_range, params, noise1, noise2,
                     conv_dtype=jnp.float32):
    """x: [N,Cin,H,W]  dlatents_in_range: [N,2,D]  noise*: [N,1,2H,2W]."""
    n, cin, h, w = x.shape
    cout = params["w0_4d"].shape[0]
    h2, w2 = 2 * h, 2 * w
    hp = h2 + 2
    wpad = _round_up(w2 + 2, 128)     # 128-aligned padded row width
    lpad = hp * wpad                  # flattened padded image length
    off0 = 2 * wpad                   # image start inside the slack buffer
    lspan = lpad + 2 * wpad           # kw-copy window (covers +/-1 kh row)
    lbuf = lpad + 4 * wpad            # full slack buffer length
    cin_p = _round_up(cin, 8)         # sublane-aligned contraction channels
    # NOTE: cout is assumed to be a multiple of 8 (true for StyleGAN channel
    # counts); otherwise the conv1 channel concat becomes sublane-unaligned.

    # Upscale2d (factor=2, gain=1): nearest-neighbour upsample, then ring pad,
    # 128-align rows, flatten and add aligned lane slack on both sides.
    xpch = jnp.pad(x, ((0, 0), (0, cin_p - cin), (0, 0), (0, 0)))
    xu = jnp.repeat(jnp.repeat(xpch, 2, axis=2), 2, axis=3)       # [N,Cin_p,H2,W2]
    xp = jnp.pad(xu, ((0, 0), (0, 0), (1, hp - h2 - 1),
                      (1, wpad - w2 - 1))).reshape(n, cin_p, lpad)
    xbuf = jnp.pad(xp, ((0, 0), (0, 0),
                        (off0, lbuf - lpad - off0))).astype(conv_dtype)

    # Both noise maps in the same padded 128-aligned layout, packed as [N,2,Lpad].
    def _pad_noise(nz):
        nz = nz.reshape(n, 1, h2, w2)
        return jnp.pad(nz, ((0, 0), (0, 0), (1, hp - h2 - 1),
                            (1, wpad - w2 - 1))).reshape(n, 1, lpad)
    noise = jnp.concatenate([_pad_noise(noise1), _pad_noise(noise2)],
                            axis=1).astype(jnp.float32)

    # Interior mask: 1 on the H2 x W2 image, 0 on the pad ring and lane slack.
    mask = jnp.pad(jnp.ones((h2, w2), jnp.float32),
                   ((1, hp - h2 - 1), (1, wpad - w2 - 1))).reshape(1, lpad)

    # StyleMod affine hoisted out of the kernel (one small batched GEMM / layer).
    def _style(wlat, blat, dlat):
        s = dlat @ wlat.T + blat[None, :]                # [N, 2*Cout]
        return s[:, :cout] + 1.0, s[:, cout:]            # (scale + 1, shift)
    sc1, sh1 = _style(params["wlat1"], params["blat1"], dlatents_in_range[:, 0])
    sc2, sh2 = _style(params["wlat2"], params["blat2"], dlatents_in_range[:, 1])

    # Packed per-(batch, channel) table: [b0, nw1, sc1, sh1, b1, nw2, sc2, sh2].
    bc = lambda v: jnp.broadcast_to(v[None, :], (n, cout))
    chvec = jnp.stack([bc(params["b0"]), bc(params["nw1"]), sc1, sh1,
                       bc(params["b1"]), bc(params["nw2"]), sc2, sh2],
                      axis=-1).astype(jnp.float32)       # [N, Cout, 8]

    # Weights reshaped so each kh row is one GEMM with the kw taps stacked
    # along the contraction dim: [3, Cout, 3*C], contraction index = kw*C + i.
    def _to_taps(w4d, ci_pad):
        co, ci, kh, kw = w4d.shape
        w4d = jnp.pad(w4d, ((0, 0), (0, ci_pad - ci), (0, 0), (0, 0)))
        t = jnp.transpose(w4d, (2, 3, 1, 0)).reshape(kh, kw * ci_pad, co)
        return jnp.transpose(t, (0, 2, 1)).astype(conv_dtype)
    w0t = _to_taps(params["w0_4d"], cin_p)               # [3, Cout, 3*Cin_p]
    w1t = _to_taps(params["w1_4d"], cout)                # [3, Cout, 3*Cout]

    kernel = _make_kernel(cout, wpad, lpad, lspan, lbuf, off0,
                          h2 * w2, h2 * wpad)

    out = pl.pallas_call(
        kernel,
        out_shape=jax.ShapeDtypeStruct((n, cout, h2 * wpad), jnp.float32),
        grid=(n,),
        in_specs=[
            pl.BlockSpec((1, cin_p, lbuf), lambda i: (i, 0, 0)),       # x buffer
            pl.BlockSpec((3, cout, 3 * cin_p), lambda i: (0, 0, 0)),   # conv0 taps
            pl.BlockSpec((3, cout, 3 * cout), lambda i: (0, 0, 0)),    # conv1 taps
            pl.BlockSpec((1, cout, 8), lambda i: (i, 0, 0)),           # channel table
            pl.BlockSpec((1, 2, lpad), lambda i: (i, 0, 0)),           # noise (both layers)
            pl.BlockSpec((1, lpad), lambda i: (0, 0)),                 # interior mask
        ],
        out_specs=pl.BlockSpec((1, cout, h2 * wpad), lambda i: (i, 0, 0)),
        scratch_shapes=[pltpu.VMEM((cout, lbuf), conv_dtype)],         # y1 stays in VMEM
        compiler_params=pltpu.CompilerParams(
            dimension_semantics=("parallel",),
            vmem_limit_bytes=_vmem_limit_bytes()),
    )(xbuf, w0t, w1t, chvec, noise, mask)

    # Drop the 1-pixel left ring column and the lane slack (cheap narrow crop;
    # the ring rows were already dropped in-kernel by a 128-aligned slice).
    return out.reshape(n, cout, h2, wpad)[:, :, :, 1:1 + w2]


# -----------------------------------------------------------------------------
# Parameters (equalized-lr scaling folded into the stored weights).
# -----------------------------------------------------------------------------
def init_params(key, in_channels, out_channels, dlatent_size):
    ks = 3
    keys = jax.random.split(key, 6)
    w_mul0 = math.sqrt(2.0) * (in_channels * ks * ks) ** -0.5
    w_mul1 = math.sqrt(2.0) * (out_channels * ks * ks) ** -0.5
    w0 = jax.random.normal(keys[0], (out_channels, in_channels, ks, ks),
                           jnp.float32) * w_mul0
    w1 = jax.random.normal(keys[1], (out_channels, out_channels, ks, ks),
                           jnp.float32) * w_mul1
    # NoiseLayer per-channel weights (default init is zeros; small values so
    # the noise path is actually exercised).
    nw1 = 0.1 * jax.random.normal(keys[2], (out_channels,), jnp.float32)
    nw2 = 0.1 * jax.random.normal(keys[3], (out_channels,), jnp.float32)
    # StyleMod equalized-lr linear (gain=1.0, use_wscale=True).
    lat_mul = dlatent_size ** -0.5
    wlat1 = jax.random.normal(keys[4], (2 * out_channels, dlatent_size),
                              jnp.float32) * lat_mul
    wlat2 = jax.random.normal(keys[5], (2 * out_channels, dlatent_size),
                              jnp.float32) * lat_mul
    return dict(
        w0_4d=w0, w1_4d=w1,
        b0=jnp.zeros((out_channels,), jnp.float32),
        b1=jnp.zeros((out_channels,), jnp.float32),
        nw1=nw1, nw2=nw2, wlat1=wlat1, wlat2=wlat2,
        blat1=jnp.zeros((2 * out_channels,), jnp.float32),
        blat2=jnp.zeros((2 * out_channels,), jnp.float32),
    )


# -----------------------------------------------------------------------------
# Pure-JAX reference (matches the PyTorch forward) for a correctness check.
# -----------------------------------------------------------------------------
def _ref_conv3x3(x, w):
    return jax.lax.conv_general_dilated(
        x, w, window_strides=(1, 1), padding=((1, 1), (1, 1)),
        dimension_numbers=("NCHW", "OIHW", "NCHW"))


def _ref_capa(x, nw, noise, wlat, blat, dlat):
    x = x + nw.reshape(1, -1, 1, 1) * noise
    x = jnp.maximum(x, 0.0)
    mean = x.mean(axis=(2, 3), keepdims=True)
    var = ((x - mean) ** 2).mean(axis=(2, 3), keepdims=True)
    x = (x - mean) / jnp.sqrt(var + 1e-5)
    style = dlat @ wlat.T + blat[None, :]
    c = x.shape[1]
    scale = style[:, :c].reshape(-1, c, 1, 1)
    shift = style[:, c:].reshape(-1, c, 1, 1)
    return x * (scale + 1.0) + shift


def gsynthesis_block_ref(x, dlatents, params, noise1, noise2):
    xu = jnp.repeat(jnp.repeat(x, 2, axis=2), 2, axis=3)
    y = _ref_conv3x3(xu, params["w0_4d"]) + params["b0"].reshape(1, -1, 1, 1)
    y = _ref_capa(y, params["nw1"], noise1, params["wlat1"], params["blat1"],
                  dlatents[:, 0])
    y = _ref_conv3x3(y, params["w1_4d"]) + params["b1"].reshape(1, -1, 1, 1)
    y = _ref_capa(y, params["nw2"], noise2, params["wlat2"], params["blat2"],
                  dlatents[:, 1])
    return y


if __name__ == "__main__":
    N, Cin, Cout, H, W, D = 2, 4, 8, 16, 16, 16

    key = jax.random.PRNGKey(0)
    k_x, k_d, k_n1, k_n2, k_p = jax.random.split(key, 5)

    x = jax.random.normal(k_x, (N, Cin, H, W), jnp.float32)
    dlatents_in_range = jax.random.normal(k_d, (N, 2, D), jnp.float32)
    noise1 = jax.random.normal(k_n1, (N, 1, 2 * H, 2 * W), jnp.float32)
    noise2 = jax.random.normal(k_n2, (N, 1, 2 * H, 2 * W), jnp.float32)

    params = init_params(k_p, Cin, Cout, D)

    # f32 MXU path here so the tight check vs. the f32 reference holds; set
    # conv_dtype=jnp.bfloat16 for 2x MXU throughput at production sizes
    # (f32 accumulation and f32 capa chain are kept either way).
    out = jax.jit(gsynthesis_block)(x, dlatents_in_range, params, noise1, noise2)
    out = jax.block_until_ready(out)

    ref = gsynthesis_block_ref(x, dlatents_in_range, params, noise1, noise2)
    assert out.shape == (N, Cout, 2 * H, 2 * W)
    assert jnp.allclose(out, ref, atol=1e-4, rtol=1e-4), "mismatch vs reference"

    print("KERNEL_OK")
</pallas_src>

<mosaic_0001>
module attributes {stable_mosaic.version = 11 : i64} {
  func.func @kernel(%arg0: i32, %arg1: memref<1x8x4864xf32, #tpu.memory_space<vmem>>, %arg2: memref<3x8x24xf32, #tpu.memory_space<vmem>>, %arg3: memref<3x8x24xf32, #tpu.memory_space<vmem>>, %arg4: memref<1x8x8xf32, #tpu.memory_space<vmem>>, %arg5: memref<1x2x4352xf32, #tpu.memory_space<vmem>>, %arg6: memref<1x4352xf32, #tpu.memory_space<vmem>>, %arg7: memref<1x8x4096xf32, #tpu.memory_space<vmem>>, %arg8: memref<8x4864xf32, #tpu.memory_space<vmem>>) attributes {dimension_semantics = [#tpu.dimension_semantics<parallel>], iteration_bounds = array<i64: 2>, scalar_prefetch = 0 : i64, scratch_operands = 1 : i64, tpu.core_type = #tpu.core_type<tc>, window_params = [{transform_indices = @transform_0, window_bounds = array<i64: 1, 8, 4864>}, {pipeline_mode = #tpu.pipeline_mode<synchronous>, transform_indices = @transform_1, window_bounds = array<i64: 3, 8, 24>}, {pipeline_mode = #tpu.pipeline_mode<synchronous>, transform_indices = @transform_2, window_bounds = array<i64: 3, 8, 24>}, {transform_indices = @transform_3, window_bounds = array<i64: 1, 8, 8>}, {transform_indices = @transform_4, window_bounds = array<i64: 1, 2, 4352>}, {pipeline_mode = #tpu.pipeline_mode<synchronous>, transform_indices = @transform_5, window_bounds = array<i64: 1, 4352>}, {transform_indices = @transform_6, window_bounds = array<i64: 1, 8, 4096>}]} {
    %c0 = arith.constant 0 : index
    %c0_0 = arith.constant 0 : index
    %0 = vector.load %arg6[%c0, %c0_0] : memref<1x4352xf32, #tpu.memory_space<vmem>>, vector<1x4352xf32>
    %c0_1 = arith.constant 0 : index
    %c0_2 = arith.constant 0 : index
    %c0_3 = arith.constant 0 : index
    %1 = vector.load %arg4[%c0_1, %c0_2, %c0_3] : memref<1x8x8xf32, #tpu.memory_space<vmem>>, vector<1x8x8xf32>
    %2 = vector.shape_cast %1 : vector<1x8x8xf32> to vector<8x8xf32>
    %c0_4 = arith.constant 0 : index
    %c0_5 = arith.constant 0 : index
    %c127 = arith.constant 127 : index
    %3 = vector.load %arg1[%c0_4, %c0_5, %c127] : memref<1x8x4864xf32, #tpu.memory_space<vmem>>, vector<1x8x4608xf32>
    %4 = vector.shape_cast %3 : vector<1x8x4608xf32> to vector<8x4608xf32>
    %c0_6 = arith.constant 0 : index
    %c0_7 = arith.constant 0 : index
    %c128 = arith.constant 128 : index
    %5 = vector.load %arg1[%c0_6, %c0_7, %c128] : memref<1x8x4864xf32, #tpu.memory_space<vmem>>, vector<1x8x4608xf32>
    %6 = vector.shape_cast %5 : vector<1x8x4608xf32> to vector<8x4608xf32>
    %c0_8 = arith.constant 0 : index
    %c0_9 = arith.constant 0 : index
    %c129 = arith.constant 129 : index
    %7 = vector.load %arg1[%c0_8, %c0_9, %c129] : memref<1x8x4864xf32, #tpu.memory_space<vmem>>, vector<1x8x4608xf32>
    %8 = vector.shape_cast %7 : vector<1x8x4608xf32> to vector<8x4608xf32>
    %9 = tpu.concatenate %4, %6, %8 in 0 : vector<8x4608xf32>, vector<8x4608xf32>, vector<8x4608xf32> -> vector<24x4608xf32>
    %cst = arith.constant 0.000000e+00 : f32
    %10 = vector.broadcast %cst : f32 to vector<8x4352xf32>
    %c0_10 = arith.constant 0 : index
    %c0_11 = arith.constant 0 : index
    %c0_12 = arith.constant 0 : index
    %11 = vector.load %arg2[%c0_10, %c0_11, %c0_12] : memref<3x8x24xf32, #tpu.memory_space<vmem>>, vector<1x8x24xf32>
    %12 = vector.shape_cast %11 : vector<1x8x24xf32> to vector<8x24xf32>
    %13 = vector.extract_strided_slice %9 {offsets = [0, 0], sizes = [24, 4352], strides = [1, 1]} : vector<24x4608xf32> to vector<24x4352xf32>
    %cst_13 = arith.constant dense<0.000000e+00> : vector<8x4352xf32>
    %14 = tpu.matmul %12, %13, %cst_13 {dimension_numbers = #tpu.dot_dimension_numbers<[1], [0], [0], [1], [0, 0, 1, 1], [], []>} : vector<8x24xf32>, vector<24x4352xf32>, vector<8x4352xf32> -> vector<8x4352xf32>
    %15 = arith.addf %10, %14 : vector<8x4352xf32>
    %c1 = arith.constant 1 : index
    %c0_14 = arith.constant 0 : index
    %c0_15 = arith.constant 0 : index
    %16 = vector.load %arg2[%c1, %c0_14, %c0_15] : memref<3x8x24xf32, #tpu.memory_space<vmem>>, vector<1x8x24xf32>
    %17 = vector.shape_cast %16 : vector<1x8x24xf32> to vector<8x24xf32>
    %18 = vector.extract_strided_slice %9 {offsets = [0, 128], sizes = [24, 4352], strides = [1, 1]} : vector<24x4608xf32> to vector<24x4352xf32>
    %cst_16 = arith.constant dense<0.000000e+00> : vector<8x4352xf32>
    %19 = tpu.matmul %17, %18, %cst_16 {dimension_numbers = #tpu.dot_dimension_numbers<[1], [0], [0], [1], [0, 0, 1, 1], [], []>} : vector<8x24xf32>, vector<24x4352xf32>, vector<8x4352xf32> -> vector<8x4352xf32>
    %20 = arith.addf %15, %19 : vector<8x4352xf32>
    %c2 = arith.constant 2 : index
    %c0_17 = arith.constant 0 : index
    %c0_18 = arith.constant 0 : index
    %21 = vector.load %arg2[%c2, %c0_17, %c0_18] : memref<3x8x24xf32, #tpu.memory_space<vmem>>, vector<1x8x24xf32>
    %22 = vector.shape_cast %21 : vector<1x8x24xf32> to vector<8x24xf32>
    %23 = vector.extract_strided_slice %9 {offsets = [0, 256], sizes = [24, 4352], strides = [1, 1]} : vector<24x4608xf32> to vector<24x4352xf32>
    %cst_19 = arith.constant dense<0.000000e+00> : vector<8x4352xf32>
    %24 = tpu.matmul %22, %23, %cst_19 {dimension_numbers = #tpu.dot_dimension_numbers<[1], [0], [0], [1], [0, 0, 1, 1], [], []>} : vector<8x24xf32>, vector<24x4352xf32>, vector<8x4352xf32> -> vector<8x4352xf32>
    %25 = arith.addf %20, %24 : vector<8x4352xf32>
    %26 = vector.extract_strided_slice %2 {offsets = [0, 0], sizes = [8, 1], strides = [1, 1]} : vector<8x8xf32> to vector<8x1xf32>
    %27 = vector.extract_strided_slice %2 {offsets = [0, 1], sizes = [8, 1], strides = [1, 1]} : vector<8x8xf32> to vector<8x1xf32>
    %c0_20 = arith.constant 0 : index
    %c0_21 = arith.constant 0 : index
    %c0_22 = arith.constant 0 : index
    %28 = vector.load %arg5[%c0_20, %c0_21, %c0_22] : memref<1x2x4352xf32, #tpu.memory_space<vmem>>, vector<1x1x4352xf32>
    %29 = vector.shape_cast %28 : vector<1x1x4352xf32> to vector<1x4352xf32>
    %30 = vector.extract_strided_slice %2 {offsets = [0, 2], sizes = [8, 1], strides = [1, 1]} : vector<8x8xf32> to vector<8x1xf32>
    %31 = vector.extract_strided_slice %2 {offsets = [0, 3], sizes = [8, 1], strides = [1, 1]} : vector<8x8xf32> to vector<8x1xf32>
    %32 = vector.broadcast %26 : vector<8x1xf32> to vector<8x4352xf32>
    %33 = arith.addf %25, %32 : vector<8x4352xf32>
    %34 = vector.broadcast %27 : vector<8x1xf32> to vector<8x4352xf32>
    %35 = vector.broadcast %29 : vector<1x4352xf32> to vector<8x4352xf32>
    %36 = arith.mulf %34, %35 : vector<8x4352xf32>
    %37 = arith.addf %33, %36 : vector<8x4352xf32>
    %cst_23 = arith.constant 0.000000e+00 : f32
    %38 = vector.broadcast %cst_23 : f32 to vector<8x4352xf32>
    %39 = arith.maximumf %37, %38 : vector<8x4352xf32>
    %40 = vector.broadcast %0 : vector<1x4352xf32> to vector<8x4352xf32>
    %41 = arith.mulf %39, %40 : vector<8x4352xf32>
    %cst_24 = arith.constant dense<0.000000e+00> : vector<8xf32>
    %42 = vector.multi_reduction <add>, %41, %cst_24 [1] : vector<8x4352xf32> to vector<8xf32>
    %43 = vector.shape_cast %42 : vector<8xf32> to vector<8x1xf32>
    %44 = arith.mulf %41, %41 : vector<8x4352xf32>
    %cst_25 = arith.constant dense<0.000000e+00> : vector<8xf32>
    %45 = vector.multi_reduction <add>, %44, %cst_25 [1] : vector<8x4352xf32> to vector<8xf32>
    %46 = vector.shape_cast %45 : vector<8xf32> to vector<8x1xf32>
    %cst_26 = arith.constant 9.765625E-4 : f32
    %47 = vector.broadcast %cst_26 : f32 to vector<8x1xf32>
    %48 = arith.mulf %43, %47 : vector<8x1xf32>
    %cst_27 = arith.constant 9.765625E-4 : f32
    %49 = vector.broadcast %cst_27 : f32 to vector<8x1xf32>
    %50 = arith.mulf %46, %49 : vector<8x1xf32>
    %51 = arith.mulf %48, %48 : vector<8x1xf32>
    %52 = arith.subf %50, %51 : vector<8x1xf32>
    %cst_28 = arith.constant 0.000000e+00 : f32
    %53 = vector.broadcast %cst_28 : f32 to vector<8x1xf32>
    %54 = arith.maximumf %52, %53 : vector<8x1xf32>
    %cst_29 = arith.constant 9.99999974E-6 : f32
    %55 = vector.broadcast %cst_29 : f32 to vector<8x1xf32>
    %56 = arith.addf %54, %55 : vector<8x1xf32>
    %57 = math.rsqrt %56 : vector<8x1xf32>
    %58 = arith.mulf %30, %57 : vector<8x1xf32>
    %59 = arith.mulf %48, %58 : vector<8x1xf32>
    %60 = arith.subf %31, %59 : vector<8x1xf32>
    %61 = vector.broadcast %58 : vector<8x1xf32> to vector<8x4352xf32>
    %62 = arith.mulf %39, %61 : vector<8x4352xf32>
    %63 = vector.broadcast %60 : vector<8x1xf32> to vector<8x4352xf32>
    %64 = arith.addf %62, %63 : vector<8x4352xf32>
    %cst_30 = arith.constant 0.000000e+00 : f32
    %65 = vector.broadcast %cst_30 : f32 to vector<8x256xf32>
    %c0_31 = arith.constant 0 : index
    %c0_32 = arith.constant 0 : index
    %66 = vector.load %arg8[%c0_31, %c0_32] : memref<8x4864xf32, #tpu.memory_space<vmem>>, vector<8x256xf32>
    tpu.vector_store %arg8[%c0_31, %c0_32], %65 {strides = array<i32>} : memref<8x4864xf32, #tpu.memory_space<vmem>>, vector<8x256xf32>,
    %cst_33 = arith.constant 0.000000e+00 : f32
    %67 = vector.broadcast %cst_33 : f32 to vector<8x256xf32>
    %c0_34 = arith.constant 0 : index
    %c4608 = arith.constant 4608 : index
    %68 = vector.load %arg8[%c0_34, %c4608] : memref<8x4864xf32, #tpu.memory_space<vmem>>, vector<8x256xf32>
    tpu.vector_store %arg8[%c0_34, %c4608], %67 {strides = array<i32>} : memref<8x4864xf32, #tpu.memory_space<vmem>>, vector<8x256xf32>,
    %69 = vector.broadcast %0 : vector<1x4352xf32> to vector<8x4352xf32>
    %70 = arith.mulf %64, %69 : vector<8x4352xf32>
    %c0_35 = arith.constant 0 : index
    %c256 = arith.constant 256 : index
    %71 = vector.load %arg8[%c0_35, %c256] : memref<8x4864xf32, #tpu.memory_space<vmem>>, vector<8x4352xf32>
    tpu.vector_store %arg8[%c0_35, %c256], %70 {strides = array<i32>} : memref<8x4864xf32, #tpu.memory_space<vmem>>, vector<8x4352xf32>,
    %c0_36 = arith.constant 0 : index
    %c127_37 = arith.constant 127 : index
    %72 = vector.load %arg8[%c0_36, %c127_37] : memref<8x4864xf32, #tpu.memory_space<vmem>>, vector<8x4608xf32>
    %c0_38 = arith.constant 0 : index
    %c128_39 = arith.constant 128 : index
    %73 = vector.load %arg8[%c0_38, %c128_39] : memref<8x4864xf32, #tpu.memory_space<vmem>>, vector<8x4608xf32>
    %c0_40 = arith.constant 0 : index
    %c129_41 = arith.constant 129 : index
    %74 = vector.load %arg8[%c0_40, %c129_41] : memref<8x4864xf32, #tpu.memory_space<vmem>>, vector<8x4608xf32>
    %75 = tpu.concatenate %72, %73, %74 in 0 : vector<8x4608xf32>, vector<8x4608xf32>, vector<8x4608xf32> -> vector<24x4608xf32>
    %cst_42 = arith.constant 0.000000e+00 : f32
    %76 = vector.broadcast %cst_42 : f32 to vector<8x4352xf32>
    %c0_43 = arith.constant 0 : index
    %c0_44 = arith.constant 0 : index
    %c0_45 = arith.constant 0 : index
    %77 = vector.load %arg3[%c0_43, %c0_44, %c0_45] : memref<3x8x24xf32, #tpu.memory_space<vmem>>, vector<1x8x24xf32>
    %78 = vector.shape_cast %77 : vector<1x8x24xf32> to vector<8x24xf32>
    %79 = vector.extract_strided_slice %75 {offsets = [0, 0], sizes = [24, 4352], strides = [1, 1]} : vector<24x4608xf32> to vector<24x4352xf32>
    %cst_46 = arith.constant dense<0.000000e+00> : vector<8x4352xf32>
    %80 = tpu.matmul %78, %79, %cst_46 {dimension_numbers = #tpu.dot_dimension_numbers<[1], [0], [0], [1], [0, 0, 1, 1], [], []>} : vector<8x24xf32>, vector<24x4352xf32>, vector<8x4352xf32> -> vector<8x4352xf32>
    %81 = arith.addf %76, %80 : vector<8x4352xf32>
    %c1_47 = arith.constant 1 : index
    %c0_48 = arith.constant 0 : index
    %c0_49 = arith.constant 0 : index
    %82 = vector.load %arg3[%c1_47, %c0_48, %c0_49] : memref<3x8x24xf32, #tpu.memory_space<vmem>>, vector<1x8x24xf32>
    %83 = vector.shape_cast %82 : vector<1x8x24xf32> to vector<8x24xf32>
    %84 = vector.extract_strided_slice %75 {offsets = [0, 128], sizes = [24, 4352], strides = [1, 1]} : vector<24x4608xf32> to vector<24x4352xf32>
    %cst_50 = arith.constant dense<0.000000e+00> : vector<8x4352xf32>
    %85 = tpu.matmul %83, %84, %cst_50 {dimension_numbers = #tpu.dot_dimension_numbers<[1], [0], [0], [1], [0, 0, 1, 1], [], []>} : vector<8x24xf32>, vector<24x4352xf32>, vector<8x4352xf32> -> vector<8x4352xf32>
    %86 = arith.addf %81, %85 : vector<8x4352xf32>
    %c2_51 = arith.constant 2 : index
    %c0_52 = arith.constant 0 : index
    %c0_53 = arith.constant 0 : index
    %87 = vector.load %arg3[%c2_51, %c0_52, %c0_53] : memref<3x8x24xf32, #tpu.memory_space<vmem>>, vector<1x8x24xf32>
    %88 = vector.shape_cast %87 : vector<1x8x24xf32> to vector<8x24xf32>
    %89 = vector.extract_strided_slice %75 {offsets = [0, 256], sizes = [24, 4352], strides = [1, 1]} : vector<24x4608xf32> to vector<24x4352xf32>
    %cst_54 = arith.constant dense<0.000000e+00> : vector<8x4352xf32>
    %90 = tpu.matmul %88, %89, %cst_54 {dimension_numbers = #tpu.dot_dimension_numbers<[1], [0], [0], [1], [0, 0, 1, 1], [], []>} : vector<8x24xf32>, vector<24x4352xf32>, vector<8x4352xf32> -> vector<8x4352xf32>
    %91 = arith.addf %86, %90 : vector<8x4352xf32>
    %92 = vector.extract_strided_slice %2 {offsets = [0, 4], sizes = [8, 1], strides = [1, 1]} : vector<8x8xf32> to vector<8x1xf32>
    %93 = vector.extract_strided_slice %2 {offsets = [0, 5], sizes = [8, 1], strides = [1, 1]} : vector<8x8xf32> to vector<8x1xf32>
    %c0_55 = arith.constant 0 : index
    %c1_56 = arith.constant 1 : index
    %c0_57 = arith.constant 0 : index
    %94 = vector.load %arg5[%c0_55, %c1_56, %c0_57] : memref<1x2x4352xf32, #tpu.memory_space<vmem>>, vector<1x1x4352xf32>
    %95 = vector.shape_cast %94 : vector<1x1x4352xf32> to vector<1x4352xf32>
    %96 = vector.extract_strided_slice %2 {offsets = [0, 6], sizes = [8, 1], strides = [1, 1]} : vector<8x8xf32> to vector<8x1xf32>
    %97 = vector.extract_strided_slice %2 {offsets = [0, 7], sizes = [8, 1], strides = [1, 1]} : vector<8x8xf32> to vector<8x1xf32>
    %98 = vector.broadcast %92 : vector<8x1xf32> to vector<8x4352xf32>
    %99 = arith.addf %91, %98 : vector<8x4352xf32>
    %100 = vector.broadcast %93 : vector<8x1xf32> to vector<8x4352xf32>
    %101 = vector.broadcast %95 : vector<1x4352xf32> to vector<8x4352xf32>
    %102 = arith.mulf %100, %101 : vector<8x4352xf32>
    %103 = arith.addf %99, %102 : vector<8x4352xf32>
    %cst_58 = arith.constant 0.000000e+00 : f32
    %104 = vector.broadcast %cst_58 : f32 to vector<8x4352xf32>
    %105 = arith.maximumf %103, %104 : vector<8x4352xf32>
    %106 = vector.broadcast %0 : vector<1x4352xf32> to vector<8x4352xf32>
    %107 = arith.mulf %105, %106 : vector<8x4352xf32>
    %cst_59 = arith.constant dense<0.000000e+00> : vector<8xf32>
    %108 = vector.multi_reduction <add>, %107, %cst_59 [1] : vector<8x4352xf32> to vector<8xf32>
    %109 = vector.shape_cast %108 : vector<8xf32> to vector<8x1xf32>
    %110 = arith.mulf %107, %107 : vector<8x4352xf32>
    %cst_60 = arith.constant dense<0.000000e+00> : vector<8xf32>
    %111 = vector.multi_reduction <add>, %110, %cst_60 [1] : vector<8x4352xf32> to vector<8xf32>
    %112 = vector.shape_cast %111 : vector<8xf32> to vector<8x1xf32>
    %cst_61 = arith.constant 9.765625E-4 : f32
    %113 = vector.broadcast %cst_61 : f32 to vector<8x1xf32>
    %114 = arith.mulf %109, %113 : vector<8x1xf32>
    %cst_62 = arith.constant 9.765625E-4 : f32
    %115 = vector.broadcast %cst_62 : f32 to vector<8x1xf32>
    %116 = arith.mulf %112, %115 : vector<8x1xf32>
    %117 = arith.mulf %114, %114 : vector<8x1xf32>
    %118 = arith.subf %116, %117 : vector<8x1xf32>
    %cst_63 = arith.constant 0.000000e+00 : f32
    %119 = vector.broadcast %cst_63 : f32 to vector<8x1xf32>
    %120 = arith.maximumf %118, %119 : vector<8x1xf32>
    %cst_64 = arith.constant 9.99999974E-6 : f32
    %121 = vector.broadcast %cst_64 : f32 to vector<8x1xf32>
    %122 = arith.addf %120, %121 : vector<8x1xf32>
    %123 = math.rsqrt %122 : vector<8x1xf32>
    %124 = arith.mulf %96, %123 : vector<8x1xf32>
    %125 = arith.mulf %114, %124 : vector<8x1xf32>
    %126 = arith.subf %97, %125 : vector<8x1xf32>
    %127 = vector.broadcast %124 : vector<8x1xf32> to vector<8x4352xf32>
    %128 = arith.mulf %105, %127 : vector<8x4352xf32>
    %129 = vector.broadcast %126 : vector<8x1xf32> to vector<8x4352xf32>
    %130 = arith.addf %128, %129 : vector<8x4352xf32>
    %131 = vector.extract_strided_slice %130 {offsets = [0, 128], sizes = [8, 4096], strides = [1, 1]} : vector<8x4352xf32> to vector<8x4096xf32>
    %c0_65 = arith.constant 0 : index
    %c0_66 = arith.constant 0 : index
    %c0_67 = arith.constant 0 : index
    %132 = vector.load %arg7[%c0_65, %c0_66, %c0_67] : memref<1x8x4096xf32, #tpu.memory_space<vmem>>, vector<1x8x4096xf32>
    %133 = vector.shape_cast %132 : vector<1x8x4096xf32> to vector<8x4096xf32>
    %134 = vector.shape_cast %131 : vector<8x4096xf32> to vector<1x8x4096xf32>
    tpu.vector_store %arg7[%c0_65, %c0_66, %c0_67], %134 {strides = array<i32>} : memref<1x8x4096xf32, #tpu.memory_space<vmem>>, vector<1x8x4096xf32>,
    return
  }
  func.func @transform_0(%arg0: i32) -> (i32, i32, i32) {
    %c0_i32 = arith.constant 0 : i32
    %c0_i32_0 = arith.constant 0 : i32
    %c0_i32_1 = arith.constant 0 : i32
    return %arg0, %c0_i32, %c0_i32_0 : i32, i32, i32
  }
  func.func @transform_1(%arg0: i32) -> (i32, i32, i32) {
    %c0_i32 = arith.constant 0 : i32
    %c0_i32_0 = arith.constant 0 : i32
    %c0_i32_1 = arith.constant 0 : i32
    %c0_i32_2 = arith.constant 0 : i32
    return %c0_i32, %c0_i32_0, %c0_i32_1 : i32, i32, i32
  }
  func.func @transform_2(%arg0: i32) -> (i32, i32, i32) {
    %c0_i32 = arith.constant 0 : i32
    %c0_i32_0 = arith.constant 0 : i32
    %c0_i32_1 = arith.constant 0 : i32
    %c0_i32_2 = arith.constant 0 : i32
    return %c0_i32, %c0_i32_0, %c0_i32_1 : i32, i32, i32
  }
  func.func @transform_3(%arg0: i32) -> (i32, i32, i32) {
    %c0_i32 = arith.constant 0 : i32
    %c0_i32_0 = arith.constant 0 : i32
    %c0_i32_1 = arith.constant 0 : i32
    return %arg0, %c0_i32, %c0_i32_0 : i32, i32, i32
  }
  func.func @transform_4(%arg0: i32) -> (i32, i32, i32) {
    %c0_i32 = arith.constant 0 : i32
    %c0_i32_0 = arith.constant 0 : i32
    %c0_i32_1 = arith.constant 0 : i32
    return %arg0, %c0_i32, %c0_i32_0 : i32, i32, i32
  }
  func.func @transform_5(%arg0: i32) -> (i32, i32) {
    %c0_i32 = arith.constant 0 : i32
    %c0_i32_0 = arith.constant 0 : i32
    %c0_i32_1 = arith.constant 0 : i32
    return %c0_i32, %c0_i32_0 : i32, i32
  }
  func.func @transform_6(%arg0: i32) -> (i32, i32, i32) {
    %c0_i32 = arith.constant 0 : i32
    %c0_i32_0 = arith.constant 0 : i32
    %c0_i32_1 = arith.constant 0 : i32
    return %arg0, %c0_i32, %c0_i32_0 : i32, i32, i32
  }
}

</mosaic_0001>

<llo_original>
// kernel: gsynthesis_block.1
$region0: #{gsynthesis_block.1}
  #allocation0 [shape = 'u32[]', space=smem, size = 0x4, offset = 0x4, fixed_abs, tag = 'smem constant byte address 0x4 - core index']
  #allocation1 [shape = 'u32[144,128]{1,0:T(1,128)}', space=vmem, size = 0x12000, scoped, tag = 'internal scratch']
  #allocation2 [shape = 'f32[8,4864]{1,0:T(8,128)}', space=vmem, size = 0x26000, scoped, tag = 'scratch operand']
  %s0 = inlined_call_operand.vmem [shape: f32[2,8,4864], index: 0, kind: input, shape index: {}]
  %s1 = inlined_call_operand.vmem [shape: f32[3,8,24], index: 1, kind: input, shape index: {}]
  %s2 = inlined_call_operand.vmem [shape: f32[3,8,24], index: 2, kind: input, shape index: {}]
  %s3 = inlined_call_operand.vmem [shape: f32[2,8,8], index: 3, kind: input, shape index: {}]
  %s4 = inlined_call_operand.vmem [shape: f32[2,2,4352], index: 4, kind: input, shape index: {}]
  %s5 = inlined_call_operand.vmem [shape: f32[1,4352], index: 5, kind: input, shape index: {}]
  %s6 = inlined_call_operand.vmem [shape: f32[2,8,4096], index: 6, kind: output, shape index: {}]
  %s7 = sld [smem:[#allocation0]]
  $region57: #{gsynthesis_block.1} parent=0
    _
  %s9 = ssub.s32 1, %s7
  %s10 = scalar_select 0, %s9, %s7
  loop: start=0, step=1, limit=4
  $region2: #{gsynthesis_block.1} parent=0 // loop_pre_header
    _
  $region3: #{gsynthesis_block.1} parent=0 // loop_header
    %s12 = sphi 0, %s16
    %p13 = scmp.ge.s32.totalorder %s12, 4
    %s22 = sphi 0, %s24
    %s25 = sphi 0, %s22
    %s26 = sphi 0, %s25
    %s42 = sphi 0, %s26
    %s46 = sphi 0, %s46
    %s48 = sphi 0, %s46
    %s49 = sphi 0, %s48
    %s63 = sphi 0, %s49
    %s67 = sphi 0, %s67
    %s69 = sphi 0, %s67
    %s70 = sphi 0, %s69
    %s84 = sphi 0, %s70
    %s90 = sphi 0, %s92
    %s93 = sphi 0, %s90
    %s94 = sphi 0, %s93
    %s110 = sphi 0, %s94
    %s116 = sphi 0, %s118
    %s119 = sphi 0, %s116
    %s120 = sphi 0, %s119
    %s136 = sphi 0, %s120
    %s140 = sphi 0, %s140
    %s142 = sphi 0, %s140
    %s143 = sphi 0, %s142
    %s157 = sphi 0, %s143
    %s163 = sphi 0, %s165
    %s166 = sphi 0, %s163
    %s167 = sphi 0, %s166
    %s183 = sphi 0, %s167
  $region4: #{gsynthesis_block.1} parent=0 // loop_header_branch
    %15 = sbr.rel (%p13) target = $region8
  $region5: #{gsynthesis_block.1} parent=0 // loop_body
    %s17 = ssub.s32 %s12, 1
    %s18 = ssub.s32 %s12, 2
    %s19 = sadd.s32 %s12, 1
    %s20 = ssub.s32 %s12, %s19
    %p21 = scmp.eq.s32.totalorder %s20, 0
    %s23 = sadd.s32 %s22, 1
    %s24 = scalar_select %p21, %s22, %s23
    %p27 = pneg %p21
    %p28 = scmp.eq.s32.totalorder %s12, 1
    %p29 = por %p27, %p28
    %p30 = scmp.ne.s32.totalorder %s22, %s25
    %p31 = scmp.eq.s32.totalorder %s12, 0
    %p32 = por %p30, %p31
    %p33 = scmp.ne.s32.totalorder %s22, %s25
    %p34 = scmp.eq.s32.totalorder %s17, 1
    %p35 = por %p33, %p34
    %p36 = scmp.ne.s32.totalorder %s25, %s26
    %p37 = scmp.eq.s32.totalorder %s17, 0
    %p38 = por %p36, %p37
    %p39 = scmp.ne.s32.totalorder %s25, %s26
    %p40 = scmp.eq.s32.totalorder %s18, 1
    %p41 = por %p39, %p40
    %p43 = scmp.ne.s32.totalorder %s26, %s42
    %p44 = scmp.eq.s32.totalorder %s18, 0
    %p45 = por %p43, %p44
    %s47 = sadd.s32 %s46, 1
    %p50 = scmp.eq.s32.totalorder %s12, 1
    %p51 = scmp.ne.s32.totalorder %s46, %s48
    %p52 = scmp.eq.s32.totalorder %s12, 0
    %p53 = por %p51, %p52
    %p54 = scmp.ne.s32.totalorder %s46, %s48
    %p55 = scmp.eq.s32.totalorder %s17, 1
    %p56 = por %p54, %p55
    %p57 = scmp.ne.s32.totalorder %s48, %s49
    %p58 = scmp.eq.s32.totalorder %s17, 0
    %p59 = por %p57, %p58
    %p60 = scmp.ne.s32.totalorder %s48, %s49
    %p61 = scmp.eq.s32.totalorder %s18, 1
    %p62 = por %p60, %p61
    %p64 = scmp.ne.s32.totalorder %s49, %s63
    %p65 = scmp.eq.s32.totalorder %s18, 0
    %p66 = por %p64, %p65
    %s68 = sadd.s32 %s67, 1
    %p71 = scmp.eq.s32.totalorder %s12, 1
    %p72 = scmp.ne.s32.totalorder %s67, %s69
    %p73 = scmp.eq.s32.totalorder %s12, 0
    %p74 = por %p72, %p73
    %p75 = scmp.ne.s32.totalorder %s67, %s69
    %p76 = scmp.eq.s32.totalorder %s17, 1
    %p77 = por %p75, %p76
    %p78 = scmp.ne.s32.totalorder %s69, %s70
    %p79 = scmp.eq.s32.totalorder %s17, 0
    %p80 = por %p78, %p79
    %p81 = scmp.ne.s32.totalorder %s69, %s70
    %p82 = scmp.eq.s32.totalorder %s18, 1
    %p83 = por %p81, %p82
    %p85 = scmp.ne.s32.totalorder %s70, %s84
    %p86 = scmp.eq.s32.totalorder %s18, 0
    %p87 = por %p85, %p86
    %s88 = ssub.s32 %s12, %s19
    %p89 = scmp.eq.s32.totalorder %s88, 0
    %s91 = sadd.s32 %s90, 1
    %s92 = scalar_select %p89, %s90, %s91
    %p95 = pneg %p89
    %p96 = scmp.eq.s32.totalorder %s12, 1
    %p97 = por %p95, %p96
    %p98 = scmp.ne.s32.totalorder %s90, %s93
    %p99 = scmp.eq.s32.totalorder %s12, 0
    %p100 = por %p98, %p99
    %p101 = scmp.ne.s32.totalorder %s90, %s93
    %p102 = scmp.eq.s32.totalorder %s17, 1
    %p103 = por %p101, %p102
    %p104 = scmp.ne.s32.totalorder %s93, %s94
    %p105 = scmp.eq.s32.totalorder %s17, 0
    %p106 = por %p104, %p105
    %p107 = scmp.ne.s32.totalorder %s93, %s94
    %p108 = scmp.eq.s32.totalorder %s18, 1
    %p109 = por %p107, %p108
    %p111 = scmp.ne.s32.totalorder %s94, %s110
    %p112 = scmp.eq.s32.totalorder %s18, 0
    %p113 = por %p111, %p112
    %s114 = ssub.s32 %s12, %s19
    %p115 = scmp.eq.s32.totalorder %s114, 0
    %s117 = sadd.s32 %s116, 1
    %s118 = scalar_select %p115, %s116, %s117
    %p121 = pneg %p115
    %p122 = scmp.eq.s32.totalorder %s12, 1
    %p123 = por %p121, %p122
    %p124 = scmp.ne.s32.totalorder %s116, %s119
    %p125 = scmp.eq.s32.totalorder %s12, 0
    %p126 = por %p124, %p125
    %p127 = scmp.ne.s32.totalorder %s116, %s119
    %p128 = scmp.eq.s32.totalorder %s17, 1
    %p129 = por %p127, %p128
    %p130 = scmp.ne.s32.totalorder %s119, %s120
    %p131 = scmp.eq.s32.totalorder %s17, 0
    %p132 = por %p130, %p131
    %p133 = scmp.ne.s32.totalorder %s119, %s120
    %p134 = scmp.eq.s32.totalorder %s18, 1
    %p135 = por %p133, %p134
    %p137 = scmp.ne.s32.totalorder %s120, %s136
    %p138 = scmp.eq.s32.totalorder %s18, 0
    %p139 = por %p137, %p138
    %s141 = sadd.s32 %s140, 1
    %p144 = scmp.eq.s32.totalorder %s12, 1
    %p145 = scmp.ne.s32.totalorder %s140, %s142
    %p146 = scmp.eq.s32.totalorder %s12, 0
    %p147 = por %p145, %p146
    %p148 = scmp.ne.s32.totalorder %s140, %s142
    %p149 = scmp.eq.s32.totalorder %s17, 1
    %p150 = por %p148, %p149
    %p151 = scmp.ne.s32.totalorder %s142, %s143
    %p152 = scmp.eq.s32.totalorder %s17, 0
    %p153 = por %p151, %p152
    %p154 = scmp.ne.s32.totalorder %s142, %s143
    %p155 = scmp.eq.s32.totalorder %s18, 1
    %p156 = por %p154, %p155
    %p158 = scmp.ne.s32.totalorder %s143, %s157
    %p159 = scmp.eq.s32.totalorder %s18, 0
    %p160 = por %p158, %p159
    %s161 = ssub.s32 %s12, %s19
    %p162 = scmp.eq.s32.totalorder %s161, 0
    %s164 = sadd.s32 %s163, 1
    %s165 = scalar_select %p162, %s163, %s164
    %p168 = pneg %p162
    %p169 = scmp.eq.s32.totalorder %s12, 1
    %p170 = por %p168, %p169
    %p171 = scmp.ne.s32.totalorder %s163, %s166
    %p172 = scmp.eq.s32.totalorder %s12, 0
    %p173 = por %p171, %p172
    %p174 = scmp.ne.s32.totalorder %s163, %s166
    %p175 = scmp.eq.s32.totalorder %s17, 1
    %p176 = por %p174, %p175
    %p177 = scmp.ne.s32.totalorder %s166, %s167
    %p178 = scmp.eq.s32.totalorder %s17, 0
    %p179 = por %p177, %p178
    %p180 = scmp.ne.s32.totalorder %s166, %s167
    %p181 = scmp.eq.s32.totalorder %s18, 1
    %p182 = por %p180, %p181
    %p184 = scmp.ne.s32.totalorder %s167, %s183
    %p185 = scmp.eq.s32.totalorder %s18, 0
    %p186 = por %p184, %p185
    %p187 = scmp.le.s32.totalorder 1, %s12
    %p188 = scmp.lt.s32.totalorder %s12, 3
    %p189 = pnand %p187, %p188
    %p190 = pneg %p189
    // Predicated region
    $region9: #{gsynthesis_block.1} parent=5 // pred_check
      _
    $region10: #{gsynthesis_block.1} parent=5 // pred_check_branch
      %192 = sbr.rel (%p189) target = $region12
    $region11: #{gsynthesis_block.1} parent=5 // pred_region
      %s193 = ssub.s32 %s12, 1
      // Predicated region
      $region13: #{gsynthesis_block.1} parent=11 // pred_check
        %p194 = pneg %p59
      $region14: #{gsynthesis_block.1} parent=11 // pred_check_branch
        %196 = sbr.rel (%p194) target = $region16
      $region15: #{gsynthesis_block.1} parent=11 // pred_region
        _
      $region16: #{gsynthesis_block.1} parent=11 // pred_fallthru
        _
      // Predicated region
      $region17: #{gsynthesis_block.1} parent=11 // pred_check
        %p197 = pneg %p80
      $region18: #{gsynthesis_block.1} parent=11 // pred_check_branch
        %199 = sbr.rel (%p197) target = $region20
      $region19: #{gsynthesis_block.1} parent=11 // pred_region
        _
      $region20: #{gsynthesis_block.1} parent=11 // pred_fallthru
        _
      // Predicated region
      $region21: #{gsynthesis_block.1} parent=11 // pred_check
        %p200 = pneg %p153
      $region22: #{gsynthesis_block.1} parent=11 // pred_check_branch
        %202 = sbr.rel (%p200) target = $region24
      $region23: #{gsynthesis_block.1} parent=11 // pred_region
        _
      $region24: #{gsynthesis_block.1} parent=11 // pred_fallthru
        _
    $region12: #{gsynthesis_block.1} parent=5 // pred_fallthru
      _
    %p203 = scmp.lt.s32.totalorder %s12, 2
    // Predicated region
    $region25: #{gsynthesis_block.1} parent=5 // pred_check
      %p204 = pneg %p203
    $region26: #{gsynthesis_block.1} parent=5 // pred_check_branch
      %206 = sbr.rel (%p204) target = $region28
    $region27: #{gsynthesis_block.1} parent=5 // pred_region
      // Predicated region
      $region29: #{gsynthesis_block.1} parent=27 // pred_check
        %p207 = pneg %p32
      $region30: #{gsynthesis_block.1} parent=27 // pred_check_branch
        %209 = sbr.rel (%p207) target = $region32
      $region31: #{gsynthesis_block.1} parent=27 // pred_region
        %p210 = scmp.lt.s32.totalorder %s12, 1
        %s211 = scalar_select %p210, %s12, 1
        %s212 = smul.addr %s211, 38
        %s213 = smul.addr %s212, 8
        %s214 = scalar_lea.vmem %s0, %s213
      $region32: #{gsynthesis_block.1} parent=27 // pred_fallthru
        _
      // Predicated region
      $region33: #{gsynthesis_block.1} parent=27 // pred_check
        %p215 = pneg %p100
      $region34: #{gsynthesis_block.1} parent=27 // pred_check_branch
        %217 = sbr.rel (%p215) target = $region36
      $region35: #{gsynthesis_block.1} parent=27 // pred_region
        %p218 = scmp.lt.s32.totalorder %s12, 1
        %s219 = scalar_select %p218, %s12, 1
        %s220 = smul.addr %s219, 8
        %s221 = scalar_lea.vmem %s3, %s220
      $region36: #{gsynthesis_block.1} parent=27 // pred_fallthru
        _
      // Predicated region
      $region37: #{gsynthesis_block.1} parent=27 // pred_check
        %p222 = pneg %p126
      $region38: #{gsynthesis_block.1} parent=27 // pred_check_branch
        %224 = sbr.rel (%p222) target = $region40
      $region39: #{gsynthesis_block.1} parent=27 // pred_region
        %p225 = scmp.lt.s32.totalorder %s12, 1
        %s226 = scalar_select %p225, %s12, 1
        %s227 = smul.addr %s226, 34
        %s228 = smul.addr %s227, 2
        %s229 = scalar_lea.vmem %s4, %s228
      $region40: #{gsynthesis_block.1} parent=27 // pred_fallthru
        _
    $region28: #{gsynthesis_block.1} parent=5 // pred_fallthru
      _
    %p230 = scmp.le.s32.totalorder 1, %s12
    %p231 = scmp.lt.s32.totalorder %s12, 3
    %p232 = pnand %p230, %p231
    %p233 = pneg %p232
    // Predicated region
    $region41: #{gsynthesis_block.1} parent=5 // pred_check
      _
    $region42: #{gsynthesis_block.1} parent=5 // pred_check_branch
      %235 = sbr.rel (%p232) target = $region44
    $region43: #{gsynthesis_block.1} parent=5 // pred_region
      %s236 = ssub.s32 %s12, 1
      %p237 = scmp.lt.s32.totalorder %s17, 1
      %s238 = scalar_select %p237, %s17, 1
      %s239 = smul.addr %s238, 38
      %s240 = smul.addr %s239, 8
      %s241 = scalar_lea.vmem %s0, %s240
      %p242 = pneg %p38
      %p243 = pneg %p35
      %p244 = pneg %p59
      %p245 = pneg %p56
      %p246 = pneg %p80
      %p247 = pneg %p77
      %p248 = scmp.lt.s32.totalorder %s17, 1
      %s249 = scalar_select %p248, %s17, 1
      %s250 = smul.addr %s249, 8
      %s251 = scalar_lea.vmem %s3, %s250
      %p252 = pneg %p106
      %p253 = pneg %p103
      %p254 = scmp.lt.s32.totalorder %s17, 1
      %s255 = scalar_select %p254, %s17, 1
      %s256 = smul.addr %s255, 34
      %s257 = smul.addr %s256, 2
      %s258 = scalar_lea.vmem %s4, %s257
      %p259 = pneg %p132
      %p260 = pneg %p129
      %p261 = pneg %p153
      %p262 = pneg %p150
      %p263 = pneg %p179
      %p264 = pneg %p176
      %p265 = scmp.lt.s32.totalorder %s17, 1
      %s266 = scalar_select %p265, %s17, 1
      %s267 = smul.addr %s266, 32
      %s268 = smul.addr %s267, 8
      %s269 = scalar_lea.vmem %s6, %s268
      %p270 = scmp.lt.s32.totalorder %s17, 1
      %s271 = scalar_select %p270, %s17, 1
      %s272 = smul.addr %s271, 38
      %s273 = smul.addr %s272, 8
      %s274 = scalar_lea.vmem %s0, %s273
      %p275 = scmp.lt.s32.totalorder %s17, 1
      %s276 = scalar_select %p275, %s17, 1
      %s277 = smul.addr %s276, 8
      %s278 = scalar_lea.vmem %s3, %s277
      %p279 = scmp.lt.s32.totalorder %s17, 1
      %s280 = scalar_select %p279, %s17, 1
      %s281 = smul.addr %s280, 34
      %s282 = smul.addr %s281, 2
      %s283 = scalar_lea.vmem %s4, %s282
      %p284 = scmp.lt.s32.totalorder %s17, 1
      %s285 = scalar_select %p284, %s17, 1
      %s286 = smul.addr %s285, 32
      %s287 = smul.addr %s286, 8
      %s288 = scalar_lea.vmem %s6, %s287
      %v289 = vld [vmem:[%s5] sm:$0xff]
      %v290 = vld [vmem:[%s5 + $0x8] sm:$0xff]
      %v291 = vld [vmem:[%s5 + $0x10] sm:$0xff]
      %v292 = vld [vmem:[%s5 + $0x18] sm:$0xff]
      %v293 = vld [vmem:[%s5 + $0x20] sm:$0x3]
      %v294 = vld [vmem:[%s278] sm:$0xff]
      %v295 = vld [vmem:[%s274] sm:$0xff]
      %v296 = vld [vmem:[%s274 + $0x8] sm:$0xff]
      %v297 = vld [vmem:[%s274 + $0x10] sm:$0xff]
      %v298 = vld [vmem:[%s274 + $0x18] sm:$0xff]
      %v299 = vld [vmem:[%s274 + $0x20] sm:$0xff]
      %v300 = vld [vmem:[%s274 + $0x28] sm:$0xff]
      %v301 = vld [vmem:[%s274 + $0x30] sm:$0xff]
      %v302 = vld [vmem:[%s274 + $0x38] sm:$0xff]
      %v303 = vld [vmem:[%s274 + $0x40] sm:$0xff]
      %v304 = vld [vmem:[%s274 + $0x48] sm:$0xff]
      %v305 = vld [vmem:[%s274 + $0x50] sm:$0xff]
      %v306 = vld [vmem:[%s274 + $0x58] sm:$0xff]
      %v307 = vld [vmem:[%s274 + $0x60] sm:$0xff]
      %v308 = vld [vmem:[%s274 + $0x68] sm:$0xff]
      %v309 = vld [vmem:[%s274 + $0x70] sm:$0xff]
      %v310 = vld [vmem:[%s274 + $0x78] sm:$0xff]
      %v311 = vld [vmem:[%s274 + $0x80] sm:$0xff]
      %v312 = vld [vmem:[%s274 + $0x88] sm:$0xff]
      %v313 = vld [vmem:[%s274 + $0x90] sm:$0xff]
      %v314 = vld [vmem:[%s274 + $0x98] sm:$0xff]
      %v315 = vld [vmem:[%s274 + $0xa0] sm:$0xff]
      %v316 = vld [vmem:[%s274 + $0xa8] sm:$0xff]
      %v317 = vld [vmem:[%s274 + $0xb0] sm:$0xff]
      %v318 = vld [vmem:[%s274 + $0xb8] sm:$0xff]
      %v319 = vld [vmem:[%s274 + $0xc0] sm:$0xff]
      %v320 = vld [vmem:[%s274 + $0xc8] sm:$0xff]
      %v321 = vld [vmem:[%s274 + $0xd0] sm:$0xff]
      %v322 = vld [vmem:[%s274 + $0xd8] sm:$0xff]
      %v323 = vld [vmem:[%s274 + $0xe0] sm:$0xff]
      %v324 = vld [vmem:[%s274 + $0xe8] sm:$0xff]
      %v325 = vld [vmem:[%s274 + $0xf0] sm:$0xff]
      %v326 = vld [vmem:[%s274 + $0xf8] sm:$0xff]
      %v327 = vld [vmem:[%s274 + $0x100] sm:$0xff]
      %v328 = vld [vmem:[%s274 + $0x108] sm:$0xff]
      %v329 = vld [vmem:[%s274 + $0x110] sm:$0xff]
      %v330 = vld [vmem:[%s274 + $0x118] sm:$0xff]
      %v331 = vld [vmem:[%s274 + $0x120] sm:$0xff]
      %v332 = vld [vmem:[%s274 + $0x8] sm:$0xff]
      %v333 = vld [vmem:[%s274 + $0x10] sm:$0xff]
      %v334 = vld [vmem:[%s274 + $0x18] sm:$0xff]
      %v335 = vld [vmem:[%s274 + $0x20] sm:$0xff]
      %v336 = vld [vmem:[%s274 + $0x28] sm:$0xff]
      %v337 = vld [vmem:[%s274 + $0x30] sm:$0xff]
      %v338 = vld [vmem:[%s274 + $0x38] sm:$0xff]
      %v339 = vld [vmem:[%s274 + $0x40] sm:$0xff]
      %v340 = vld [vmem:[%s274 + $0x48] sm:$0xff]
      %v341 = vld [vmem:[%s274 + $0x50] sm:$0xff]
      %v342 = vld [vmem:[%s274 + $0x58] sm:$0xff]
      %v343 = vld [vmem:[%s274 + $0x60] sm:$0xff]
      %v344 = vld [vmem:[%s274 + $0x68] sm:$0xff]
      %v345 = vld [vmem:[%s274 + $0x70] sm:$0xff]
      %v346 = vld [vmem:[%s274 + $0x78] sm:$0xff]
      %v347 = vld [vmem:[%s274 + $0x80] sm:$0xff]
      %v348 = vld [vmem:[%s274 + $0x88] sm:$0xff]
      %v349 = vld [vmem:[%s274 + $0x90] sm:$0xff]
      %v350 = vld [vmem:[%s274 + $0x98] sm:$0xff]
      %v351 = vld [vmem:[%s274 + $0xa0] sm:$0xff]
      %v352 = vld [vmem:[%s274 + $0xa8] sm:$0xff]
      %v353 = vld [vmem:[%s274 + $0xb0] sm:$0xff]
      %v354 = vld [vmem:[%s274 + $0xb8] sm:$0xff]
      %v355 = vld [vmem:[%s274 + $0xc0] sm:$0xff]
      %v356 = vld [vmem:[%s274 + $0xc8] sm:$0xff]
      %v357 = vld [vmem:[%s274 + $0xd0] sm:$0xff]
      %v358 = vld [vmem:[%s274 + $0xd8] sm:$0xff]
      %v359 = vld [vmem:[%s274 + $0xe0] sm:$0xff]
      %v360 = vld [vmem:[%s274 + $0xe8] sm:$0xff]
      %v361 = vld [vmem:[%s274 + $0xf0] sm:$0xff]
      %v362 = vld [vmem:[%s274 + $0xf8] sm:$0xff]
      %v363 = vld [vmem:[%s274 + $0x100] sm:$0xff]
      %v364 = vld [vmem:[%s274 + $0x108] sm:$0xff]
      %v365 = vld [vmem:[%s274 + $0x110] sm:$0xff]
      %v366 = vld [vmem:[%s274 + $0x118] sm:$0xff]
      %v367 = vld [vmem:[%s274 + $0x120] sm:$0xff]
      %v368 = vld [vmem:[%s274 + $0x128] sm:$0xff]
      %405 = vrot.lane.b32.xlu0 %v296, 127
      %v406 = vpop.permute.xlu0 %405
      %407 = vrot.lane.b32.xlu0 %v297, 127
      %v408 = vpop.permute.xlu0 %407
      %409 = vrot.lane.b32.xlu0 %v298, 127
      %v410 = vpop.permute.xlu0 %409
      %411 = vrot.lane.b32.xlu0 %v299, 127
      %v412 = vpop.permute.xlu0 %411
      %413 = vrot.lane.b32.xlu0 %v300, 127
      %v414 = vpop.permute.xlu0 %413
      %415 = vrot.lane.b32.xlu0 %v301, 127
      %v416 = vpop.permute.xlu0 %415
      %417 = vrot.lane.b32.xlu0 %v302, 127
      %v418 = vpop.permute.xlu0 %417
      %419 = vrot.lane.b32.xlu0 %v303, 127
      %v420 = vpop.permute.xlu0 %419
      %421 = vrot.lane.b32.xlu0 %v304, 127
      %v422 = vpop.permute.xlu0 %421
      %423 = vrot.lane.b32.xlu0 %v305, 127
      %v424 = vpop.permute.xlu0 %423
      %425 = vrot.lane.b32.xlu0 %v306, 127
      %v426 = vpop.permute.xlu0 %425
      %427 = vrot.lane.b32.xlu0 %v307, 127
      %v428 = vpop.permute.xlu0 %427
      %429 = vrot.lane.b32.xlu0 %v308, 127
      %v430 = vpop.permute.xlu0 %429
      %431 = vrot.lane.b32.xlu0 %v309, 127
      %v432 = vpop.permute.xlu0 %431
      %433 = vrot.lane.b32.xlu0 %v310, 127
      %v434 = vpop.permute.xlu0 %433
      %435 = vrot.lane.b32.xlu0 %v311, 127
      %v436 = vpop.permute.xlu0 %435
      %437 = vrot.lane.b32.xlu0 %v312, 127
      %v438 = vpop.permute.xlu0 %437
      %439 = vrot.lane.b32.xlu0 %v313, 127
      %v440 = vpop.permute.xlu0 %439
      %441 = vrot.lane.b32.xlu0 %v314, 127
      %v442 = vpop.permute.xlu0 %441
      %443 = vrot.lane.b32.xlu0 %v315, 127
      %v444 = vpop.permute.xlu0 %443
      %445 = vrot.lane.b32.xlu0 %v316, 127
      %v446 = vpop.permute.xlu0 %445
      %447 = vrot.lane.b32.xlu0 %v317, 127
      %v448 = vpop.permute.xlu0 %447
      %449 = vrot.lane.b32.xlu0 %v318, 127
      %v450 = vpop.permute.xlu0 %449
      %451 = vrot.lane.b32.xlu0 %v319, 127
      %v452 = vpop.permute.xlu0 %451
      %453 = vrot.lane.b32.xlu0 %v320, 127
      %v454 = vpop.permute.xlu0 %453
      %455 = vrot.lane.b32.xlu0 %v321, 127
      %v456 = vpop.permute.xlu0 %455
      %457 = vrot.lane.b32.xlu0 %v322, 127
      %v458 = vpop.permute.xlu0 %457
      %459 = vrot.lane.b32.xlu0 %v323, 127
      %v460 = vpop.permute.xlu0 %459
      %461 = vrot.lane.b32.xlu0 %v324, 127
      %v462 = vpop.permute.xlu0 %461
      %463 = vrot.lane.b32.xlu0 %v325, 127
      %v464 = vpop.permute.xlu0 %463
      %465 = vrot.lane.b32.xlu0 %v326, 127
      %v466 = vpop.permute.xlu0 %465
      %467 = vrot.lane.b32.xlu0 %v327, 127
      %v468 = vpop.permute.xlu0 %467
      %469 = vrot.lane.b32.xlu0 %v328, 127
      %v470 = vpop.permute.xlu0 %469
      %471 = vrot.lane.b32.xlu0 %v329, 127
      %v472 = vpop.permute.xlu0 %471
      %473 = vrot.lane.b32.xlu0 %v330, 127
      %v474 = vpop.permute.xlu0 %473
      %475 = vrot.lane.b32.xlu0 %v331, 127
      %v476 = vpop.permute.xlu0 %475
      %vm477 = vcmask 1039360
      %v478 = vsel %vm477, %v406, %v408
      %v479 = vsel %vm477, %v408, %v410
      %v480 = vsel %vm477, %v410, %v412
      %v481 = vsel %vm477, %v412, %v414
      %v482 = vsel %vm477, %v414, %v416
      %v483 = vsel %vm477, %v416, %v418
      %v484 = vsel %vm477, %v418, %v420
      %v485 = vsel %vm477, %v420, %v422
      %v486 = vsel %vm477, %v422, %v424
      %v487 = vsel %vm477, %v424, %v426
      %v488 = vsel %vm477, %v426, %v428
      %v489 = vsel %vm477, %v428, %v430
      %v490 = vsel %vm477, %v430, %v432
      %v491 = vsel %vm477, %v432, %v434
      %v492 = vsel %vm477, %v434, %v436
      %v493 = vsel %vm477, %v436, %v438
      %v494 = vsel %vm477, %v438, %v440
      %v495 = vsel %vm477, %v440, %v442
      %v496 = vsel %vm477, %v442, %v444
      %v497 = vsel %vm477, %v444, %v446
      %v498 = vsel %vm477, %v446, %v448
      %v499 = vsel %vm477, %v448, %v450
      %v500 = vsel %vm477, %v450, %v452
      %v501 = vsel %vm477, %v452, %v454
      %v502 = vsel %vm477, %v454, %v456
      %v503 = vsel %vm477, %v456, %v458
      %v504 = vsel %vm477, %v458, %v460
      %v505 = vsel %vm477, %v460, %v462
      %v506 = vsel %vm477, %v462, %v464
      %v507 = vsel %vm477, %v464, %v466
      %v508 = vsel %vm477, %v466, %v468
      %v509 = vsel %vm477, %v468, %v470
      %v510 = vsel %vm477, %v470, %v472
      %v511 = vsel %vm477, %v472, %v474
      %v512 = vsel %vm477, %v474, %v476
      %550 = vrot.lane.b32.xlu0 %v332, 126
      %v551 = vpop.permute.xlu0 %550
      %552 = vrot.lane.b32.xlu0 %v333, 126
      %v553 = vpop.permute.xlu0 %552
      %554 = vrot.lane.b32.xlu0 %v334, 126
      %v555 = vpop.permute.xlu0 %554
      %556 = vrot.lane.b32.xlu0 %v335, 126
      %v557 = vpop.permute.xlu0 %556
      %558 = vrot.lane.b32.xlu0 %v336, 126
      %v559 = vpop.permute.xlu0 %558
      %560 = vrot.lane.b32.xlu0 %v337, 126
      %v561 = vpop.permute.xlu0 %560
      %562 = vrot.lane.b32.xlu0 %v338, 126
      %v563 = vpop.permute.xlu0 %562
      %564 = vrot.lane.b32.xlu0 %v339, 126
      %v565 = vpop.permute.xlu0 %564
      %566 = vrot.lane.b32.xlu0 %v340, 126
      %v567 = vpop.permute.xlu0 %566
      %568 = vrot.lane.b32.xlu0 %v341, 126
      %v569 = vpop.permute.xlu0 %568
      %570 = vrot.lane.b32.xlu0 %v342, 126
      %v571 = vpop.permute.xlu0 %570
      %572 = vrot.lane.b32.xlu0 %v343, 126
      %v573 = vpop.permute.xlu0 %572
      %574 = vrot.lane.b32.xlu0 %v344, 126
      %v575 = vpop.permute.xlu0 %574
      %576 = vrot.lane.b32.xlu0 %v345, 126
      %v577 = vpop.permute.xlu0 %576
      %578 = vrot.lane.b32.xlu0 %v346, 126
      %v579 = vpop.permute.xlu0 %578
      %580 = vrot.lane.b32.xlu0 %v347, 126
      %v581 = vpop.permute.xlu0 %580
      %582 = vrot.lane.b32.xlu0 %v348, 126
      %v583 = vpop.permute.xlu0 %582
      %584 = vrot.lane.b32.xlu0 %v349, 126
      %v585 = vpop.permute.xlu0 %584
      %586 = vrot.lane.b32.xlu0 %v350, 126
      %v587 = vpop.permute.xlu0 %586
      %588 = vrot.lane.b32.xlu0 %v351, 126
      %v589 = vpop.permute.xlu0 %588
      %590 = vrot.lane.b32.xlu0 %v352, 126
      %v591 = vpop.permute.xlu0 %590
      %592 = vrot.lane.b32.xlu0 %v353, 126
      %v593 = vpop.permute.xlu0 %592
      %594 = vrot.lane.b32.xlu0 %v354, 126
      %v595 = vpop.permute.xlu0 %594
      %596 = vrot.lane.b32.xlu0 %v355, 126
      %v597 = vpop.permute.xlu0 %596
      %598 = vrot.lane.b32.xlu0 %v356, 126
      %v599 = vpop.permute.xlu0 %598
      %600 = vrot.lane.b32.xlu0 %v357, 126
      %v601 = vpop.permute.xlu0 %600
      %602 = vrot.lane.b32.xlu0 %v358, 126
      %v603 = vpop.permute.xlu0 %602
      %604 = vrot.lane.b32.xlu0 %v359, 126
      %v605 = vpop.permute.xlu0 %604
      %606 = vrot.lane.b32.xlu0 %v360, 126
      %v607 = vpop.permute.xlu0 %606
      %608 = vrot.lane.b32.xlu0 %v361, 126
      %v609 = vpop.permute.xlu0 %608
      %610 = vrot.lane.b32.xlu0 %v362, 126
      %v611 = vpop.permute.xlu0 %610
      %612 = vrot.lane.b32.xlu0 %v363, 126
      %v613 = vpop.permute.xlu0 %612
      %614 = vrot.lane.b32.xlu0 %v364, 126
      %v615 = vpop.permute.xlu0 %614
      %616 = vrot.lane.b32.xlu0 %v365, 126
      %v617 = vpop.permute.xlu0 %616
      %618 = vrot.lane.b32.xlu0 %v366, 126
      %v619 = vpop.permute.xlu0 %618
      %620 = vrot.lane.b32.xlu0 %v367, 126
      %v621 = vpop.permute.xlu0 %620
      %622 = vrot.lane.b32.xlu0 %v368, 126
      %v623 = vpop.permute.xlu0 %622
      %vm624 = vcmask 1031168
      %v625 = vsel %vm624, %v551, %v553
      %v626 = vsel %vm624, %v553, %v555
      %v627 = vsel %vm624, %v555, %v557
      %v628 = vsel %vm624, %v557, %v559
      %v629 = vsel %vm624, %v559, %v561
      %v630 = vsel %vm624, %v561, %v563
      %v631 = vsel %vm624, %v563, %v565
      %v632 = vsel %vm624, %v565, %v567
      %v633 = vsel %vm624, %v567, %v569
      %v634 = vsel %vm624, %v569, %v571
      %v635 = vsel %vm624, %v571, %v573
      %v636 = vsel %vm624, %v573, %v575
      %v637 = vsel %vm624, %v575, %v577
      %v638 = vsel %vm624, %v577, %v579
      %v639 = vsel %vm624, %v579, %v581
      %v640 = vsel %vm624, %v581, %v583
      %v641 = vsel %vm624, %v583, %v585
      %v642 = vsel %vm624, %v585, %v587
      %v643 = vsel %vm624, %v587, %v589
      %v644 = vsel %vm624, %v589, %v591
      %v645 = vsel %vm624, %v591, %v593
      %v646 = vsel %vm624, %v593, %v595
      %v647 = vsel %vm624, %v595, %v597
      %v648 = vsel %vm624, %v597, %v599
      %v649 = vsel %vm624, %v599, %v601
      %v650 = vsel %vm624, %v601, %v603
      %v651 = vsel %vm624, %v603, %v605
      %v652 = vsel %vm624, %v605, %v607
      %v653 = vsel %vm624, %v607, %v609
      %v654 = vsel %vm624, %v609, %v611
      %v655 = vsel %vm624, %v611, %v613
      %v656 = vsel %vm624, %v613, %v615
      %v657 = vsel %vm624, %v615, %v617
      %v658 = vsel %vm624, %v617, %v619
      %v659 = vsel %vm624, %v619, %v621
      %v660 = vsel %vm624, %v621, %v623
      %v661 = vld [vmem:[%s1] sm:$0xff]
      %s662 = scalar_lea.vmem %s1, 8
      %v663 = vld [vmem:[%s662] sm:$0xff]
      %664 = vrot.lane.b32.xlu0 %v296, 1
      %v665 = vpop.permute.xlu0 %664
      %666 = vrot.lane.b32.xlu0 %v297, 1
      %v667 = vpop.permute.xlu0 %666
      %668 = vrot.lane.b32.xlu0 %v298, 1
      %v669 = vpop.permute.xlu0 %668
      %670 = vrot.lane.b32.xlu0 %v299, 1
      %v671 = vpop.permute.xlu0 %670
      %672 = vrot.lane.b32.xlu0 %v300, 1
      %v673 = vpop.permute.xlu0 %672
      %674 = vrot.lane.b32.xlu0 %v301, 1
      %v675 = vpop.permute.xlu0 %674
      %676 = vrot.lane.b32.xlu0 %v302, 1
      %v677 = vpop.permute.xlu0 %676
      %678 = vrot.lane.b32.xlu0 %v303, 1
      %v679 = vpop.permute.xlu0 %678
      %680 = vrot.lane.b32.xlu0 %v304, 1
      %v681 = vpop.permute.xlu0 %680
      %682 = vrot.lane.b32.xlu0 %v305, 1
      %v683 = vpop.permute.xlu0 %682
      %684 = vrot.lane.b32.xlu0 %v306, 1
      %v685 = vpop.permute.xlu0 %684
      %686 = vrot.lane.b32.xlu0 %v307, 1
      %v687 = vpop.permute.xlu0 %686
      %688 = vrot.lane.b32.xlu0 %v308, 1
      %v689 = vpop.permute.xlu0 %688
      %690 = vrot.lane.b32.xlu0 %v309, 1
      %v691 = vpop.permute.xlu0 %690
      %692 = vrot.lane.b32.xlu0 %v310, 1
      %v693 = vpop.permute.xlu0 %692
      %694 = vrot.lane.b32.xlu0 %v311, 1
      %v695 = vpop.permute.xlu0 %694
      %696 = vrot.lane.b32.xlu0 %v312, 1
      %v697 = vpop.permute.xlu0 %696
      %698 = vrot.lane.b32.xlu0 %v313, 1
      %v699 = vpop.permute.xlu0 %698
      %700 = vrot.lane.b32.xlu0 %v314, 1
      %v701 = vpop.permute.xlu0 %700
      %702 = vrot.lane.b32.xlu0 %v315, 1
      %v703 = vpop.permute.xlu0 %702
      %704 = vrot.lane.b32.xlu0 %v316, 1
      %v705 = vpop.permute.xlu0 %704
      %706 = vrot.lane.b32.xlu0 %v317, 1
      %v707 = vpop.permute.xlu0 %706
      %708 = vrot.lane.b32.xlu0 %v318, 1
      %v709 = vpop.permute.xlu0 %708
      %710 = vrot.lane.b32.xlu0 %v319, 1
      %v711 = vpop.permute.xlu0 %710
      %712 = vrot.lane.b32.xlu0 %v320, 1
      %v713 = vpop.permute.xlu0 %712
      %714 = vrot.lane.b32.xlu0 %v321, 1
      %v715 = vpop.permute.xlu0 %714
      %716 = vrot.lane.b32.xlu0 %v322, 1
      %v717 = vpop.permute.xlu0 %716
      %718 = vrot.lane.b32.xlu0 %v323, 1
      %v719 = vpop.permute.xlu0 %718
      %720 = vrot.lane.b32.xlu0 %v324, 1
      %v721 = vpop.permute.xlu0 %720
      %722 = vrot.lane.b32.xlu0 %v325, 1
      %v723 = vpop.permute.xlu0 %722
      %724 = vrot.lane.b32.xlu0 %v326, 1
      %v725 = vpop.permute.xlu0 %724
      %726 = vrot.lane.b32.xlu0 %v327, 1
      %v727 = vpop.permute.xlu0 %726
      %728 = vrot.lane.b32.xlu0 %v328, 1
      %v729 = vpop.permute.xlu0 %728
      %730 = vrot.lane.b32.xlu0 %v329, 1
      %v731 = vpop.permute.xlu0 %730
      %732 = vrot.lane.b32.xlu0 %v330, 1
      %v733 = vpop.permute.xlu0 %732
      %734 = vrot.lane.b32.xlu0 %v478, 1
      %v735 = vpop.permute.xlu0 %734
      %736 = vrot.lane.b32.xlu0 %v479, 1
      %v737 = vpop.permute.xlu0 %736
      %738 = vrot.lane.b32.xlu0 %v480, 1
      %v739 = vpop.permute.xlu0 %738
      %740 = vrot.lane.b32.xlu0 %v481, 1
      %v741 = vpop.permute.xlu0 %740
      %742 = vrot.lane.b32.xlu0 %v482, 1
      %v743 = vpop.permute.xlu0 %742
      %744 = vrot.lane.b32.xlu0 %v483, 1
      %v745 = vpop.permute.xlu0 %744
      %746 = vrot.lane.b32.xlu0 %v484, 1
      %v747 = vpop.permute.xlu0 %746
      %748 = vrot.lane.b32.xlu0 %v485, 1
      %v749 = vpop.permute.xlu0 %748
      %750 = vrot.lane.b32.xlu0 %v486, 1
      %v751 = vpop.permute.xlu0 %750
      %752 = vrot.lane.b32.xlu0 %v487, 1
      %v753 = vpop.permute.xlu0 %752
      %754 = vrot.lane.b32.xlu0 %v488, 1
      %v755 = vpop.permute.xlu0 %754
      %756 = vrot.lane.b32.xlu0 %v489, 1
      %v757 = vpop.permute.xlu0 %756
      %758 = vrot.lane.b32.xlu0 %v490, 1
      %v759 = vpop.permute.xlu0 %758
      %760 = vrot.lane.b32.xlu0 %v491, 1
      %v761 = vpop.permute.xlu0 %760
      %762 = vrot.lane.b32.xlu0 %v492, 1
      %v763 = vpop.permute.xlu0 %762
      %764 = vrot.lane.b32.xlu0 %v493, 1
      %v765 = vpop.permute.xlu0 %764
      %766 = vrot.lane.b32.xlu0 %v494, 1
      %v767 = vpop.permute.xlu0 %766
      %768 = vrot.lane.b32.xlu0 %v495, 1
      %v769 = vpop.permute.xlu0 %768
      %770 = vrot.lane.b32.xlu0 %v496, 1
      %v771 = vpop.permute.xlu0 %770
      %772 = vrot.lane.b32.xlu0 %v497, 1
      %v773 = vpop.permute.xlu0 %772
      %774 = vrot.lane.b32.xlu0 %v498, 1
      %v775 = vpop.permute.xlu0 %774
      %776 = vrot.lane.b32.xlu0 %v499, 1
      %v777 = vpop.permute.xlu0 %776
      %778 = vrot.lane.b32.xlu0 %v500, 1
      %v779 = vpop.permute.xlu0 %778
      %780 = vrot.lane.b32.xlu0 %v501, 1
      %v781 = vpop.permute.xlu0 %780
      %782 = vrot.lane.b32.xlu0 %v502, 1
      %v783 = vpop.permute.xlu0 %782
      %784 = vrot.lane.b32.xlu0 %v503, 1
      %v785 = vpop.permute.xlu0 %784
      %786 = vrot.lane.b32.xlu0 %v504, 1
      %v787 = vpop.permute.xlu0 %786
      %788 = vrot.lane.b32.xlu0 %v505, 1
      %v789 = vpop.permute.xlu0 %788
      %790 = vrot.lane.b32.xlu0 %v506, 1
      %v791 = vpop.permute.xlu0 %790
      %792 = vrot.lane.b32.xlu0 %v507, 1
      %v793 = vpop.permute.xlu0 %792
      %794 = vrot.lane.b32.xlu0 %v508, 1
      %v795 = vpop.permute.xlu0 %794
      %796 = vrot.lane.b32.xlu0 %v509, 1
      %v797 = vpop.permute.xlu0 %796
      %798 = vrot.lane.b32.xlu0 %v510, 1
      %v799 = vpop.permute.xlu0 %798
      %800 = vrot.lane.b32.xlu0 %v511, 1
      %v801 = vpop.permute.xlu0 %800
      %802 = vrot.lane.b32.xlu0 %v512, 1
      %v803 = vpop.permute.xlu0 %802
      %804 = vrot.lane.b32.xlu0 %v625, 1
      %v805 = vpop.permute.xlu0 %804
      %806 = vrot.lane.b32.xlu0 %v626, 1
      %v807 = vpop.permute.xlu0 %806
      %808 = vrot.lane.b32.xlu0 %v627, 1
      %v809 = vpop.permute.xlu0 %808
      %810 = vrot.lane.b32.xlu0 %v628, 1
      %v811 = vpop.permute.xlu0 %810
      %812 = vrot.lane.b32.xlu0 %v629, 1
      %v813 = vpop.permute.xlu0 %812
      %814 = vrot.lane.b32.xlu0 %v630, 1
      %v815 = vpop.permute.xlu0 %814
      %816 = vrot.lane.b32.xlu0 %v631, 1
      %v817 = vpop.permute.xlu0 %816
      %818 = vrot.lane.b32.xlu0 %v632, 1
      %v819 = vpop.permute.xlu0 %818
      %820 = vrot.lane.b32.xlu0 %v633, 1
      %v821 = vpop.permute.xlu0 %820
      %822 = vrot.lane.b32.xlu0 %v634, 1
      %v823 = vpop.permute.xlu0 %822
      %824 = vrot.lane.b32.xlu0 %v635, 1
      %v825 = vpop.permute.xlu0 %824
      %826 = vrot.lane.b32.xlu0 %v636, 1
      %v827 = vpop.permute.xlu0 %826
      %828 = vrot.lane.b32.xlu0 %v637, 1
      %v829 = vpop.permute.xlu0 %828
      %830 = vrot.lane.b32.xlu0 %v638, 1
      %v831 = vpop.permute.xlu0 %830
      %832 = vrot.lane.b32.xlu0 %v639, 1
      %v833 = vpop.permute.xlu0 %832
      %834 = vrot.lane.b32.xlu0 %v640, 1
      %v835 = vpop.permute.xlu0 %834
      %836 = vrot.lane.b32.xlu0 %v641, 1
      %v837 = vpop.permute.xlu0 %836
      %838 = vrot.lane.b32.xlu0 %v642, 1
      %v839 = vpop.permute.xlu0 %838
      %840 = vrot.lane.b32.xlu0 %v643, 1
      %v841 = vpop.permute.xlu0 %840
      %842 = vrot.lane.b32.xlu0 %v644, 1
      %v843 = vpop.permute.xlu0 %842
      %844 = vrot.lane.b32.xlu0 %v645, 1
      %v845 = vpop.permute.xlu0 %844
      %846 = vrot.lane.b32.xlu0 %v646, 1
      %v847 = vpop.permute.xlu0 %846
      %848 = vrot.lane.b32.xlu0 %v647, 1
      %v849 = vpop.permute.xlu0 %848
      %850 = vrot.lane.b32.xlu0 %v648, 1
      %v851 = vpop.permute.xlu0 %850
      %852 = vrot.lane.b32.xlu0 %v649, 1
      %v853 = vpop.permute.xlu0 %852
      %854 = vrot.lane.b32.xlu0 %v650, 1
      %v855 = vpop.permute.xlu0 %854
      %856 = vrot.lane.b32.xlu0 %v651, 1
      %v857 = vpop.permute.xlu0 %856
      %858 = vrot.lane.b32.xlu0 %v652, 1
      %v859 = vpop.permute.xlu0 %858
      %860 = vrot.lane.b32.xlu0 %v653, 1
      %v861 = vpop.permute.xlu0 %860
      %862 = vrot.lane.b32.xlu0 %v654, 1
      %v863 = vpop.permute.xlu0 %862
      %864 = vrot.lane.b32.xlu0 %v655, 1
      %v865 = vpop.permute.xlu0 %864
      %866 = vrot.lane.b32.xlu0 %v656, 1
      %v867 = vpop.permute.xlu0 %866
      %868 = vrot.lane.b32.xlu0 %v657, 1
      %v869 = vpop.permute.xlu0 %868
      %870 = vrot.lane.b32.xlu0 %v658, 1
      %v871 = vpop.permute.xlu0 %870
      %872 = vrot.lane.b32.xlu0 %v659, 1
      %v873 = vpop.permute.xlu0 %872
      %vm874 = vcmask 7168
      %v875 = vsel %vm874, %v665, %v667
      %v876 = vsel %vm874, %v667, %v669
      %v877 = vsel %vm874, %v669, %v671
      %v878 = vsel %vm874, %v671, %v673
      %v879 = vsel %vm874, %v673, %v675
      %v880 = vsel %vm874, %v675, %v677
      %v881 = vsel %vm874, %v677, %v679
      %v882 = vsel %vm874, %v679, %v681
      %v883 = vsel %vm874, %v681, %v683
      %v884 = vsel %vm874, %v683, %v685
      %v885 = vsel %vm874, %v685, %v687
      %v886 = vsel %vm874, %v687, %v689
      %v887 = vsel %vm874, %v689, %v691
      %v888 = vsel %vm874, %v691, %v693
      %v889 = vsel %vm874, %v693, %v695
      %v890 = vsel %vm874, %v695, %v697
      %v891 = vsel %vm874, %v697, %v699
      %v892 = vsel %vm874, %v699, %v701
      %v893 = vsel %vm874, %v701, %v703
      %v894 = vsel %vm874, %v703, %v705
      %v895 = vsel %vm874, %v705, %v707
      %v896 = vsel %vm874, %v707, %v709
      %v897 = vsel %vm874, %v709, %v711
      %v898 = vsel %vm874, %v711, %v713
      %v899 = vsel %vm874, %v713, %v715
      %v900 = vsel %vm874, %v715, %v717
      %v901 = vsel %vm874, %v717, %v719
      %v902 = vsel %vm874, %v719, %v721
      %v903 = vsel %vm874, %v721, %v723
      %v904 = vsel %vm874, %v723, %v725
      %v905 = vsel %vm874, %v725, %v727
      %v906 = vsel %vm874, %v727, %v729
      %v907 = vsel %vm874, %v729, %v731
      %v908 = vsel %vm874, %v731, %v733
      %v909 = vsel %vm874, %v735, %v737
      %v910 = vsel %vm874, %v737, %v739
      %v911 = vsel %vm874, %v739, %v741
      %v912 = vsel %vm874, %v741, %v743
      %v913 = vsel %vm874, %v743, %v745
      %v914 = vsel %vm874, %v745, %v747
      %v915 = vsel %vm874, %v747, %v749
      %v916 = vsel %vm874, %v749, %v751
      %v917 = vsel %vm874, %v751, %v753
      %v918 = vsel %vm874, %v753, %v755
      %v919 = vsel %vm874, %v755, %v757
      %v920 = vsel %vm874, %v757, %v759
      %v921 = vsel %vm874, %v759, %v761
      %v922 = vsel %vm874, %v761, %v763
      %v923 = vsel %vm874, %v763, %v765
      %v924 = vsel %vm874, %v765, %v767
      %v925 = vsel %vm874, %v767, %v769
      %v926 = vsel %vm874, %v769, %v771
      %v927 = vsel %vm874, %v771, %v773
      %v928 = vsel %vm874, %v773, %v775
      %v929 = vsel %vm874, %v775, %v777
      %v930 = vsel %vm874, %v777, %v779
      %v931 = vsel %vm874, %v779, %v781
      %v932 = vsel %vm874, %v781, %v783
      %v933 = vsel %vm874, %v783, %v785
      %v934 = vsel %vm874, %v785, %v787
      %v935 = vsel %vm874, %v787, %v789
      %v936 = vsel %vm874, %v789, %v791
      %v937 = vsel %vm874, %v791, %v793
      %v938 = vsel %vm874, %v793, %v795
      %v939 = vsel %vm874, %v795, %v797
      %v940 = vsel %vm874, %v797, %v799
      %v941 = vsel %vm874, %v799, %v801
      %v942 = vsel %vm874, %v801, %v803
      %v943 = vsel %vm874, %v805, %v807
      %v944 = vsel %vm874, %v807, %v809
      %v945 = vsel %vm874, %v809, %v811
      %v946 = vsel %vm874, %v811, %v813
      %v947 = vsel %vm874, %v813, %v815
      %v948 = vsel %vm874, %v815, %v817
      %v949 = vsel %vm874, %v817, %v819
      %v950 = vsel %vm874, %v819, %v821
      %v951 = vsel %vm874, %v821, %v823
      %v952 = vsel %vm874, %v823, %v825
      %v953 = vsel %vm874, %v825, %v827
      %v954 = vsel %vm874, %v827, %v829
      %v955 = vsel %vm874, %v829, %v831
      %v956 = vsel %vm874, %v831, %v833
      %v957 = vsel %vm874, %v833, %v835
      %v958 = vsel %vm874, %v835, %v837
      %v959 = vsel %vm874, %v837, %v839
      %v960 = vsel %vm874, %v839, %v841
      %v961 = vsel %vm874, %v841, %v843
      %v962 = vsel %vm874, %v843, %v845
      %v963 = vsel %vm874, %v845, %v847
      %v964 = vsel %vm874, %v847, %v849
      %v965 = vsel %vm874, %v849, %v851
      %v966 = vsel %vm874, %v851, %v853
      %v967 = vsel %vm874, %v853, %v855
      %v968 = vsel %vm874, %v855, %v857
      %v969 = vsel %vm874, %v857, %v859
      %v970 = vsel %vm874, %v859, %v861
      %v971 = vsel %vm874, %v861, %v863
      %v972 = vsel %vm874, %v863, %v865
      %v973 = vsel %vm874, %v865, %v867
      %v974 = vsel %vm874, %v867, %v869
      %v975 = vsel %vm874, %v869, %v871
      %v976 = vsel %vm874, %v871, %v873
      %vm1079 = vcmask 195584
      %v1081 = vsel %vm1079, %v663, 0
      %1083 = vmatprep.subr.mxu0 %v876
      %1084 = vmatpush1.msra.mxu0 %v875
      %1085 = vmatprep.subr.mxu0 %v910
      %1086 = vmatpush1.msra.mxu0 %v909
      %1087 = vmatprep.subr.mxu0 %v944
      %1088 = vmatpush1.msra.mxu0 %v943
      %1089 = vmatprep.subr.mxu0 0.0
      %1090 = vmatpush1.msra.mxu0 0.0
      %1091 = vmatprep.subr.mxu0 0.0
      %1092 = vmatpush1.msra.mxu0 0.0
      %1093 = vmatprep.subr.mxu0 0.0
      %1094 = vmatpush1.msra.mxu0 0.0
      %1095 = vmatprep.subr.mxu0 0.0
      %1096 = vmatpush1.msra.mxu0 0.0
      %1097 = vmatprep.subr.mxu0 0.0
      %1098 = vmatpush1.msra.mxu0 0.0
      %1099 = vmatprep.subr.mxu0 0.0
      %1100 = vmatpush1.msra.mxu0 0.0
      %1101 = vmatprep.subr.mxu0 0.0
      %1102 = vmatpush1.msra.mxu0 0.0
      %1103 = vmatprep.subr.mxu0 0.0
      %1104 = vmatpush1.msra.mxu0 0.0
      %1105 = vmatprep.subr.mxu0 0.0
      %1106 = vmatpush1.msra.mxu0 0.0
      %1107 = vmatprep.subr.mxu0 0.0
      %1108 = vmatpush1.msra.mxu0 0.0
      %1109 = vmatprep.subr.mxu0 0.0
      %1110 = vmatpush1.msra.mxu0 0.0
      %1111 = vmatprep.subr.mxu0 0.0
      %1112 = vmatpush1.msra.mxu0 0.0
      %1113 = vmatprep.subr.mxu0 0.0
      %1114 = vmatpush1.msra.mxu0 0.0
      %1115 = vmatprep.subr.mxu0 0.0
      %1116 = vmatpush1.msra.mxu0 0.0
      %1117 = vmatprep.subr.mxu0 0.0
      %1118 = vmatpush1.msra.mxu0 0.0
      %1119 = vmatprep.subr.mxu0 0.0
      %1120 = vmatpush1.msra.mxu0 0.0
      %1121 = vmatprep.subr.mxu0 0.0
      %1122 = vmatpush1.msra.mxu0 0.0
      %1123 = vmatprep.subr.mxu0 0.0
      %1124 = vmatpush1.msra.mxu0 0.0
      %1125 = vmatprep.subr.mxu0 0.0
      %1126 = vmatpush1.msra.mxu0 0.0
      %1127 = vmatprep.subr.mxu0 0.0
      %1128 = vmatpush1.msra.mxu0 0.0
      %1129 = vmatprep.subr.mxu0 0.0
      %1130 = vmatpush1.msra.mxu0 0.0
      %1131 = vmatprep.subr.mxu0 0.0
      %1132 = vmatpush1.msra.mxu0 0.0
      %1133 = vmatprep.subr.mxu0 0.0
      %1134 = vmatpush1.msra.mxu0 0.0
      %1135 = vmatprep.subr.mxu0 0.0
      %1136 = vmatpush1.msra.mxu0 0.0
      %1137 = vmatprep.subr.mxu0 0.0
      %1138 = vmatpush1.msra.mxu0 0.0
      %1139 = vmatprep.subr.mxu0 0.0
      %1140 = vmatpush1.msra.mxu0 0.0
      %1141 = vmatprep.subr.mxu0 0.0
      %1142 = vmatpush1.msra.mxu0 0.0
      %1143 = vmatprep.subr.mxu0 0.0
      %1144 = vmatpush1.msra.mxu0 0.0
      %1145 = vmatprep.subr.mxu0 0.0
      %1146 = vmatpush1.msra.mxu0 0.0
      %1147 = vmatprep.mubr.f32.mxu0 0.0
      %1148 = vmatmul.mubr.f32.gmra.mrb[0].mxu0 %v1081
      %v1149 = vpop.f32.mrb[0].mxu0
      %v1150 = vadd.f32 0.0, %v1149
      %v1151 = vpop.f32.mrb[0].mxu0
      %v1152 = vadd.f32 0.0, %v1151
      %1153 = vdwg.mxu0
      %1154 = vmatprep.subr.mxu0 %v878
      %1155 = vmatpush1.msra.mxu0 %v877
      %1156 = vmatprep.subr.mxu0 %v912
      %1157 = vmatpush1.msra.mxu0 %v911
      %1158 = vmatprep.subr.mxu0 %v946
      %1159 = vmatpush1.msra.mxu0 %v945
      %1160 = vmatprep.subr.mxu0 0.0
      %1161 = vmatpush1.msra.mxu0 0.0
      %1162 = vmatprep.subr.mxu0 0.0
      %1163 = vmatpush1.msra.mxu0 0.0
      %1164 = vmatprep.subr.mxu0 0.0
      %1165 = vmatpush1.msra.mxu0 0.0
      %1166 = vmatprep.subr.mxu0 0.0
      %1167 = vmatpush1.msra.mxu0 0.0
      %1168 = vmatprep.subr.mxu0 0.0
      %1169 = vmatpush1.msra.mxu0 0.0
      %1170 = vmatprep.subr.mxu0 0.0
      %1171 = vmatpush1.msra.mxu0 0.0
      %1172 = vmatprep.subr.mxu0 0.0
      %1173 = vmatpush1.msra.mxu0 0.0
      %1174 = vmatprep.subr.mxu0 0.0
      %1175 = vmatpush1.msra.mxu0 0.0
      %1176 = vmatprep.subr.mxu0 0.0
      %1177 = vmatpush1.msra.mxu0 0.0
      %1178 = vmatprep.subr.mxu0 0.0
      %1179 = vmatpush1.msra.mxu0 0.0
      %1180 = vmatprep.subr.mxu0 0.0
      %1181 = vmatpush1.msra.mxu0 0.0
      %1182 = vmatprep.subr.mxu0 0.0
      %1183 = vmatpush1.msra.mxu0 0.0
      %1184 = vmatprep.subr.mxu0 0.0
      %1185 = vmatpush1.msra.mxu0 0.0
      %1186 = vmatprep.subr.mxu0 0.0
      %1187 = vmatpush1.msra.mxu0 0.0
      %1188 = vmatprep.subr.mxu0 0.0
      %1189 = vmatpush1.msra.mxu0 0.0
      %1190 = vmatprep.subr.mxu0 0.0
      %1191 = vmatpush1.msra.mxu0 0.0
      %1192 = vmatprep.subr.mxu0 0.0
      %1193 = vmatpush1.msra.mxu0 0.0
      %1194 = vmatprep.subr.mxu0 0.0
      %1195 = vmatpush1.msra.mxu0 0.0
      %1196 = vmatprep.subr.mxu0 0.0
      %1197 = vmatpush1.msra.mxu0 0.0
      %1198 = vmatprep.subr.mxu0 0.0
      %1199 = vmatpush1.msra.mxu0 0.0
      %1200 = vmatprep.subr.mxu0 0.0
      %1201 = vmatpush1.msra.mxu0 0.0
      %1202 = vmatprep.subr.mxu0 0.0
      %1203 = vmatpush1.msra.mxu0 0.0
      %1204 = vmatprep.subr.mxu0 0.0
      %1205 = vmatpush1.msra.mxu0 0.0
      %1206 = vmatprep.subr.mxu0 0.0
      %1207 = vmatpush1.msra.mxu0 0.0
      %1208 = vmatprep.subr.mxu0 0.0
      %1209 = vmatpush1.msra.mxu0 0.0
      %1210 = vmatprep.subr.mxu0 0.0
      %1211 = vmatpush1.msra.mxu0 0.0
      %1212 = vmatprep.subr.mxu0 0.0
      %1213 = vmatpush1.msra.mxu0 0.0
      %1214 = vmatprep.subr.mxu0 0.0
      %1215 = vmatpush1.msra.mxu0 0.0
      %1216 = vmatprep.subr.mxu0 0.0
      %1217 = vmatpush1.msra.mxu0 0.0
      %1218 = vmatprep.mubr.f32.mxu0 0.0
      %1219 = vmatmul.mubr.f32.gmra.mrb[0].mxu0 %v1081
      %v1220 = vpop.f32.mrb[0].mxu0
      %v1221 = vadd.f32 0.0, %v1220
      %v1222 = vpop.f32.mrb[0].mxu0
      %v1223 = vadd.f32 0.0, %v1222
      %1224 = vdwg.mxu0
      %1225 = vmatprep.subr.mxu0 %v880
      %1226 = vmatpush1.msra.mxu0 %v879
      %1227 = vmatprep.subr.mxu0 %v914
      %1228 = vmatpush1.msra.mxu0 %v913
      %1229 = vmatprep.subr.mxu0 %v948
      %1230 = vmatpush1.msra.mxu0 %v947
      %1231 = vmatprep.subr.mxu0 0.0
      %1232 = vmatpush1.msra.mxu0 0.0
      %1233 = vmatprep.subr.mxu0 0.0
      %1234 = vmatpush1.msra.mxu0 0.0
      %1235 = vmatprep.subr.mxu0 0.0
      %1236 = vmatpush1.msra.mxu0 0.0
      %1237 = vmatprep.subr.mxu0 0.0
      %1238 = vmatpush1.msra.mxu0 0.0
      %1239 = vmatprep.subr.mxu0 0.0
      %1240 = vmatpush1.msra.mxu0 0.0
      %1241 = vmatprep.subr.mxu0 0.0
      %1242 = vmatpush1.msra.mxu0 0.0
      %1243 = vmatprep.subr.mxu0 0.0
      %1244 = vmatpush1.msra.mxu0 0.0
      %1245 = vmatprep.subr.mxu0 0.0
      %1246 = vmatpush1.msra.mxu0 0.0
      %1247 = vmatprep.subr.mxu0 0.0
      %1248 = vmatpush1.msra.mxu0 0.0
      %1249 = vmatprep.subr.mxu0 0.0
      %1250 = vmatpush1.msra.mxu0 0.0
      %1251 = vmatprep.subr.mxu0 0.0
      %1252 = vmatpush1.msra.mxu0 0.0
      %1253 = vmatprep.subr.mxu0 0.0
      %1254 = vmatpush1.msra.mxu0 0.0
      %1255 = vmatprep.subr.mxu0 0.0
      %1256 = vmatpush1.msra.mxu0 0.0
      %1257 = vmatprep.subr.mxu0 0.0
      %1258 = vmatpush1.msra.mxu0 0.0
      %1259 = vmatprep.subr.mxu0 0.0
      %1260 = vmatpush1.msra.mxu0 0.0
      %1261 = vmatprep.subr.mxu0 0.0
      %1262 = vmatpush1.msra.mxu0 0.0
      %1263 = vmatprep.subr.mxu0 0.0
      %1264 = vmatpush1.msra.mxu0 0.0
      %1265 = vmatprep.subr.mxu0 0.0
      %1266 = vmatpush1.msra.mxu0 0.0
      %1267 = vmatprep.subr.mxu0 0.0
      %1268 = vmatpush1.msra.mxu0 0.0
      %1269 = vmatprep.subr.mxu0 0.0
      %1270 = vmatpush1.msra.mxu0 0.0
      %1271 = vmatprep.subr.mxu0 0.0
      %1272 = vmatpush1.msra.mxu0 0.0
      %1273 = vmatprep.subr.mxu0 0.0
      %1274 = vmatpush1.msra.mxu0 0.0
      %1275 = vmatprep.subr.mxu0 0.0
      %1276 = vmatpush1.msra.mxu0 0.0
      %1277 = vmatprep.subr.mxu0 0.0
      %1278 = vmatpush1.msra.mxu0 0.0
      %1279 = vmatprep.subr.mxu0 0.0
      %1280 = vmatpush1.msra.mxu0 0.0
      %1281 = vmatprep.subr.mxu0 0.0
      %1282 = vmatpush1.msra.mxu0 0.0
      %1283 = vmatprep.subr.mxu0 0.0
      %1284 = vmatpush1.msra.mxu0 0.0
      %1285 = vmatprep.subr.mxu0 0.0
      %1286 = vmatpush1.msra.mxu0 0.0
      %1287 = vmatprep.subr.mxu0 0.0
      %1288 = vmatpush1.msra.mxu0 0.0
      %1289 = vmatprep.mubr.f32.mxu0 0.0
      %1290 = vmatmul.mubr.f32.gmra.mrb[0].mxu0 %v1081
      %v1291 = vpop.f32.mrb[0].mxu0
      %v1292 = vadd.f32 0.0, %v1291
      %v1293 = vpop.f32.mrb[0].mxu0
      %v1294 = vadd.f32 0.0, %v1293
      %1295 = vdwg.mxu0
      %1296 = vmatprep.subr.mxu0 %v882
      %1297 = vmatpush1.msra.mxu0 %v881
      %1298 = vmatprep.subr.mxu0 %v916
      %1299 = vmatpush1.msra.mxu0 %v915
      %1300 = vmatprep.subr.mxu0 %v950
      %1301 = vmatpush1.msra.mxu0 %v949
      %1302 = vmatprep.subr.mxu0 0.0
      %1303 = vmatpush1.msra.mxu0 0.0
      %1304 = vmatprep.subr.mxu0 0.0
      %1305 = vmatpush1.msra.mxu0 0.0
      %1306 = vmatprep.subr.mxu0 0.0
      %1307 = vmatpush1.msra.mxu0 0.0
      %1308 = vmatprep.subr.mxu0 0.0
      %1309 = vmatpush1.msra.mxu0 0.0
      %1310 = vmatprep.subr.mxu0 0.0
      %1311 = vmatpush1.msra.mxu0 0.0
      %1312 = vmatprep.subr.mxu0 0.0
      %1313 = vmatpush1.msra.mxu0 0.0
      %1314 = vmatprep.subr.mxu0 0.0
      %1315 = vmatpush1.msra.mxu0 0.0
      %1316 = vmatprep.subr.mxu0 0.0
      %1317 = vmatpush1.msra.mxu0 0.0
      %1318 = vmatprep.subr.mxu0 0.0
      %1319 = vmatpush1.msra.mxu0 0.0
      %1320 = vmatprep.subr.mxu0 0.0
      %1321 = vmatpush1.msra.mxu0 0.0
      %1322 = vmatprep.subr.mxu0 0.0
      %1323 = vmatpush1.msra.mxu0 0.0
      %1324 = vmatprep.subr.mxu0 0.0
      %1325 = vmatpush1.msra.mxu0 0.0
      %1326 = vmatprep.subr.mxu0 0.0
      %1327 = vmatpush1.msra.mxu0 0.0
      %1328 = vmatprep.subr.mxu0 0.0
      %1329 = vmatpush1.msra.mxu0 0.0
      %1330 = vmatprep.subr.mxu0 0.0
      %1331 = vmatpush1.msra.mxu0 0.0
      %1332 = vmatprep.subr.mxu0 0.0
      %1333 = vmatpush1.msra.mxu0 0.0
      %1334 = vmatprep.subr.mxu0 0.0
      %1335 = vmatpush1.msra.mxu0 0.0
      %1336 = vmatprep.subr.mxu0 0.0
      %1337 = vmatpush1.msra.mxu0 0.0
      %1338 = vmatprep.subr.mxu0 0.0
      %1339 = vmatpush1.msra.mxu0 0.0
      %1340 = vmatprep.subr.mxu0 0.0
      %1341 = vmatpush1.msra.mxu0 0.0
      %1342 = vmatprep.subr.mxu0 0.0
      %1343 = vmatpush1.msra.mxu0 0.0
      %1344 = vmatprep.subr.mxu0 0.0
      %1345 = vmatpush1.msra.mxu0 0.0
      %1346 = vmatprep.subr.mxu0 0.0
      %1347 = vmatpush1.msra.mxu0 0.0
      %1348 = vmatprep.subr.mxu0 0.0
      %1349 = vmatpush1.msra.mxu0 0.0
      %1350 = vmatprep.subr.mxu0 0.0
      %1351 = vmatpush1.msra.mxu0 0.0
      %1352 = vmatprep.subr.mxu0 0.0
      %1353 = vmatpush1.msra.mxu0 0.0
      %1354 = vmatprep.subr.mxu0 0.0
      %1355 = vmatpush1.msra.mxu0 0.0
      %1356 = vmatprep.subr.mxu0 0.0
      %1357 = vmatpush1.msra.mxu0 0.0
      %1358 = vmatprep.subr.mxu0 0.0
      %1359 = vmatpush1.msra.mxu0 0.0
      %1360 = vmatprep.mubr.f32.mxu0 0.0
      %1361 = vmatmul.mubr.f32.gmra.mrb[0].mxu0 %v1081
      %v1362 = vpop.f32.mrb[0].mxu0
      %v1363 = vadd.f32 0.0, %v1362
      %v1364 = vpop.f32.mrb[0].mxu0
      %v1365 = vadd.f32 0.0, %v1364
      %1366 = vdwg.mxu0
      %1367 = vmatprep.subr.mxu0 %v884
      %1368 = vmatpush1.msra.mxu0 %v883
      %1369 = vmatprep.subr.mxu0 %v918
      %1370 = vmatpush1.msra.mxu0 %v917
      %1371 = vmatprep.subr.mxu0 %v952
      %1372 = vmatpush1.msra.mxu0 %v951
      %1373 = vmatprep.subr.mxu0 0.0
      %1374 = vmatpush1.msra.mxu0 0.0
      %1375 = vmatprep.subr.mxu0 0.0
      %1376 = vmatpush1.msra.mxu0 0.0
      %1377 = vmatprep.subr.mxu0 0.0
      %1378 = vmatpush1.msra.mxu0 0.0
      %1379 = vmatprep.subr.mxu0 0.0
      %1380 = vmatpush1.msra.mxu0 0.0
      %1381 = vmatprep.subr.mxu0 0.0
      %1382 = vmatpush1.msra.mxu0 0.0
      %1383 = vmatprep.subr.mxu0 0.0
      %1384 = vmatpush1.msra.mxu0 0.0
      %1385 = vmatprep.subr.mxu0 0.0
      %1386 = vmatpush1.msra.mxu0 0.0
      %1387 = vmatprep.subr.mxu0 0.0
      %1388 = vmatpush1.msra.mxu0 0.0
      %1389 = vmatprep.subr.mxu0 0.0
      %1390 = vmatpush1.msra.mxu0 0.0
      %1391 = vmatprep.subr.mxu0 0.0
      %1392 = vmatpush1.msra.mxu0 0.0
      %1393 = vmatprep.subr.mxu0 0.0
      %1394 = vmatpush1.msra.mxu0 0.0
      %1395 = vmatprep.subr.mxu0 0.0
      %1396 = vmatpush1.msra.mxu0 0.0
      %1397 = vmatprep.subr.mxu0 0.0
      %1398 = vmatpush1.msra.mxu0 0.0
      %1399 = vmatprep.subr.mxu0 0.0
      %1400 = vmatpush1.msra.mxu0 0.0
      %1401 = vmatprep.subr.mxu0 0.0
      %1402 = vmatpush1.msra.mxu0 0.0
      %1403 = vmatprep.subr.mxu0 0.0
      %1404 = vmatpush1.msra.mxu0 0.0
      %1405 = vmatprep.subr.mxu0 0.0
      %1406 = vmatpush1.msra.mxu0 0.0
      %1407 = vmatprep.subr.mxu0 0.0
      %1408 = vmatpush1.msra.mxu0 0.0
      %1409 = vmatprep.subr.mxu0 0.0
      %1410 = vmatpush1.msra.mxu0 0.0
      %1411 = vmatprep.subr.mxu0 0.0
      %1412 = vmatpush1.msra.mxu0 0.0
      %1413 = vmatprep.subr.mxu0 0.0
      %1414 = vmatpush1.msra.mxu0 0.0
      %1415 = vmatprep.subr.mxu0 0.0
      %1416 = vmatpush1.msra.mxu0 0.0
      %1417 = vmatprep.subr.mxu0 0.0
      %1418 = vmatpush1.msra.mxu0 0.0
      %1419 = vmatprep.subr.mxu0 0.0
      %1420 = vmatpush1.msra.mxu0 0.0
      %1421 = vmatprep.subr.mxu0 0.0
      %1422 = vmatpush1.msra.mxu0 0.0
      %1423 = vmatprep.subr.mxu0 0.0
      %1424 = vmatpush1.msra.mxu0 0.0
      %1425 = vmatprep.subr.mxu0 0.0
      %1426 = vmatpush1.msra.mxu0 0.0
      %1427 = vmatprep.subr.mxu0 0.0
      %1428 = vmatpush1.msra.mxu0 0.0
      %1429 = vmatprep.subr.mxu0 0.0
      %1430 = vmatpush1.msra.mxu0 0.0
      %1431 = vmatprep.mubr.f32.mxu0 0.0
      %1432 = vmatmul.mubr.f32.gmra.mrb[0].mxu0 %v1081
      %v1433 = vpop.f32.mrb[0].mxu0
      %v1434 = vadd.f32 0.0, %v1433
      %v1435 = vpop.f32.mrb[0].mxu0
      %v1436 = vadd.f32 0.0, %v1435
      %1437 = vdwg.mxu0
      %1438 = vmatprep.subr.mxu0 %v886
      %1439 = vmatpush1.msra.mxu0 %v885
      %1440 = vmatprep.subr.mxu0 %v920
      %1441 = vmatpush1.msra.mxu0 %v919
      %1442 = vmatprep.subr.mxu0 %v954
      %1443 = vmatpush1.msra.mxu0 %v953
      %1444 = vmatprep.subr.mxu0 0.0
      %1445 = vmatpush1.msra.mxu0 0.0
      %1446 = vmatprep.subr.mxu0 0.0
      %1447 = vmatpush1.msra.mxu0 0.0
      %1448 = vmatprep.subr.mxu0 0.0
      %1449 = vmatpush1.msra.mxu0 0.0
      %1450 = vmatprep.subr.mxu0 0.0
      %1451 = vmatpush1.msra.mxu0 0.0
      %1452 = vmatprep.subr.mxu0 0.0
      %1453 = vmatpush1.msra.mxu0 0.0
      %1454 = vmatprep.subr.mxu0 0.0
      %1455 = vmatpush1.msra.mxu0 0.0
      %1456 = vmatprep.subr.mxu0 0.0
      %1457 = vmatpush1.msra.mxu0 0.0
      %1458 = vmatprep.subr.mxu0 0.0
      %1459 = vmatpush1.msra.mxu0 0.0
      %1460 = vmatprep.subr.mxu0 0.0
      %1461 = vmatpush1.msra.mxu0 0.0
      %1462 = vmatprep.subr.mxu0 0.0
      %1463 = vmatpush1.msra.mxu0 0.0
      %1464 = vmatprep.subr.mxu0 0.0
      %1465 = vmatpush1.msra.mxu0 0.0
      %1466 = vmatprep.subr.mxu0 0.0
      %1467 = vmatpush1.msra.mxu0 0.0
      %1468 = vmatprep.subr.mxu0 0.0
      %1469 = vmatpush1.msra.mxu0 0.0
      %1470 = vmatprep.subr.mxu0 0.0
      %1471 = vmatpush1.msra.mxu0 0.0
      %1472 = vmatprep.subr.mxu0 0.0
      %1473 = vmatpush1.msra.mxu0 0.0
      %1474 = vmatprep.subr.mxu0 0.0
      %1475 = vmatpush1.msra.mxu0 0.0
      %1476 = vmatprep.subr.mxu0 0.0
      %1477 = vmatpush1.msra.mxu0 0.0
      %1478 = vmatprep.subr.mxu0 0.0
      %1479 = vmatpush1.msra.mxu0 0.0
      %1480 = vmatprep.subr.mxu0 0.0
      %1481 = vmatpush1.msra.mxu0 0.0
      %1482 = vmatprep.subr.mxu0 0.0
      %1483 = vmatpush1.msra.mxu0 0.0
      %1484 = vmatprep.subr.mxu0 0.0
      %1485 = vmatpush1.msra.mxu0 0.0
      %1486 = vmatprep.subr.mxu0 0.0
      %1487 = vmatpush1.msra.mxu0 0.0
      %1488 = vmatprep.subr.mxu0 0.0
      %1489 = vmatpush1.msra.mxu0 0.0
      %1490 = vmatprep.subr.mxu0 0.0
      %1491 = vmatpush1.msra.mxu0 0.0
      %1492 = vmatprep.subr.mxu0 0.0
      %1493 = vmatpush1.msra.mxu0 0.0
      %1494 = vmatprep.subr.mxu0 0.0
      %1495 = vmatpush1.msra.mxu0 0.0
      %1496 = vmatprep.subr.mxu0 0.0
      %1497 = vmatpush1.msra.mxu0 0.0
      %1498 = vmatprep.subr.mxu0 0.0
      %1499 = vmatpush1.msra.mxu0 0.0
      %1500 = vmatprep.subr.mxu0 0.0
      %1501 = vmatpush1.msra.mxu0 0.0
      %1502 = vmatprep.mubr.f32.mxu0 0.0
      %1503 = vmatmul.mubr.f32.gmra.mrb[0].mxu0 %v1081
      %v1504 = vpop.f32.mrb[0].mxu0
      %v1505 = vadd.f32 0.0, %v1504
      %v1506 = vpop.f32.mrb[0].mxu0
      %v1507 = vadd.f32 0.0, %v1506
      %1508 = vdwg.mxu0
      %1509 = vmatprep.subr.mxu0 %v888
      %1510 = vmatpush1.msra.mxu0 %v887
      %1511 = vmatprep.subr.mxu0 %v922
      %1512 = vmatpush1.msra.mxu0 %v921
      %1513 = vmatprep.subr.mxu0 %v956
      %1514 = vmatpush1.msra.mxu0 %v955
      %1515 = vmatprep.subr.mxu0 0.0
      %1516 = vmatpush1.msra.mxu0 0.0
      %1517 = vmatprep.subr.mxu0 0.0
      %1518 = vmatpush1.msra.mxu0 0.0
      %1519 = vmatprep.subr.mxu0 0.0
      %1520 = vmatpush1.msra.mxu0 0.0
      %1521 = vmatprep.subr.mxu0 0.0
      %1522 = vmatpush1.msra.mxu0 0.0
      %1523 = vmatprep.subr.mxu0 0.0
      %1524 = vmatpush1.msra.mxu0 0.0
      %1525 = vmatprep.subr.mxu0 0.0
      %1526 = vmatpush1.msra.mxu0 0.0
      %1527 = vmatprep.subr.mxu0 0.0
      %1528 = vmatpush1.msra.mxu0 0.0
      %1529 = vmatprep.subr.mxu0 0.0
      %1530 = vmatpush1.msra.mxu0 0.0
      %1531 = vmatprep.subr.mxu0 0.0
      %1532 = vmatpush1.msra.mxu0 0.0
      %1533 = vmatprep.subr.mxu0 0.0
      %1534 = vmatpush1.msra.mxu0 0.0
      %1535 = vmatprep.subr.mxu0 0.0
      %1536 = vmatpush1.msra.mxu0 0.0
      %1537 = vmatprep.subr.mxu0 0.0
      %1538 = vmatpush1.msra.mxu0 0.0
      %1539 = vmatprep.subr.mxu0 0.0
      %1540 = vmatpush1.msra.mxu0 0.0
      %1541 = vmatprep.subr.mxu0 0.0
      %1542 = vmatpush1.msra.mxu0 0.0
      %1543 = vmatprep.subr.mxu0 0.0
      %1544 = vmatpush1.msra.mxu0 0.0
      %1545 = vmatprep.subr.mxu0 0.0
      %1546 = vmatpush1.msra.mxu0 0.0
      %1547 = vmatprep.subr.mxu0 0.0
      %1548 = vmatpush1.msra.mxu0 0.0
      %1549 = vmatprep.subr.mxu0 0.0
      %1550 = vmatpush1.msra.mxu0 0.0
      %1551 = vmatprep.subr.mxu0 0.0
      %1552 = vmatpush1.msra.mxu0 0.0
      %1553 = vmatprep.subr.mxu0 0.0
      %1554 = vmatpush1.msra.mxu0 0.0
      %1555 = vmatprep.subr.mxu0 0.0
      %1556 = vmatpush1.msra.mxu0 0.0
      %1557 = vmatprep.subr.mxu0 0.0
      %1558 = vmatpush1.msra.mxu0 0.0
      %1559 = vmatprep.subr.mxu0 0.0
      %1560 = vmatpush1.msra.mxu0 0.0
      %1561 = vmatprep.subr.mxu0 0.0
      %1562 = vmatpush1.msra.mxu0 0.0
      %1563 = vmatprep.subr.mxu0 0.0
      %1564 = vmatpush1.msra.mxu0 0.0
      %1565 = vmatprep.subr.mxu0 0.0
      %1566 = vmatpush1.msra.mxu0 0.0
      %1567 = vmatprep.subr.mxu0 0.0
      %1568 = vmatpush1.msra.mxu0 0.0
      %1569 = vmatprep.subr.mxu0 0.0
      %1570 = vmatpush1.msra.mxu0 0.0
      %1571 = vmatprep.subr.mxu0 0.0
      %1572 = vmatpush1.msra.mxu0 0.0
      %1573 = vmatprep.mubr.f32.mxu0 0.0
      %1574 = vmatmul.mubr.f32.gmra.mrb[0].mxu0 %v1081
      %v1575 = vpop.f32.mrb[0].mxu0
      %v1576 = vadd.f32 0.0, %v1575
      %v1577 = vpop.f32.mrb[0].mxu0
      %v1578 = vadd.f32 0.0, %v1577
      %1579 = vdwg.mxu0
      %1580 = vmatprep.subr.mxu0 %v890
      %1581 = vmatpush1.msra.mxu0 %v889
      %1582 = vmatprep.subr.mxu0 %v924
      %1583 = vmatpush1.msra.mxu0 %v923
      %1584 = vmatprep.subr.mxu0 %v958
      %1585 = vmatpush1.msra.mxu0 %v957
      %1586 = vmatprep.subr.mxu0 0.0
      %1587 = vmatpush1.msra.mxu0 0.0
      %1588 = vmatprep.subr.mxu0 0.0
      %1589 = vmatpush1.msra.mxu0 0.0
      %1590 = vmatprep.subr.mxu0 0.0
      %1591 = vmatpush1.msra.mxu0 0.0
      %1592 = vmatprep.subr.mxu0 0.0
      %1593 = vmatpush1.msra.mxu0 0.0
      %1594 = vmatprep.subr.mxu0 0.0
      %1595 = vmatpush1.msra.mxu0 0.0
      %1596 = vmatprep.subr.mxu0 0.0
      %1597 = vmatpush1.msra.mxu0 0.0
      %1598 = vmatprep.subr.mxu0 0.0
      %1599 = vmatpush1.msra.mxu0 0.0
      %1600 = vmatprep.subr.mxu0 0.0
      %1601 = vmatpush1.msra.mxu0 0.0
      %1602 = vmatprep.subr.mxu0 0.0
      %1603 = vmatpush1.msra.mxu0 0.0
      %1604 = vmatprep.subr.mxu0 0.0
      %1605 = vmatpush1.msra.mxu0 0.0
      %1606 = vmatprep.subr.mxu0 0.0
      %1607 = vmatpush1.msra.mxu0 0.0
      %1608 = vmatprep.subr.mxu0 0.0
      %1609 = vmatpush1.msra.mxu0 0.0
      %1610 = vmatprep.subr.mxu0 0.0
      %1611 = vmatpush1.msra.mxu0 0.0
      %1612 = vmatprep.subr.mxu0 0.0
      %1613 = vmatpush1.msra.mxu0 0.0
      %1614 = vmatprep.subr.mxu0 0.0
      %1615 = vmatpush1.msra.mxu0 0.0
      %1616 = vmatprep.subr.mxu0 0.0
      %1617 = vmatpush1.msra.mxu0 0.0
      %1618 = vmatprep.subr.mxu0 0.0
      %1619 = vmatpush1.msra.mxu0 0.0
      %1620 = vmatprep.subr.mxu0 0.0
      %1621 = vmatpush1.msra.mxu0 0.0
      %1622 = vmatprep.subr.mxu0 0.0
      %1623 = vmatpush1.msra.mxu0 0.0
      %1624 = vmatprep.subr.mxu0 0.0
      %1625 = vmatpush1.msra.mxu0 0.0
      %1626 = vmatprep.subr.mxu0 0.0
      %1627 = vmatpush1.msra.mxu0 0.0
      %1628 = vmatprep.subr.mxu0 0.0
      %1629 = vmatpush1.msra.mxu0 0.0
      %1630 = vmatprep.subr.mxu0 0.0
      %1631 = vmatpush1.msra.mxu0 0.0
      %1632 = vmatprep.subr.mxu0 0.0
      %1633 = vmatpush1.msra.mxu0 0.0
      %1634 = vmatprep.subr.mxu0 0.0
      %1635 = vmatpush1.msra.mxu0 0.0
      %1636 = vmatprep.subr.mxu0 0.0
      %1637 = vmatpush1.msra.mxu0 0.0
      %1638 = vmatprep.subr.mxu0 0.0
      %1639 = vmatpush1.msra.mxu0 0.0
      %1640 = vmatprep.subr.mxu0 0.0
      %1641 = vmatpush1.msra.mxu0 0.0
      %1642 = vmatprep.subr.mxu0 0.0
      %1643 = vmatpush1.msra.mxu0 0.0
      %1644 = vmatprep.mubr.f32.mxu0 0.0
      %1645 = vmatmul.mubr.f32.gmra.mrb[0].mxu0 %v1081
      %v1646 = vpop.f32.mrb[0].mxu0
      %v1647 = vadd.f32 0.0, %v1646
      %v1648 = vpop.f32.mrb[0].mxu0
      %v1649 = vadd.f32 0.0, %v1648
      %1650 = vdwg.mxu0
      %1651 = vmatprep.subr.mxu0 %v892
      %1652 = vmatpush1.msra.mxu0 %v891
      %1653 = vmatprep.subr.mxu0 %v926
      %1654 = vmatpush1.msra.mxu0 %v925
      %1655 = vmatprep.subr.mxu0 %v960
      %1656 = vmatpush1.msra.mxu0 %v959
      %1657 = vmatprep.subr.mxu0 0.0
      %1658 = vmatpush1.msra.mxu0 0.0
      %1659 = vmatprep.subr.mxu0 0.0
      %1660 = vmatpush1.msra.mxu0 0.0
      %1661 = vmatprep.subr.mxu0 0.0
      %1662 = vmatpush1.msra.mxu0 0.0
      %1663 = vmatprep.subr.mxu0 0.0
      %1664 = vmatpush1.msra.mxu0 0.0
      %1665 = vmatprep.subr.mxu0 0.0
      %1666 = vmatpush1.msra.mxu0 0.0
      %1667 = vmatprep.subr.mxu0 0.0
      %1668 = vmatpush1.msra.mxu0 0.0
      %1669 = vmatprep.subr.mxu0 0.0
      %1670 = vmatpush1.msra.mxu0 0.0
      %1671 = vmatprep.subr.mxu0 0.0
      %1672 = vmatpush1.msra.mxu0 0.0
      %1673 = vmatprep.subr.mxu0 0.0
      %1674 = vmatpush1.msra.mxu0 0.0
      %1675 = vmatprep.subr.mxu0 0.0
      %1676 = vmatpush1.msra.mxu0 0.0
      %1677 = vmatprep.subr.mxu0 0.0
      %1678 = vmatpush1.msra.mxu0 0.0
      %1679 = vmatprep.subr.mxu0 0.0
      %1680 = vmatpush1.msra.mxu0 0.0
      %1681 = vmatprep.subr.mxu0 0.0
      %1682 = vmatpush1.msra.mxu0 0.0
      %1683 = vmatprep.subr.mxu0 0.0
      %1684 = vmatpush1.msra.mxu0 0.0
      %1685 = vmatprep.subr.mxu0 0.0
      %1686 = vmatpush1.msra.mxu0 0.0
      %1687 = vmatprep.subr.mxu0 0.0
      %1688 = vmatpush1.msra.mxu0 0.0
      %1689 = vmatprep.subr.mxu0 0.0
      %1690 = vmatpush1.msra.mxu0 0.0
      %1691 = vmatprep.subr.mxu0 0.0
      %1692 = vmatpush1.msra.mxu0 0.0
      %1693 = vmatprep.subr.mxu0 0.0
      %1694 = vmatpush1.msra.mxu0 0.0
      %1695 = vmatprep.subr.mxu0 0.0
      %1696 = vmatpush1.msra.mxu0 0.0
      %1697 = vmatprep.subr.mxu0 0.0
      %1698 = vmatpush1.msra.mxu0 0.0
      %1699 = vmatprep.subr.mxu0 0.0
      %1700 = vmatpush1.msra.mxu0 0.0
      %1701 = vmatprep.subr.mxu0 0.0
      %1702 = vmatpush1.msra.mxu0 0.0
      %1703 = vmatprep.subr.mxu0 0.0
      %1704 = vmatpush1.msra.mxu0 0.0
      %1705 = vmatprep.subr.mxu0 0.0
      %1706 = vmatpush1.msra.mxu0 0.0
      %1707 = vmatprep.subr.mxu0 0.0
      %1708 = vmatpush1.msra.mxu0 0.0
      %1709 = vmatprep.subr.mxu0 0.0
      %1710 = vmatpush1.msra.mxu0 0.0
      %1711 = vmatprep.subr.mxu0 0.0
      %1712 = vmatpush1.msra.mxu0 0.0
      %1713 = vmatprep.subr.mxu0 0.0
      %1714 = vmatpush1.msra.mxu0 0.0
      %1715 = vmatprep.mubr.f32.mxu0 0.0
      %1716 = vmatmul.mubr.f32.gmra.mrb[0].mxu0 %v1081
      %v1717 = vpop.f32.mrb[0].mxu0
      %v1718 = vadd.f32 0.0, %v1717
      %v1719 = vpop.f32.mrb[0].mxu0
      %v1720 = vadd.f32 0.0, %v1719
      %1721 = vdwg.mxu0
      %1722 = vmatprep.subr.mxu0 %v894
      %1723 = vmatpush1.msra.mxu0 %v893
      %1724 = vmatprep.subr.mxu0 %v928
      %1725 = vmatpush1.msra.mxu0 %v927
      %1726 = vmatprep.subr.mxu0 %v962
      %1727 = vmatpush1.msra.mxu0 %v961
      %1728 = vmatprep.subr.mxu0 0.0
      %1729 = vmatpush1.msra.mxu0 0.0
      %1730 = vmatprep.subr.mxu0 0.0
      %1731 = vmatpush1.msra.mxu0 0.0
      %1732 = vmatprep.subr.mxu0 0.0
      %1733 = vmatpush1.msra.mxu0 0.0
      %1734 = vmatprep.subr.mxu0 0.0
      %1735 = vmatpush1.msra.mxu0 0.0
      %1736 = vmatprep.subr.mxu0 0.0
      %1737 = vmatpush1.msra.mxu0 0.0
      %1738 = vmatprep.subr.mxu0 0.0
      %1739 = vmatpush1.msra.mxu0 0.0
      %1740 = vmatprep.subr.mxu0 0.0
      %1741 = vmatpush1.msra.mxu0 0.0
      %1742 = vmatprep.subr.mxu0 0.0
      %1743 = vmatpush1.msra.mxu0 0.0
      %1744 = vmatprep.subr.mxu0 0.0
      %1745 = vmatpush1.msra.mxu0 0.0
      %1746 = vmatprep.subr.mxu0 0.0
      %1747 = vmatpush1.msra.mxu0 0.0
      %1748 = vmatprep.subr.mxu0 0.0
      %1749 = vmatpush1.msra.mxu0 0.0
      %1750 = vmatprep.subr.mxu0 0.0
      %1751 = vmatpush1.msra.mxu0 0.0
      %1752 = vmatprep.subr.mxu0 0.0
      %1753 = vmatpush1.msra.mxu0 0.0
      %1754 = vmatprep.subr.mxu0 0.0
      %1755 = vmatpush1.msra.mxu0 0.0
      %1756 = vmatprep.subr.mxu0 0.0
      %1757 = vmatpush1.msra.mxu0 0.0
      %1758 = vmatprep.subr.mxu0 0.0
      %1759 = vmatpush1.msra.mxu0 0.0
      %1760 = vmatprep.subr.mxu0 0.0
      %1761 = vmatpush1.msra.mxu0 0.0
      %1762 = vmatprep.subr.mxu0 0.0
      %1763 = vmatpush1.msra.mxu0 0.0
      %1764 = vmatprep.subr.mxu0 0.0
      %1765 = vmatpush1.msra.mxu0 0.0
      %1766 = vmatprep.subr.mxu0 0.0
      %1767 = vmatpush1.msra.mxu0 0.0
      %1768 = vmatprep.subr.mxu0 0.0
      %1769 = vmatpush1.msra.mxu0 0.0
      %1770 = vmatprep.subr.mxu0 0.0
      %1771 = vmatpush1.msra.mxu0 0.0
      %1772 = vmatprep.subr.mxu0 0.0
      %1773 = vmatpush1.msra.mxu0 0.0
      %1774 = vmatprep.subr.mxu0 0.0
      %1775 = vmatpush1.msra.mxu0 0.0
      %1776 = vmatprep.subr.mxu0 0.0
      %1777 = vmatpush1.msra.mxu0 0.0
      %1778 = vmatprep.subr.mxu0 0.0
      %1779 = vmatpush1.msra.mxu0 0.0
      %1780 = vmatprep.subr.mxu0 0.0
      %1781 = vmatpush1.msra.mxu0 0.0
      %1782 = vmatprep.subr.mxu0 0.0
      %1783 = vmatpush1.msra.mxu0 0.0
      %1784 = vmatprep.subr.mxu0 0.0
      %1785 = vmatpush1.msra.mxu0 0.0
      %1786 = vmatprep.mubr.f32.mxu0 0.0
      %1787 = vmatmul.mubr.f32.gmra.mrb[0].mxu0 %v1081
      %v1788 = vpop.f32.mrb[0].mxu0
      %v1789 = vadd.f32 0.0, %v1788
      %v1790 = vpop.f32.mrb[0].mxu0
      %v1791 = vadd.f32 0.0, %v1790
      %1792 = vdwg.mxu0
      %1793 = vmatprep.subr.mxu0 %v896
      %1794 = vmatpush1.msra.mxu0 %v895
      %1795 = vmatprep.subr.mxu0 %v930
      %1796 = vmatpush1.msra.mxu0 %v929
      %1797 = vmatprep.subr.mxu0 %v964
      %1798 = vmatpush1.msra.mxu0 %v963
      %1799 = vmatprep.subr.mxu0 0.0
      %1800 = vmatpush1.msra.mxu0 0.0
      %1801 = vmatprep.subr.mxu0 0.0
      %1802 = vmatpush1.msra.mxu0 0.0
      %1803 = vmatprep.subr.mxu0 0.0
      %1804 = vmatpush1.msra.mxu0 0.0
      %1805 = vmatprep.subr.mxu0 0.0
      %1806 = vmatpush1.msra.mxu0 0.0
      %1807 = vmatprep.subr.mxu0 0.0
      %1808 = vmatpush1.msra.mxu0 0.0
      %1809 = vmatprep.subr.mxu0 0.0
      %1810 = vmatpush1.msra.mxu0 0.0
      %1811 = vmatprep.subr.mxu0 0.0
      %1812 = vmatpush1.msra.mxu0 0.0
      %1813 = vmatprep.subr.mxu0 0.0
      %1814 = vmatpush1.msra.mxu0 0.0
      %1815 = vmatprep.subr.mxu0 0.0
      %1816 = vmatpush1.msra.mxu0 0.0
      %1817 = vmatprep.subr.mxu0 0.0
      %1818 = vmatpush1.msra.mxu0 0.0
      %1819 = vmatprep.subr.mxu0 0.0
      %1820 = vmatpush1.msra.mxu0 0.0
      %1821 = vmatprep.subr.mxu0 0.0
      %1822 = vmatpush1.msra.mxu0 0.0
      %1823 = vmatprep.subr.mxu0 0.0
      %1824 = vmatpush1.msra.mxu0 0.0
      %1825 = vmatprep.subr.mxu0 0.0
      %1826 = vmatpush1.msra.mxu0 0.0
      %1827 = vmatprep.subr.mxu0 0.0
      %1828 = vmatpush1.msra.mxu0 0.0
      %1829 = vmatprep.subr.mxu0 0.0
      %1830 = vmatpush1.msra.mxu0 0.0
      %1831 = vmatprep.subr.mxu0 0.0
      %1832 = vmatpush1.msra.mxu0 0.0
      %1833 = vmatprep.subr.mxu0 0.0
      %1834 = vmatpush1.msra.mxu0 0.0
      %1835 = vmatprep.subr.mxu0 0.0
      %1836 = vmatpush1.msra.mxu0 0.0
      %1837 = vmatprep.subr.mxu0 0.0
      %1838 = vmatpush1.msra.mxu0 0.0
      %1839 = vmatprep.subr.mxu0 0.0
      %1840 = vmatpush1.msra.mxu0 0.0
      %1841 = vmatprep.subr.mxu0 0.0
      %1842 = vmatpush1.msra.mxu0 0.0
      %1843 = vmatprep.subr.mxu0 0.0
      %1844 = vmatpush1.msra.mxu0 0.0
      %1845 = vmatprep.subr.mxu0 0.0
      %1846 = vmatpush1.msra.mxu0 0.0
      %1847 = vmatprep.subr.mxu0 0.0
      %1848 = vmatpush1.msra.mxu0 0.0
      %1849 = vmatprep.subr.mxu0 0.0
      %1850 = vmatpush1.msra.mxu0 0.0
      %1851 = vmatprep.subr.mxu0 0.0
      %1852 = vmatpush1.msra.mxu0 0.0
      %1853 = vmatprep.subr.mxu0 0.0
      %1854 = vmatpush1.msra.mxu0 0.0
      %1855 = vmatprep.subr.mxu0 0.0
      %1856 = vmatpush1.msra.mxu0 0.0
      %1857 = vmatprep.mubr.f32.mxu0 0.0
      %1858 = vmatmul.mubr.f32.gmra.mrb[0].mxu0 %v1081
      %v1859 = vpop.f32.mrb[0].mxu0
      %v1860 = vadd.f32 0.0, %v1859
      %v1861 = vpop.f32.mrb[0].mxu0
      %v1862 = vadd.f32 0.0, %v1861
      %1863 = vdwg.mxu0
      %1864 = vmatprep.subr.mxu0 %v898
      %1865 = vmatpush1.msra.mxu0 %v897
      %1866 = vmatprep.subr.mxu0 %v932
      %1867 = vmatpush1.msra.mxu0 %v931
      %1868 = vmatprep.subr.mxu0 %v966
      %1869 = vmatpush1.msra.mxu0 %v965
      %1870 = vmatprep.subr.mxu0 0.0
      %1871 = vmatpush1.msra.mxu0 0.0
      %1872 = vmatprep.subr.mxu0 0.0
      %1873 = vmatpush1.msra.mxu0 0.0
      %1874 = vmatprep.subr.mxu0 0.0
      %1875 = vmatpush1.msra.mxu0 0.0
      %1876 = vmatprep.subr.mxu0 0.0
      %1877 = vmatpush1.msra.mxu0 0.0
      %1878 = vmatprep.subr.mxu0 0.0
      %1879 = vmatpush1.msra.mxu0 0.0
      %1880 = vmatprep.subr.mxu0 0.0
      %1881 = vmatpush1.msra.mxu0 0.0
      %1882 = vmatprep.subr.mxu0 0.0
      %1883 = vmatpush1.msra.mxu0 0.0
      %1884 = vmatprep.subr.mxu0 0.0
      %1885 = vmatpush1.msra.mxu0 0.0
      %1886 = vmatprep.subr.mxu0 0.0
      %1887 = vmatpush1.msra.mxu0 0.0
      %1888 = vmatprep.subr.mxu0 0.0
      %1889 = vmatpush1.msra.mxu0 0.0
      %1890 = vmatprep.subr.mxu0 0.0
      %1891 = vmatpush1.msra.mxu0 0.0
      %1892 = vmatprep.subr.mxu0 0.0
      %1893 = vmatpush1.msra.mxu0 0.0
      %1894 = vmatprep.subr.mxu0 0.0
      %1895 = vmatpush1.msra.mxu0 0.0
      %1896 = vmatprep.subr.mxu0 0.0
      %1897 = vmatpush1.msra.mxu0 0.0
      %1898 = vmatprep.subr.mxu0 0.0
      %1899 = vmatpush1.msra.mxu0 0.0
      %1900 = vmatprep.subr.mxu0 0.0
      %1901 = vmatpush1.msra.mxu0 0.0
      %1902 = vmatprep.subr.mxu0 0.0
      %1903 = vmatpush1.msra.mxu0 0.0
      %1904 = vmatprep.subr.mxu0 0.0
      %1905 = vmatpush1.msra.mxu0 0.0
      %1906 = vmatprep.subr.mxu0 0.0
      %1907 = vmatpush1.msra.mxu0 0.0
      %1908 = vmatprep.subr.mxu0 0.0
      %1909 = vmatpush1.msra.mxu0 0.0
      %1910 = vmatprep.subr.mxu0 0.0
      %1911 = vmatpush1.msra.mxu0 0.0
      %1912 = vmatprep.subr.mxu0 0.0
      %1913 = vmatpush1.msra.mxu0 0.0
      %1914 = vmatprep.subr.mxu0 0.0
      %1915 = vmatpush1.msra.mxu0 0.0
      %1916 = vmatprep.subr.mxu0 0.0
      %1917 = vmatpush1.msra.mxu0 0.0
      %1918 = vmatprep.subr.mxu0 0.0
      %1919 = vmatpush1.msra.mxu0 0.0
      %1920 = vmatprep.subr.mxu0 0.0
      %1921 = vmatpush1.msra.mxu0 0.0
      %1922 = vmatprep.subr.mxu0 0.0
      %1923 = vmatpush1.msra.mxu0 0.0
      %1924 = vmatprep.subr.mxu0 0.0
      %1925 = vmatpush1.msra.mxu0 0.0
      %1926 = vmatprep.subr.mxu0 0.0
      %1927 = vmatpush1.msra.mxu0 0.0
      %1928 = vmatprep.mubr.f32.mxu0 0.0
      %1929 = vmatmul.mubr.f32.gmra.mrb[0].mxu0 %v1081
      %v1930 = vpop.f32.mrb[0].mxu0
      %v1931 = vadd.f32 0.0, %v1930
      %v1932 = vpop.f32.mrb[0].mxu0
      %v1933 = vadd.f32 0.0, %v1932
      %1934 = vdwg.mxu0
      %1935 = vmatprep.subr.mxu0 %v900
      %1936 = vmatpush1.msra.mxu0 %v899
      %1937 = vmatprep.subr.mxu0 %v934
      %1938 = vmatpush1.msra.mxu0 %v933
      %1939 = vmatprep.subr.mxu0 %v968
      %1940 = vmatpush1.msra.mxu0 %v967
      %1941 = vmatprep.subr.mxu0 0.0
      %1942 = vmatpush1.msra.mxu0 0.0
      %1943 = vmatprep.subr.mxu0 0.0
      %1944 = vmatpush1.msra.mxu0 0.0
      %1945 = vmatprep.subr.mxu0 0.0
      %1946 = vmatpush1.msra.mxu0 0.0
      %1947 = vmatprep.subr.mxu0 0.0
      %1948 = vmatpush1.msra.mxu0 0.0
      %1949 = vmatprep.subr.mxu0 0.0
      %1950 = vmatpush1.msra.mxu0 0.0
      %1951 = vmatprep.subr.mxu0 0.0
      %1952 = vmatpush1.msra.mxu0 0.0
      %1953 = vmatprep.subr.mxu0 0.0
      %1954 = vmatpush1.msra.mxu0 0.0
      %1955 = vmatprep.subr.mxu0 0.0
      %1956 = vmatpush1.msra.mxu0 0.0
      %1957 = vmatprep.subr.mxu0 0.0
      %1958 = vmatpush1.msra.mxu0 0.0
      %1959 = vmatprep.subr.mxu0 0.0
      %1960 = vmatpush1.msra.mxu0 0.0
      %1961 = vmatprep.subr.mxu0 0.0
      %1962 = vmatpush1.msra.mxu0 0.0
      %1963 = vmatprep.subr.mxu0 0.0
      %1964 = vmatpush1.msra.mxu0 0.0
      %1965 = vmatprep.subr.mxu0 0.0
      %1966 = vmatpush1.msra.mxu0 0.0
      %1967 = vmatprep.subr.mxu0 0.0
      %1968 = vmatpush1.msra.mxu0 0.0
      %1969 = vmatprep.subr.mxu0 0.0
      %1970 = vmatpush1.msra.mxu0 0.0
      %1971 = vmatprep.subr.mxu0 0.0
      %1972 = vmatpush1.msra.mxu0 0.0
      %1973 = vmatprep.subr.mxu0 0.0
      %1974 = vmatpush1.msra.mxu0 0.0
      %1975 = vmatprep.subr.mxu0 0.0
      %1976 = vmatpush1.msra.mxu0 0.0
      %1977 = vmatprep.subr.mxu0 0.0
      %1978 = vmatpush1.msra.mxu0 0.0
      %1979 = vmatprep.subr.mxu0 0.0
      %1980 = vmatpush1.msra.mxu0 0.0
      %1981 = vmatprep.subr.mxu0 0.0
      %1982 = vmatpush1.msra.mxu0 0.0
      %1983 = vmatprep.subr.mxu0 0.0
      %1984 = vmatpush1.msra.mxu0 0.0
      %1985 = vmatprep.subr.mxu0 0.0
      %1986 = vmatpush1.msra.mxu0 0.0
      %1987 = vmatprep.subr.mxu0 0.0
      %1988 = vmatpush1.msra.mxu0 0.0
      %1989 = vmatprep.subr.mxu0 0.0
      %1990 = vmatpush1.msra.mxu0 0.0
      %1991 = vmatprep.subr.mxu0 0.0
      %1992 = vmatpush1.msra.mxu0 0.0
      %1993 = vmatprep.subr.mxu0 0.0
      %1994 = vmatpush1.msra.mxu0 0.0
      %1995 = vmatprep.subr.mxu0 0.0
      %1996 = vmatpush1.msra.mxu0 0.0
      %1997 = vmatprep.subr.mxu0 0.0
      %1998 = vmatpush1.msra.mxu0 0.0
      %1999 = vmatprep.mubr.f32.mxu0 0.0
      %2000 = vmatmul.mubr.f32.gmra.mrb[0].mxu0 %v1081
      %v2001 = vpop.f32.mrb[0].mxu0
      %v2002 = vadd.f32 0.0, %v2001
      %v2003 = vpop.f32.mrb[0].mxu0
      %v2004 = vadd.f32 0.0, %v2003
      %2005 = vdwg.mxu0
      %2006 = vmatprep.subr.mxu0 %v902
      %2007 = vmatpush1.msra.mxu0 %v901
      %2008 = vmatprep.subr.mxu0 %v936
      %2009 = vmatpush1.msra.mxu0 %v935
      %2010 = vmatprep.subr.mxu0 %v970
      %2011 = vmatpush1.msra.mxu0 %v969
      %2012 = vmatprep.subr.mxu0 0.0
      %2013 = vmatpush1.msra.mxu0 0.0
      %2014 = vmatprep.subr.mxu0 0.0
      %2015 = vmatpush1.msra.mxu0 0.0
      %2016 = vmatprep.subr.mxu0 0.0
      %2017 = vmatpush1.msra.mxu0 0.0
      %2018 = vmatprep.subr.mxu0 0.0
      %2019 = vmatpush1.msra.mxu0 0.0
      %2020 = vmatprep.subr.mxu0 0.0
      %2021 = vmatpush1.msra.mxu0 0.0
      %2022 = vmatprep.subr.mxu0 0.0
      %2023 = vmatpush1.msra.mxu0 0.0
      %2024 = vmatprep.subr.mxu0 0.0
      %2025 = vmatpush1.msra.mxu0 0.0
      %2026 = vmatprep.subr.mxu0 0.0
      %2027 = vmatpush1.msra.mxu0 0.0
      %2028 = vmatprep.subr.mxu0 0.0
      %2029 = vmatpush1.msra.mxu0 0.0
      %2030 = vmatprep.subr.mxu0 0.0
      %2031 = vmatpush1.msra.mxu0 0.0
      %2032 = vmatprep.subr.mxu0 0.0
      %2033 = vmatpush1.msra.mxu0 0.0
      %2034 = vmatprep.subr.mxu0 0.0
      %2035 = vmatpush1.msra.mxu0 0.0
      %2036 = vmatprep.subr.mxu0 0.0
      %2037 = vmatpush1.msra.mxu0 0.0
      %2038 = vmatprep.subr.mxu0 0.0
      %2039 = vmatpush1.msra.mxu0 0.0
      %2040 = vmatprep.subr.mxu0 0.0
      %2041 = vmatpush1.msra.mxu0 0.0
      %2042 = vmatprep.subr.mxu0 0.0
      %2043 = vmatpush1.msra.mxu0 0.0
      %2044 = vmatprep.subr.mxu0 0.0
      %2045 = vmatpush1.msra.mxu0 0.0
      %2046 = vmatprep.subr.mxu0 0.0
      %2047 = vmatpush1.msra.mxu0 0.0
      %2048 = vmatprep.subr.mxu0 0.0
      %2049 = vmatpush1.msra.mxu0 0.0
      %2050 = vmatprep.subr.mxu0 0.0
      %2051 = vmatpush1.msra.mxu0 0.0
      %2052 = vmatprep.subr.mxu0 0.0
      %2053 = vmatpush1.msra.mxu0 0.0
      %2054 = vmatprep.subr.mxu0 0.0
      %2055 = vmatpush1.msra.mxu0 0.0
      %2056 = vmatprep.subr.mxu0 0.0
      %2057 = vmatpush1.msra.mxu0 0.0
      %2058 = vmatprep.subr.mxu0 0.0
      %2059 = vmatpush1.msra.mxu0 0.0
      %2060 = vmatprep.subr.mxu0 0.0
      %2061 = vmatpush1.msra.mxu0 0.0
      %2062 = vmatprep.subr.mxu0 0.0
      %2063 = vmatpush1.msra.mxu0 0.0
      %2064 = vmatprep.subr.mxu0 0.0
      %2065 = vmatpush1.msra.mxu0 0.0
      %2066 = vmatprep.subr.mxu0 0.0
      %2067 = vmatpush1.msra.mxu0 0.0
      %2068 = vmatprep.subr.mxu0 0.0
      %2069 = vmatpush1.msra.mxu0 0.0
      %2070 = vmatprep.mubr.f32.mxu0 0.0
      %2071 = vmatmul.mubr.f32.gmra.mrb[0].mxu0 %v1081
      %v2072 = vpop.f32.mrb[0].mxu0
      %v2073 = vadd.f32 0.0, %v2072
      %v2074 = vpop.f32.mrb[0].mxu0
      %v2075 = vadd.f32 0.0, %v2074
      %2076 = vdwg.mxu0
      %2077 = vmatprep.subr.mxu0 %v904
      %2078 = vmatpush1.msra.mxu0 %v903
      %2079 = vmatprep.subr.mxu0 %v938
      %2080 = vmatpush1.msra.mxu0 %v937
      %2081 = vmatprep.subr.mxu0 %v972
      %2082 = vmatpush1.msra.mxu0 %v971
      %2083 = vmatprep.subr.mxu0 0.0
      %2084 = vmatpush1.msra.mxu0 0.0
      %2085 = vmatprep.subr.mxu0 0.0
      %2086 = vmatpush1.msra.mxu0 0.0
      %2087 = vmatprep.subr.mxu0 0.0
      %2088 = vmatpush1.msra.mxu0 0.0
      %2089 = vmatprep.subr.mxu0 0.0
      %2090 = vmatpush1.msra.mxu0 0.0
      %2091 = vmatprep.subr.mxu0 0.0
      %2092 = vmatpush1.msra.mxu0 0.0
      %2093 = vmatprep.subr.mxu0 0.0
      %2094 = vmatpush1.msra.mxu0 0.0
      %2095 = vmatprep.subr.mxu0 0.0
      %2096 = vmatpush1.msra.mxu0 0.0
      %2097 = vmatprep.subr.mxu0 0.0
      %2098 = vmatpush1.msra.mxu0 0.0
      %2099 = vmatprep.subr.mxu0 0.0
      %2100 = vmatpush1.msra.mxu0 0.0
      %2101 = vmatprep.subr.mxu0 0.0
      %2102 = vmatpush1.msra.mxu0 0.0
      %2103 = vmatprep.subr.mxu0 0.0
      %2104 = vmatpush1.msra.mxu0 0.0
      %2105 = vmatprep.subr.mxu0 0.0
      %2106 = vmatpush1.msra.mxu0 0.0
      %2107 = vmatprep.subr.mxu0 0.0
      %2108 = vmatpush1.msra.mxu0 0.0
      %2109 = vmatprep.subr.mxu0 0.0
      %2110 = vmatpush1.msra.mxu0 0.0
      %2111 = vmatprep.subr.mxu0 0.0
      %2112 = vmatpush1.msra.mxu0 0.0
      %2113 = vmatprep.subr.mxu0 0.0
      %2114 = vmatpush1.msra.mxu0 0.0
      %2115 = vmatprep.subr.mxu0 0.0
      %2116 = vmatpush1.msra.mxu0 0.0
      %2117 = vmatprep.subr.mxu0 0.0
      %2118 = vmatpush1.msra.mxu0 0.0
      %2119 = vmatprep.subr.mxu0 0.0
      %2120 = vmatpush1.msra.mxu0 0.0
      %2121 = vmatprep.subr.mxu0 0.0
      %2122 = vmatpush1.msra.mxu0 0.0
      %2123 = vmatprep.subr.mxu0 0.0
      %2124 = vmatpush1.msra.mxu0 0.0
      %2125 = vmatprep.subr.mxu0 0.0
      %2126 = vmatpush1.msra.mxu0 0.0
      %2127 = vmatprep.subr.mxu0 0.0
      %2128 = vmatpush1.msra.mxu0 0.0
      %2129 = vmatprep.subr.mxu0 0.0
      %2130 = vmatpush1.msra.mxu0 0.0
      %2131 = vmatprep.subr.mxu0 0.0
      %2132 = vmatpush1.msra.mxu0 0.0
      %2133 = vmatprep.subr.mxu0 0.0
      %2134 = vmatpush1.msra.mxu0 0.0
      %2135 = vmatprep.subr.mxu0 0.0
      %2136 = vmatpush1.msra.mxu0 0.0
      %2137 = vmatprep.subr.mxu0 0.0
      %2138 = vmatpush1.msra.mxu0 0.0
      %2139 = vmatprep.subr.mxu0 0.0
      %2140 = vmatpush1.msra.mxu0 0.0
      %2141 = vmatprep.mubr.f32.mxu0 0.0
      %2142 = vmatmul.mubr.f32.gmra.mrb[0].mxu0 %v1081
      %v2143 = vpop.f32.mrb[0].mxu0
      %v2144 = vadd.f32 0.0, %v2143
      %v2145 = vpop.f32.mrb[0].mxu0
      %v2146 = vadd.f32 0.0, %v2145
      %2147 = vdwg.mxu0
      %2148 = vmatprep.subr.mxu0 %v906
      %2149 = vmatpush1.msra.mxu0 %v905
      %2150 = vmatprep.subr.mxu0 %v940
      %2151 = vmatpush1.msra.mxu0 %v939
      %2152 = vmatprep.subr.mxu0 %v974
      %2153 = vmatpush1.msra.mxu0 %v973
      %2154 = vmatprep.subr.mxu0 0.0
      %2155 = vmatpush1.msra.mxu0 0.0
      %2156 = vmatprep.subr.mxu0 0.0
      %2157 = vmatpush1.msra.mxu0 0.0
      %2158 = vmatprep.subr.mxu0 0.0
      %2159 = vmatpush1.msra.mxu0 0.0
      %2160 = vmatprep.subr.mxu0 0.0
      %2161 = vmatpush1.msra.mxu0 0.0
      %2162 = vmatprep.subr.mxu0 0.0
      %2163 = vmatpush1.msra.mxu0 0.0
      %2164 = vmatprep.subr.mxu0 0.0
      %2165 = vmatpush1.msra.mxu0 0.0
      %2166 = vmatprep.subr.mxu0 0.0
      %2167 = vmatpush1.msra.mxu0 0.0
      %2168 = vmatprep.subr.mxu0 0.0
      %2169 = vmatpush1.msra.mxu0 0.0
      %2170 = vmatprep.subr.mxu0 0.0
      %2171 = vmatpush1.msra.mxu0 0.0
      %2172 = vmatprep.subr.mxu0 0.0
      %2173 = vmatpush1.msra.mxu0 0.0
      %2174 = vmatprep.subr.mxu0 0.0
      %2175 = vmatpush1.msra.mxu0 0.0
      %2176 = vmatprep.subr.mxu0 0.0
      %2177 = vmatpush1.msra.mxu0 0.0
      %2178 = vmatprep.subr.mxu0 0.0
      %2179 = vmatpush1.msra.mxu0 0.0
      %2180 = vmatprep.subr.mxu0 0.0
      %2181 = vmatpush1.msra.mxu0 0.0
      %2182 = vmatprep.subr.mxu0 0.0
      %2183 = vmatpush1.msra.mxu0 0.0
      %2184 = vmatprep.subr.mxu0 0.0
      %2185 = vmatpush1.msra.mxu0 0.0
      %2186 = vmatprep.subr.mxu0 0.0
      %2187 = vmatpush1.msra.mxu0 0.0
      %2188 = vmatprep.subr.mxu0 0.0
      %2189 = vmatpush1.msra.mxu0 0.0
      %2190 = vmatprep.subr.mxu0 0.0
      %2191 = vmatpush1.msra.mxu0 0.0
      %2192 = vmatprep.subr.mxu0 0.0
      %2193 = vmatpush1.msra.mxu0 0.0
      %2194 = vmatprep.subr.mxu0 0.0
      %2195 = vmatpush1.msra.mxu0 0.0
      %2196 = vmatprep.subr.mxu0 0.0
      %2197 = vmatpush1.msra.mxu0 0.0
      %2198 = vmatprep.subr.mxu0 0.0
      %2199 = vmatpush1.msra.mxu0 0.0
      %2200 = vmatprep.subr.mxu0 0.0
      %2201 = vmatpush1.msra.mxu0 0.0
      %2202 = vmatprep.subr.mxu0 0.0
      %2203 = vmatpush1.msra.mxu0 0.0
      %2204 = vmatprep.subr.mxu0 0.0
      %2205 = vmatpush1.msra.mxu0 0.0
      %2206 = vmatprep.subr.mxu0 0.0
      %2207 = vmatpush1.msra.mxu0 0.0
      %2208 = vmatprep.subr.mxu0 0.0
      %2209 = vmatpush1.msra.mxu0 0.0
      %2210 = vmatprep.subr.mxu0 0.0
      %2211 = vmatpush1.msra.mxu0 0.0
      %2212 = vmatprep.mubr.f32.mxu0 0.0
      %2213 = vmatmul.mubr.f32.gmra.mrb[0].mxu0 %v1081
      %v2214 = vpop.f32.mrb[0].mxu0
      %v2215 = vadd.f32 0.0, %v2214
      %v2216 = vpop.f32.mrb[0].mxu0
      %v2217 = vadd.f32 0.0, %v2216
      %2218 = vdwg.mxu0
      %2219 = vmatprep.subr.mxu0 %v908
      %2220 = vmatpush1.msra.mxu0 %v907
      %2221 = vmatprep.subr.mxu0 %v942
      %2222 = vmatpush1.msra.mxu0 %v941
      %2223 = vmatprep.subr.mxu0 %v976
      %2224 = vmatpush1.msra.mxu0 %v975
      %2225 = vmatprep.subr.mxu0 0.0
      %2226 = vmatpush1.msra.mxu0 0.0
      %2227 = vmatprep.subr.mxu0 0.0
      %2228 = vmatpush1.msra.mxu0 0.0
      %2229 = vmatprep.subr.mxu0 0.0
      %2230 = vmatpush1.msra.mxu0 0.0
      %2231 = vmatprep.subr.mxu0 0.0
      %2232 = vmatpush1.msra.mxu0 0.0
      %2233 = vmatprep.subr.mxu0 0.0
      %2234 = vmatpush1.msra.mxu0 0.0
      %2235 = vmatprep.subr.mxu0 0.0
      %2236 = vmatpush1.msra.mxu0 0.0
      %2237 = vmatprep.subr.mxu0 0.0
      %2238 = vmatpush1.msra.mxu0 0.0
      %2239 = vmatprep.subr.mxu0 0.0
      %2240 = vmatpush1.msra.mxu0 0.0
      %2241 = vmatprep.subr.mxu0 0.0
      %2242 = vmatpush1.msra.mxu0 0.0
      %2243 = vmatprep.subr.mxu0 0.0
      %2244 = vmatpush1.msra.mxu0 0.0
      %2245 = vmatprep.subr.mxu0 0.0
      %2246 = vmatpush1.msra.mxu0 0.0
      %2247 = vmatprep.subr.mxu0 0.0
      %2248 = vmatpush1.msra.mxu0 0.0
      %2249 = vmatprep.subr.mxu0 0.0
      %2250 = vmatpush1.msra.mxu0 0.0
      %2251 = vmatprep.subr.mxu0 0.0
      %2252 = vmatpush1.msra.mxu0 0.0
      %2253 = vmatprep.subr.mxu0 0.0
      %2254 = vmatpush1.msra.mxu0 0.0
      %2255 = vmatprep.subr.mxu0 0.0
      %2256 = vmatpush1.msra.mxu0 0.0
      %2257 = vmatprep.subr.mxu0 0.0
      %2258 = vmatpush1.msra.mxu0 0.0
      %2259 = vmatprep.subr.mxu0 0.0
      %2260 = vmatpush1.msra.mxu0 0.0
      %2261 = vmatprep.subr.mxu0 0.0
      %2262 = vmatpush1.msra.mxu0 0.0
      %2263 = vmatprep.subr.mxu0 0.0
      %2264 = vmatpush1.msra.mxu0 0.0
      %2265 = vmatprep.subr.mxu0 0.0
      %2266 = vmatpush1.msra.mxu0 0.0
      %2267 = vmatprep.subr.mxu0 0.0
      %2268 = vmatpush1.msra.mxu0 0.0
      %2269 = vmatprep.subr.mxu0 0.0
      %2270 = vmatpush1.msra.mxu0 0.0
      %2271 = vmatprep.subr.mxu0 0.0
      %2272 = vmatpush1.msra.mxu0 0.0
      %2273 = vmatprep.subr.mxu0 0.0
      %2274 = vmatpush1.msra.mxu0 0.0
      %2275 = vmatprep.subr.mxu0 0.0
      %2276 = vmatpush1.msra.mxu0 0.0
      %2277 = vmatprep.subr.mxu0 0.0
      %2278 = vmatpush1.msra.mxu0 0.0
      %2279 = vmatprep.subr.mxu0 0.0
      %2280 = vmatpush1.msra.mxu0 0.0
      %2281 = vmatprep.subr.mxu0 0.0
      %2282 = vmatpush1.msra.mxu0 0.0
      %2283 = vmatprep.mubr.f32.mxu0 0.0
      %2284 = vmatmul.mubr.f32.gmra.mrb[0].mxu0 %v1081
      %v2285 = vpop.f32.mrb[0].mxu0
      %v2286 = vadd.f32 0.0, %v2285
      %v2287 = vpop.f32.mrb[0].mxu0
      %v2288 = vadd.f32 0.0, %v2287
      %2289 = vdwg.mxu0
      %2291 = vrot.lane.b32.xlu0 %v295, 1
      %v2292 = vpop.permute.xlu0 %2291
      %2293 = vrot.lane.b32.xlu0 %v406, 1
      %v2294 = vpop.permute.xlu0 %2293
      %2295 = vrot.lane.b32.xlu0 %v551, 1
      %v2296 = vpop.permute.xlu0 %2295
      %v2297 = vsel %vm874, %v2292, %v665
      %v2298 = vsel %vm874, %v2294, %v735
      %v2299 = vsel %vm874, %v2296, %v805
      %v2304 = vsel %vm1079, %v661, 0
      %2306 = vmatprep.subr.mxu0 %v875
      %2307 = vmatpush1.msra.mxu0 %v2297
      %2308 = vmatprep.subr.mxu0 %v909
      %2309 = vmatpush1.msra.mxu0 %v2298
      %2310 = vmatprep.subr.mxu0 %v943
      %2311 = vmatpush1.msra.mxu0 %v2299
      %2312 = vmatprep.subr.mxu0 0.0
      %2313 = vmatpush1.msra.mxu0 0.0
      %2314 = vmatprep.subr.mxu0 0.0
      %2315 = vmatpush1.msra.mxu0 0.0
      %2316 = vmatprep.subr.mxu0 0.0
      %2317 = vmatpush1.msra.mxu0 0.0
      %2318 = vmatprep.subr.mxu0 0.0
      %2319 = vmatpush1.msra.mxu0 0.0
      %2320 = vmatprep.subr.mxu0 0.0
      %2321 = vmatpush1.msra.mxu0 0.0
      %2322 = vmatprep.subr.mxu0 0.0
      %2323 = vmatpush1.msra.mxu0 0.0
      %2324 = vmatprep.subr.mxu0 0.0
      %2325 = vmatpush1.msra.mxu0 0.0
      %2326 = vmatprep.subr.mxu0 0.0
      %2327 = vmatpush1.msra.mxu0 0.0
      %2328 = vmatprep.subr.mxu0 0.0
      %2329 = vmatpush1.msra.mxu0 0.0
      %2330 = vmatprep.subr.mxu0 0.0
      %2331 = vmatpush1.msra.mxu0 0.0
      %2332 = vmatprep.subr.mxu0 0.0
      %2333 = vmatpush1.msra.mxu0 0.0
      %2334 = vmatprep.subr.mxu0 0.0
      %2335 = vmatpush1.msra.mxu0 0.0
      %2336 = vmatprep.subr.mxu0 0.0
      %2337 = vmatpush1.msra.mxu0 0.0
      %2338 = vmatprep.subr.mxu0 0.0
      %2339 = vmatpush1.msra.mxu0 0.0
      %2340 = vmatprep.subr.mxu0 0.0
      %2341 = vmatpush1.msra.mxu0 0.0
      %2342 = vmatprep.subr.mxu0 0.0
      %2343 = vmatpush1.msra.mxu0 0.0
      %2344 = vmatprep.subr.mxu0 0.0
      %2345 = vmatpush1.msra.mxu0 0.0
      %2346 = vmatprep.subr.mxu0 0.0
      %2347 = vmatpush1.msra.mxu0 0.0
      %2348 = vmatprep.subr.mxu0 0.0
      %2349 = vmatpush1.msra.mxu0 0.0
      %2350 = vmatprep.subr.mxu0 0.0
      %2351 = vmatpush1.msra.mxu0 0.0
      %2352 = vmatprep.subr.mxu0 0.0
      %2353 = vmatpush1.msra.mxu0 0.0
      %2354 = vmatprep.subr.mxu0 0.0
      %2355 = vmatpush1.msra.mxu0 0.0
      %2356 = vmatprep.subr.mxu0 0.0
      %2357 = vmatpush1.msra.mxu0 0.0
      %2358 = vmatprep.subr.mxu0 0.0
      %2359 = vmatpush1.msra.mxu0 0.0
      %2360 = vmatprep.subr.mxu0 0.0
      %2361 = vmatpush1.msra.mxu0 0.0
      %2362 = vmatprep.subr.mxu0 0.0
      %2363 = vmatpush1.msra.mxu0 0.0
      %2364 = vmatprep.subr.mxu0 0.0
      %2365 = vmatpush1.msra.mxu0 0.0
      %2366 = vmatprep.subr.mxu0 0.0
      %2367 = vmatpush1.msra.mxu0 0.0
      %2368 = vmatprep.subr.mxu0 0.0
      %2369 = vmatpush1.msra.mxu0 0.0
      %2370 = vmatprep.mubr.f32.mxu0 0.0
      %2371 = vmatmul.mubr.f32.gmra.mrb[0].mxu0 %v2304
      %v2372 = vpop.f32.mrb[0].mxu0
      %v2373 = vadd.f32 %v1150, %v2372
      %v2374 = vpop.f32.mrb[0].mxu0
      %v2375 = vadd.f32 %v1152, %v2374
      %2376 = vdwg.mxu0
      %2377 = vmatprep.subr.mxu0 %v877
      %2378 = vmatpush1.msra.mxu0 %v876
      %2379 = vmatprep.subr.mxu0 %v911
      %2380 = vmatpush1.msra.mxu0 %v910
      %2381 = vmatprep.subr.mxu0 %v945
      %2382 = vmatpush1.msra.mxu0 %v944
      %2383 = vmatprep.subr.mxu0 0.0
      %2384 = vmatpush1.msra.mxu0 0.0
      %2385 = vmatprep.subr.mxu0 0.0
      %2386 = vmatpush1.msra.mxu0 0.0
      %2387 = vmatprep.subr.mxu0 0.0
      %2388 = vmatpush1.msra.mxu0 0.0
      %2389 = vmatprep.subr.mxu0 0.0
      %2390 = vmatpush1.msra.mxu0 0.0
      %2391 = vmatprep.subr.mxu0 0.0
      %2392 = vmatpush1.msra.mxu0 0.0
      %2393 = vmatprep.subr.mxu0 0.0
      %2394 = vmatpush1.msra.mxu0 0.0
      %2395 = vmatprep.subr.mxu0 0.0
      %2396 = vmatpush1.msra.mxu0 0.0
      %2397 = vmatprep.subr.mxu0 0.0
      %2398 = vmatpush1.msra.mxu0 0.0
      %2399 = vmatprep.subr.mxu0 0.0
      %2400 = vmatpush1.msra.mxu0 0.0
      %2401 = vmatprep.subr.mxu0 0.0
      %2402 = vmatpush1.msra.mxu0 0.0
      %2403 = vmatprep.subr.mxu0 0.0
      %2404 = vmatpush1.msra.mxu0 0.0
      %2405 = vmatprep.subr.mxu0 0.0
      %2406 = vmatpush1.msra.mxu0 0.0
      %2407 = vmatprep.subr.mxu0 0.0
      %2408 = vmatpush1.msra.mxu0 0.0
      %2409 = vmatprep.subr.mxu0 0.0
      %2410 = vmatpush1.msra.mxu0 0.0
      %2411 = vmatprep.subr.mxu0 0.0
      %2412 = vmatpush1.msra.mxu0 0.0
      %2413 = vmatprep.subr.mxu0 0.0
      %2414 = vmatpush1.msra.mxu0 0.0
      %2415 = vmatprep.subr.mxu0 0.0
      %2416 = vmatpush1.msra.mxu0 0.0
      %2417 = vmatprep.subr.mxu0 0.0
      %2418 = vmatpush1.msra.mxu0 0.0
      %2419 = vmatprep.subr.mxu0 0.0
      %2420 = vmatpush1.msra.mxu0 0.0
      %2421 = vmatprep.subr.mxu0 0.0
      %2422 = vmatpush1.msra.mxu0 0.0
      %2423 = vmatprep.subr.mxu0 0.0
      %2424 = vmatpush1.msra.mxu0 0.0
      %2425 = vmatprep.subr.mxu0 0.0
      %2426 = vmatpush1.msra.mxu0 0.0
      %2427 = vmatprep.subr.mxu0 0.0
      %2428 = vmatpush1.msra.mxu0 0.0
      %2429 = vmatprep.subr.mxu0 0.0
      %2430 = vmatpush1.msra.mxu0 0.0
      %2431 = vmatprep.subr.mxu0 0.0
      %2432 = vmatpush1.msra.mxu0 0.0
      %2433 = vmatprep.subr.mxu0 0.0
      %2434 = vmatpush1.msra.mxu0 0.0
      %2435 = vmatprep.subr.mxu0 0.0
      %2436 = vmatpush1.msra.mxu0 0.0
      %2437 = vmatprep.subr.mxu0 0.0
      %2438 = vmatpush1.msra.mxu0 0.0
      %2439 = vmatprep.subr.mxu0 0.0
      %2440 = vmatpush1.msra.mxu0 0.0
      %2441 = vmatprep.mubr.f32.mxu0 0.0
      %2442 = vmatmul.mubr.f32.gmra.mrb[0].mxu0 %v2304
      %v2443 = vpop.f32.mrb[0].mxu0
      %v2444 = vadd.f32 %v1221, %v2443
      %v2445 = vpop.f32.mrb[0].mxu0
      %v2446 = vadd.f32 %v1223, %v2445
      %2447 = vdwg.mxu0
      %2448 = vmatprep.subr.mxu0 %v879
      %2449 = vmatpush1.msra.mxu0 %v878
      %2450 = vmatprep.subr.mxu0 %v913
      %2451 = vmatpush1.msra.mxu0 %v912
      %2452 = vmatprep.subr.mxu0 %v947
      %2453 = vmatpush1.msra.mxu0 %v946
      %2454 = vmatprep.subr.mxu0 0.0
      %2455 = vmatpush1.msra.mxu0 0.0
      %2456 = vmatprep.subr.mxu0 0.0
      %2457 = vmatpush1.msra.mxu0 0.0
      %2458 = vmatprep.subr.mxu0 0.0
      %2459 = vmatpush1.msra.mxu0 0.0
      %2460 = vmatprep.subr.mxu0 0.0
      %2461 = vmatpush1.msra.mxu0 0.0
      %2462 = vmatprep.subr.mxu0 0.0
      %2463 = vmatpush1.msra.mxu0 0.0
      %2464 = vmatprep.subr.mxu0 0.0
      %2465 = vmatpush1.msra.mxu0 0.0
      %2466 = vmatprep.subr.mxu0 0.0
      %2467 = vmatpush1.msra.mxu0 0.0
      %2468 = vmatprep.subr.mxu0 0.0
      %2469 = vmatpush1.msra.mxu0 0.0
      %2470 = vmatprep.subr.mxu0 0.0
      %2471 = vmatpush1.msra.mxu0 0.0
      %2472 = vmatprep.subr.mxu0 0.0
      %2473 = vmatpush1.msra.mxu0 0.0
      %2474 = vmatprep.subr.mxu0 0.0
      %2475 = vmatpush1.msra.mxu0 0.0
      %2476 = vmatprep.subr.mxu0 0.0
      %2477 = vmatpush1.msra.mxu0 0.0
      %2478 = vmatprep.subr.mxu0 0.0
      %2479 = vmatpush1.msra.mxu0 0.0
      %2480 = vmatprep.subr.mxu0 0.0
      %2481 = vmatpush1.msra.mxu0 0.0
      %2482 = vmatprep.subr.mxu0 0.0
      %2483 = vmatpush1.msra.mxu0 0.0
      %2484 = vmatprep.subr.mxu0 0.0
      %2485 = vmatpush1.msra.mxu0 0.0
      %2486 = vmatprep.subr.mxu0 0.0
      %2487 = vmatpush1.msra.mxu0 0.0
      %2488 = vmatprep.subr.mxu0 0.0
      %2489 = vmatpush1.msra.mxu0 0.0
      %2490 = vmatprep.subr.mxu0 0.0
      %2491 = vmatpush1.msra.mxu0 0.0
      %2492 = vmatprep.subr.mxu0 0.0
      %2493 = vmatpush1.msra.mxu0 0.0
      %2494 = vmatprep.subr.mxu0 0.0
      %2495 = vmatpush1.msra.mxu0 0.0
      %2496 = vmatprep.subr.mxu0 0.0
      %2497 = vmatpush1.msra.mxu0 0.0
      %2498 = vmatprep.subr.mxu0 0.0
      %2499 = vmatpush1.msra.mxu0 0.0
      %2500 = vmatprep.subr.mxu0 0.0
      %2501 = vmatpush1.msra.mxu0 0.0
      %2502 = vmatprep.subr.mxu0 0.0
      %2503 = vmatpush1.msra.mxu0 0.0
      %2504 = vmatprep.subr.mxu0 0.0
      %2505 = vmatpush1.msra.mxu0 0.0
      %2506 = vmatprep.subr.mxu0 0.0
      %2507 = vmatpush1.msra.mxu0 0.0
      %2508 = vmatprep.subr.mxu0 0.0
      %2509 = vmatpush1.msra.mxu0 0.0
      %2510 = vmatprep.subr.mxu0 0.0
      %2511 = vmatpush1.msra.mxu0 0.0
      %2512 = vmatprep.mubr.f32.mxu0 0.0
      %2513 = vmatmul.mubr.f32.gmra.mrb[0].mxu0 %v2304
      %v2514 = vpop.f32.mrb[0].mxu0
      %v2515 = vadd.f32 %v1292, %v2514
      %v2516 = vpop.f32.mrb[0].mxu0
      %v2517 = vadd.f32 %v1294, %v2516
      %2518 = vdwg.mxu0
      %2519 = vmatprep.subr.mxu0 %v881
      %2520 = vmatpush1.msra.mxu0 %v880
      %2521 = vmatprep.subr.mxu0 %v915
      %2522 = vmatpush1.msra.mxu0 %v914
      %2523 = vmatprep.subr.mxu0 %v949
      %2524 = vmatpush1.msra.mxu0 %v948
      %2525 = vmatprep.subr.mxu0 0.0
      %2526 = vmatpush1.msra.mxu0 0.0
      %2527 = vmatprep.subr.mxu0 0.0
      %2528 = vmatpush1.msra.mxu0 0.0
      %2529 = vmatprep.subr.mxu0 0.0
      %2530 = vmatpush1.msra.mxu0 0.0
      %2531 = vmatprep.subr.mxu0 0.0
      %2532 = vmatpush1.msra.mxu0 0.0
      %2533 = vmatprep.subr.mxu0 0.0
      %2534 = vmatpush1.msra.mxu0 0.0
      %2535 = vmatprep.subr.mxu0 0.0
      %2536 = vmatpush1.msra.mxu0 0.0
      %2537 = vmatprep.subr.mxu0 0.0
      %2538 = vmatpush1.msra.mxu0 0.0
      %2539 = vmatprep.subr.mxu0 0.0
      %2540 = vmatpush1.msra.mxu0 0.0
      %2541 = vmatprep.subr.mxu0 0.0
      %2542 = vmatpush1.msra.mxu0 0.0
      %2543 = vmatprep.subr.mxu0 0.0
      %2544 = vmatpush1.msra.mxu0 0.0
      %2545 = vmatprep.subr.mxu0 0.0
      %2546 = vmatpush1.msra.mxu0 0.0
      %2547 = vmatprep.subr.mxu0 0.0
      %2548 = vmatpush1.msra.mxu0 0.0
      %2549 = vmatprep.subr.mxu0 0.0
      %2550 = vmatpush1.msra.mxu0 0.0
      %2551 = vmatprep.subr.mxu0 0.0
      %2552 = vmatpush1.msra.mxu0 0.0
      %2553 = vmatprep.subr.mxu0 0.0
      %2554 = vmatpush1.msra.mxu0 0.0
      %2555 = vmatprep.subr.mxu0 0.0
      %2556 = vmatpush1.msra.mxu0 0.0
      %2557 = vmatprep.subr.mxu0 0.0
      %2558 = vmatpush1.msra.mxu0 0.0
      %2559 = vmatprep.subr.mxu0 0.0
      %2560 = vmatpush1.msra.mxu0 0.0
      %2561 = vmatprep.subr.mxu0 0.0
      %2562 = vmatpush1.msra.mxu0 0.0
      %2563 = vmatprep.subr.mxu0 0.0
      %2564 = vmatpush1.msra.mxu0 0.0
      %2565 = vmatprep.subr.mxu0 0.0
      %2566 = vmatpush1.msra.mxu0 0.0
      %2567 = vmatprep.subr.mxu0 0.0
      %2568 = vmatpush1.msra.mxu0 0.0
      %2569 = vmatprep.subr.mxu0 0.0
      %2570 = vmatpush1.msra.mxu0 0.0
      %2571 = vmatprep.subr.mxu0 0.0
      %2572 = vmatpush1.msra.mxu0 0.0
      %2573 = vmatprep.subr.mxu0 0.0
      %2574 = vmatpush1.msra.mxu0 0.0
      %2575 = vmatprep.subr.mxu0 0.0
      %2576 = vmatpush1.msra.mxu0 0.0
      %2577 = vmatprep.subr.mxu0 0.0
      %2578 = vmatpush1.msra.mxu0 0.0
      %2579 = vmatprep.subr.mxu0 0.0
      %2580 = vmatpush1.msra.mxu0 0.0
      %2581 = vmatprep.subr.mxu0 0.0
      %2582 = vmatpush1.msra.mxu0 0.0
      %2583 = vmatprep.mubr.f32.mxu0 0.0
      %2584 = vmatmul.mubr.f32.gmra.mrb[0].mxu0 %v2304
      %v2585 = vpop.f32.mrb[0].mxu0
      %v2586 = vadd.f32 %v1363, %v2585
      %v2587 = vpop.f32.mrb[0].mxu0
      %v2588 = vadd.f32 %v1365, %v2587
      %2589 = vdwg.mxu0
      %2590 = vmatprep.subr.mxu0 %v883
      %2591 = vmatpush1.msra.mxu0 %v882
      %2592 = vmatprep.subr.mxu0 %v917
      %2593 = vmatpush1.msra.mxu0 %v916
      %2594 = vmatprep.subr.mxu0 %v951
      %2595 = vmatpush1.msra.mxu0 %v950
      %2596 = vmatprep.subr.mxu0 0.0
      %2597 = vmatpush1.msra.mxu0 0.0
      %2598 = vmatprep.subr.mxu0 0.0
      %2599 = vmatpush1.msra.mxu0 0.0
      %2600 = vmatprep.subr.mxu0 0.0
      %2601 = vmatpush1.msra.mxu0 0.0
      %2602 = vmatprep.subr.mxu0 0.0
      %2603 = vmatpush1.msra.mxu0 0.0
      %2604 = vmatprep.subr.mxu0 0.0
      %2605 = vmatpush1.msra.mxu0 0.0
      %2606 = vmatprep.subr.mxu0 0.0
      %2607 = vmatpush1.msra.mxu0 0.0
      %2608 = vmatprep.subr.mxu0 0.0
      %2609 = vmatpush1.msra.mxu0 0.0
      %2610 = vmatprep.subr.mxu0 0.0
      %2611 = vmatpush1.msra.mxu0 0.0
      %2612 = vmatprep.subr.mxu0 0.0
      %2613 = vmatpush1.msra.mxu0 0.0
      %2614 = vmatprep.subr.mxu0 0.0
      %2615 = vmatpush1.msra.mxu0 0.0
      %2616 = vmatprep.subr.mxu0 0.0
      %2617 = vmatpush1.msra.mxu0 0.0
      %2618 = vmatprep.subr.mxu0 0.0
      %2619 = vmatpush1.msra.mxu0 0.0
      %2620 = vmatprep.subr.mxu0 0.0
      %2621 = vmatpush1.msra.mxu0 0.0
      %2622 = vmatprep.subr.mxu0 0.0
      %2623 = vmatpush1.msra.mxu0 0.0
      %2624 = vmatprep.subr.mxu0 0.0
      %2625 = vmatpush1.msra.mxu0 0.0
      %2626 = vmatprep.subr.mxu0 0.0
      %2627 = vmatpush1.msra.mxu0 0.0
      %2628 = vmatprep.subr.mxu0 0.0
      %2629 = vmatpush1.msra.mxu0 0.0
      %2630 = vmatprep.subr.mxu0 0.0
      %2631 = vmatpush1.msra.mxu0 0.0
      %2632 = vmatprep.subr.mxu0 0.0
      %2633 = vmatpush1.msra.mxu0 0.0
      %2634 = vmatprep.subr.mxu0 0.0
      %2635 = vmatpush1.msra.mxu0 0.0
      %2636 = vmatprep.subr.mxu0 0.0
      %2637 = vmatpush1.msra.mxu0 0.0
      %2638 = vmatprep.subr.mxu0 0.0
      %2639 = vmatpush1.msra.mxu0 0.0
      %2640 = vmatprep.subr.mxu0 0.0
      %2641 = vmatpush1.msra.mxu0 0.0
      %2642 = vmatprep.subr.mxu0 0.0
      %2643 = vmatpush1.msra.mxu0 0.0
      %2644 = vmatprep.subr.mxu0 0.0
      %2645 = vmatpush1.msra.mxu0 0.0
      %2646 = vmatprep.subr.mxu0 0.0
      %2647 = vmatpush1.msra.mxu0 0.0
      %2648 = vmatprep.subr.mxu0 0.0
      %2649 = vmatpush1.msra.mxu0 0.0
      %2650 = vmatprep.subr.mxu0 0.0
      %2651 = vmatpush1.msra.mxu0 0.0
      %2652 = vmatprep.subr.mxu0 0.0
      %2653 = vmatpush1.msra.mxu0 0.0
      %2654 = vmatprep.mubr.f32.mxu0 0.0
      %2655 = vmatmul.mubr.f32.gmra.mrb[0].mxu0 %v2304
      %v2656 = vpop.f32.mrb[0].mxu0
      %v2657 = vadd.f32 %v1434, %v2656
      %v2658 = vpop.f32.mrb[0].mxu0
      %v2659 = vadd.f32 %v1436, %v2658
      %2660 = vdwg.mxu0
      %2661 = vmatprep.subr.mxu0 %v885
      %2662 = vmatpush1.msra.mxu0 %v884
      %2663 = vmatprep.subr.mxu0 %v919
      %2664 = vmatpush1.msra.mxu0 %v918
      %2665 = vmatprep.subr.mxu0 %v953
      %2666 = vmatpush1.msra.mxu0 %v952
      %2667 = vmatprep.subr.mxu0 0.0
      %2668 = vmatpush1.msra.mxu0 0.0
      %2669 = vmatprep.subr.mxu0 0.0
      %2670 = vmatpush1.msra.mxu0 0.0
      %2671 = vmatprep.subr.mxu0 0.0
      %2672 = vmatpush1.msra.mxu0 0.0
      %2673 = vmatprep.subr.mxu0 0.0
      %2674 = vmatpush1.msra.mxu0 0.0
      %2675 = vmatprep.subr.mxu0 0.0
      %2676 = vmatpush1.msra.mxu0 0.0
      %2677 = vmatprep.subr.mxu0 0.0
      %2678 = vmatpush1.msra.mxu0 0.0
      %2679 = vmatprep.subr.mxu0 0.0
      %2680 = vmatpush1.msra.mxu0 0.0
      %2681 = vmatprep.subr.mxu0 0.0
      %2682 = vmatpush1.msra.mxu0 0.0
      %2683 = vmatprep.subr.mxu0 0.0
      %2684 = vmatpush1.msra.mxu0 0.0
      %2685 = vmatprep.subr.mxu0 0.0
      %2686 = vmatpush1.msra.mxu0 0.0
      %2687 = vmatprep.subr.mxu0 0.0
      %2688 = vmatpush1.msra.mxu0 0.0
      %2689 = vmatprep.subr.mxu0 0.0
      %2690 = vmatpush1.msra.mxu0 0.0
      %2691 = vmatprep.subr.mxu0 0.0
      %2692 = vmatpush1.msra.mxu0 0.0
      %2693 = vmatprep.subr.mxu0 0.0
      %2694 = vmatpush1.msra.mxu0 0.0
      %2695 = vmatprep.subr.mxu0 0.0
      %2696 = vmatpush1.msra.mxu0 0.0
      %2697 = vmatprep.subr.mxu0 0.0
      %2698 = vmatpush1.msra.mxu0 0.0
      %2699 = vmatprep.subr.mxu0 0.0
      %2700 = vmatpush1.msra.mxu0 0.0
      %2701 = vmatprep.subr.mxu0 0.0
      %2702 = vmatpush1.msra.mxu0 0.0
      %2703 = vmatprep.subr.mxu0 0.0
      %2704 = vmatpush1.msra.mxu0 0.0
      %2705 = vmatprep.subr.mxu0 0.0
      %2706 = vmatpush1.msra.mxu0 0.0
      %2707 = vmatprep.subr.mxu0 0.0
      %2708 = vmatpush1.msra.mxu0 0.0
      %2709 = vmatprep.subr.mxu0 0.0
      %2710 = vmatpush1.msra.mxu0 0.0
      %2711 = vmatprep.subr.mxu0 0.0
      %2712 = vmatpush1.msra.mxu0 0.0
      %2713 = vmatprep.subr.mxu0 0.0
      %2714 = vmatpush1.msra.mxu0 0.0
      %2715 = vmatprep.subr.mxu0 0.0
      %2716 = vmatpush1.msra.mxu0 0.0
      %2717 = vmatprep.subr.mxu0 0.0
      %2718 = vmatpush1.msra.mxu0 0.0
      %2719 = vmatprep.subr.mxu0 0.0
      %2720 = vmatpush1.msra.mxu0 0.0
      %2721 = vmatprep.subr.mxu0 0.0
      %2722 = vmatpush1.msra.mxu0 0.0
      %2723 = vmatprep.subr.mxu0 0.0
      %2724 = vmatpush1.msra.mxu0 0.0
      %2725 = vmatprep.mubr.f32.mxu0 0.0
      %2726 = vmatmul.mubr.f32.gmra.mrb[0].mxu0 %v2304
      %v2727 = vpop.f32.mrb[0].mxu0
      %v2728 = vadd.f32 %v1505, %v2727
      %v2729 = vpop.f32.mrb[0].mxu0
      %v2730 = vadd.f32 %v1507, %v2729
      %2731 = vdwg.mxu0
      %2732 = vmatprep.subr.mxu0 %v887
      %2733 = vmatpush1.msra.mxu0 %v886
      %2734 = vmatprep.subr.mxu0 %v921
      %2735 = vmatpush1.msra.mxu0 %v920
      %2736 = vmatprep.subr.mxu0 %v955
      %2737 = vmatpush1.msra.mxu0 %v954
      %2738 = vmatprep.subr.mxu0 0.0
      %2739 = vmatpush1.msra.mxu0 0.0
      %2740 = vmatprep.subr.mxu0 0.0
      %2741 = vmatpush1.msra.mxu0 0.0
      %2742 = vmatprep.subr.mxu0 0.0
      %2743 = vmatpush1.msra.mxu0 0.0
      %2744 = vmatprep.subr.mxu0 0.0
      %2745 = vmatpush1.msra.mxu0 0.0
      %2746 = vmatprep.subr.mxu0 0.0
      %2747 = vmatpush1.msra.mxu0 0.0
      %2748 = vmatprep.subr.mxu0 0.0
      %2749 = vmatpush1.msra.mxu0 0.0
      %2750 = vmatprep.subr.mxu0 0.0
      %2751 = vmatpush1.msra.mxu0 0.0
      %2752 = vmatprep.subr.mxu0 0.0
      %2753 = vmatpush1.msra.mxu0 0.0
      %2754 = vmatprep.subr.mxu0 0.0
      %2755 = vmatpush1.msra.mxu0 0.0
      %2756 = vmatprep.subr.mxu0 0.0
      %2757 = vmatpush1.msra.mxu0 0.0
      %2758 = vmatprep.subr.mxu0 0.0
      %2759 = vmatpush1.msra.mxu0 0.0
      %2760 = vmatprep.subr.mxu0 0.0
      %2761 = vmatpush1.msra.mxu0 0.0
      %2762 = vmatprep.subr.mxu0 0.0
      %2763 = vmatpush1.msra.mxu0 0.0
      %2764 = vmatprep.subr.mxu0 0.0
      %2765 = vmatpush1.msra.mxu0 0.0
      %2766 = vmatprep.subr.mxu0 0.0
      %2767 = vmatpush1.msra.mxu0 0.0
      %2768 = vmatprep.subr.mxu0 0.0
      %2769 = vmatpush1.msra.mxu0 0.0
      %2770 = vmatprep.subr.mxu0 0.0
      %2771 = vmatpush1.msra.mxu0 0.0
      %2772 = vmatprep.subr.mxu0 0.0
      %2773 = vmatpush1.msra.mxu0 0.0
      %2774 = vmatprep.subr.mxu0 0.0
      %2775 = vmatpush1.msra.mxu0 0.0
      %2776 = vmatprep.subr.mxu0 0.0
      %2777 = vmatpush1.msra.mxu0 0.0
      %2778 = vmatprep.subr.mxu0 0.0
      %2779 = vmatpush1.msra.mxu0 0.0
      %2780 = vmatprep.subr.mxu0 0.0
      %2781 = vmatpush1.msra.mxu0 0.0
      %2782 = vmatprep.subr.mxu0 0.0
      %2783 = vmatpush1.msra.mxu0 0.0
      %2784 = vmatprep.subr.mxu0 0.0
      %2785 = vmatpush1.msra.mxu0 0.0
      %2786 = vmatprep.subr.mxu0 0.0
      %2787 = vmatpush1.msra.mxu0 0.0
      %2788 = vmatprep.subr.mxu0 0.0
      %2789 = vmatpush1.msra.mxu0 0.0
      %2790 = vmatprep.subr.mxu0 0.0
      %2791 = vmatpush1.msra.mxu0 0.0
      %2792 = vmatprep.subr.mxu0 0.0
      %2793 = vmatpush1.msra.mxu0 0.0
      %2794 = vmatprep.subr.mxu0 0.0
      %2795 = vmatpush1.msra.mxu0 0.0
      %2796 = vmatprep.mubr.f32.mxu0 0.0
      %2797 = vmatmul.mubr.f32.gmra.mrb[0].mxu0 %v2304
      %v2798 = vpop.f32.mrb[0].mxu0
      %v2799 = vadd.f32 %v1576, %v2798
      %v2800 = vpop.f32.mrb[0].mxu0
      %v2801 = vadd.f32 %v1578, %v2800
      %2802 = vdwg.mxu0
      %2803 = vmatprep.subr.mxu0 %v889
      %2804 = vmatpush1.msra.mxu0 %v888
      %2805 = vmatprep.subr.mxu0 %v923
      %2806 = vmatpush1.msra.mxu0 %v922
      %2807 = vmatprep.subr.mxu0 %v957
      %2808 = vmatpush1.msra.mxu0 %v956
      %2809 = vmatprep.subr.mxu0 0.0
      %2810 = vmatpush1.msra.mxu0 0.0
      %2811 = vmatprep.subr.mxu0 0.0
      %2812 = vmatpush1.msra.mxu0 0.0
      %2813 = vmatprep.subr.mxu0 0.0
      %2814 = vmatpush1.msra.mxu0 0.0
      %2815 = vmatprep.subr.mxu0 0.0
      %2816 = vmatpush1.msra.mxu0 0.0
      %2817 = vmatprep.subr.mxu0 0.0
      %2818 = vmatpush1.msra.mxu0 0.0
      %2819 = vmatprep.subr.mxu0 0.0
      %2820 = vmatpush1.msra.mxu0 0.0
      %2821 = vmatprep.subr.mxu0 0.0
      %2822 = vmatpush1.msra.mxu0 0.0
      %2823 = vmatprep.subr.mxu0 0.0
      %2824 = vmatpush1.msra.mxu0 0.0
      %2825 = vmatprep.subr.mxu0 0.0
      %2826 = vmatpush1.msra.mxu0 0.0
      %2827 = vmatprep.subr.mxu0 0.0
      %2828 = vmatpush1.msra.mxu0 0.0
      %2829 = vmatprep.subr.mxu0 0.0
      %2830 = vmatpush1.msra.mxu0 0.0
      %2831 = vmatprep.subr.mxu0 0.0
      %2832 = vmatpush1.msra.mxu0 0.0
      %2833 = vmatprep.subr.mxu0 0.0
      %2834 = vmatpush1.msra.mxu0 0.0
      %2835 = vmatprep.subr.mxu0 0.0
      %2836 = vmatpush1.msra.mxu0 0.0
      %2837 = vmatprep.subr.mxu0 0.0
      %2838 = vmatpush1.msra.mxu0 0.0
      %2839 = vmatprep.subr.mxu0 0.0
      %2840 = vmatpush1.msra.mxu0 0.0
      %2841 = vmatprep.subr.mxu0 0.0
      %2842 = vmatpush1.msra.mxu0 0.0
      %2843 = vmatprep.subr.mxu0 0.0
      %2844 = vmatpush1.msra.mxu0 0.0
      %2845 = vmatprep.subr.mxu0 0.0
      %2846 = vmatpush1.msra.mxu0 0.0
      %2847 = vmatprep.subr.mxu0 0.0
      %2848 = vmatpush1.msra.mxu0 0.0
      %2849 = vmatprep.subr.mxu0 0.0
      %2850 = vmatpush1.msra.mxu0 0.0
      %2851 = vmatprep.subr.mxu0 0.0
      %2852 = vmatpush1.msra.mxu0 0.0
      %2853 = vmatprep.subr.mxu0 0.0
      %2854 = vmatpush1.msra.mxu0 0.0
      %2855 = vmatprep.subr.mxu0 0.0
      %2856 = vmatpush1.msra.mxu0 0.0
      %2857 = vmatprep.subr.mxu0 0.0
      %2858 = vmatpush1.msra.mxu0 0.0
      %2859 = vmatprep.subr.mxu0 0.0
      %2860 = vmatpush1.msra.mxu0 0.0
      %2861 = vmatprep.subr.mxu0 0.0
      %2862 = vmatpush1.msra.mxu0 0.0
      %2863 = vmatprep.subr.mxu0 0.0
      %2864 = vmatpush1.msra.mxu0 0.0
      %2865 = vmatprep.subr.mxu0 0.0
      %2866 = vmatpush1.msra.mxu0 0.0
      %2867 = vmatprep.mubr.f32.mxu0 0.0
      %2868 = vmatmul.mubr.f32.gmra.mrb[0].mxu0 %v2304
      %v2869 = vpop.f32.mrb[0].mxu0
      %v2870 = vadd.f32 %v1647, %v2869
      %v2871 = vpop.f32.mrb[0].mxu0
      %v2872 = vadd.f32 %v1649, %v2871
      %2873 = vdwg.mxu0
      %2874 = vmatprep.subr.mxu0 %v891
      %2875 = vmatpush1.msra.mxu0 %v890
      %2876 = vmatprep.subr.mxu0 %v925
      %2877 = vmatpush1.msra.mxu0 %v924
      %2878 = vmatprep.subr.mxu0 %v959
      %2879 = vmatpush1.msra.mxu0 %v958
      %2880 = vmatprep.subr.mxu0 0.0
      %2881 = vmatpush1.msra.mxu0 0.0
      %2882 = vmatprep.subr.mxu0 0.0
      %2883 = vmatpush1.msra.mxu0 0.0
      %2884 = vmatprep.subr.mxu0 0.0
      %2885 = vmatpush1.msra.mxu0 0.0
      %2886 = vmatprep.subr.mxu0 0.0
      %2887 = vmatpush1.msra.mxu0 0.0
      %2888 = vmatprep.subr.mxu0 0.0
      %2889 = vmatpush1.msra.mxu0 0.0
      %2890 = vmatprep.subr.mxu0 0.0
      %2891 = vmatpush1.msra.mxu0 0.0
      %2892 = vmatprep.subr.mxu0 0.0
      %2893 = vmatpush1.msra.mxu0 0.0
      %2894 = vmatprep.subr.mxu0 0.0
      %2895 = vmatpush1.msra.mxu0 0.0
      %2896 = vmatprep.subr.mxu0 0.0
      %2897 = vmatpush1.msra.mxu0 0.0
      %2898 = vmatprep.subr.mxu0 0.0
      %2899 = vmatpush1.msra.mxu0 0.0
      %2900 = vmatprep.subr.mxu0 0.0
      %2901 = vmatpush1.msra.mxu0 0.0
      %2902 = vmatprep.subr.mxu0 0.0
      %2903 = vmatpush1.msra.mxu0 0.0
      %2904 = vmatprep.subr.mxu0 0.0
      %2905 = vmatpush1.msra.mxu0 0.0
      %2906 = vmatprep.subr.mxu0 0.0
      %2907 = vmatpush1.msra.mxu0 0.0
      %2908 = vmatprep.subr.mxu0 0.0
      %2909 = vmatpush1.msra.mxu0 0.0
      %2910 = vmatprep.subr.mxu0 0.0
      %2911 = vmatpush1.msra.mxu0 0.0
      %2912 = vmatprep.subr.mxu0 0.0
      %2913 = vmatpush1.msra.mxu0 0.0
      %2914 = vmatprep.subr.mxu0 0.0
      %2915 = vmatpush1.msra.mxu0 0.0
      %2916 = vmatprep.subr.mxu0 0.0
      %2917 = vmatpush1.msra.mxu0 0.0
      %2918 = vmatprep.subr.mxu0 0.0
      %2919 = vmatpush1.msra.mxu0 0.0
      %2920 = vmatprep.subr.mxu0 0.0
      %2921 = vmatpush1.msra.mxu0 0.0
      %2922 = vmatprep.subr.mxu0 0.0
      %2923 = vmatpush1.msra.mxu0 0.0
      %2924 = vmatprep.subr.mxu0 0.0
      %2925 = vmatpush1.msra.mxu0 0.0
      %2926 = vmatprep.subr.mxu0 0.0
      %2927 = vmatpush1.msra.mxu0 0.0
      %2928 = vmatprep.subr.mxu0 0.0
      %2929 = vmatpush1.msra.mxu0 0.0
      %2930 = vmatprep.subr.mxu0 0.0
      %2931 = vmatpush1.msra.mxu0 0.0
      %2932 = vmatprep.subr.mxu0 0.0
      %2933 = vmatpush1.msra.mxu0 0.0
      %2934 = vmatprep.subr.mxu0 0.0
      %2935 = vmatpush1.msra.mxu0 0.0
      %2936 = vmatprep.subr.mxu0 0.0
      %2937 = vmatpush1.msra.mxu0 0.0
      %2938 = vmatprep.mubr.f32.mxu0 0.0
      %2939 = vmatmul.mubr.f32.gmra.mrb[0].mxu0 %v2304
      %v2940 = vpop.f32.mrb[0].mxu0
      %v2941 = vadd.f32 %v1718, %v2940
      %v2942 = vpop.f32.mrb[0].mxu0
      %v2943 = vadd.f32 %v1720, %v2942
      %2944 = vdwg.mxu0
      %2945 = vmatprep.subr.mxu0 %v893
      %2946 = vmatpush1.msra.mxu0 %v892
      %2947 = vmatprep.subr.mxu0 %v927
      %2948 = vmatpush1.msra.mxu0 %v926
      %2949 = vmatprep.subr.mxu0 %v961
      %2950 = vmatpush1.msra.mxu0 %v960
      %2951 = vmatprep.subr.mxu0 0.0
      %2952 = vmatpush1.msra.mxu0 0.0
      %2953 = vmatprep.subr.mxu0 0.0
      %2954 = vmatpush1.msra.mxu0 0.0
      %2955 = vmatprep.subr.mxu0 0.0
      %2956 = vmatpush1.msra.mxu0 0.0
      %2957 = vmatprep.subr.mxu0 0.0
      %2958 = vmatpush1.msra.mxu0 0.0
      %2959 = vmatprep.subr.mxu0 0.0
      %2960 = vmatpush1.msra.mxu0 0.0
      %2961 = vmatprep.subr.mxu0 0.0
      %2962 = vmatpush1.msra.mxu0 0.0
      %2963 = vmatprep.subr.mxu0 0.0
      %2964 = vmatpush1.msra.mxu0 0.0
      %2965 = vmatprep.subr.mxu0 0.0
      %2966 = vmatpush1.msra.mxu0 0.0
      %2967 = vmatprep.subr.mxu0 0.0
      %2968 = vmatpush1.msra.mxu0 0.0
      %2969 = vmatprep.subr.mxu0 0.0
      %2970 = vmatpush1.msra.mxu0 0.0
      %2971 = vmatprep.subr.mxu0 0.0
      %2972 = vmatpush1.msra.mxu0 0.0
      %2973 = vmatprep.subr.mxu0 0.0
      %2974 = vmatpush1.msra.mxu0 0.0
      %2975 = vmatprep.subr.mxu0 0.0
      %2976 = vmatpush1.msra.mxu0 0.0
      %2977 = vmatprep.subr.mxu0 0.0
      %2978 = vmatpush1.msra.mxu0 0.0
      %2979 = vmatprep.subr.mxu0 0.0
      %2980 = vmatpush1.msra.mxu0 0.0
      %2981 = vmatprep.subr.mxu0 0.0
      %2982 = vmatpush1.msra.mxu0 0.0
      %2983 = vmatprep.subr.mxu0 0.0
      %2984 = vmatpush1.msra.mxu0 0.0
      %2985 = vmatprep.subr.mxu0 0.0
      %2986 = vmatpush1.msra.mxu0 0.0
      %2987 = vmatprep.subr.mxu0 0.0
      %2988 = vmatpush1.msra.mxu0 0.0
      %2989 = vmatprep.subr.mxu0 0.0
      %2990 = vmatpush1.msra.mxu0 0.0
      %2991 = vmatprep.subr.mxu0 0.0
      %2992 = vmatpush1.msra.mxu0 0.0
      %2993 = vmatprep.subr.mxu0 0.0
      %2994 = vmatpush1.msra.mxu0 0.0
      %2995 = vmatprep.subr.mxu0 0.0
      %2996 = vmatpush1.msra.mxu0 0.0
      %2997 = vmatprep.subr.mxu0 0.0
      %2998 = vmatpush1.msra.mxu0 0.0
      %2999 = vmatprep.subr.mxu0 0.0
      %3000 = vmatpush1.msra.mxu0 0.0
      %3001 = vmatprep.subr.mxu0 0.0
      %3002 = vmatpush1.msra.mxu0 0.0
      %3003 = vmatprep.subr.mxu0 0.0
      %3004 = vmatpush1.msra.mxu0 0.0
      %3005 = vmatprep.subr.mxu0 0.0
      %3006 = vmatpush1.msra.mxu0 0.0
      %3007 = vmatprep.subr.mxu0 0.0
      %3008 = vmatpush1.msra.mxu0 0.0
      %3009 = vmatprep.mubr.f32.mxu0 0.0
      %3010 = vmatmul.mubr.f32.gmra.mrb[0].mxu0 %v2304
      %v3011 = vpop.f32.mrb[0].mxu0
      %v3012 = vadd.f32 %v1789, %v3011
      %v3013 = vpop.f32.mrb[0].mxu0
      %v3014 = vadd.f32 %v1791, %v3013
      %3015 = vdwg.mxu0
      %3016 = vmatprep.subr.mxu0 %v895
      %3017 = vmatpush1.msra.mxu0 %v894
      %3018 = vmatprep.subr.mxu0 %v929
      %3019 = vmatpush1.msra.mxu0 %v928
      %3020 = vmatprep.subr.mxu0 %v963
      %3021 = vmatpush1.msra.mxu0 %v962
      %3022 = vmatprep.subr.mxu0 0.0
      %3023 = vmatpush1.msra.mxu0 0.0
      %3024 = vmatprep.subr.mxu0 0.0
      %3025 = vmatpush1.msra.mxu0 0.0
      %3026 = vmatprep.subr.mxu0 0.0
      %3027 = vmatpush1.msra.mxu0 0.0
      %3028 = vmatprep.subr.mxu0 0.0
      %3029 = vmatpush1.msra.mxu0 0.0
      %3030 = vmatprep.subr.mxu0 0.0
      %3031 = vmatpush1.msra.mxu0 0.0
      %3032 = vmatprep.subr.mxu0 0.0
      %3033 = vmatpush1.msra.mxu0 0.0
      %3034 = vmatprep.subr.mxu0 0.0
      %3035 = vmatpush1.msra.mxu0 0.0
      %3036 = vmatprep.subr.mxu0 0.0
      %3037 = vmatpush1.msra.mxu0 0.0
      %3038 = vmatprep.subr.mxu0 0.0
      %3039 = vmatpush1.msra.mxu0 0.0
      %3040 = vmatprep.subr.mxu0 0.0
      %3041 = vmatpush1.msra.mxu0 0.0
      %3042 = vmatprep.subr.mxu0 0.0
      %3043 = vmatpush1.msra.mxu0 0.0
      %3044 = vmatprep.subr.mxu0 0.0
      %3045 = vmatpush1.msra.mxu0 0.0
      %3046 = vmatprep.subr.mxu0 0.0
      %3047 = vmatpush1.msra.mxu0 0.0
      %3048 = vmatprep.subr.mxu0 0.0
      %3049 = vmatpush1.msra.mxu0 0.0
      %3050 = vmatprep.subr.mxu0 0.0
      %3051 = vmatpush1.msra.mxu0 0.0
      %3052 = vmatprep.subr.mxu0 0.0
      %3053 = vmatpush1.msra.mxu0 0.0
      %3054 = vmatprep.subr.mxu0 0.0
      %3055 = vmatpush1.msra.mxu0 0.0
      %3056 = vmatprep.subr.mxu0 0.0
      %3057 = vmatpush1.msra.mxu0 0.0
      %3058 = vmatprep.subr.mxu0 0.0
      %3059 = vmatpush1.msra.mxu0 0.0
      %3060 = vmatprep.subr.mxu0 0.0
      %3061 = vmatpush1.msra.mxu0 0.0
      %3062 = vmatprep.subr.mxu0 0.0
      %3063 = vmatpush1.msra.mxu0 0.0
      %3064 = vmatprep.subr.mxu0 0.0
      %3065 = vmatpush1.msra.mxu0 0.0
      %3066 = vmatprep.subr.mxu0 0.0
      %3067 = vmatpush1.msra.mxu0 0.0
      %3068 = vmatprep.subr.mxu0 0.0
      %3069 = vmatpush1.msra.mxu0 0.0
      %3070 = vmatprep.subr.mxu0 0.0
      %3071 = vmatpush1.msra.mxu0 0.0
      %3072 = vmatprep.subr.mxu0 0.0
      %3073 = vmatpush1.msra.mxu0 0.0
      %3074 = vmatprep.subr.mxu0 0.0
      %3075 = vmatpush1.msra.mxu0 0.0
      %3076 = vmatprep.subr.mxu0 0.0
      %3077 = vmatpush1.msra.mxu0 0.0
      %3078 = vmatprep.subr.mxu0 0.0
      %3079 = vmatpush1.msra.mxu0 0.0
      %3080 = vmatprep.mubr.f32.mxu0 0.0
      %3081 = vmatmul.mubr.f32.gmra.mrb[0].mxu0 %v2304
      %v3082 = vpop.f32.mrb[0].mxu0
      %v3083 = vadd.f32 %v1860, %v3082
      %v3084 = vpop.f32.mrb[0].mxu0
      %v3085 = vadd.f32 %v1862, %v3084
      %3086 = vdwg.mxu0
      %3087 = vmatprep.subr.mxu0 %v897
      %3088 = vmatpush1.msra.mxu0 %v896
      %3089 = vmatprep.subr.mxu0 %v931
      %3090 = vmatpush1.msra.mxu0 %v930
      %3091 = vmatprep.subr.mxu0 %v965
      %3092 = vmatpush1.msra.mxu0 %v964
      %3093 = vmatprep.subr.mxu0 0.0
      %3094 = vmatpush1.msra.mxu0 0.0
      %3095 = vmatprep.subr.mxu0 0.0
      %3096 = vmatpush1.msra.mxu0 0.0
      %3097 = vmatprep.subr.mxu0 0.0
      %3098 = vmatpush1.msra.mxu0 0.0
      %3099 = vmatprep.subr.mxu0 0.0
      %3100 = vmatpush1.msra.mxu0 0.0
      %3101 = vmatprep.subr.mxu0 0.0
      %3102 = vmatpush1.msra.mxu0 0.0
      %3103 = vmatprep.subr.mxu0 0.0
      %3104 = vmatpush1.msra.mxu0 0.0
      %3105 = vmatprep.subr.mxu0 0.0
      %3106 = vmatpush1.msra.mxu0 0.0
      %3107 = vmatprep.subr.mxu0 0.0
      %3108 = vmatpush1.msra.mxu0 0.0
      %3109 = vmatprep.subr.mxu0 0.0
      %3110 = vmatpush1.msra.mxu0 0.0
      %3111 = vmatprep.subr.mxu0 0.0
      %3112 = vmatpush1.msra.mxu0 0.0
      %3113 = vmatprep.subr.mxu0 0.0
      %3114 = vmatpush1.msra.mxu0 0.0
      %3115 = vmatprep.subr.mxu0 0.0
      %3116 = vmatpush1.msra.mxu0 0.0
      %3117 = vmatprep.subr.mxu0 0.0
      %3118 = vmatpush1.msra.mxu0 0.0
      %3119 = vmatprep.subr.mxu0 0.0
      %3120 = vmatpush1.msra.mxu0 0.0
      %3121 = vmatprep.subr.mxu0 0.0
      %3122 = vmatpush1.msra.mxu0 0.0
      %3123 = vmatprep.subr.mxu0 0.0
      %3124 = vmatpush1.msra.mxu0 0.0
      %3125 = vmatprep.subr.mxu0 0.0
      %3126 = vmatpush1.msra.mxu0 0.0
      %3127 = vmatprep.subr.mxu0 0.0
      %3128 = vmatpush1.msra.mxu0 0.0
      %3129 = vmatprep.subr.mxu0 0.0
      %3130 = vmatpush1.msra.mxu0 0.0
      %3131 = vmatprep.subr.mxu0 0.0
      %3132 = vmatpush1.msra.mxu0 0.0
      %3133 = vmatprep.subr.mxu0 0.0
      %3134 = vmatpush1.msra.mxu0 0.0
      %3135 = vmatprep.subr.mxu0 0.0
      %3136 = vmatpush1.msra.mxu0 0.0
      %3137 = vmatprep.subr.mxu0 0.0
      %3138 = vmatpush1.msra.mxu0 0.0
      %3139 = vmatprep.subr.mxu0 0.0
      %3140 = vmatpush1.msra.mxu0 0.0
      %3141 = vmatprep.subr.mxu0 0.0
      %3142 = vmatpush1.msra.mxu0 0.0
      %3143 = vmatprep.subr.mxu0 0.0
      %3144 = vmatpush1.msra.mxu0 0.0
      %3145 = vmatprep.subr.mxu0 0.0
      %3146 = vmatpush1.msra.mxu0 0.0
      %3147 = vmatprep.subr.mxu0 0.0
      %3148 = vmatpush1.msra.mxu0 0.0
      %3149 = vmatprep.subr.mxu0 0.0
      %3150 = vmatpush1.msra.mxu0 0.0
      %3151 = vmatprep.mubr.f32.mxu0 0.0
      %3152 = vmatmul.mubr.f32.gmra.mrb[0].mxu0 %v2304
      %v3153 = vpop.f32.mrb[0].mxu0
      %v3154 = vadd.f32 %v1931, %v3153
      %v3155 = vpop.f32.mrb[0].mxu0
      %v3156 = vadd.f32 %v1933, %v3155
      %3157 = vdwg.mxu0
      %3158 = vmatprep.subr.mxu0 %v899
      %3159 = vmatpush1.msra.mxu0 %v898
      %3160 = vmatprep.subr.mxu0 %v933
      %3161 = vmatpush1.msra.mxu0 %v932
      %3162 = vmatprep.subr.mxu0 %v967
      %3163 = vmatpush1.msra.mxu0 %v966
      %3164 = vmatprep.subr.mxu0 0.0
      %3165 = vmatpush1.msra.mxu0 0.0
      %3166 = vmatprep.subr.mxu0 0.0
      %3167 = vmatpush1.msra.mxu0 0.0
      %3168 = vmatprep.subr.mxu0 0.0
      %3169 = vmatpush1.msra.mxu0 0.0
      %3170 = vmatprep.subr.mxu0 0.0
      %3171 = vmatpush1.msra.mxu0 0.0
      %3172 = vmatprep.subr.mxu0 0.0
      %3173 = vmatpush1.msra.mxu0 0.0
      %3174 = vmatprep.subr.mxu0 0.0
      %3175 = vmatpush1.msra.mxu0 0.0
      %3176 = vmatprep.subr.mxu0 0.0
      %3177 = vmatpush1.msra.mxu0 0.0
      %3178 = vmatprep.subr.mxu0 0.0
      %3179 = vmatpush1.msra.mxu0 0.0
      %3180 = vmatprep.subr.mxu0 0.0
      %3181 = vmatpush1.msra.mxu0 0.0
      %3182 = vmatprep.subr.mxu0 0.0
      %3183 = vmatpush1.msra.mxu0 0.0
      %3184 = vmatprep.subr.mxu0 0.0
      %3185 = vmatpush1.msra.mxu0 0.0
      %3186 = vmatprep.subr.mxu0 0.0
      %3187 = vmatpush1.msra.mxu0 0.0
      %3188 = vmatprep.subr.mxu0 0.0
      %3189 = vmatpush1.msra.mxu0 0.0
      %3190 = vmatprep.subr.mxu0 0.0
      %3191 = vmatpush1.msra.mxu0 0.0
      %3192 = vmatprep.subr.mxu0 0.0
      %3193 = vmatpush1.msra.mxu0 0.0
      %3194 = vmatprep.subr.mxu0 0.0
      %3195 = vmatpush1.msra.mxu0 0.0
      %3196 = vmatprep.subr.mxu0 0.0
      %3197 = vmatpush1.msra.mxu0 0.0
      %3198 = vmatprep.subr.mxu0 0.0
      %3199 = vmatpush1.msra.mxu0 0.0
      %3200 = vmatprep.subr.mxu0 0.0
      %3201 = vmatpush1.msra.mxu0 0.0
      %3202 = vmatprep.subr.mxu0 0.0
      %3203 = vmatpush1.msra.mxu0 0.0
      %3204 = vmatprep.subr.mxu0 0.0
      %3205 = vmatpush1.msra.mxu0 0.0
      %3206 = vmatprep.subr.mxu0 0.0
      %3207 = vmatpush1.msra.mxu0 0.0
      %3208 = vmatprep.subr.mxu0 0.0
      %3209 = vmatpush1.msra.mxu0 0.0
      %3210 = vmatprep.subr.mxu0 0.0
      %3211 = vmatpush1.msra.mxu0 0.0
      %3212 = vmatprep.subr.mxu0 0.0
      %3213 = vmatpush1.msra.mxu0 0.0
      %3214 = vmatprep.subr.mxu0 0.0
      %3215 = vmatpush1.msra.mxu0 0.0
      %3216 = vmatprep.subr.mxu0 0.0
      %3217 = vmatpush1.msra.mxu0 0.0
      %3218 = vmatprep.subr.mxu0 0.0
      %3219 = vmatpush1.msra.mxu0 0.0
      %3220 = vmatprep.subr.mxu0 0.0
      %3221 = vmatpush1.msra.mxu0 0.0
      %3222 = vmatprep.mubr.f32.mxu0 0.0
      %3223 = vmatmul.mubr.f32.gmra.mrb[0].mxu0 %v2304
      %v3224 = vpop.f32.mrb[0].mxu0
      %v3225 = vadd.f32 %v2002, %v3224
      %v3226 = vpop.f32.mrb[0].mxu0
      %v3227 = vadd.f32 %v2004, %v3226
      %3228 = vdwg.mxu0
      %3229 = vmatprep.subr.mxu0 %v901
      %3230 = vmatpush1.msra.mxu0 %v900
      %3231 = vmatprep.subr.mxu0 %v935
      %3232 = vmatpush1.msra.mxu0 %v934
      %3233 = vmatprep.subr.mxu0 %v969
      %3234 = vmatpush1.msra.mxu0 %v968
      %3235 = vmatprep.subr.mxu0 0.0
      %3236 = vmatpush1.msra.mxu0 0.0
      %3237 = vmatprep.subr.mxu0 0.0
      %3238 = vmatpush1.msra.mxu0 0.0
      %3239 = vmatprep.subr.mxu0 0.0
      %3240 = vmatpush1.msra.mxu0 0.0
      %3241 = vmatprep.subr.mxu0 0.0
      %3242 = vmatpush1.msra.mxu0 0.0
      %3243 = vmatprep.subr.mxu0 0.0
      %3244 = vmatpush1.msra.mxu0 0.0
      %3245 = vmatprep.subr.mxu0 0.0
      %3246 = vmatpush1.msra.mxu0 0.0
      %3247 = vmatprep.subr.mxu0 0.0
      %3248 = vmatpush1.msra.mxu0 0.0
      %3249 = vmatprep.subr.mxu0 0.0
      %3250 = vmatpush1.msra.mxu0 0.0
      %3251 = vmatprep.subr.mxu0 0.0
      %3252 = vmatpush1.msra.mxu0 0.0
      %3253 = vmatprep.subr.mxu0 0.0
      %3254 = vmatpush1.msra.mxu0 0.0
      %3255 = vmatprep.subr.mxu0 0.0
      %3256 = vmatpush1.msra.mxu0 0.0
      %3257 = vmatprep.subr.mxu0 0.0
      %3258 = vmatpush1.msra.mxu0 0.0
      %3259 = vmatprep.subr.mxu0 0.0
      %3260 = vmatpush1.msra.mxu0 0.0
      %3261 = vmatprep.subr.mxu0 0.0
      %3262 = vmatpush1.msra.mxu0 0.0
      %3263 = vmatprep.subr.mxu0 0.0
      %3264 = vmatpush1.msra.mxu0 0.0
      %3265 = vmatprep.subr.mxu0 0.0
      %3266 = vmatpush1.msra.mxu0 0.0
      %3267 = vmatprep.subr.mxu0 0.0
      %3268 = vmatpush1.msra.mxu0 0.0
      %3269 = vmatprep.subr.mxu0 0.0
      %3270 = vmatpush1.msra.mxu0 0.0
      %3271 = vmatprep.subr.mxu0 0.0
      %3272 = vmatpush1.msra.mxu0 0.0
      %3273 = vmatprep.subr.mxu0 0.0
      %3274 = vmatpush1.msra.mxu0 0.0
      %3275 = vmatprep.subr.mxu0 0.0
      %3276 = vmatpush1.msra.mxu0 0.0
      %3277 = vmatprep.subr.mxu0 0.0
      %3278 = vmatpush1.msra.mxu0 0.0
      %3279 = vmatprep.subr.mxu0 0.0
      %3280 = vmatpush1.msra.mxu0 0.0
      %3281 = vmatprep.subr.mxu0 0.0
      %3282 = vmatpush1.msra.mxu0 0.0
      %3283 = vmatprep.subr.mxu0 0.0
      %3284 = vmatpush1.msra.mxu0 0.0
      %3285 = vmatprep.subr.mxu0 0.0
      %3286 = vmatpush1.msra.mxu0 0.0
      %3287 = vmatprep.subr.mxu0 0.0
      %3288 = vmatpush1.msra.mxu0 0.0
      %3289 = vmatprep.subr.mxu0 0.0
      %3290 = vmatpush1.msra.mxu0 0.0
      %3291 = vmatprep.subr.mxu0 0.0
      %3292 = vmatpush1.msra.mxu0 0.0
      %3293 = vmatprep.mubr.f32.mxu0 0.0
      %3294 = vmatmul.mubr.f32.gmra.mrb[0].mxu0 %v2304
      %v3295 = vpop.f32.mrb[0].mxu0
      %v3296 = vadd.f32 %v2073, %v3295
      %v3297 = vpop.f32.mrb[0].mxu0
      %v3298 = vadd.f32 %v2075, %v3297
      %3299 = vdwg.mxu0
      %3300 = vmatprep.subr.mxu0 %v903
      %3301 = vmatpush1.msra.mxu0 %v902
      %3302 = vmatprep.subr.mxu0 %v937
      %3303 = vmatpush1.msra.mxu0 %v936
      %3304 = vmatprep.subr.mxu0 %v971
      %3305 = vmatpush1.msra.mxu0 %v970
      %3306 = vmatprep.subr.mxu0 0.0
      %3307 = vmatpush1.msra.mxu0 0.0
      %3308 = vmatprep.subr.mxu0 0.0
      %3309 = vmatpush1.msra.mxu0 0.0
      %3310 = vmatprep.subr.mxu0 0.0
      %3311 = vmatpush1.msra.mxu0 0.0
      %3312 = vmatprep.subr.mxu0 0.0
      %3313 = vmatpush1.msra.mxu0 0.0
      %3314 = vmatprep.subr.mxu0 0.0
      %3315 = vmatpush1.msra.mxu0 0.0
      %3316 = vmatprep.subr.mxu0 0.0
      %3317 = vmatpush1.msra.mxu0 0.0
      %3318 = vmatprep.subr.mxu0 0.0
      %3319 = vmatpush1.msra.mxu0 0.0
      %3320 = vmatprep.subr.mxu0 0.0
      %3321 = vmatpush1.msra.mxu0 0.0
      %3322 = vmatprep.subr.mxu0 0.0
      %3323 = vmatpush1.msra.mxu0 0.0
      %3324 = vmatprep.subr.mxu0 0.0
      %3325 = vmatpush1.msra.mxu0 0.0
      %3326 = vmatprep.subr.mxu0 0.0
      %3327 = vmatpush1.msra.mxu0 0.0
      %3328 = vmatprep.subr.mxu0 0.0
      %3329 = vmatpush1.msra.mxu0 0.0
      %3330 = vmatprep.subr.mxu0 0.0
      %3331 = vmatpush1.msra.mxu0 0.0
      %3332 = vmatprep.subr.mxu0 0.0
      %3333 = vmatpush1.msra.mxu0 0.0
      %3334 = vmatprep.subr.mxu0 0.0
      %3335 = vmatpush1.msra.mxu0 0.0
      %3336 = vmatprep.subr.mxu0 0.0
      %3337 = vmatpush1.msra.mxu0 0.0
      %3338 = vmatprep.subr.mxu0 0.0
      %3339 = vmatpush1.msra.mxu0 0.0
      %3340 = vmatprep.subr.mxu0 0.0
      %3341 = vmatpush1.msra.mxu0 0.0
      %3342 = vmatprep.subr.mxu0 0.0
      %3343 = vmatpush1.msra.mxu0 0.0
      %3344 = vmatprep.subr.mxu0 0.0
      %3345 = vmatpush1.msra.mxu0 0.0
      %3346 = vmatprep.subr.mxu0 0.0
      %3347 = vmatpush1.msra.mxu0 0.0
      %3348 = vmatprep.subr.mxu0 0.0
      %3349 = vmatpush1.msra.mxu0 0.0
      %3350 = vmatprep.subr.mxu0 0.0
      %3351 = vmatpush1.msra.mxu0 0.0
      %3352 = vmatprep.subr.mxu0 0.0
      %3353 = vmatpush1.msra.mxu0 0.0
      %3354 = vmatprep.subr.mxu0 0.0
      %3355 = vmatpush1.msra.mxu0 0.0
      %3356 = vmatprep.subr.mxu0 0.0
      %3357 = vmatpush1.msra.mxu0 0.0
      %3358 = vmatprep.subr.mxu0 0.0
      %3359 = vmatpush1.msra.mxu0 0.0
      %3360 = vmatprep.subr.mxu0 0.0
      %3361 = vmatpush1.msra.mxu0 0.0
      %3362 = vmatprep.subr.mxu0 0.0
      %3363 = vmatpush1.msra.mxu0 0.0
      %3364 = vmatprep.mubr.f32.mxu0 0.0
      %3365 = vmatmul.mubr.f32.gmra.mrb[0].mxu0 %v2304
      %v3366 = vpop.f32.mrb[0].mxu0
      %v3367 = vadd.f32 %v2144, %v3366
      %v3368 = vpop.f32.mrb[0].mxu0
      %v3369 = vadd.f32 %v2146, %v3368
      %3370 = vdwg.mxu0
      %3371 = vmatprep.subr.mxu0 %v905
      %3372 = vmatpush1.msra.mxu0 %v904
      %3373 = vmatprep.subr.mxu0 %v939
      %3374 = vmatpush1.msra.mxu0 %v938
      %3375 = vmatprep.subr.mxu0 %v973
      %3376 = vmatpush1.msra.mxu0 %v972
      %3377 = vmatprep.subr.mxu0 0.0
      %3378 = vmatpush1.msra.mxu0 0.0
      %3379 = vmatprep.subr.mxu0 0.0
      %3380 = vmatpush1.msra.mxu0 0.0
      %3381 = vmatprep.subr.mxu0 0.0
      %3382 = vmatpush1.msra.mxu0 0.0
      %3383 = vmatprep.subr.mxu0 0.0
      %3384 = vmatpush1.msra.mxu0 0.0
      %3385 = vmatprep.subr.mxu0 0.0
      %3386 = vmatpush1.msra.mxu0 0.0
      %3387 = vmatprep.subr.mxu0 0.0
      %3388 = vmatpush1.msra.mxu0 0.0
      %3389 = vmatprep.subr.mxu0 0.0
      %3390 = vmatpush1.msra.mxu0 0.0
      %3391 = vmatprep.subr.mxu0 0.0
      %3392 = vmatpush1.msra.mxu0 0.0
      %3393 = vmatprep.subr.mxu0 0.0
      %3394 = vmatpush1.msra.mxu0 0.0
      %3395 = vmatprep.subr.mxu0 0.0
      %3396 = vmatpush1.msra.mxu0 0.0
      %3397 = vmatprep.subr.mxu0 0.0
      %3398 = vmatpush1.msra.mxu0 0.0
      %3399 = vmatprep.subr.mxu0 0.0
      %3400 = vmatpush1.msra.mxu0 0.0
      %3401 = vmatprep.subr.mxu0 0.0
      %3402 = vmatpush1.msra.mxu0 0.0
      %3403 = vmatprep.subr.mxu0 0.0
      %3404 = vmatpush1.msra.mxu0 0.0
      %3405 = vmatprep.subr.mxu0 0.0
      %3406 = vmatpush1.msra.mxu0 0.0
      %3407 = vmatprep.subr.mxu0 0.0
      %3408 = vmatpush1.msra.mxu0 0.0
      %3409 = vmatprep.subr.mxu0 0.0
      %3410 = vmatpush1.msra.mxu0 0.0
      %3411 = vmatprep.subr.mxu0 0.0
      %3412 = vmatpush1.msra.mxu0 0.0
      %3413 = vmatprep.subr.mxu0 0.0
      %3414 = vmatpush1.msra.mxu0 0.0
      %3415 = vmatprep.subr.mxu0 0.0
      %3416 = vmatpush1.msra.mxu0 0.0
      %3417 = vmatprep.subr.mxu0 0.0
      %3418 = vmatpush1.msra.mxu0 0.0
      %3419 = vmatprep.subr.mxu0 0.0
      %3420 = vmatpush1.msra.mxu0 0.0
      %3421 = vmatprep.subr.mxu0 0.0
      %3422 = vmatpush1.msra.mxu0 0.0
      %3423 = vmatprep.subr.mxu0 0.0
      %3424 = vmatpush1.msra.mxu0 0.0
      %3425 = vmatprep.subr.mxu0 0.0
      %3426 = vmatpush1.msra.mxu0 0.0
      %3427 = vmatprep.subr.mxu0 0.0
      %3428 = vmatpush1.msra.mxu0 0.0
      %3429 = vmatprep.subr.mxu0 0.0
      %3430 = vmatpush1.msra.mxu0 0.0
      %3431 = vmatprep.subr.mxu0 0.0
      %3432 = vmatpush1.msra.mxu0 0.0
      %3433 = vmatprep.subr.mxu0 0.0
      %3434 = vmatpush1.msra.mxu0 0.0
      %3435 = vmatprep.mubr.f32.mxu0 0.0
      %3436 = vmatmul.mubr.f32.gmra.mrb[0].mxu0 %v2304
      %v3437 = vpop.f32.mrb[0].mxu0
      %v3438 = vadd.f32 %v2215, %v3437
      %v3439 = vpop.f32.mrb[0].mxu0
      %v3440 = vadd.f32 %v2217, %v3439
      %3441 = vdwg.mxu0
      %3442 = vmatprep.subr.mxu0 %v907
      %3443 = vmatpush1.msra.mxu0 %v906
      %3444 = vmatprep.subr.mxu0 %v941
      %3445 = vmatpush1.msra.mxu0 %v940
      %3446 = vmatprep.subr.mxu0 %v975
      %3447 = vmatpush1.msra.mxu0 %v974
      %3448 = vmatprep.subr.mxu0 0.0
      %3449 = vmatpush1.msra.mxu0 0.0
      %3450 = vmatprep.subr.mxu0 0.0
      %3451 = vmatpush1.msra.mxu0 0.0
      %3452 = vmatprep.subr.mxu0 0.0
      %3453 = vmatpush1.msra.mxu0 0.0
      %3454 = vmatprep.subr.mxu0 0.0
      %3455 = vmatpush1.msra.mxu0 0.0
      %3456 = vmatprep.subr.mxu0 0.0
      %3457 = vmatpush1.msra.mxu0 0.0
      %3458 = vmatprep.subr.mxu0 0.0
      %3459 = vmatpush1.msra.mxu0 0.0
      %3460 = vmatprep.subr.mxu0 0.0
      %3461 = vmatpush1.msra.mxu0 0.0
      %3462 = vmatprep.subr.mxu0 0.0
      %3463 = vmatpush1.msra.mxu0 0.0
      %3464 = vmatprep.subr.mxu0 0.0
      %3465 = vmatpush1.msra.mxu0 0.0
      %3466 = vmatprep.subr.mxu0 0.0
      %3467 = vmatpush1.msra.mxu0 0.0
      %3468 = vmatprep.subr.mxu0 0.0
      %3469 = vmatpush1.msra.mxu0 0.0
      %3470 = vmatprep.subr.mxu0 0.0
      %3471 = vmatpush1.msra.mxu0 0.0
      %3472 = vmatprep.subr.mxu0 0.0
      %3473 = vmatpush1.msra.mxu0 0.0
      %3474 = vmatprep.subr.mxu0 0.0
      %3475 = vmatpush1.msra.mxu0 0.0
      %3476 = vmatprep.subr.mxu0 0.0
      %3477 = vmatpush1.msra.mxu0 0.0
      %3478 = vmatprep.subr.mxu0 0.0
      %3479 = vmatpush1.msra.mxu0 0.0
      %3480 = vmatprep.subr.mxu0 0.0
      %3481 = vmatpush1.msra.mxu0 0.0
      %3482 = vmatprep.subr.mxu0 0.0
      %3483 = vmatpush1.msra.mxu0 0.0
      %3484 = vmatprep.subr.mxu0 0.0
      %3485 = vmatpush1.msra.mxu0 0.0
      %3486 = vmatprep.subr.mxu0 0.0
      %3487 = vmatpush1.msra.mxu0 0.0
      %3488 = vmatprep.subr.mxu0 0.0
      %3489 = vmatpush1.msra.mxu0 0.0
      %3490 = vmatprep.subr.mxu0 0.0
      %3491 = vmatpush1.msra.mxu0 0.0
      %3492 = vmatprep.subr.mxu0 0.0
      %3493 = vmatpush1.msra.mxu0 0.0
      %3494 = vmatprep.subr.mxu0 0.0
      %3495 = vmatpush1.msra.mxu0 0.0
      %3496 = vmatprep.subr.mxu0 0.0
      %3497 = vmatpush1.msra.mxu0 0.0
      %3498 = vmatprep.subr.mxu0 0.0
      %3499 = vmatpush1.msra.mxu0 0.0
      %3500 = vmatprep.subr.mxu0 0.0
      %3501 = vmatpush1.msra.mxu0 0.0
      %3502 = vmatprep.subr.mxu0 0.0
      %3503 = vmatpush1.msra.mxu0 0.0
      %3504 = vmatprep.subr.mxu0 0.0
      %3505 = vmatpush1.msra.mxu0 0.0
      %3506 = vmatprep.mubr.f32.mxu0 0.0
      %3507 = vmatmul.mubr.f32.gmra.mrb[0].mxu0 %v2304
      %v3508 = vpop.f32.mrb[0].mxu0
      %v3509 = vadd.f32 %v2286, %v3508
      %v3510 = vpop.f32.mrb[0].mxu0
      %v3511 = vadd.f32 %v2288, %v3510
      %3512 = vdwg.mxu0
      %s3513 = scalar_lea.vmem %s1, 16
      %v3514 = vld [vmem:[%s3513] sm:$0xff]
      %3515 = vrot.lane.b32.xlu0 %v331, 1
      %v3516 = vpop.permute.xlu0 %3515
      %3517 = vrot.lane.b32.xlu0 %v476, 1
      %v3518 = vpop.permute.xlu0 %3517
      %3519 = vrot.lane.b32.xlu0 %v660, 1
      %v3520 = vpop.permute.xlu0 %3519
      %v3521 = vsel %vm874, %v733, %v3516
      %v3522 = vsel %vm874, %v803, %v3518
      %v3523 = vsel %vm874, %v873, %v3520
      %v3528 = vsel %vm1079, %v3514, 0
      %3530 = vmatprep.subr.mxu0 %v877
      %3531 = vmatpush1.msra.mxu0 %v876
      %3532 = vmatprep.subr.mxu0 %v911
      %3533 = vmatpush1.msra.mxu0 %v910
      %3534 = vmatprep.subr.mxu0 %v945
      %3535 = vmatpush1.msra.mxu0 %v944
      %3536 = vmatprep.subr.mxu0 0.0
      %3537 = vmatpush1.msra.mxu0 0.0
      %3538 = vmatprep.subr.mxu0 0.0
      %3539 = vmatpush1.msra.mxu0 0.0
      %3540 = vmatprep.subr.mxu0 0.0
      %3541 = vmatpush1.msra.mxu0 0.0
      %3542 = vmatprep.subr.mxu0 0.0
      %3543 = vmatpush1.msra.mxu0 0.0
      %3544 = vmatprep.subr.mxu0 0.0
      %3545 = vmatpush1.msra.mxu0 0.0
      %3546 = vmatprep.subr.mxu0 0.0
      %3547 = vmatpush1.msra.mxu0 0.0
      %3548 = vmatprep.subr.mxu0 0.0
      %3549 = vmatpush1.msra.mxu0 0.0
      %3550 = vmatprep.subr.mxu0 0.0
      %3551 = vmatpush1.msra.mxu0 0.0
      %3552 = vmatprep.subr.mxu0 0.0
      %3553 = vmatpush1.msra.mxu0 0.0
      %3554 = vmatprep.subr.mxu0 0.0
      %3555 = vmatpush1.msra.mxu0 0.0
      %3556 = vmatprep.subr.mxu0 0.0
      %3557 = vmatpush1.msra.mxu0 0.0
      %3558 = vmatprep.subr.mxu0 0.0
      %3559 = vmatpush1.msra.mxu0 0.0
      %3560 = vmatprep.subr.mxu0 0.0
      %3561 = vmatpush1.msra.mxu0 0.0
      %3562 = vmatprep.subr.mxu0 0.0
      %3563 = vmatpush1.msra.mxu0 0.0
      %3564 = vmatprep.subr.mxu0 0.0
      %3565 = vmatpush1.msra.mxu0 0.0
      %3566 = vmatprep.subr.mxu0 0.0
      %3567 = vmatpush1.msra.mxu0 0.0
      %3568 = vmatprep.subr.mxu0 0.0
      %3569 = vmatpush1.msra.mxu0 0.0
      %3570 = vmatprep.subr.mxu0 0.0
      %3571 = vmatpush1.msra.mxu0 0.0
      %3572 = vmatprep.subr.mxu0 0.0
      %3573 = vmatpush1.msra.mxu0 0.0
      %3574 = vmatprep.subr.mxu0 0.0
      %3575 = vmatpush1.msra.mxu0 0.0
      %3576 = vmatprep.subr.mxu0 0.0
      %3577 = vmatpush1.msra.mxu0 0.0
      %3578 = vmatprep.subr.mxu0 0.0
      %3579 = vmatpush1.msra.mxu0 0.0
      %3580 = vmatprep.subr.mxu0 0.0
      %3581 = vmatpush1.msra.mxu0 0.0
      %3582 = vmatprep.subr.mxu0 0.0
      %3583 = vmatpush1.msra.mxu0 0.0
      %3584 = vmatprep.subr.mxu0 0.0
      %3585 = vmatpush1.msra.mxu0 0.0
      %3586 = vmatprep.subr.mxu0 0.0
      %3587 = vmatpush1.msra.mxu0 0.0
      %3588 = vmatprep.subr.mxu0 0.0
      %3589 = vmatpush1.msra.mxu0 0.0
      %3590 = vmatprep.subr.mxu0 0.0
      %3591 = vmatpush1.msra.mxu0 0.0
      %3592 = vmatprep.subr.mxu0 0.0
      %3593 = vmatpush1.msra.mxu0 0.0
      %3594 = vmatprep.mubr.f32.mxu0 0.0
      %3595 = vmatmul.mubr.f32.gmra.mrb[0].mxu0 %v3528
      %v3596 = vpop.f32.mrb[0].mxu0
      %v3597 = vadd.f32 0.0, %v3596
      %v3598 = vpop.f32.mrb[0].mxu0
      %v3599 = vadd.f32 0.0, %v3598
      %3600 = vdwg.mxu0
      %3601 = vmatprep.subr.mxu0 %v879
      %3602 = vmatpush1.msra.mxu0 %v878
      %3603 = vmatprep.subr.mxu0 %v913
      %3604 = vmatpush1.msra.mxu0 %v912
      %3605 = vmatprep.subr.mxu0 %v947
      %3606 = vmatpush1.msra.mxu0 %v946
      %3607 = vmatprep.subr.mxu0 0.0
      %3608 = vmatpush1.msra.mxu0 0.0
      %3609 = vmatprep.subr.mxu0 0.0
      %3610 = vmatpush1.msra.mxu0 0.0
      %3611 = vmatprep.subr.mxu0 0.0
      %3612 = vmatpush1.msra.mxu0 0.0
      %3613 = vmatprep.subr.mxu0 0.0
      %3614 = vmatpush1.msra.mxu0 0.0
      %3615 = vmatprep.subr.mxu0 0.0
      %3616 = vmatpush1.msra.mxu0 0.0
      %3617 = vmatprep.subr.mxu0 0.0
      %3618 = vmatpush1.msra.mxu0 0.0
      %3619 = vmatprep.subr.mxu0 0.0
      %3620 = vmatpush1.msra.mxu0 0.0
      %3621 = vmatprep.subr.mxu0 0.0
      %3622 = vmatpush1.msra.mxu0 0.0
      %3623 = vmatprep.subr.mxu0 0.0
      %3624 = vmatpush1.msra.mxu0 0.0
      %3625 = vmatprep.subr.mxu0 0.0
      %3626 = vmatpush1.msra.mxu0 0.0
      %3627 = vmatprep.subr.mxu0 0.0
      %3628 = vmatpush1.msra.mxu0 0.0
      %3629 = vmatprep.subr.mxu0 0.0
      %3630 = vmatpush1.msra.mxu0 0.0
      %3631 = vmatprep.subr.mxu0 0.0
      %3632 = vmatpush1.msra.mxu0 0.0
      %3633 = vmatprep.subr.mxu0 0.0
      %3634 = vmatpush1.msra.mxu0 0.0
      %3635 = vmatprep.subr.mxu0 0.0
      %3636 = vmatpush1.msra.mxu0 0.0
      %3637 = vmatprep.subr.mxu0 0.0
      %3638 = vmatpush1.msra.mxu0 0.0
      %3639 = vmatprep.subr.mxu0 0.0
      %3640 = vmatpush1.msra.mxu0 0.0
      %3641 = vmatprep.subr.mxu0 0.0
      %3642 = vmatpush1.msra.mxu0 0.0
      %3643 = vmatprep.subr.mxu0 0.0
      %3644 = vmatpush1.msra.mxu0 0.0
      %3645 = vmatprep.subr.mxu0 0.0
      %3646 = vmatpush1.msra.mxu0 0.0
      %3647 = vmatprep.subr.mxu0 0.0
      %3648 = vmatpush1.msra.mxu0 0.0
      %3649 = vmatprep.subr.mxu0 0.0
      %3650 = vmatpush1.msra.mxu0 0.0
      %3651 = vmatprep.subr.mxu0 0.0
      %3652 = vmatpush1.msra.mxu0 0.0
      %3653 = vmatprep.subr.mxu0 0.0
      %3654 = vmatpush1.msra.mxu0 0.0
      %3655 = vmatprep.subr.mxu0 0.0
      %3656 = vmatpush1.msra.mxu0 0.0
      %3657 = vmatprep.subr.mxu0 0.0
      %3658 = vmatpush1.msra.mxu0 0.0
      %3659 = vmatprep.subr.mxu0 0.0
      %3660 = vmatpush1.msra.mxu0 0.0
      %3661 = vmatprep.subr.mxu0 0.0
      %3662 = vmatpush1.msra.mxu0 0.0
      %3663 = vmatprep.subr.mxu0 0.0
      %3664 = vmatpush1.msra.mxu0 0.0
      %3665 = vmatprep.mubr.f32.mxu0 0.0
      %3666 = vmatmul.mubr.f32.gmra.mrb[0].mxu0 %v3528
      %v3667 = vpop.f32.mrb[0].mxu0
      %v3668 = vadd.f32 0.0, %v3667
      %v3669 = vpop.f32.mrb[0].mxu0
      %v3670 = vadd.f32 0.0, %v3669
      %3671 = vdwg.mxu0
      %3672 = vmatprep.subr.mxu0 %v881
      %3673 = vmatpush1.msra.mxu0 %v880
      %3674 = vmatprep.subr.mxu0 %v915
      %3675 = vmatpush1.msra.mxu0 %v914
      %3676 = vmatprep.subr.mxu0 %v949
      %3677 = vmatpush1.msra.mxu0 %v948
      %3678 = vmatprep.subr.mxu0 0.0
      %3679 = vmatpush1.msra.mxu0 0.0
      %3680 = vmatprep.subr.mxu0 0.0
      %3681 = vmatpush1.msra.mxu0 0.0
      %3682 = vmatprep.subr.mxu0 0.0
      %3683 = vmatpush1.msra.mxu0 0.0
      %3684 = vmatprep.subr.mxu0 0.0
      %3685 = vmatpush1.msra.mxu0 0.0
      %3686 = vmatprep.subr.mxu0 0.0
      %3687 = vmatpush1.msra.mxu0 0.0
      %3688 = vmatprep.subr.mxu0 0.0
      %3689 = vmatpush1.msra.mxu0 0.0
      %3690 = vmatprep.subr.mxu0 0.0
      %3691 = vmatpush1.msra.mxu0 0.0
      %3692 = vmatprep.subr.mxu0 0.0
      %3693 = vmatpush1.msra.mxu0 0.0
      %3694 = vmatprep.subr.mxu0 0.0
      %3695 = vmatpush1.msra.mxu0 0.0
      %3696 = vmatprep.subr.mxu0 0.0
      %3697 = vmatpush1.msra.mxu0 0.0
      %3698 = vmatprep.subr.mxu0 0.0
      %3699 = vmatpush1.msra.mxu0 0.0
      %3700 = vmatprep.subr.mxu0 0.0
      %3701 = vmatpush1.msra.mxu0 0.0
      %3702 = vmatprep.subr.mxu0 0.0
      %3703 = vmatpush1.msra.mxu0 0.0
      %3704 = vmatprep.subr.mxu0 0.0
      %3705 = vmatpush1.msra.mxu0 0.0
      %3706 = vmatprep.subr.mxu0 0.0
      %3707 = vmatpush1.msra.mxu0 0.0
      %3708 = vmatprep.subr.mxu0 0.0
      %3709 = vmatpush1.msra.mxu0 0.0
      %3710 = vmatprep.subr.mxu0 0.0
      %3711 = vmatpush1.msra.mxu0 0.0
      %3712 = vmatprep.subr.mxu0 0.0
      %3713 = vmatpush1.msra.mxu0 0.0
      %3714 = vmatprep.subr.mxu0 0.0
      %3715 = vmatpush1.msra.mxu0 0.0
      %3716 = vmatprep.subr.mxu0 0.0
      %3717 = vmatpush1.msra.mxu0 0.0
      %3718 = vmatprep.subr.mxu0 0.0
      %3719 = vmatpush1.msra.mxu0 0.0
      %3720 = vmatprep.subr.mxu0 0.0
      %3721 = vmatpush1.msra.mxu0 0.0
      %3722 = vmatprep.subr.mxu0 0.0
      %3723 = vmatpush1.msra.mxu0 0.0
      %3724 = vmatprep.subr.mxu0 0.0
      %3725 = vmatpush1.msra.mxu0 0.0
      %3726 = vmatprep.subr.mxu0 0.0
      %3727 = vmatpush1.msra.mxu0 0.0
      %3728 = vmatprep.subr.mxu0 0.0
      %3729 = vmatpush1.msra.mxu0 0.0
      %3730 = vmatprep.subr.mxu0 0.0
      %3731 = vmatpush1.msra.mxu0 0.0
      %3732 = vmatprep.subr.mxu0 0.0
      %3733 = vmatpush1.msra.mxu0 0.0
      %3734 = vmatprep.subr.mxu0 0.0
      %3735 = vmatpush1.msra.mxu0 0.0
      %3736 = vmatprep.mubr.f32.mxu0 0.0
      %3737 = vmatmul.mubr.f32.gmra.mrb[0].mxu0 %v3528
      %v3738 = vpop.f32.mrb[0].mxu0
      %v3739 = vadd.f32 0.0, %v3738
      %v3740 = vpop.f32.mrb[0].mxu0
      %v3741 = vadd.f32 0.0, %v3740
      %3742 = vdwg.mxu0
      %3743 = vmatprep.subr.mxu0 %v883
      %3744 = vmatpush1.msra.mxu0 %v882
      %3745 = vmatprep.subr.mxu0 %v917
      %3746 = vmatpush1.msra.mxu0 %v916
      %3747 = vmatprep.subr.mxu0 %v951
      %3748 = vmatpush1.msra.mxu0 %v950
      %3749 = vmatprep.subr.mxu0 0.0
      %3750 = vmatpush1.msra.mxu0 0.0
      %3751 = vmatprep.subr.mxu0 0.0
      %3752 = vmatpush1.msra.mxu0 0.0
      %3753 = vmatprep.subr.mxu0 0.0
      %3754 = vmatpush1.msra.mxu0 0.0
      %3755 = vmatprep.subr.mxu0 0.0
      %3756 = vmatpush1.msra.mxu0 0.0
      %3757 = vmatprep.subr.mxu0 0.0
      %3758 = vmatpush1.msra.mxu0 0.0
      %3759 = vmatprep.subr.mxu0 0.0
      %3760 = vmatpush1.msra.mxu0 0.0
      %3761 = vmatprep.subr.mxu0 0.0
      %3762 = vmatpush1.msra.mxu0 0.0
      %3763 = vmatprep.subr.mxu0 0.0
      %3764 = vmatpush1.msra.mxu0 0.0
      %3765 = vmatprep.subr.mxu0 0.0
      %3766 = vmatpush1.msra.mxu0 0.0
      %3767 = vmatprep.subr.mxu0 0.0
      %3768 = vmatpush1.msra.mxu0 0.0
      %3769 = vmatprep.subr.mxu0 0.0
      %3770 = vmatpush1.msra.mxu0 0.0
      %3771 = vmatprep.subr.mxu0 0.0
      %3772 = vmatpush1.msra.mxu0 0.0
      %3773 = vmatprep.subr.mxu0 0.0
      %3774 = vmatpush1.msra.mxu0 0.0
      %3775 = vmatprep.subr.mxu0 0.0
      %3776 = vmatpush1.msra.mxu0 0.0
      %3777 = vmatprep.subr.mxu0 0.0
      %3778 = vmatpush1.msra.mxu0 0.0
      %3779 = vmatprep.subr.mxu0 0.0
      %3780 = vmatpush1.msra.mxu0 0.0
      %3781 = vmatprep.subr.mxu0 0.0
      %3782 = vmatpush1.msra.mxu0 0.0
      %3783 = vmatprep.subr.mxu0 0.0
      %3784 = vmatpush1.msra.mxu0 0.0
      %3785 = vmatprep.subr.mxu0 0.0
      %3786 = vmatpush1.msra.mxu0 0.0
      %3787 = vmatprep.subr.mxu0 0.0
      %3788 = vmatpush1.msra.mxu0 0.0
      %3789 = vmatprep.subr.mxu0 0.0
      %3790 = vmatpush1.msra.mxu0 0.0
      %3791 = vmatprep.subr.mxu0 0.0
      %3792 = vmatpush1.msra.mxu0 0.0
      %3793 = vmatprep.subr.mxu0 0.0
      %3794 = vmatpush1.msra.mxu0 0.0
      %3795 = vmatprep.subr.mxu0 0.0
      %3796 = vmatpush1.msra.mxu0 0.0
      %3797 = vmatprep.subr.mxu0 0.0
      %3798 = vmatpush1.msra.mxu0 0.0
      %3799 = vmatprep.subr.mxu0 0.0
      %3800 = vmatpush1.msra.mxu0 0.0
      %3801 = vmatprep.subr.mxu0 0.0
      %3802 = vmatpush1.msra.mxu0 0.0
      %3803 = vmatprep.subr.mxu0 0.0
      %3804 = vmatpush1.msra.mxu0 0.0
      %3805 = vmatprep.subr.mxu0 0.0
      %3806 = vmatpush1.msra.mxu0 0.0
      %3807 = vmatprep.mubr.f32.mxu0 0.0
      %3808 = vmatmul.mubr.f32.gmra.mrb[0].mxu0 %v3528
      %v3809 = vpop.f32.mrb[0].mxu0
      %v3810 = vadd.f32 0.0, %v3809
      %v3811 = vpop.f32.mrb[0].mxu0
      %v3812 = vadd.f32 0.0, %v3811
      %3813 = vdwg.mxu0
      %3814 = vmatprep.subr.mxu0 %v885
      %3815 = vmatpush1.msra.mxu0 %v884
      %3816 = vmatprep.subr.mxu0 %v919
      %3817 = vmatpush1.msra.mxu0 %v918
      %3818 = vmatprep.subr.mxu0 %v953
      %3819 = vmatpush1.msra.mxu0 %v952
      %3820 = vmatprep.subr.mxu0 0.0
      %3821 = vmatpush1.msra.mxu0 0.0
      %3822 = vmatprep.subr.mxu0 0.0
      %3823 = vmatpush1.msra.mxu0 0.0
      %3824 = vmatprep.subr.mxu0 0.0
      %3825 = vmatpush1.msra.mxu0 0.0
      %3826 = vmatprep.subr.mxu0 0.0
      %3827 = vmatpush1.msra.mxu0 0.0
      %3828 = vmatprep.subr.mxu0 0.0
      %3829 = vmatpush1.msra.mxu0 0.0
      %3830 = vmatprep.subr.mxu0 0.0
      %3831 = vmatpush1.msra.mxu0 0.0
      %3832 = vmatprep.subr.mxu0 0.0
      %3833 = vmatpush1.msra.mxu0 0.0
      %3834 = vmatprep.subr.mxu0 0.0
      %3835 = vmatpush1.msra.mxu0 0.0
      %3836 = vmatprep.subr.mxu0 0.0
      %3837 = vmatpush1.msra.mxu0 0.0
      %3838 = vmatprep.subr.mxu0 0.0
      %3839 = vmatpush1.msra.mxu0 0.0
      %3840 = vmatprep.subr.mxu0 0.0
      %3841 = vmatpush1.msra.mxu0 0.0
      %3842 = vmatprep.subr.mxu0 0.0
      %3843 = vmatpush1.msra.mxu0 0.0
      %3844 = vmatprep.subr.mxu0 0.0
      %3845 = vmatpush1.msra.mxu0 0.0
      %3846 = vmatprep.subr.mxu0 0.0
      %3847 = vmatpush1.msra.mxu0 0.0
      %3848 = vmatprep.subr.mxu0 0.0
      %3849 = vmatpush1.msra.mxu0 0.0
      %3850 = vmatprep.subr.mxu0 0.0
      %3851 = vmatpush1.msra.mxu0 0.0
      %3852 = vmatprep.subr.mxu0 0.0
      %3853 = vmatpush1.msra.mxu0 0.0
      %3854 = vmatprep.subr.mxu0 0.0
      %3855 = vmatpush1.msra.mxu0 0.0
      %3856 = vmatprep.subr.mxu0 0.0
      %3857 = vmatpush1.msra.mxu0 0.0
      %3858 = vmatprep.subr.mxu0 0.0
      %3859 = vmatpush1.msra.mxu0 0.0
      %3860 = vmatprep.subr.mxu0 0.0
      %3861 = vmatpush1.msra.mxu0 0.0
      %3862 = vmatprep.subr.mxu0 0.0
      %3863 = vmatpush1.msra.mxu0 0.0
      %3864 = vmatprep.subr.mxu0 0.0
      %3865 = vmatpush1.msra.mxu0 0.0
      %3866 = vmatprep.subr.mxu0 0.0
      %3867 = vmatpush1.msra.mxu0 0.0
      %3868 = vmatprep.subr.mxu0 0.0
      %3869 = vmatpush1.msra.mxu0 0.0
      %3870 = vmatprep.subr.mxu0 0.0
      %3871 = vmatpush1.msra.mxu0 0.0
      %3872 = vmatprep.subr.mxu0 0.0
      %3873 = vmatpush1.msra.mxu0 0.0
      %3874 = vmatprep.subr.mxu0 0.0
      %3875 = vmatpush1.msra.mxu0 0.0
      %3876 = vmatprep.subr.mxu0 0.0
      %3877 = vmatpush1.msra.mxu0 0.0
      %3878 = vmatprep.mubr.f32.mxu0 0.0
      %3879 = vmatmul.mubr.f32.gmra.mrb[0].mxu0 %v3528
      %v3880 = vpop.f32.mrb[0].mxu0
      %v3881 = vadd.f32 0.0, %v3880
      %v3882 = vpop.f32.mrb[0].mxu0
      %v3883 = vadd.f32 0.0, %v3882
      %3884 = vdwg.mxu0
      %3885 = vmatprep.subr.mxu0 %v887
      %3886 = vmatpush1.msra.mxu0 %v886
      %3887 = vmatprep.subr.mxu0 %v921
      %3888 = vmatpush1.msra.mxu0 %v920
      %3889 = vmatprep.subr.mxu0 %v955
      %3890 = vmatpush1.msra.mxu0 %v954
      %3891 = vmatprep.subr.mxu0 0.0
      %3892 = vmatpush1.msra.mxu0 0.0
      %3893 = vmatprep.subr.mxu0 0.0
      %3894 = vmatpush1.msra.mxu0 0.0
      %3895 = vmatprep.subr.mxu0 0.0
      %3896 = vmatpush1.msra.mxu0 0.0
      %3897 = vmatprep.subr.mxu0 0.0
      %3898 = vmatpush1.msra.mxu0 0.0
      %3899 = vmatprep.subr.mxu0 0.0
      %3900 = vmatpush1.msra.mxu0 0.0
      %3901 = vmatprep.subr.mxu0 0.0
      %3902 = vmatpush1.msra.mxu0 0.0
      %3903 = vmatprep.subr.mxu0 0.0
      %3904 = vmatpush1.msra.mxu0 0.0
      %3905 = vmatprep.subr.mxu0 0.0
      %3906 = vmatpush1.msra.mxu0 0.0
      %3907 = vmatprep.subr.mxu0 0.0
      %3908 = vmatpush1.msra.mxu0 0.0
      %3909 = vmatprep.subr.mxu0 0.0
      %3910 = vmatpush1.msra.mxu0 0.0
      %3911 = vmatprep.subr.mxu0 0.0
      %3912 = vmatpush1.msra.mxu0 0.0
      %3913 = vmatprep.subr.mxu0 0.0
      %3914 = vmatpush1.msra.mxu0 0.0
      %3915 = vmatprep.subr.mxu0 0.0
      %3916 = vmatpush1.msra.mxu0 0.0
      %3917 = vmatprep.subr.mxu0 0.0
      %3918 = vmatpush1.msra.mxu0 0.0
      %3919 = vmatprep.subr.mxu0 0.0
      %3920 = vmatpush1.msra.mxu0 0.0
      %3921 = vmatprep.subr.mxu0 0.0
      %3922 = vmatpush1.msra.mxu0 0.0
      %3923 = vmatprep.subr.mxu0 0.0
      %3924 = vmatpush1.msra.mxu0 0.0
      %3925 = vmatprep.subr.mxu0 0.0
      %3926 = vmatpush1.msra.mxu0 0.0
      %3927 = vmatprep.subr.mxu0 0.0
      %3928 = vmatpush1.msra.mxu0 0.0
      %3929 = vmatprep.subr.mxu0 0.0
      %3930 = vmatpush1.msra.mxu0 0.0
      %3931 = vmatprep.subr.mxu0 0.0
      %3932 = vmatpush1.msra.mxu0 0.0
      %3933 = vmatprep.subr.mxu0 0.0
      %3934 = vmatpush1.msra.mxu0 0.0
      %3935 = vmatprep.subr.mxu0 0.0
      %3936 = vmatpush1.msra.mxu0 0.0
      %3937 = vmatprep.subr.mxu0 0.0
      %3938 = vmatpush1.msra.mxu0 0.0
      %3939 = vmatprep.subr.mxu0 0.0
      %3940 = vmatpush1.msra.mxu0 0.0
      %3941 = vmatprep.subr.mxu0 0.0
      %3942 = vmatpush1.msra.mxu0 0.0
      %3943 = vmatprep.subr.mxu0 0.0
      %3944 = vmatpush1.msra.mxu0 0.0
      %3945 = vmatprep.subr.mxu0 0.0
      %3946 = vmatpush1.msra.mxu0 0.0
      %3947 = vmatprep.subr.mxu0 0.0
      %3948 = vmatpush1.msra.mxu0 0.0
      %3949 = vmatprep.mubr.f32.mxu0 0.0
      %3950 = vmatmul.mubr.f32.gmra.mrb[0].mxu0 %v3528
      %v3951 = vpop.f32.mrb[0].mxu0
      %v3952 = vadd.f32 0.0, %v3951
      %v3953 = vpop.f32.mrb[0].mxu0
      %v3954 = vadd.f32 0.0, %v3953
      %3955 = vdwg.mxu0
      %3956 = vmatprep.subr.mxu0 %v889
      %3957 = vmatpush1.msra.mxu0 %v888
      %3958 = vmatprep.subr.mxu0 %v923
      %3959 = vmatpush1.msra.mxu0 %v922
      %3960 = vmatprep.subr.mxu0 %v957
      %3961 = vmatpush1.msra.mxu0 %v956
      %3962 = vmatprep.subr.mxu0 0.0
      %3963 = vmatpush1.msra.mxu0 0.0
      %3964 = vmatprep.subr.mxu0 0.0
      %3965 = vmatpush1.msra.mxu0 0.0
      %3966 = vmatprep.subr.mxu0 0.0
      %3967 = vmatpush1.msra.mxu0 0.0
      %3968 = vmatprep.subr.mxu0 0.0
      %3969 = vmatpush1.msra.mxu0 0.0
      %3970 = vmatprep.subr.mxu0 0.0
      %3971 = vmatpush1.msra.mxu0 0.0
      %3972 = vmatprep.subr.mxu0 0.0
      %3973 = vmatpush1.msra.mxu0 0.0
      %3974 = vmatprep.subr.mxu0 0.0
      %3975 = vmatpush1.msra.mxu0 0.0
      %3976 = vmatprep.subr.mxu0 0.0
      %3977 = vmatpush1.msra.mxu0 0.0
      %3978 = vmatprep.subr.mxu0 0.0
      %3979 = vmatpush1.msra.mxu0 0.0
      %3980 = vmatprep.subr.mxu0 0.0
      %3981 = vmatpush1.msra.mxu0 0.0
      %3982 = vmatprep.subr.mxu0 0.0
      %3983 = vmatpush1.msra.mxu0 0.0
      %3984 = vmatprep.subr.mxu0 0.0
      %3985 = vmatpush1.msra.mxu0 0.0
      %3986 = vmatprep.subr.mxu0 0.0
      %3987 = vmatpush1.msra.mxu0 0.0
      %3988 = vmatprep.subr.mxu0 0.0
      %3989 = vmatpush1.msra.mxu0 0.0
      %3990 = vmatprep.subr.mxu0 0.0
      %3991 = vmatpush1.msra.mxu0 0.0
      %3992 = vmatprep.subr.mxu0 0.0
      %3993 = vmatpush1.msra.mxu0 0.0
      %3994 = vmatprep.subr.mxu0 0.0
      %3995 = vmatpush1.msra.mxu0 0.0
      %3996 = vmatprep.subr.mxu0 0.0
      %3997 = vmatpush1.msra.mxu0 0.0
      %3998 = vmatprep.subr.mxu0 0.0
      %3999 = vmatpush1.msra.mxu0 0.0
      %4000 = vmatprep.subr.mxu0 0.0
      %4001 = vmatpush1.msra.mxu0 0.0
      %4002 = vmatprep.subr.mxu0 0.0
      %4003 = vmatpush1.msra.mxu0 0.0
      %4004 = vmatprep.subr.mxu0 0.0
      %4005 = vmatpush1.msra.mxu0 0.0
      %4006 = vmatprep.subr.mxu0 0.0
      %4007 = vmatpush1.msra.mxu0 0.0
      %4008 = vmatprep.subr.mxu0 0.0
      %4009 = vmatpush1.msra.mxu0 0.0
      %4010 = vmatprep.subr.mxu0 0.0
      %4011 = vmatpush1.msra.mxu0 0.0
      %4012 = vmatprep.subr.mxu0 0.0
      %4013 = vmatpush1.msra.mxu0 0.0
      %4014 = vmatprep.subr.mxu0 0.0
      %4015 = vmatpush1.msra.mxu0 0.0
      %4016 = vmatprep.subr.mxu0 0.0
      %4017 = vmatpush1.msra.mxu0 0.0
      %4018 = vmatprep.subr.mxu0 0.0
      %4019 = vmatpush1.msra.mxu0 0.0
      %4020 = vmatprep.mubr.f32.mxu0 0.0
      %4021 = vmatmul.mubr.f32.gmra.mrb[0].mxu0 %v3528
      %v4022 = vpop.f32.mrb[0].mxu0
      %v4023 = vadd.f32 0.0, %v4022
      %v4024 = vpop.f32.mrb[0].mxu0
      %v4025 = vadd.f32 0.0, %v4024
      %4026 = vdwg.mxu0
      %4027 = vmatprep.subr.mxu0 %v891
      %4028 = vmatpush1.msra.mxu0 %v890
      %4029 = vmatprep.subr.mxu0 %v925
      %4030 = vmatpush1.msra.mxu0 %v924
      %4031 = vmatprep.subr.mxu0 %v959
      %4032 = vmatpush1.msra.mxu0 %v958
      %4033 = vmatprep.subr.mxu0 0.0
      %4034 = vmatpush1.msra.mxu0 0.0
      %4035 = vmatprep.subr.mxu0 0.0
      %4036 = vmatpush1.msra.mxu0 0.0
      %4037 = vmatprep.subr.mxu0 0.0
      %4038 = vmatpush1.msra.mxu0 0.0
      %4039 = vmatprep.subr.mxu0 0.0
      %4040 = vmatpush1.msra.mxu0 0.0
      %4041 = vmatprep.subr.mxu0 0.0
      %4042 = vmatpush1.msra.mxu0 0.0
      %4043 = vmatprep.subr.mxu0 0.0
      %4044 = vmatpush1.msra.mxu0 0.0
      %4045 = vmatprep.subr.mxu0 0.0
      %4046 = vmatpush1.msra.mxu0 0.0
      %4047 = vmatprep.subr.mxu0 0.0
      %4048 = vmatpush1.msra.mxu0 0.0
      %4049 = vmatprep.subr.mxu0 0.0
      %4050 = vmatpush1.msra.mxu0 0.0
      %4051 = vmatprep.subr.mxu0 0.0
      %4052 = vmatpush1.msra.mxu0 0.0
      %4053 = vmatprep.subr.mxu0 0.0
      %4054 = vmatpush1.msra.mxu0 0.0
      %4055 = vmatprep.subr.mxu0 0.0
      %4056 = vmatpush1.msra.mxu0 0.0
      %4057 = vmatprep.subr.mxu0 0.0
      %4058 = vmatpush1.msra.mxu0 0.0
      %4059 = vmatprep.subr.mxu0 0.0
      %4060 = vmatpush1.msra.mxu0 0.0
      %4061 = vmatprep.subr.mxu0 0.0
      %4062 = vmatpush1.msra.mxu0 0.0
      %4063 = vmatprep.subr.mxu0 0.0
      %4064 = vmatpush1.msra.mxu0 0.0
      %4065 = vmatprep.subr.mxu0 0.0
      %4066 = vmatpush1.msra.mxu0 0.0
      %4067 = vmatprep.subr.mxu0 0.0
      %4068 = vmatpush1.msra.mxu0 0.0
      %4069 = vmatprep.subr.mxu0 0.0
      %4070 = vmatpush1.msra.mxu0 0.0
      %4071 = vmatprep.subr.mxu0 0.0
      %4072 = vmatpush1.msra.mxu0 0.0
      %4073 = vmatprep.subr.mxu0 0.0
      %4074 = vmatpush1.msra.mxu0 0.0
      %4075 = vmatprep.subr.mxu0 0.0
      %4076 = vmatpush1.msra.mxu0 0.0
      %4077 = vmatprep.subr.mxu0 0.0
      %4078 = vmatpush1.msra.mxu0 0.0
      %4079 = vmatprep.subr.mxu0 0.0
      %4080 = vmatpush1.msra.mxu0 0.0
      %4081 = vmatprep.subr.mxu0 0.0
      %4082 = vmatpush1.msra.mxu0 0.0
      %4083 = vmatprep.subr.mxu0 0.0
      %4084 = vmatpush1.msra.mxu0 0.0
      %4085 = vmatprep.subr.mxu0 0.0
      %4086 = vmatpush1.msra.mxu0 0.0
      %4087 = vmatprep.subr.mxu0 0.0
      %4088 = vmatpush1.msra.mxu0 0.0
      %4089 = vmatprep.subr.mxu0 0.0
      %4090 = vmatpush1.msra.mxu0 0.0
      %4091 = vmatprep.mubr.f32.mxu0 0.0
      %4092 = vmatmul.mubr.f32.gmra.mrb[0].mxu0 %v3528
      %v4093 = vpop.f32.mrb[0].mxu0
      %v4094 = vadd.f32 0.0, %v4093
      %v4095 = vpop.f32.mrb[0].mxu0
      %v4096 = vadd.f32 0.0, %v4095
      %4097 = vdwg.mxu0
      %4098 = vmatprep.subr.mxu0 %v893
      %4099 = vmatpush1.msra.mxu0 %v892
      %4100 = vmatprep.subr.mxu0 %v927
      %4101 = vmatpush1.msra.mxu0 %v926
      %4102 = vmatprep.subr.mxu0 %v961
      %4103 = vmatpush1.msra.mxu0 %v960
      %4104 = vmatprep.subr.mxu0 0.0
      %4105 = vmatpush1.msra.mxu0 0.0
      %4106 = vmatprep.subr.mxu0 0.0
      %4107 = vmatpush1.msra.mxu0 0.0
      %4108 = vmatprep.subr.mxu0 0.0
      %4109 = vmatpush1.msra.mxu0 0.0
      %4110 = vmatprep.subr.mxu0 0.0
      %4111 = vmatpush1.msra.mxu0 0.0
      %4112 = vmatprep.subr.mxu0 0.0
      %4113 = vmatpush1.msra.mxu0 0.0
      %4114 = vmatprep.subr.mxu0 0.0
      %4115 = vmatpush1.msra.mxu0 0.0
      %4116 = vmatprep.subr.mxu0 0.0
      %4117 = vmatpush1.msra.mxu0 0.0
      %4118 = vmatprep.subr.mxu0 0.0
      %4119 = vmatpush1.msra.mxu0 0.0
      %4120 = vmatprep.subr.mxu0 0.0
      %4121 = vmatpush1.msra.mxu0 0.0
      %4122 = vmatprep.subr.mxu0 0.0
      %4123 = vmatpush1.msra.mxu0 0.0
      %4124 = vmatprep.subr.mxu0 0.0
      %4125 = vmatpush1.msra.mxu0 0.0
      %4126 = vmatprep.subr.mxu0 0.0
      %4127 = vmatpush1.msra.mxu0 0.0
      %4128 = vmatprep.subr.mxu0 0.0
      %4129 = vmatpush1.msra.mxu0 0.0
      %4130 = vmatprep.subr.mxu0 0.0
      %4131 = vmatpush1.msra.mxu0 0.0
      %4132 = vmatprep.subr.mxu0 0.0
      %4133 = vmatpush1.msra.mxu0 0.0
      %4134 = vmatprep.subr.mxu0 0.0
      %4135 = vmatpush1.msra.mxu0 0.0
      %4136 = vmatprep.subr.mxu0 0.0
      %4137 = vmatpush1.msra.mxu0 0.0
      %4138 = vmatprep.subr.mxu0 0.0
      %4139 = vmatpush1.msra.mxu0 0.0
      %4140 = vmatprep.subr.mxu0 0.0
      %4141 = vmatpush1.msra.mxu0 0.0
      %4142 = vmatprep.subr.mxu0 0.0
      %4143 = vmatpush1.msra.mxu0 0.0
      %4144 = vmatprep.subr.mxu0 0.0
      %4145 = vmatpush1.msra.mxu0 0.0
      %4146 = vmatprep.subr.mxu0 0.0
      %4147 = vmatpush1.msra.mxu0 0.0
      %4148 = vmatprep.subr.mxu0 0.0
      %4149 = vmatpush1.msra.mxu0 0.0
      %4150 = vmatprep.subr.mxu0 0.0
      %4151 = vmatpush1.msra.mxu0 0.0
      %4152 = vmatprep.subr.mxu0 0.0
      %4153 = vmatpush1.msra.mxu0 0.0
      %4154 = vmatprep.subr.mxu0 0.0
      %4155 = vmatpush1.msra.mxu0 0.0
      %4156 = vmatprep.subr.mxu0 0.0
      %4157 = vmatpush1.msra.mxu0 0.0
      %4158 = vmatprep.subr.mxu0 0.0
      %4159 = vmatpush1.msra.mxu0 0.0
      %4160 = vmatprep.subr.mxu0 0.0
      %4161 = vmatpush1.msra.mxu0 0.0
      %4162 = vmatprep.mubr.f32.mxu0 0.0
      %4163 = vmatmul.mubr.f32.gmra.mrb[0].mxu0 %v3528
      %v4164 = vpop.f32.mrb[0].mxu0
      %v4165 = vadd.f32 0.0, %v4164
      %v4166 = vpop.f32.mrb[0].mxu0
      %v4167 = vadd.f32 0.0, %v4166
      %4168 = vdwg.mxu0
      %4169 = vmatprep.subr.mxu0 %v895
      %4170 = vmatpush1.msra.mxu0 %v894
      %4171 = vmatprep.subr.mxu0 %v929
      %4172 = vmatpush1.msra.mxu0 %v928
      %4173 = vmatprep.subr.mxu0 %v963
      %4174 = vmatpush1.msra.mxu0 %v962
      %4175 = vmatprep.subr.mxu0 0.0
      %4176 = vmatpush1.msra.mxu0 0.0
      %4177 = vmatprep.subr.mxu0 0.0
      %4178 = vmatpush1.msra.mxu0 0.0
      %4179 = vmatprep.subr.mxu0 0.0
      %4180 = vmatpush1.msra.mxu0 0.0
      %4181 = vmatprep.subr.mxu0 0.0
      %4182 = vmatpush1.msra.mxu0 0.0
      %4183 = vmatprep.subr.mxu0 0.0
      %4184 = vmatpush1.msra.mxu0 0.0
      %4185 = vmatprep.subr.mxu0 0.0
      %4186 = vmatpush1.msra.mxu0 0.0
      %4187 = vmatprep.subr.mxu0 0.0
      %4188 = vmatpush1.msra.mxu0 0.0
      %4189 = vmatprep.subr.mxu0 0.0
      %4190 = vmatpush1.msra.mxu0 0.0
      %4191 = vmatprep.subr.mxu0 0.0
      %4192 = vmatpush1.msra.mxu0 0.0
      %4193 = vmatprep.subr.mxu0 0.0
      %4194 = vmatpush1.msra.mxu0 0.0
      %4195 = vmatprep.subr.mxu0 0.0
      %4196 = vmatpush1.msra.mxu0 0.0
      %4197 = vmatprep.subr.mxu0 0.0
      %4198 = vmatpush1.msra.mxu0 0.0
      %4199 = vmatprep.subr.mxu0 0.0
      %4200 = vmatpush1.msra.mxu0 0.0
      %4201 = vmatprep.subr.mxu0 0.0
      %4202 = vmatpush1.msra.mxu0 0.0
      %4203 = vmatprep.subr.mxu0 0.0
      %4204 = vmatpush1.msra.mxu0 0.0
      %4205 = vmatprep.subr.mxu0 0.0
      %4206 = vmatpush1.msra.mxu0 0.0
      %4207 = vmatprep.subr.mxu0 0.0
      %4208 = vmatpush1.msra.mxu0 0.0
      %4209 = vmatprep.subr.mxu0 0.0
      %4210 = vmatpush1.msra.mxu0 0.0
      %4211 = vmatprep.subr.mxu0 0.0
      %4212 = vmatpush1.msra.mxu0 0.0
      %4213 = vmatprep.subr.mxu0 0.0
      %4214 = vmatpush1.msra.mxu0 0.0
      %4215 = vmatprep.subr.mxu0 0.0
      %4216 = vmatpush1.msra.mxu0 0.0
      %4217 = vmatprep.subr.mxu0 0.0
      %4218 = vmatpush1.msra.mxu0 0.0
      %4219 = vmatprep.subr.mxu0 0.0
      %4220 = vmatpush1.msra.mxu0 0.0
      %4221 = vmatprep.subr.mxu0 0.0
      %4222 = vmatpush1.msra.mxu0 0.0
      %4223 = vmatprep.subr.mxu0 0.0
      %4224 = vmatpush1.msra.mxu0 0.0
      %4225 = vmatprep.subr.mxu0 0.0
      %4226 = vmatpush1.msra.mxu0 0.0
      %4227 = vmatprep.subr.mxu0 0.0
      %4228 = vmatpush1.msra.mxu0 0.0
      %4229 = vmatprep.subr.mxu0 0.0
      %4230 = vmatpush1.msra.mxu0 0.0
      %4231 = vmatprep.subr.mxu0 0.0
      %4232 = vmatpush1.msra.mxu0 0.0
      %4233 = vmatprep.mubr.f32.mxu0 0.0
      %4234 = vmatmul.mubr.f32.gmra.mrb[0].mxu0 %v3528
      %v4235 = vpop.f32.mrb[0].mxu0
      %v4236 = vadd.f32 0.0, %v4235
      %v4237 = vpop.f32.mrb[0].mxu0
      %v4238 = vadd.f32 0.0, %v4237
      %4239 = vdwg.mxu0
      %4240 = vmatprep.subr.mxu0 %v897
      %4241 = vmatpush1.msra.mxu0 %v896
      %4242 = vmatprep.subr.mxu0 %v931
      %4243 = vmatpush1.msra.mxu0 %v930
      %4244 = vmatprep.subr.mxu0 %v965
      %4245 = vmatpush1.msra.mxu0 %v964
      %4246 = vmatprep.subr.mxu0 0.0
      %4247 = vmatpush1.msra.mxu0 0.0
      %4248 = vmatprep.subr.mxu0 0.0
      %4249 = vmatpush1.msra.mxu0 0.0
      %4250 = vmatprep.subr.mxu0 0.0
      %4251 = vmatpush1.msra.mxu0 0.0
      %4252 = vmatprep.subr.mxu0 0.0
      %4253 = vmatpush1.msra.mxu0 0.0
      %4254 = vmatprep.subr.mxu0 0.0
      %4255 = vmatpush1.msra.mxu0 0.0
      %4256 = vmatprep.subr.mxu0 0.0
      %4257 = vmatpush1.msra.mxu0 0.0
      %4258 = vmatprep.subr.mxu0 0.0
      %4259 = vmatpush1.msra.mxu0 0.0
      %4260 = vmatprep.subr.mxu0 0.0
      %4261 = vmatpush1.msra.mxu0 0.0
      %4262 = vmatprep.subr.mxu0 0.0
      %4263 = vmatpush1.msra.mxu0 0.0
      %4264 = vmatprep.subr.mxu0 0.0
      %4265 = vmatpush1.msra.mxu0 0.0
      %4266 = vmatprep.subr.mxu0 0.0
      %4267 = vmatpush1.msra.mxu0 0.0
      %4268 = vmatprep.subr.mxu0 0.0
      %4269 = vmatpush1.msra.mxu0 0.0
      %4270 = vmatprep.subr.mxu0 0.0
      %4271 = vmatpush1.msra.mxu0 0.0
      %4272 = vmatprep.subr.mxu0 0.0
      %4273 = vmatpush1.msra.mxu0 0.0
      %4274 = vmatprep.subr.mxu0 0.0
      %4275 = vmatpush1.msra.mxu0 0.0
      %4276 = vmatprep.subr.mxu0 0.0
      %4277 = vmatpush1.msra.mxu0 0.0
      %4278 = vmatprep.subr.mxu0 0.0
      %4279 = vmatpush1.msra.mxu0 0.0
      %4280 = vmatprep.subr.mxu0 0.0
      %4281 = vmatpush1.msra.mxu0 0.0
      %4282 = vmatprep.subr.mxu0 0.0
      %4283 = vmatpush1.msra.mxu0 0.0
      %4284 = vmatprep.subr.mxu0 0.0
      %4285 = vmatpush1.msra.mxu0 0.0
      %4286 = vmatprep.subr.mxu0 0.0
      %4287 = vmatpush1.msra.mxu0 0.0
      %4288 = vmatprep.subr.mxu0 0.0
      %4289 = vmatpush1.msra.mxu0 0.0
      %4290 = vmatprep.subr.mxu0 0.0
      %4291 = vmatpush1.msra.mxu0 0.0
      %4292 = vmatprep.subr.mxu0 0.0
      %4293 = vmatpush1.msra.mxu0 0.0
      %4294 = vmatprep.subr.mxu0 0.0
      %4295 = vmatpush1.msra.mxu0 0.0
      %4296 = vmatprep.subr.mxu0 0.0
      %4297 = vmatpush1.msra.mxu0 0.0
      %4298 = vmatprep.subr.mxu0 0.0
      %4299 = vmatpush1.msra.mxu0 0.0
      %4300 = vmatprep.subr.mxu0 0.0
      %4301 = vmatpush1.msra.mxu0 0.0
      %4302 = vmatprep.subr.mxu0 0.0
      %4303 = vmatpush1.msra.mxu0 0.0
      %4304 = vmatprep.mubr.f32.mxu0 0.0
      %4305 = vmatmul.mubr.f32.gmra.mrb[0].mxu0 %v3528
      %v4306 = vpop.f32.mrb[0].mxu0
      %v4307 = vadd.f32 0.0, %v4306
      %v4308 = vpop.f32.mrb[0].mxu0
      %v4309 = vadd.f32 0.0, %v4308
      %4310 = vdwg.mxu0
      %4311 = vmatprep.subr.mxu0 %v899
      %4312 = vmatpush1.msra.mxu0 %v898
      %4313 = vmatprep.subr.mxu0 %v933
      %4314 = vmatpush1.msra.mxu0 %v932
      %4315 = vmatprep.subr.mxu0 %v967
      %4316 = vmatpush1.msra.mxu0 %v966
      %4317 = vmatprep.subr.mxu0 0.0
      %4318 = vmatpush1.msra.mxu0 0.0
      %4319 = vmatprep.subr.mxu0 0.0
      %4320 = vmatpush1.msra.mxu0 0.0
      %4321 = vmatprep.subr.mxu0 0.0
      %4322 = vmatpush1.msra.mxu0 0.0
      %4323 = vmatprep.subr.mxu0 0.0
      %4324 = vmatpush1.msra.mxu0 0.0
      %4325 = vmatprep.subr.mxu0 0.0
      %4326 = vmatpush1.msra.mxu0 0.0
      %4327 = vmatprep.subr.mxu0 0.0
      %4328 = vmatpush1.msra.mxu0 0.0
      %4329 = vmatprep.subr.mxu0 0.0
      %4330 = vmatpush1.msra.mxu0 0.0
      %4331 = vmatprep.subr.mxu0 0.0
      %4332 = vmatpush1.msra.mxu0 0.0
      %4333 = vmatprep.subr.mxu0 0.0
      %4334 = vmatpush1.msra.mxu0 0.0
      %4335 = vmatprep.subr.mxu0 0.0
      %4336 = vmatpush1.msra.mxu0 0.0
      %4337 = vmatprep.subr.mxu0 0.0
      %4338 = vmatpush1.msra.mxu0 0.0
      %4339 = vmatprep.subr.mxu0 0.0
      %4340 = vmatpush1.msra.mxu0 0.0
      %4341 = vmatprep.subr.mxu0 0.0
      %4342 = vmatpush1.msra.mxu0 0.0
      %4343 = vmatprep.subr.mxu0 0.0
      %4344 = vmatpush1.msra.mxu0 0.0
      %4345 = vmatprep.subr.mxu0 0.0
      %4346 = vmatpush1.msra.mxu0 0.0
      %4347 = vmatprep.subr.mxu0 0.0
      %4348 = vmatpush1.msra.mxu0 0.0
      %4349 = vmatprep.subr.mxu0 0.0
      %4350 = vmatpush1.msra.mxu0 0.0
      %4351 = vmatprep.subr.mxu0 0.0
      %4352 = vmatpush1.msra.mxu0 0.0
      %4353 = vmatprep.subr.mxu0 0.0
      %4354 = vmatpush1.msra.mxu0 0.0
      %4355 = vmatprep.subr.mxu0 0.0
      %4356 = vmatpush1.msra.mxu0 0.0
      %4357 = vmatprep.subr.mxu0 0.0
      %4358 = vmatpush1.msra.mxu0 0.0
      %4359 = vmatprep.subr.mxu0 0.0
      %4360 = vmatpush1.msra.mxu0 0.0
      %4361 = vmatprep.subr.mxu0 0.0
      %4362 = vmatpush1.msra.mxu0 0.0
      %4363 = vmatprep.subr.mxu0 0.0
      %4364 = vmatpush1.msra.mxu0 0.0
      %4365 = vmatprep.subr.mxu0 0.0
      %4366 = vmatpush1.msra.mxu0 0.0
      %4367 = vmatprep.subr.mxu0 0.0
      %4368 = vmatpush1.msra.mxu0 0.0
      %4369 = vmatprep.subr.mxu0 0.0
      %4370 = vmatpush1.msra.mxu0 0.0
      %4371 = vmatprep.subr.mxu0 0.0
      %4372 = vmatpush1.msra.mxu0 0.0
      %4373 = vmatprep.subr.mxu0 0.0
      %4374 = vmatpush1.msra.mxu0 0.0
      %4375 = vmatprep.mubr.f32.mxu0 0.0
      %4376 = vmatmul.mubr.f32.gmra.mrb[0].mxu0 %v3528
      %v4377 = vpop.f32.mrb[0].mxu0
      %v4378 = vadd.f32 0.0, %v4377
      %v4379 = vpop.f32.mrb[0].mxu0
      %v4380 = vadd.f32 0.0, %v4379
      %4381 = vdwg.mxu0
      %4382 = vmatprep.subr.mxu0 %v901
      %4383 = vmatpush1.msra.mxu0 %v900
      %4384 = vmatprep.subr.mxu0 %v935
      %4385 = vmatpush1.msra.mxu0 %v934
      %4386 = vmatprep.subr.mxu0 %v969
      %4387 = vmatpush1.msra.mxu0 %v968
      %4388 = vmatprep.subr.mxu0 0.0
      %4389 = vmatpush1.msra.mxu0 0.0
      %4390 = vmatprep.subr.mxu0 0.0
      %4391 = vmatpush1.msra.mxu0 0.0
      %4392 = vmatprep.subr.mxu0 0.0
      %4393 = vmatpush1.msra.mxu0 0.0
      %4394 = vmatprep.subr.mxu0 0.0
      %4395 = vmatpush1.msra.mxu0 0.0
      %4396 = vmatprep.subr.mxu0 0.0
      %4397 = vmatpush1.msra.mxu0 0.0
      %4398 = vmatprep.subr.mxu0 0.0
      %4399 = vmatpush1.msra.mxu0 0.0
      %4400 = vmatprep.subr.mxu0 0.0
      %4401 = vmatpush1.msra.mxu0 0.0
      %4402 = vmatprep.subr.mxu0 0.0
      %4403 = vmatpush1.msra.mxu0 0.0
      %4404 = vmatprep.subr.mxu0 0.0
      %4405 = vmatpush1.msra.mxu0 0.0
      %4406 = vmatprep.subr.mxu0 0.0
      %4407 = vmatpush1.msra.mxu0 0.0
      %4408 = vmatprep.subr.mxu0 0.0
      %4409 = vmatpush1.msra.mxu0 0.0
      %4410 = vmatprep.subr.mxu0 0.0
      %4411 = vmatpush1.msra.mxu0 0.0
      %4412 = vmatprep.subr.mxu0 0.0
      %4413 = vmatpush1.msra.mxu0 0.0
      %4414 = vmatprep.subr.mxu0 0.0
      %4415 = vmatpush1.msra.mxu0 0.0
      %4416 = vmatprep.subr.mxu0 0.0
      %4417 = vmatpush1.msra.mxu0 0.0
      %4418 = vmatprep.subr.mxu0 0.0
      %4419 = vmatpush1.msra.mxu0 0.0
      %4420 = vmatprep.subr.mxu0 0.0
      %4421 = vmatpush1.msra.mxu0 0.0
      %4422 = vmatprep.subr.mxu0 0.0
      %4423 = vmatpush1.msra.mxu0 0.0
      %4424 = vmatprep.subr.mxu0 0.0
      %4425 = vmatpush1.msra.mxu0 0.0
      %4426 = vmatprep.subr.mxu0 0.0
      %4427 = vmatpush1.msra.mxu0 0.0
      %4428 = vmatprep.subr.mxu0 0.0
      %4429 = vmatpush1.msra.mxu0 0.0
      %4430 = vmatprep.subr.mxu0 0.0
      %4431 = vmatpush1.msra.mxu0 0.0
      %4432 = vmatprep.subr.mxu0 0.0
      %4433 = vmatpush1.msra.mxu0 0.0
      %4434 = vmatprep.subr.mxu0 0.0
      %4435 = vmatpush1.msra.mxu0 0.0
      %4436 = vmatprep.subr.mxu0 0.0
      %4437 = vmatpush1.msra.mxu0 0.0
      %4438 = vmatprep.subr.mxu0 0.0
      %4439 = vmatpush1.msra.mxu0 0.0
      %4440 = vmatprep.subr.mxu0 0.0
      %4441 = vmatpush1.msra.mxu0 0.0
      %4442 = vmatprep.subr.mxu0 0.0
      %4443 = vmatpush1.msra.mxu0 0.0
      %4444 = vmatprep.subr.mxu0 0.0
      %4445 = vmatpush1.msra.mxu0 0.0
      %4446 = vmatprep.mubr.f32.mxu0 0.0
      %4447 = vmatmul.mubr.f32.gmra.mrb[0].mxu0 %v3528
      %v4448 = vpop.f32.mrb[0].mxu0
      %v4449 = vadd.f32 0.0, %v4448
      %v4450 = vpop.f32.mrb[0].mxu0
      %v4451 = vadd.f32 0.0, %v4450
      %4452 = vdwg.mxu0
      %4453 = vmatprep.subr.mxu0 %v903
      %4454 = vmatpush1.msra.mxu0 %v902
      %4455 = vmatprep.subr.mxu0 %v937
      %4456 = vmatpush1.msra.mxu0 %v936
      %4457 = vmatprep.subr.mxu0 %v971
      %4458 = vmatpush1.msra.mxu0 %v970
      %4459 = vmatprep.subr.mxu0 0.0
      %4460 = vmatpush1.msra.mxu0 0.0
      %4461 = vmatprep.subr.mxu0 0.0
      %4462 = vmatpush1.msra.mxu0 0.0
      %4463 = vmatprep.subr.mxu0 0.0
      %4464 = vmatpush1.msra.mxu0 0.0
      %4465 = vmatprep.subr.mxu0 0.0
      %4466 = vmatpush1.msra.mxu0 0.0
      %4467 = vmatprep.subr.mxu0 0.0
      %4468 = vmatpush1.msra.mxu0 0.0
      %4469 = vmatprep.subr.mxu0 0.0
      %4470 = vmatpush1.msra.mxu0 0.0
      %4471 = vmatprep.subr.mxu0 0.0
      %4472 = vmatpush1.msra.mxu0 0.0
      %4473 = vmatprep.subr.mxu0 0.0
      %4474 = vmatpush1.msra.mxu0 0.0
      %4475 = vmatprep.subr.mxu0 0.0
      %4476 = vmatpush1.msra.mxu0 0.0
      %4477 = vmatprep.subr.mxu0 0.0
      %4478 = vmatpush1.msra.mxu0 0.0
      %4479 = vmatprep.subr.mxu0 0.0
      %4480 = vmatpush1.msra.mxu0 0.0
      %4481 = vmatprep.subr.mxu0 0.0
      %4482 = vmatpush1.msra.mxu0 0.0
      %4483 = vmatprep.subr.mxu0 0.0
      %4484 = vmatpush1.msra.mxu0 0.0
      %4485 = vmatprep.subr.mxu0 0.0
      %4486 = vmatpush1.msra.mxu0 0.0
      %4487 = vmatprep.subr.mxu0 0.0
      %4488 = vmatpush1.msra.mxu0 0.0
      %4489 = vmatprep.subr.mxu0 0.0
      %4490 = vmatpush1.msra.mxu0 0.0
      %4491 = vmatprep.subr.mxu0 0.0
      %4492 = vmatpush1.msra.mxu0 0.0
      %4493 = vmatprep.subr.mxu0 0.0
      %4494 = vmatpush1.msra.mxu0 0.0
      %4495 = vmatprep.subr.mxu0 0.0
      %4496 = vmatpush1.msra.mxu0 0.0
      %4497 = vmatprep.subr.mxu0 0.0
      %4498 = vmatpush1.msra.mxu0 0.0
      %4499 = vmatprep.subr.mxu0 0.0
      %4500 = vmatpush1.msra.mxu0 0.0
      %4501 = vmatprep.subr.mxu0 0.0
      %4502 = vmatpush1.msra.mxu0 0.0
      %4503 = vmatprep.subr.mxu0 0.0
      %4504 = vmatpush1.msra.mxu0 0.0
      %4505 = vmatprep.subr.mxu0 0.0
      %4506 = vmatpush1.msra.mxu0 0.0
      %4507 = vmatprep.subr.mxu0 0.0
      %4508 = vmatpush1.msra.mxu0 0.0
      %4509 = vmatprep.subr.mxu0 0.0
      %4510 = vmatpush1.msra.mxu0 0.0
      %4511 = vmatprep.subr.mxu0 0.0
      %4512 = vmatpush1.msra.mxu0 0.0
      %4513 = vmatprep.subr.mxu0 0.0
      %4514 = vmatpush1.msra.mxu0 0.0
      %4515 = vmatprep.subr.mxu0 0.0
      %4516 = vmatpush1.msra.mxu0 0.0
      %4517 = vmatprep.mubr.f32.mxu0 0.0
      %4518 = vmatmul.mubr.f32.gmra.mrb[0].mxu0 %v3528
      %v4519 = vpop.f32.mrb[0].mxu0
      %v4520 = vadd.f32 0.0, %v4519
      %v4521 = vpop.f32.mrb[0].mxu0
      %v4522 = vadd.f32 0.0, %v4521
      %4523 = vdwg.mxu0
      %4524 = vmatprep.subr.mxu0 %v905
      %4525 = vmatpush1.msra.mxu0 %v904
      %4526 = vmatprep.subr.mxu0 %v939
      %4527 = vmatpush1.msra.mxu0 %v938
      %4528 = vmatprep.subr.mxu0 %v973
      %4529 = vmatpush1.msra.mxu0 %v972
      %4530 = vmatprep.subr.mxu0 0.0
      %4531 = vmatpush1.msra.mxu0 0.0
      %4532 = vmatprep.subr.mxu0 0.0
      %4533 = vmatpush1.msra.mxu0 0.0
      %4534 = vmatprep.subr.mxu0 0.0
      %4535 = vmatpush1.msra.mxu0 0.0
      %4536 = vmatprep.subr.mxu0 0.0
      %4537 = vmatpush1.msra.mxu0 0.0
      %4538 = vmatprep.subr.mxu0 0.0
      %4539 = vmatpush1.msra.mxu0 0.0
      %4540 = vmatprep.subr.mxu0 0.0
      %4541 = vmatpush1.msra.mxu0 0.0
      %4542 = vmatprep.subr.mxu0 0.0
      %4543 = vmatpush1.msra.mxu0 0.0
      %4544 = vmatprep.subr.mxu0 0.0
      %4545 = vmatpush1.msra.mxu0 0.0
      %4546 = vmatprep.subr.mxu0 0.0
      %4547 = vmatpush1.msra.mxu0 0.0
      %4548 = vmatprep.subr.mxu0 0.0
      %4549 = vmatpush1.msra.mxu0 0.0
      %4550 = vmatprep.subr.mxu0 0.0
      %4551 = vmatpush1.msra.mxu0 0.0
      %4552 = vmatprep.subr.mxu0 0.0
      %4553 = vmatpush1.msra.mxu0 0.0
      %4554 = vmatprep.subr.mxu0 0.0
      %4555 = vmatpush1.msra.mxu0 0.0
      %4556 = vmatprep.subr.mxu0 0.0
      %4557 = vmatpush1.msra.mxu0 0.0
      %4558 = vmatprep.subr.mxu0 0.0
      %4559 = vmatpush1.msra.mxu0 0.0
      %4560 = vmatprep.subr.mxu0 0.0
      %4561 = vmatpush1.msra.mxu0 0.0
      %4562 = vmatprep.subr.mxu0 0.0
      %4563 = vmatpush1.msra.mxu0 0.0
      %4564 = vmatprep.subr.mxu0 0.0
      %4565 = vmatpush1.msra.mxu0 0.0
      %4566 = vmatprep.subr.mxu0 0.0
      %4567 = vmatpush1.msra.mxu0 0.0
      %4568 = vmatprep.subr.mxu0 0.0
      %4569 = vmatpush1.msra.mxu0 0.0
      %4570 = vmatprep.subr.mxu0 0.0
      %4571 = vmatpush1.msra.mxu0 0.0
      %4572 = vmatprep.subr.mxu0 0.0
      %4573 = vmatpush1.msra.mxu0 0.0
      %4574 = vmatprep.subr.mxu0 0.0
      %4575 = vmatpush1.msra.mxu0 0.0
      %4576 = vmatprep.subr.mxu0 0.0
      %4577 = vmatpush1.msra.mxu0 0.0
      %4578 = vmatprep.subr.mxu0 0.0
      %4579 = vmatpush1.msra.mxu0 0.0
      %4580 = vmatprep.subr.mxu0 0.0
      %4581 = vmatpush1.msra.mxu0 0.0
      %4582 = vmatprep.subr.mxu0 0.0
      %4583 = vmatpush1.msra.mxu0 0.0
      %4584 = vmatprep.subr.mxu0 0.0
      %4585 = vmatpush1.msra.mxu0 0.0
      %4586 = vmatprep.subr.mxu0 0.0
      %4587 = vmatpush1.msra.mxu0 0.0
      %4588 = vmatprep.mubr.f32.mxu0 0.0
      %4589 = vmatmul.mubr.f32.gmra.mrb[0].mxu0 %v3528
      %v4590 = vpop.f32.mrb[0].mxu0
      %v4591 = vadd.f32 0.0, %v4590
      %v4592 = vpop.f32.mrb[0].mxu0
      %v4593 = vadd.f32 0.0, %v4592
      %4594 = vdwg.mxu0
      %4595 = vmatprep.subr.mxu0 %v907
      %4596 = vmatpush1.msra.mxu0 %v906
      %4597 = vmatprep.subr.mxu0 %v941
      %4598 = vmatpush1.msra.mxu0 %v940
      %4599 = vmatprep.subr.mxu0 %v975
      %4600 = vmatpush1.msra.mxu0 %v974
      %4601 = vmatprep.subr.mxu0 0.0
      %4602 = vmatpush1.msra.mxu0 0.0
      %4603 = vmatprep.subr.mxu0 0.0
      %4604 = vmatpush1.msra.mxu0 0.0
      %4605 = vmatprep.subr.mxu0 0.0
      %4606 = vmatpush1.msra.mxu0 0.0
      %4607 = vmatprep.subr.mxu0 0.0
      %4608 = vmatpush1.msra.mxu0 0.0
      %4609 = vmatprep.subr.mxu0 0.0
      %4610 = vmatpush1.msra.mxu0 0.0
      %4611 = vmatprep.subr.mxu0 0.0
      %4612 = vmatpush1.msra.mxu0 0.0
      %4613 = vmatprep.subr.mxu0 0.0
      %4614 = vmatpush1.msra.mxu0 0.0
      %4615 = vmatprep.subr.mxu0 0.0
      %4616 = vmatpush1.msra.mxu0 0.0
      %4617 = vmatprep.subr.mxu0 0.0
      %4618 = vmatpush1.msra.mxu0 0.0
      %4619 = vmatprep.subr.mxu0 0.0
      %4620 = vmatpush1.msra.mxu0 0.0
      %4621 = vmatprep.subr.mxu0 0.0
      %4622 = vmatpush1.msra.mxu0 0.0
      %4623 = vmatprep.subr.mxu0 0.0
      %4624 = vmatpush1.msra.mxu0 0.0
      %4625 = vmatprep.subr.mxu0 0.0
      %4626 = vmatpush1.msra.mxu0 0.0
      %4627 = vmatprep.subr.mxu0 0.0
      %4628 = vmatpush1.msra.mxu0 0.0
      %4629 = vmatprep.subr.mxu0 0.0
      %4630 = vmatpush1.msra.mxu0 0.0
      %4631 = vmatprep.subr.mxu0 0.0
      %4632 = vmatpush1.msra.mxu0 0.0
      %4633 = vmatprep.subr.mxu0 0.0
      %4634 = vmatpush1.msra.mxu0 0.0
      %4635 = vmatprep.subr.mxu0 0.0
      %4636 = vmatpush1.msra.mxu0 0.0
      %4637 = vmatprep.subr.mxu0 0.0
      %4638 = vmatpush1.msra.mxu0 0.0
      %4639 = vmatprep.subr.mxu0 0.0
      %4640 = vmatpush1.msra.mxu0 0.0
      %4641 = vmatprep.subr.mxu0 0.0
      %4642 = vmatpush1.msra.mxu0 0.0
      %4643 = vmatprep.subr.mxu0 0.0
      %4644 = vmatpush1.msra.mxu0 0.0
      %4645 = vmatprep.subr.mxu0 0.0
      %4646 = vmatpush1.msra.mxu0 0.0
      %4647 = vmatprep.subr.mxu0 0.0
      %4648 = vmatpush1.msra.mxu0 0.0
      %4649 = vmatprep.subr.mxu0 0.0
      %4650 = vmatpush1.msra.mxu0 0.0
      %4651 = vmatprep.subr.mxu0 0.0
      %4652 = vmatpush1.msra.mxu0 0.0
      %4653 = vmatprep.subr.mxu0 0.0
      %4654 = vmatpush1.msra.mxu0 0.0
      %4655 = vmatprep.subr.mxu0 0.0
      %4656 = vmatpush1.msra.mxu0 0.0
      %4657 = vmatprep.subr.mxu0 0.0
      %4658 = vmatpush1.msra.mxu0 0.0
      %4659 = vmatprep.mubr.f32.mxu0 0.0
      %4660 = vmatmul.mubr.f32.gmra.mrb[0].mxu0 %v3528
      %v4661 = vpop.f32.mrb[0].mxu0
      %v4662 = vadd.f32 0.0, %v4661
      %v4663 = vpop.f32.mrb[0].mxu0
      %v4664 = vadd.f32 0.0, %v4663
      %4665 = vdwg.mxu0
      %4666 = vmatprep.subr.mxu0 %v3521
      %4667 = vmatpush1.msra.mxu0 %v908
      %4668 = vmatprep.subr.mxu0 %v3522
      %4669 = vmatpush1.msra.mxu0 %v942
      %4670 = vmatprep.subr.mxu0 %v3523
      %4671 = vmatpush1.msra.mxu0 %v976
      %4672 = vmatprep.subr.mxu0 0.0
      %4673 = vmatpush1.msra.mxu0 0.0
      %4674 = vmatprep.subr.mxu0 0.0
      %4675 = vmatpush1.msra.mxu0 0.0
      %4676 = vmatprep.subr.mxu0 0.0
      %4677 = vmatpush1.msra.mxu0 0.0
      %4678 = vmatprep.subr.mxu0 0.0
      %4679 = vmatpush1.msra.mxu0 0.0
      %4680 = vmatprep.subr.mxu0 0.0
      %4681 = vmatpush1.msra.mxu0 0.0
      %4682 = vmatprep.subr.mxu0 0.0
      %4683 = vmatpush1.msra.mxu0 0.0
      %4684 = vmatprep.subr.mxu0 0.0
      %4685 = vmatpush1.msra.mxu0 0.0
      %4686 = vmatprep.subr.mxu0 0.0
      %4687 = vmatpush1.msra.mxu0 0.0
      %4688 = vmatprep.subr.mxu0 0.0
      %4689 = vmatpush1.msra.mxu0 0.0
      %4690 = vmatprep.subr.mxu0 0.0
      %4691 = vmatpush1.msra.mxu0 0.0
      %4692 = vmatprep.subr.mxu0 0.0
      %4693 = vmatpush1.msra.mxu0 0.0
      %4694 = vmatprep.subr.mxu0 0.0
      %4695 = vmatpush1.msra.mxu0 0.0
      %4696 = vmatprep.subr.mxu0 0.0
      %4697 = vmatpush1.msra.mxu0 0.0
      %4698 = vmatprep.subr.mxu0 0.0
      %4699 = vmatpush1.msra.mxu0 0.0
      %4700 = vmatprep.subr.mxu0 0.0
      %4701 = vmatpush1.msra.mxu0 0.0
      %4702 = vmatprep.subr.mxu0 0.0
      %4703 = vmatpush1.msra.mxu0 0.0
      %4704 = vmatprep.subr.mxu0 0.0
      %4705 = vmatpush1.msra.mxu0 0.0
      %4706 = vmatprep.subr.mxu0 0.0
      %4707 = vmatpush1.msra.mxu0 0.0
      %4708 = vmatprep.subr.mxu0 0.0
      %4709 = vmatpush1.msra.mxu0 0.0
      %4710 = vmatprep.subr.mxu0 0.0
      %4711 = vmatpush1.msra.mxu0 0.0
      %4712 = vmatprep.subr.mxu0 0.0
      %4713 = vmatpush1.msra.mxu0 0.0
      %4714 = vmatprep.subr.mxu0 0.0
      %4715 = vmatpush1.msra.mxu0 0.0
      %4716 = vmatprep.subr.mxu0 0.0
      %4717 = vmatpush1.msra.mxu0 0.0
      %4718 = vmatprep.subr.mxu0 0.0
      %4719 = vmatpush1.msra.mxu0 0.0
      %4720 = vmatprep.subr.mxu0 0.0
      %4721 = vmatpush1.msra.mxu0 0.0
      %4722 = vmatprep.subr.mxu0 0.0
      %4723 = vmatpush1.msra.mxu0 0.0
      %4724 = vmatprep.subr.mxu0 0.0
      %4725 = vmatpush1.msra.mxu0 0.0
      %4726 = vmatprep.subr.mxu0 0.0
      %4727 = vmatpush1.msra.mxu0 0.0
      %4728 = vmatprep.subr.mxu0 0.0
      %4729 = vmatpush1.msra.mxu0 0.0
      %4730 = vmatprep.mubr.f32.mxu0 0.0
      %4731 = vmatmul.mubr.f32.gmra.mrb[0].mxu0 %v3528
      %v4732 = vpop.f32.mrb[0].mxu0
      %v4733 = vadd.f32 0.0, %v4732
      %v4734 = vpop.f32.mrb[0].mxu0
      %v4735 = vadd.f32 0.0, %v4734
      %4736 = vdwg.mxu0
      %v4737 = vadd.f32 %v2373, %v3597
      %v4738 = vadd.f32 %v2375, %v3599
      %v4739 = vadd.f32 %v2444, %v3668
      %v4740 = vadd.f32 %v2446, %v3670
      %v4741 = vadd.f32 %v2515, %v3739
      %v4742 = vadd.f32 %v2517, %v3741
      %v4743 = vadd.f32 %v2586, %v3810
      %v4744 = vadd.f32 %v2588, %v3812
      %v4745 = vadd.f32 %v2657, %v3881
      %v4746 = vadd.f32 %v2659, %v3883
      %v4747 = vadd.f32 %v2728, %v3952
      %v4748 = vadd.f32 %v2730, %v3954
      %v4749 = vadd.f32 %v2799, %v4023
      %v4750 = vadd.f32 %v2801, %v4025
      %v4751 = vadd.f32 %v2870, %v4094
      %v4752 = vadd.f32 %v2872, %v4096
      %v4753 = vadd.f32 %v2941, %v4165
      %v4754 = vadd.f32 %v2943, %v4167
      %v4755 = vadd.f32 %v3012, %v4236
      %v4756 = vadd.f32 %v3014, %v4238
      %v4757 = vadd.f32 %v3083, %v4307
      %v4758 = vadd.f32 %v3085, %v4309
      %v4759 = vadd.f32 %v3154, %v4378
      %v4760 = vadd.f32 %v3156, %v4380
      %v4761 = vadd.f32 %v3225, %v4449
      %v4762 = vadd.f32 %v3227, %v4451
      %v4763 = vadd.f32 %v3296, %v4520
      %v4764 = vadd.f32 %v3298, %v4522
      %v4765 = vadd.f32 %v3367, %v4591
      %v4766 = vadd.f32 %v3369, %v4593
      %v4767 = vadd.f32 %v3438, %v4662
      %v4768 = vadd.f32 %v3440, %v4664
      %v4769 = vadd.f32 %v3509, %v4733
      %v4770 = vadd.f32 %v3511, %v4735
      %v4771 = vld [vmem:[%s283] ss:$2 sm:$0xff]
      %s4772 = scalar_lea.vmem %s283, 16
      %v4773 = vld [vmem:[%s4772] ss:$2 sm:$0xff]
      %s4774 = scalar_lea.vmem %s283, 32
      %v4775 = vld [vmem:[%s4774] ss:$2 sm:$0xff]
      %s4776 = scalar_lea.vmem %s283, 48
      %v4777 = vld [vmem:[%s4776] ss:$2 sm:$0xff]
      %s4778 = scalar_lea.vmem %s283, 64
      %v4779 = vld [vmem:[%s4778] ss:$2 sm:$0x3]
      %4781 = vset.pattern.permute.xlu0 0
      %4782 = vperm.xlu0 %4781, %v294
      %v4783 = vpop.permute.xlu0 %4782
      %v4785 = vadd.f32 %v4737, %v4783
      %v4786 = vadd.f32 %v4738, %v4783
      %v4787 = vadd.f32 %v4739, %v4783
      %v4788 = vadd.f32 %v4740, %v4783
      %v4789 = vadd.f32 %v4741, %v4783
      %v4790 = vadd.f32 %v4742, %v4783
      %v4791 = vadd.f32 %v4743, %v4783
      %v4792 = vadd.f32 %v4744, %v4783
      %v4793 = vadd.f32 %v4745, %v4783
      %v4794 = vadd.f32 %v4746, %v4783
      %v4795 = vadd.f32 %v4747, %v4783
      %v4796 = vadd.f32 %v4748, %v4783
      %v4797 = vadd.f32 %v4749, %v4783
      %v4798 = vadd.f32 %v4750, %v4783
      %v4799 = vadd.f32 %v4751, %v4783
      %v4800 = vadd.f32 %v4752, %v4783
      %v4801 = vadd.f32 %v4753, %v4783
      %v4802 = vadd.f32 %v4754, %v4783
      %v4803 = vadd.f32 %v4755, %v4783
      %v4804 = vadd.f32 %v4756, %v4783
      %v4805 = vadd.f32 %v4757, %v4783
      %v4806 = vadd.f32 %v4758, %v4783
      %v4807 = vadd.f32 %v4759, %v4783
      %v4808 = vadd.f32 %v4760, %v4783
      %v4809 = vadd.f32 %v4761, %v4783
      %v4810 = vadd.f32 %v4762, %v4783
      %v4811 = vadd.f32 %v4763, %v4783
      %v4812 = vadd.f32 %v4764, %v4783
      %v4813 = vadd.f32 %v4765, %v4783
      %v4814 = vadd.f32 %v4766, %v4783
      %v4815 = vadd.f32 %v4767, %v4783
      %v4816 = vadd.f32 %v4768, %v4783
      %v4817 = vadd.f32 %v4769, %v4783
      %v4818 = vadd.f32 %v4770, %v4783
      %4819 = vset.pattern.permute.xlu0 1
      %4820 = vperm.xlu0 %4819, %v294
      %v4821 = vpop.permute.xlu0 %4820
      %v4828 = vlaneseq
      %v4829 = vshrl.u32 %v4828, 7
      %v4830 = vsub.s32 0, %v4829
      %v4831 = vrot.slane %v4771, %v4830
      %v4832 = vlaneseq
      %v4833 = vshrl.u32 %v4832, 7
      %v4834 = vsub.s32 1, %v4833
      %v4835 = vrot.slane %v4771, %v4834
      %v4836 = vlaneseq
      %v4837 = vshrl.u32 %v4836, 7
      %v4838 = vsub.s32 2, %v4837
      %v4839 = vrot.slane %v4771, %v4838
      %v4840 = vlaneseq
      %v4841 = vshrl.u32 %v4840, 7
      %v4842 = vsub.s32 3, %v4841
      %v4843 = vrot.slane %v4771, %v4842
      %v4844 = vlaneseq
      %v4845 = vshrl.u32 %v4844, 7
      %v4846 = vsub.s32 4, %v4845
      %v4847 = vrot.slane %v4771, %v4846
      %v4848 = vlaneseq
      %v4849 = vshrl.u32 %v4848, 7
      %v4850 = vsub.s32 5, %v4849
      %v4851 = vrot.slane %v4771, %v4850
      %v4852 = vlaneseq
      %v4853 = vshrl.u32 %v4852, 7
      %v4854 = vsub.s32 6, %v4853
      %v4855 = vrot.slane %v4771, %v4854
      %v4856 = vlaneseq
      %v4857 = vshrl.u32 %v4856, 7
      %v4858 = vsub.s32 7, %v4857
      %v4859 = vrot.slane %v4771, %v4858
      %v4860 = vlaneseq
      %v4861 = vshrl.u32 %v4860, 7
      %v4862 = vsub.s32 0, %v4861
      %v4863 = vrot.slane %v4773, %v4862
      %v4864 = vlaneseq
      %v4865 = vshrl.u32 %v4864, 7
      %v4866 = vsub.s32 1, %v4865
      %v4867 = vrot.slane %v4773, %v4866
      %v4868 = vlaneseq
      %v4869 = vshrl.u32 %v4868, 7
      %v4870 = vsub.s32 2, %v4869
      %v4871 = vrot.slane %v4773, %v4870
      %v4872 = vlaneseq
      %v4873 = vshrl.u32 %v4872, 7
      %v4874 = vsub.s32 3, %v4873
      %v4875 = vrot.slane %v4773, %v4874
      %v4876 = vlaneseq
      %v4877 = vshrl.u32 %v4876, 7
      %v4878 = vsub.s32 4, %v4877
      %v4879 = vrot.slane %v4773, %v4878
      %v4880 = vlaneseq
      %v4881 = vshrl.u32 %v4880, 7
      %v4882 = vsub.s32 5, %v4881
      %v4883 = vrot.slane %v4773, %v4882
      %v4884 = vlaneseq
      %v4885 = vshrl.u32 %v4884, 7
      %v4886 = vsub.s32 6, %v4885
      %v4887 = vrot.slane %v4773, %v4886
      %v4888 = vlaneseq
      %v4889 = vshrl.u32 %v4888, 7
      %v4890 = vsub.s32 7, %v4889
      %v4891 = vrot.slane %v4773, %v4890
      %v4892 = vlaneseq
      %v4893 = vshrl.u32 %v4892, 7
      %v4894 = vsub.s32 0, %v4893
      %v4895 = vrot.slane %v4775, %v4894
      %v4896 = vlaneseq
      %v4897 = vshrl.u32 %v4896, 7
      %v4898 = vsub.s32 1, %v4897
      %v4899 = vrot.slane %v4775, %v4898
      %v4900 = vlaneseq
      %v4901 = vshrl.u32 %v4900, 7
      %v4902 = vsub.s32 2, %v4901
      %v4903 = vrot.slane %v4775, %v4902
      %v4904 = vlaneseq
      %v4905 = vshrl.u32 %v4904, 7
      %v4906 = vsub.s32 3, %v4905
      %v4907 = vrot.slane %v4775, %v4906
      %v4908 = vlaneseq
      %v4909 = vshrl.u32 %v4908, 7
      %v4910 = vsub.s32 4, %v4909
      %v4911 = vrot.slane %v4775, %v4910
      %v4912 = vlaneseq
      %v4913 = vshrl.u32 %v4912, 7
      %v4914 = vsub.s32 5, %v4913
      %v4915 = vrot.slane %v4775, %v4914
      %v4916 = vlaneseq
      %v4917 = vshrl.u32 %v4916, 7
      %v4918 = vsub.s32 6, %v4917
      %v4919 = vrot.slane %v4775, %v4918
      %v4920 = vlaneseq
      %v4921 = vshrl.u32 %v4920, 7
      %v4922 = vsub.s32 7, %v4921
      %v4923 = vrot.slane %v4775, %v4922
      %v4924 = vlaneseq
      %v4925 = vshrl.u32 %v4924, 7
      %v4926 = vsub.s32 0, %v4925
      %v4927 = vrot.slane %v4777, %v4926
      %v4928 = vlaneseq
      %v4929 = vshrl.u32 %v4928, 7
      %v4930 = vsub.s32 1, %v4929
      %v4931 = vrot.slane %v4777, %v4930
      %v4932 = vlaneseq
      %v4933 = vshrl.u32 %v4932, 7
      %v4934 = vsub.s32 2, %v4933
      %v4935 = vrot.slane %v4777, %v4934
      %v4936 = vlaneseq
      %v4937 = vshrl.u32 %v4936, 7
      %v4938 = vsub.s32 3, %v4937
      %v4939 = vrot.slane %v4777, %v4938
      %v4940 = vlaneseq
      %v4941 = vshrl.u32 %v4940, 7
      %v4942 = vsub.s32 4, %v4941
      %v4943 = vrot.slane %v4777, %v4942
      %v4944 = vlaneseq
      %v4945 = vshrl.u32 %v4944, 7
      %v4946 = vsub.s32 5, %v4945
      %v4947 = vrot.slane %v4777, %v4946
      %v4948 = vlaneseq
      %v4949 = vshrl.u32 %v4948, 7
      %v4950 = vsub.s32 6, %v4949
      %v4951 = vrot.slane %v4777, %v4950
      %v4952 = vlaneseq
      %v4953 = vshrl.u32 %v4952, 7
      %v4954 = vsub.s32 7, %v4953
      %v4955 = vrot.slane %v4777, %v4954
      %v4956 = vlaneseq
      %v4957 = vshrl.u32 %v4956, 7
      %v4958 = vsub.s32 0, %v4957
      %v4959 = vrot.slane %v4779, %v4958
      %v4960 = vlaneseq
      %v4961 = vshrl.u32 %v4960, 7
      %v4962 = vsub.s32 1, %v4961
      %v4963 = vrot.slane %v4779, %v4962
      %v4998 = vmul.f32 %v4821, %v4831
      %v4999 = vmul.f32 %v4821, %v4835
      %v5000 = vmul.f32 %v4821, %v4839
      %v5001 = vmul.f32 %v4821, %v4843
      %v5002 = vmul.f32 %v4821, %v4847
      %v5003 = vmul.f32 %v4821, %v4851
      %v5004 = vmul.f32 %v4821, %v4855
      %v5005 = vmul.f32 %v4821, %v4859
      %v5006 = vmul.f32 %v4821, %v4863
      %v5007 = vmul.f32 %v4821, %v4867
      %v5008 = vmul.f32 %v4821, %v4871
      %v5009 = vmul.f32 %v4821, %v4875
      %v5010 = vmul.f32 %v4821, %v4879
      %v5011 = vmul.f32 %v4821, %v4883
      %v5012 = vmul.f32 %v4821, %v4887
      %v5013 = vmul.f32 %v4821, %v4891
      %v5014 = vmul.f32 %v4821, %v4895
      %v5015 = vmul.f32 %v4821, %v4899
      %v5016 = vmul.f32 %v4821, %v4903
      %v5017 = vmul.f32 %v4821, %v4907
      %v5018 = vmul.f32 %v4821, %v4911
      %v5019 = vmul.f32 %v4821, %v4915
      %v5020 = vmul.f32 %v4821, %v4919
      %v5021 = vmul.f32 %v4821, %v4923
      %v5022 = vmul.f32 %v4821, %v4927
      %v5023 = vmul.f32 %v4821, %v4931
      %v5024 = vmul.f32 %v4821, %v4935
      %v5025 = vmul.f32 %v4821, %v4939
      %v5026 = vmul.f32 %v4821, %v4943
      %v5027 = vmul.f32 %v4821, %v4947
      %v5028 = vmul.f32 %v4821, %v4951
      %v5029 = vmul.f32 %v4821, %v4955
      %v5030 = vmul.f32 %v4821, %v4959
      %v5031 = vmul.f32 %v4821, %v4963
      %v5032 = vadd.f32 %v4785, %v4998
      %v5033 = vadd.f32 %v4786, %v4999
      %v5034 = vadd.f32 %v4787, %v5000
      %v5035 = vadd.f32 %v4788, %v5001
      %v5036 = vadd.f32 %v4789, %v5002
      %v5037 = vadd.f32 %v4790, %v5003
      %v5038 = vadd.f32 %v4791, %v5004
      %v5039 = vadd.f32 %v4792, %v5005
      %v5040 = vadd.f32 %v4793, %v5006
      %v5041 = vadd.f32 %v4794, %v5007
      %v5042 = vadd.f32 %v4795, %v5008
      %v5043 = vadd.f32 %v4796, %v5009
      %v5044 = vadd.f32 %v4797, %v5010
      %v5045 = vadd.f32 %v4798, %v5011
      %v5046 = vadd.f32 %v4799, %v5012
      %v5047 = vadd.f32 %v4800, %v5013
      %v5048 = vadd.f32 %v4801, %v5014
      %v5049 = vadd.f32 %v4802, %v5015
      %v5050 = vadd.f32 %v4803, %v5016
      %v5051 = vadd.f32 %v4804, %v5017
      %v5052 = vadd.f32 %v4805, %v5018
      %v5053 = vadd.f32 %v4806, %v5019
      %v5054 = vadd.f32 %v4807, %v5020
      %v5055 = vadd.f32 %v4808, %v5021
      %v5056 = vadd.f32 %v4809, %v5022
      %v5057 = vadd.f32 %v4810, %v5023
      %v5058 = vadd.f32 %v4811, %v5024
      %v5059 = vadd.f32 %v4812, %v5025
      %v5060 = vadd.f32 %v4813, %v5026
      %v5061 = vadd.f32 %v4814, %v5027
      %v5062 = vadd.f32 %v4815, %v5028
      %v5063 = vadd.f32 %v4816, %v5029
      %v5064 = vadd.f32 %v4817, %v5030
      %v5065 = vadd.f32 %v4818, %v5031
      %v5066 = vmax.f32 %v5032, 0.0
      %v5067 = vmax.f32 %v5033, 0.0
      %v5068 = vmax.f32 %v5034, 0.0
      %v5069 = vmax.f32 %v5035, 0.0
      %v5070 = vmax.f32 %v5036, 0.0
      %v5071 = vmax.f32 %v5037, 0.0
      %v5072 = vmax.f32 %v5038, 0.0
      %v5073 = vmax.f32 %v5039, 0.0
      %v5074 = vmax.f32 %v5040, 0.0
      %v5075 = vmax.f32 %v5041, 0.0
      %v5076 = vmax.f32 %v5042, 0.0
      %v5077 = vmax.f32 %v5043, 0.0
      %v5078 = vmax.f32 %v5044, 0.0
      %v5079 = vmax.f32 %v5045, 0.0
      %v5080 = vmax.f32 %v5046, 0.0
      %v5081 = vmax.f32 %v5047, 0.0
      %v5082 = vmax.f32 %v5048, 0.0
      %v5083 = vmax.f32 %v5049, 0.0
      %v5084 = vmax.f32 %v5050, 0.0
      %v5085 = vmax.f32 %v5051, 0.0
      %v5086 = vmax.f32 %v5052, 0.0
      %v5087 = vmax.f32 %v5053, 0.0
      %v5088 = vmax.f32 %v5054, 0.0
      %v5089 = vmax.f32 %v5055, 0.0
      %v5090 = vmax.f32 %v5056, 0.0
      %v5091 = vmax.f32 %v5057, 0.0
      %v5092 = vmax.f32 %v5058, 0.0
      %v5093 = vmax.f32 %v5059, 0.0
      %v5094 = vmax.f32 %v5060, 0.0
      %v5095 = vmax.f32 %v5061, 0.0
      %v5096 = vmax.f32 %v5062, 0.0
      %v5097 = vmax.f32 %v5063, 0.0
      %v5098 = vmax.f32 %v5064, 0.0
      %v5099 = vmax.f32 %v5065, 0.0
      %v5105 = vlaneseq
      %v5106 = vshrl.u32 %v5105, 7
      %v5107 = vsub.s32 0, %v5106
      %v5108 = vrot.slane %v289, %v5107
      %v5109 = vlaneseq
      %v5110 = vshrl.u32 %v5109, 7
      %v5111 = vsub.s32 1, %v5110
      %v5112 = vrot.slane %v289, %v5111
      %v5113 = vlaneseq
      %v5114 = vshrl.u32 %v5113, 7
      %v5115 = vsub.s32 2, %v5114
      %v5116 = vrot.slane %v289, %v5115
      %v5117 = vlaneseq
      %v5118 = vshrl.u32 %v5117, 7
      %v5119 = vsub.s32 3, %v5118
      %v5120 = vrot.slane %v289, %v5119
      %v5121 = vlaneseq
      %v5122 = vshrl.u32 %v5121, 7
      %v5123 = vsub.s32 4, %v5122
      %v5124 = vrot.slane %v289, %v5123
      %v5125 = vlaneseq
      %v5126 = vshrl.u32 %v5125, 7
      %v5127 = vsub.s32 5, %v5126
      %v5128 = vrot.slane %v289, %v5127
      %v5129 = vlaneseq
      %v5130 = vshrl.u32 %v5129, 7
      %v5131 = vsub.s32 6, %v5130
      %v5132 = vrot.slane %v289, %v5131
      %v5133 = vlaneseq
      %v5134 = vshrl.u32 %v5133, 7
      %v5135 = vsub.s32 7, %v5134
      %v5136 = vrot.slane %v289, %v5135
      %v5137 = vlaneseq
      %v5138 = vshrl.u32 %v5137, 7
      %v5139 = vsub.s32 0, %v5138
      %v5140 = vrot.slane %v290, %v5139
      %v5141 = vlaneseq
      %v5142 = vshrl.u32 %v5141, 7
      %v5143 = vsub.s32 1, %v5142
      %v5144 = vrot.slane %v290, %v5143
      %v5145 = vlaneseq
      %v5146 = vshrl.u32 %v5145, 7
      %v5147 = vsub.s32 2, %v5146
      %v5148 = vrot.slane %v290, %v5147
      %v5149 = vlaneseq
      %v5150 = vshrl.u32 %v5149, 7
      %v5151 = vsub.s32 3, %v5150
      %v5152 = vrot.slane %v290, %v5151
      %v5153 = vlaneseq
      %v5154 = vshrl.u32 %v5153, 7
      %v5155 = vsub.s32 4, %v5154
      %v5156 = vrot.slane %v290, %v5155
      %v5157 = vlaneseq
      %v5158 = vshrl.u32 %v5157, 7
      %v5159 = vsub.s32 5, %v5158
      %v5160 = vrot.slane %v290, %v5159
      %v5161 = vlaneseq
      %v5162 = vshrl.u32 %v5161, 7
      %v5163 = vsub.s32 6, %v5162
      %v5164 = vrot.slane %v290, %v5163
      %v5165 = vlaneseq
      %v5166 = vshrl.u32 %v5165, 7
      %v5167 = vsub.s32 7, %v5166
      %v5168 = vrot.slane %v290, %v5167
      %v5169 = vlaneseq
      %v5170 = vshrl.u32 %v5169, 7
      %v5171 = vsub.s32 0, %v5170
      %v5172 = vrot.slane %v291, %v5171
      %v5173 = vlaneseq
      %v5174 = vshrl.u32 %v5173, 7
      %v5175 = vsub.s32 1, %v5174
      %v5176 = vrot.slane %v291, %v5175
      %v5177 = vlaneseq
      %v5178 = vshrl.u32 %v5177, 7
      %v5179 = vsub.s32 2, %v5178
      %v5180 = vrot.slane %v291, %v5179
      %v5181 = vlaneseq
      %v5182 = vshrl.u32 %v5181, 7
      %v5183 = vsub.s32 3, %v5182
      %v5184 = vrot.slane %v291, %v5183
      %v5185 = vlaneseq
      %v5186 = vshrl.u32 %v5185, 7
      %v5187 = vsub.s32 4, %v5186
      %v5188 = vrot.slane %v291, %v5187
      %v5189 = vlaneseq
      %v5190 = vshrl.u32 %v5189, 7
      %v5191 = vsub.s32 5, %v5190
      %v5192 = vrot.slane %v291, %v5191
      %v5193 = vlaneseq
      %v5194 = vshrl.u32 %v5193, 7
      %v5195 = vsub.s32 6, %v5194
      %v5196 = vrot.slane %v291, %v5195
      %v5197 = vlaneseq
      %v5198 = vshrl.u32 %v5197, 7
      %v5199 = vsub.s32 7, %v5198
      %v5200 = vrot.slane %v291, %v5199
      %v5201 = vlaneseq
      %v5202 = vshrl.u32 %v5201, 7
      %v5203 = vsub.s32 0, %v5202
      %v5204 = vrot.slane %v292, %v5203
      %v5205 = vlaneseq
      %v5206 = vshrl.u32 %v5205, 7
      %v5207 = vsub.s32 1, %v5206
      %v5208 = vrot.slane %v292, %v5207
      %v5209 = vlaneseq
      %v5210 = vshrl.u32 %v5209, 7
      %v5211 = vsub.s32 2, %v5210
      %v5212 = vrot.slane %v292, %v5211
      %v5213 = vlaneseq
      %v5214 = vshrl.u32 %v5213, 7
      %v5215 = vsub.s32 3, %v5214
      %v5216 = vrot.slane %v292, %v5215
      %v5217 = vlaneseq
      %v5218 = vshrl.u32 %v5217, 7
      %v5219 = vsub.s32 4, %v5218
      %v5220 = vrot.slane %v292, %v5219
      %v5221 = vlaneseq
      %v5222 = vshrl.u32 %v5221, 7
      %v5223 = vsub.s32 5, %v5222
      %v5224 = vrot.slane %v292, %v5223
      %v5225 = vlaneseq
      %v5226 = vshrl.u32 %v5225, 7
      %v5227 = vsub.s32 6, %v5226
      %v5228 = vrot.slane %v292, %v5227
      %v5229 = vlaneseq
      %v5230 = vshrl.u32 %v5229, 7
      %v5231 = vsub.s32 7, %v5230
      %v5232 = vrot.slane %v292, %v5231
      %v5233 = vlaneseq
      %v5234 = vshrl.u32 %v5233, 7
      %v5235 = vsub.s32 0, %v5234
      %v5236 = vrot.slane %v293, %v5235
      %v5237 = vlaneseq
      %v5238 = vshrl.u32 %v5237, 7
      %v5239 = vsub.s32 1, %v5238
      %v5240 = vrot.slane %v293, %v5239
      %v5275 = vmul.f32 %v5066, %v5108
      %v5276 = vmul.f32 %v5067, %v5112
      %v5277 = vmul.f32 %v5068, %v5116
      %v5278 = vmul.f32 %v5069, %v5120
      %v5279 = vmul.f32 %v5070, %v5124
      %v5280 = vmul.f32 %v5071, %v5128
      %v5281 = vmul.f32 %v5072, %v5132
      %v5282 = vmul.f32 %v5073, %v5136
      %v5283 = vmul.f32 %v5074, %v5140
      %v5284 = vmul.f32 %v5075, %v5144
      %v5285 = vmul.f32 %v5076, %v5148
      %v5286 = vmul.f32 %v5077, %v5152
      %v5287 = vmul.f32 %v5078, %v5156
      %v5288 = vmul.f32 %v5079, %v5160
      %v5289 = vmul.f32 %v5080, %v5164
      %v5290 = vmul.f32 %v5081, %v5168
      %v5291 = vmul.f32 %v5082, %v5172
      %v5292 = vmul.f32 %v5083, %v5176
      %v5293 = vmul.f32 %v5084, %v5180
      %v5294 = vmul.f32 %v5085, %v5184
      %v5295 = vmul.f32 %v5086, %v5188
      %v5296 = vmul.f32 %v5087, %v5192
      %v5297 = vmul.f32 %v5088, %v5196
      %v5298 = vmul.f32 %v5089, %v5200
      %v5299 = vmul.f32 %v5090, %v5204
      %v5300 = vmul.f32 %v5091, %v5208
      %v5301 = vmul.f32 %v5092, %v5212
      %v5302 = vmul.f32 %v5093, %v5216
      %v5303 = vmul.f32 %v5094, %v5220
      %v5304 = vmul.f32 %v5095, %v5224
      %v5305 = vmul.f32 %v5096, %v5228
      %v5306 = vmul.f32 %v5097, %v5232
      %v5307 = vmul.f32 %v5098, %v5236
      %v5308 = vmul.f32 %v5099, %v5240
      %v5309 = vadd.f32 %v5275, %v5276
      %v5310 = vadd.f32 %v5309, %v5277
      %v5311 = vadd.f32 %v5310, %v5278
      %v5312 = vadd.f32 %v5311, %v5279
      %v5313 = vadd.f32 %v5312, %v5280
      %v5314 = vadd.f32 %v5313, %v5281
      %v5315 = vadd.f32 %v5314, %v5282
      %v5316 = vadd.f32 %v5315, %v5283
      %v5317 = vadd.f32 %v5316, %v5284
      %v5318 = vadd.f32 %v5317, %v5285
      %v5319 = vadd.f32 %v5318, %v5286
      %v5320 = vadd.f32 %v5319, %v5287
      %v5321 = vadd.f32 %v5320, %v5288
      %v5322 = vadd.f32 %v5321, %v5289
      %v5323 = vadd.f32 %v5322, %v5290
      %v5324 = vadd.f32 %v5323, %v5291
      %v5325 = vadd.f32 %v5324, %v5292
      %v5326 = vadd.f32 %v5325, %v5293
      %v5327 = vadd.f32 %v5326, %v5294
      %v5328 = vadd.f32 %v5327, %v5295
      %v5329 = vadd.f32 %v5328, %v5296
      %v5330 = vadd.f32 %v5329, %v5297
      %v5331 = vadd.f32 %v5330, %v5298
      %v5332 = vadd.f32 %v5331, %v5299
      %v5333 = vadd.f32 %v5332, %v5300
      %v5334 = vadd.f32 %v5333, %v5301
      %v5335 = vadd.f32 %v5334, %v5302
      %v5336 = vadd.f32 %v5335, %v5303
      %v5337 = vadd.f32 %v5336, %v5304
      %v5338 = vadd.f32 %v5337, %v5305
      %v5339 = vadd.f32 %v5338, %v5306
      %v5340 = vadd.f32 %v5339, %v5307
      %v5341 = vadd.f32 %v5340, %v5308
      %5342 = vadd.xlane.f32.xlu0 %v5341
      %v5343 = vpop.xlane.xlu0 %5342
      %v5344 = vmul.f32 %v5275, %v5275
      %v5345 = vmul.f32 %v5276, %v5276
      %v5346 = vmul.f32 %v5277, %v5277
      %v5347 = vmul.f32 %v5278, %v5278
      %v5348 = vmul.f32 %v5279, %v5279
      %v5349 = vmul.f32 %v5280, %v5280
      %v5350 = vmul.f32 %v5281, %v5281
      %v5351 = vmul.f32 %v5282, %v5282
      %v5352 = vmul.f32 %v5283, %v5283
      %v5353 = vmul.f32 %v5284, %v5284
      %v5354 = vmul.f32 %v5285, %v5285
      %v5355 = vmul.f32 %v5286, %v5286
      %v5356 = vmul.f32 %v5287, %v5287
      %v5357 = vmul.f32 %v5288, %v5288
      %v5358 = vmul.f32 %v5289, %v5289
      %v5359 = vmul.f32 %v5290, %v5290
      %v5360 = vmul.f32 %v5291, %v5291
      %v5361 = vmul.f32 %v5292, %v5292
      %v5362 = vmul.f32 %v5293, %v5293
      %v5363 = vmul.f32 %v5294, %v5294
      %v5364 = vmul.f32 %v5295, %v5295
      %v5365 = vmul.f32 %v5296, %v5296
      %v5366 = vmul.f32 %v5297, %v5297
      %v5367 = vmul.f32 %v5298, %v5298
      %v5368 = vmul.f32 %v5299, %v5299
      %v5369 = vmul.f32 %v5300, %v5300
      %v5370 = vmul.f32 %v5301, %v5301
      %v5371 = vmul.f32 %v5302, %v5302
      %v5372 = vmul.f32 %v5303, %v5303
      %v5373 = vmul.f32 %v5304, %v5304
      %v5374 = vmul.f32 %v5305, %v5305
      %v5375 = vmul.f32 %v5306, %v5306
      %v5376 = vmul.f32 %v5307, %v5307
      %v5377 = vmul.f32 %v5308, %v5308
      %v5378 = vadd.f32 %v5344, %v5345
      %v5379 = vadd.f32 %v5378, %v5346
      %v5380 = vadd.f32 %v5379, %v5347
      %v5381 = vadd.f32 %v5380, %v5348
      %v5382 = vadd.f32 %v5381, %v5349
      %v5383 = vadd.f32 %v5382, %v5350
      %v5384 = vadd.f32 %v5383, %v5351
      %v5385 = vadd.f32 %v5384, %v5352
      %v5386 = vadd.f32 %v5385, %v5353
      %v5387 = vadd.f32 %v5386, %v5354
      %v5388 = vadd.f32 %v5387, %v5355
      %v5389 = vadd.f32 %v5388, %v5356
      %v5390 = vadd.f32 %v5389, %v5357
      %v5391 = vadd.f32 %v5390, %v5358
      %v5392 = vadd.f32 %v5391, %v5359
      %v5393 = vadd.f32 %v5392, %v5360
      %v5394 = vadd.f32 %v5393, %v5361
      %v5395 = vadd.f32 %v5394, %v5362
      %v5396 = vadd.f32 %v5395, %v5363
      %v5397 = vadd.f32 %v5396, %v5364
      %v5398 = vadd.f32 %v5397, %v5365
      %v5399 = vadd.f32 %v5398, %v5366
      %v5400 = vadd.f32 %v5399, %v5367
      %v5401 = vadd.f32 %v5400, %v5368
      %v5402 = vadd.f32 %v5401, %v5369
      %v5403 = vadd.f32 %v5402, %v5370
      %v5404 = vadd.f32 %v5403, %v5371
      %v5405 = vadd.f32 %v5404, %v5372
      %v5406 = vadd.f32 %v5405, %v5373
      %v5407 = vadd.f32 %v5406, %v5374
      %v5408 = vadd.f32 %v5407, %v5375
      %v5409 = vadd.f32 %v5408, %v5376
      %v5410 = vadd.f32 %v5409, %v5377
      %5411 = vadd.xlane.f32.xlu0 %v5410
      %v5412 = vpop.xlane.xlu0 %5411
      %v5413 = vmul.f32 %v5343, 0.0009765625
      %v5414 = vmul.f32 %v5412, 0.0009765625
      %v5415 = vmul.f32 %v5413, %v5413
      %v5416 = vsub.f32 %v5414, %v5415
      %v5417 = vmax.f32 %v5416, 0.0
      %v5418 = vadd.f32 %v5417, 1e-05
      %v5419 = vrsqrt.pop %v5418
      %v5420 = vmul.f32 %v294, %v5419
      %v5421 = vmul.f32 %v5413, %v5420
      %5423 = vrot.lane.b32.xlu0 %v5421, 1
      %v5424 = vpop.permute.xlu0 %5423
      %v5426 = vsub.f32 %v294, %v5424
      %5428 = vset.pattern.permute.xlu0 2
      %5429 = vperm.xlu0 %5428, %v5420
      %v5430 = vpop.permute.xlu0 %5429
      %v5432 = vmul.f32 %v5066, %v5430
      %v5433 = vmul.f32 %v5067, %v5430
      %v5434 = vmul.f32 %v5068, %v5430
      %v5435 = vmul.f32 %v5069, %v5430
      %v5436 = vmul.f32 %v5070, %v5430
      %v5437 = vmul.f32 %v5071, %v5430
      %v5438 = vmul.f32 %v5072, %v5430
      %v5439 = vmul.f32 %v5073, %v5430
      %v5440 = vmul.f32 %v5074, %v5430
      %v5441 = vmul.f32 %v5075, %v5430
      %v5442 = vmul.f32 %v5076, %v5430
      %v5443 = vmul.f32 %v5077, %v5430
      %v5444 = vmul.f32 %v5078, %v5430
      %v5445 = vmul.f32 %v5079, %v5430
      %v5446 = vmul.f32 %v5080, %v5430
      %v5447 = vmul.f32 %v5081, %v5430
      %v5448 = vmul.f32 %v5082, %v5430
      %v5449 = vmul.f32 %v5083, %v5430
      %v5450 = vmul.f32 %v5084, %v5430
      %v5451 = vmul.f32 %v5085, %v5430
      %v5452 = vmul.f32 %v5086, %v5430
      %v5453 = vmul.f32 %v5087, %v5430
      %v5454 = vmul.f32 %v5088, %v5430
      %v5455 = vmul.f32 %v5089, %v5430
      %v5456 = vmul.f32 %v5090, %v5430
      %v5457 = vmul.f32 %v5091, %v5430
      %v5458 = vmul.f32 %v5092, %v5430
      %v5459 = vmul.f32 %v5093, %v5430
      %v5460 = vmul.f32 %v5094, %v5430
      %v5461 = vmul.f32 %v5095, %v5430
      %v5462 = vmul.f32 %v5096, %v5430
      %v5463 = vmul.f32 %v5097, %v5430
      %v5464 = vmul.f32 %v5098, %v5430
      %v5465 = vmul.f32 %v5099, %v5430
      %5467 = vset.pattern.permute.xlu0 3
      %5468 = vperm.xlu0 %5467, %v5426
      %v5469 = vpop.permute.xlu0 %5468
      %v5471 = vadd.f32 %v5432, %v5469
      %v5472 = vadd.f32 %v5433, %v5469
      %v5473 = vadd.f32 %v5434, %v5469
      %v5474 = vadd.f32 %v5435, %v5469
      %v5475 = vadd.f32 %v5436, %v5469
      %v5476 = vadd.f32 %v5437, %v5469
      %v5477 = vadd.f32 %v5438, %v5469
      %v5478 = vadd.f32 %v5439, %v5469
      %v5479 = vadd.f32 %v5440, %v5469
      %v5480 = vadd.f32 %v5441, %v5469
      %v5481 = vadd.f32 %v5442, %v5469
      %v5482 = vadd.f32 %v5443, %v5469
      %v5483 = vadd.f32 %v5444, %v5469
      %v5484 = vadd.f32 %v5445, %v5469
      %v5485 = vadd.f32 %v5446, %v5469
      %v5486 = vadd.f32 %v5447, %v5469
      %v5487 = vadd.f32 %v5448, %v5469
      %v5488 = vadd.f32 %v5449, %v5469
      %v5489 = vadd.f32 %v5450, %v5469
      %v5490 = vadd.f32 %v5451, %v5469
      %v5491 = vadd.f32 %v5452, %v5469
      %v5492 = vadd.f32 %v5453, %v5469
      %v5493 = vadd.f32 %v5454, %v5469
      %v5494 = vadd.f32 %v5455, %v5469
      %v5495 = vadd.f32 %v5456, %v5469
      %v5496 = vadd.f32 %v5457, %v5469
      %v5497 = vadd.f32 %v5458, %v5469
      %v5498 = vadd.f32 %v5459, %v5469
      %v5499 = vadd.f32 %v5460, %v5469
      %v5500 = vadd.f32 %v5461, %v5469
      %v5501 = vadd.f32 %v5462, %v5469
      %v5502 = vadd.f32 %v5463, %v5469
      %v5503 = vadd.f32 %v5464, %v5469
      %v5504 = vadd.f32 %v5465, %v5469
      %5505 = vst [vmem:[#allocation2] sm:$0xff] 0.0
      %5506 = vst [vmem:[#allocation2 + $0x8] sm:$0xff] 0.0
      %5507 = vst [vmem:[#allocation2 + $0x120] sm:$0xff] 0.0
      %5508 = vst [vmem:[#allocation2 + $0x128] sm:$0xff] 0.0
      %v5509 = vmul.f32 %v5471, %v5108
      %v5510 = vmul.f32 %v5472, %v5112
      %v5511 = vmul.f32 %v5473, %v5116
      %v5512 = vmul.f32 %v5474, %v5120
      %v5513 = vmul.f32 %v5475, %v5124
      %v5514 = vmul.f32 %v5476, %v5128
      %v5515 = vmul.f32 %v5477, %v5132
      %v5516 = vmul.f32 %v5478, %v5136
      %v5517 = vmul.f32 %v5479, %v5140
      %v5518 = vmul.f32 %v5480, %v5144
      %v5519 = vmul.f32 %v5481, %v5148
      %v5520 = vmul.f32 %v5482, %v5152
      %v5521 = vmul.f32 %v5483, %v5156
      %v5522 = vmul.f32 %v5484, %v5160
      %v5523 = vmul.f32 %v5485, %v5164
      %v5524 = vmul.f32 %v5486, %v5168
      %v5525 = vmul.f32 %v5487, %v5172
      %v5526 = vmul.f32 %v5488, %v5176
      %v5527 = vmul.f32 %v5489, %v5180
      %v5528 = vmul.f32 %v5490, %v5184
      %v5529 = vmul.f32 %v5491, %v5188
      %v5530 = vmul.f32 %v5492, %v5192
      %v5531 = vmul.f32 %v5493, %v5196
      %v5532 = vmul.f32 %v5494, %v5200
      %v5533 = vmul.f32 %v5495, %v5204
      %v5534 = vmul.f32 %v5496, %v5208
      %v5535 = vmul.f32 %v5497, %v5212
      %v5536 = vmul.f32 %v5498, %v5216
      %v5537 = vmul.f32 %v5499, %v5220
      %v5538 = vmul.f32 %v5500, %v5224
      %v5539 = vmul.f32 %v5501, %v5228
      %v5540 = vmul.f32 %v5502, %v5232
      %v5541 = vmul.f32 %v5503, %v5236
      %v5542 = vmul.f32 %v5504, %v5240
      %5543 = vst [vmem:[#allocation2 + $0x10] sm:$0xff] %v5509
      %5544 = vst [vmem:[#allocation2 + $0x18] sm:$0xff] %v5510
      %5545 = vst [vmem:[#allocation2 + $0x20] sm:$0xff] %v5511
      %5546 = vst [vmem:[#allocation2 + $0x28] sm:$0xff] %v5512
      %5547 = vst [vmem:[#allocation2 + $0x30] sm:$0xff] %v5513
      %5548 = vst [vmem:[#allocation2 + $0x38] sm:$0xff] %v5514
      %5549 = vst [vmem:[#allocation2 + $0x40] sm:$0xff] %v5515
      %5550 = vst [vmem:[#allocation2 + $0x48] sm:$0xff] %v5516
      %5551 = vst [vmem:[#allocation2 + $0x50] sm:$0xff] %v5517
      %5552 = vst [vmem:[#allocation2 + $0x58] sm:$0xff] %v5518
      %5553 = vst [vmem:[#allocation2 + $0x60] sm:$0xff] %v5519
      %5554 = vst [vmem:[#allocation2 + $0x68] sm:$0xff] %v5520
      %5555 = vst [vmem:[#allocation2 + $0x70] sm:$0xff] %v5521
      %5556 = vst [vmem:[#allocation2 + $0x78] sm:$0xff] %v5522
      %5557 = vst [vmem:[#allocation2 + $0x80] sm:$0xff] %v5523
      %5558 = vst [vmem:[#allocation2 + $0x88] sm:$0xff] %v5524
      %5559 = vst [vmem:[#allocation2 + $0x90] sm:$0xff] %v5525
      %5560 = vst [vmem:[#allocation2 + $0x98] sm:$0xff] %v5526
      %5561 = vst [vmem:[#allocation2 + $0xa0] sm:$0xff] %v5527
      %5562 = vst [vmem:[#allocation2 + $0xa8] sm:$0xff] %v5528
      %5563 = vst [vmem:[#allocation2 + $0xb0] sm:$0xff] %v5529
      %5564 = vst [vmem:[#allocation2 + $0xb8] sm:$0xff] %v5530
      %5565 = vst [vmem:[#allocation2 + $0xc0] sm:$0xff] %v5531
      %5566 = vst [vmem:[#allocation2 + $0xc8] sm:$0xff] %v5532
      %5567 = vst [vmem:[#allocation2 + $0xd0] sm:$0xff] %v5533
      %5568 = vst [vmem:[#allocation2 + $0xd8] sm:$0xff] %v5534
      %5569 = vst [vmem:[#allocation2 + $0xe0] sm:$0xff] %v5535
      %5570 = vst [vmem:[#allocation2 + $0xe8] sm:$0xff] %v5536
      %5571 = vst [vmem:[#allocation2 + $0xf0] sm:$0xff] %v5537
      %5572 = vst [vmem:[#allocation2 + $0xf8] sm:$0xff] %v5538
      %5573 = vst [vmem:[#allocation2 + $0x100] sm:$0xff] %v5539
      %5574 = vst [vmem:[#allocation2 + $0x108] sm:$0xff] %v5540
      %5575 = vst [vmem:[#allocation2 + $0x110] sm:$0xff] %v5541
      %5576 = vst [vmem:[#allocation2 + $0x118] sm:$0xff] %v5542
      %v5577 = vld [vmem:[#allocation2] sm:$0xff]
      %v5578 = vld [vmem:[#allocation2 + $0x8] sm:$0xff]
      %v5579 = vld [vmem:[#allocation2 + $0x10] sm:$0xff]
      %v5580 = vld [vmem:[#allocation2 + $0x18] sm:$0xff]
      %v5581 = vld [vmem:[#allocation2 + $0x20] sm:$0xff]
      %v5582 = vld [vmem:[#allocation2 + $0x28] sm:$0xff]
      %v5583 = vld [vmem:[#allocation2 + $0x30] sm:$0xff]
      %v5584 = vld [vmem:[#allocation2 + $0x38] sm:$0xff]
      %v5585 = vld [vmem:[#allocation2 + $0x40] sm:$0xff]
      %v5586 = vld [vmem:[#allocation2 + $0x48] sm:$0xff]
      %v5587 = vld [vmem:[#allocation2 + $0x50] sm:$0xff]
      %v5588 = vld [vmem:[#allocation2 + $0x58] sm:$0xff]
      %v5589 = vld [vmem:[#allocation2 + $0x60] sm:$0xff]
      %v5590 = vld [vmem:[#allocation2 + $0x68] sm:$0xff]
      %v5591 = vld [vmem:[#allocation2 + $0x70] sm:$0xff]
      %v5592 = vld [vmem:[#allocation2 + $0x78] sm:$0xff]
      %v5593 = vld [vmem:[#allocation2 + $0x80] sm:$0xff]
      %v5594 = vld [vmem:[#allocation2 + $0x88] sm:$0xff]
      %v5595 = vld [vmem:[#allocation2 + $0x90] sm:$0xff]
      %v5596 = vld [vmem:[#allocation2 + $0x98] sm:$0xff]
      %v5597 = vld [vmem:[#allocation2 + $0xa0] sm:$0xff]
      %v5598 = vld [vmem:[#allocation2 + $0xa8] sm:$0xff]
      %v5599 = vld [vmem:[#allocation2 + $0xb0] sm:$0xff]
      %v5600 = vld [vmem:[#allocation2 + $0xb8] sm:$0xff]
      %v5601 = vld [vmem:[#allocation2 + $0xc0] sm:$0xff]
      %v5602 = vld [vmem:[#allocation2 + $0xc8] sm:$0xff]
      %v5603 = vld [vmem:[#allocation2 + $0xd0] sm:$0xff]
      %v5604 = vld [vmem:[#allocation2 + $0xd8] sm:$0xff]
      %v5605 = vld [vmem:[#allocation2 + $0xe0] sm:$0xff]
      %v5606 = vld [vmem:[#allocation2 + $0xe8] sm:$0xff]
      %v5607 = vld [vmem:[#allocation2 + $0xf0] sm:$0xff]
      %v5608 = vld [vmem:[#allocation2 + $0xf8] sm:$0xff]
      %v5609 = vld [vmem:[#allocation2 + $0x100] sm:$0xff]
      %v5610 = vld [vmem:[#allocation2 + $0x108] sm:$0xff]
      %v5611 = vld [vmem:[#allocation2 + $0x110] sm:$0xff]
      %v5612 = vld [vmem:[#allocation2 + $0x118] sm:$0xff]
      %v5613 = vld [vmem:[#allocation2 + $0x120] sm:$0xff]
      %v5614 = vld [vmem:[#allocation2 + $0x8] sm:$0xff]
      %v5615 = vld [vmem:[#allocation2 + $0x10] sm:$0xff]
      %v5616 = vld [vmem:[#allocation2 + $0x18] sm:$0xff]
      %v5617 = vld [vmem:[#allocation2 + $0x20] sm:$0xff]
      %v5618 = vld [vmem:[#allocation2 + $0x28] sm:$0xff]
      %v5619 = vld [vmem:[#allocation2 + $0x30] sm:$0xff]
      %v5620 = vld [vmem:[#allocation2 + $0x38] sm:$0xff]
      %v5621 = vld [vmem:[#allocation2 + $0x40] sm:$0xff]
      %v5622 = vld [vmem:[#allocation2 + $0x48] sm:$0xff]
      %v5623 = vld [vmem:[#allocation2 + $0x50] sm:$0xff]
      %v5624 = vld [vmem:[#allocation2 + $0x58] sm:$0xff]
      %v5625 = vld [vmem:[#allocation2 + $0x60] sm:$0xff]
      %v5626 = vld [vmem:[#allocation2 + $0x68] sm:$0xff]
      %v5627 = vld [vmem:[#allocation2 + $0x70] sm:$0xff]
      %v5628 = vld [vmem:[#allocation2 + $0x78] sm:$0xff]
      %v5629 = vld [vmem:[#allocation2 + $0x80] sm:$0xff]
      %v5630 = vld [vmem:[#allocation2 + $0x88] sm:$0xff]
      %v5631 = vld [vmem:[#allocation2 + $0x90] sm:$0xff]
      %v5632 = vld [vmem:[#allocation2 + $0x98] sm:$0xff]
      %v5633 = vld [vmem:[#allocation2 + $0xa0] sm:$0xff]
      %v5634 = vld [vmem:[#allocation2 + $0xa8] sm:$0xff]
      %v5635 = vld [vmem:[#allocation2 + $0xb0] sm:$0xff]
      %v5636 = vld [vmem:[#allocation2 + $0xb8] sm:$0xff]
      %v5637 = vld [vmem:[#allocation2 + $0xc0] sm:$0xff]
      %v5638 = vld [vmem:[#allocation2 + $0xc8] sm:$0xff]
      %v5639 = vld [vmem:[#allocation2 + $0xd0] sm:$0xff]
      %v5640 = vld [vmem:[#allocation2 + $0xd8] sm:$0xff]
      %v5641 = vld [vmem:[#allocation2 + $0xe0] sm:$0xff]
      %v5642 = vld [vmem:[#allocation2 + $0xe8] sm:$0xff]
      %v5643 = vld [vmem:[#allocation2 + $0xf0] sm:$0xff]
      %v5644 = vld [vmem:[#allocation2 + $0xf8] sm:$0xff]
      %v5645 = vld [vmem:[#allocation2 + $0x100] sm:$0xff]
      %v5646 = vld [vmem:[#allocation2 + $0x108] sm:$0xff]
      %v5647 = vld [vmem:[#allocation2 + $0x110] sm:$0xff]
      %v5648 = vld [vmem:[#allocation2 + $0x118] sm:$0xff]
      %v5649 = vld [vmem:[#allocation2 + $0x120] sm:$0xff]
      %v5650 = vld [vmem:[#allocation2 + $0x128] sm:$0xff]
      %5687 = vrot.lane.b32.xlu0 %v5578, 127
      %v5688 = vpop.permute.xlu0 %5687
      %5689 = vrot.lane.b32.xlu0 %v5579, 127
      %v5690 = vpop.permute.xlu0 %5689
      %5691 = vrot.lane.b32.xlu0 %v5580, 127
      %v5692 = vpop.permute.xlu0 %5691
      %5693 = vrot.lane.b32.xlu0 %v5581, 127
      %v5694 = vpop.permute.xlu0 %5693
      %5695 = vrot.lane.b32.xlu0 %v5582, 127
      %v5696 = vpop.permute.xlu0 %5695
      %5697 = vrot.lane.b32.xlu0 %v5583, 127
      %v5698 = vpop.permute.xlu0 %5697
      %5699 = vrot.lane.b32.xlu0 %v5584, 127
      %v5700 = vpop.permute.xlu0 %5699
      %5701 = vrot.lane.b32.xlu0 %v5585, 127
      %v5702 = vpop.permute.xlu0 %5701
      %5703 = vrot.lane.b32.xlu0 %v5586, 127
      %v5704 = vpop.permute.xlu0 %5703
      %5705 = vrot.lane.b32.xlu0 %v5587, 127
      %v5706 = vpop.permute.xlu0 %5705
      %5707 = vrot.lane.b32.xlu0 %v5588, 127
      %v5708 = vpop.permute.xlu0 %5707
      %5709 = vrot.lane.b32.xlu0 %v5589, 127
      %v5710 = vpop.permute.xlu0 %5709
      %5711 = vrot.lane.b32.xlu0 %v5590, 127
      %v5712 = vpop.permute.xlu0 %5711
      %5713 = vrot.lane.b32.xlu0 %v5591, 127
      %v5714 = vpop.permute.xlu0 %5713
      %5715 = vrot.lane.b32.xlu0 %v5592, 127
      %v5716 = vpop.permute.xlu0 %5715
      %5717 = vrot.lane.b32.xlu0 %v5593, 127
      %v5718 = vpop.permute.xlu0 %5717
      %5719 = vrot.lane.b32.xlu0 %v5594, 127
      %v5720 = vpop.permute.xlu0 %5719
      %5721 = vrot.lane.b32.xlu0 %v5595, 127
      %v5722 = vpop.permute.xlu0 %5721
      %5723 = vrot.lane.b32.xlu0 %v5596, 127
      %v5724 = vpop.permute.xlu0 %5723
      %5725 = vrot.lane.b32.xlu0 %v5597, 127
      %v5726 = vpop.permute.xlu0 %5725
      %5727 = vrot.lane.b32.xlu0 %v5598, 127
      %v5728 = vpop.permute.xlu0 %5727
      %5729 = vrot.lane.b32.xlu0 %v5599, 127
      %v5730 = vpop.permute.xlu0 %5729
      %5731 = vrot.lane.b32.xlu0 %v5600, 127
      %v5732 = vpop.permute.xlu0 %5731
      %5733 = vrot.lane.b32.xlu0 %v5601, 127
      %v5734 = vpop.permute.xlu0 %5733
      %5735 = vrot.lane.b32.xlu0 %v5602, 127
      %v5736 = vpop.permute.xlu0 %5735
      %5737 = vrot.lane.b32.xlu0 %v5603, 127
      %v5738 = vpop.permute.xlu0 %5737
      %5739 = vrot.lane.b32.xlu0 %v5604, 127
      %v5740 = vpop.permute.xlu0 %5739
      %5741 = vrot.lane.b32.xlu0 %v5605, 127
      %v5742 = vpop.permute.xlu0 %5741
      %5743 = vrot.lane.b32.xlu0 %v5606, 127
      %v5744 = vpop.permute.xlu0 %5743
      %5745 = vrot.lane.b32.xlu0 %v5607, 127
      %v5746 = vpop.permute.xlu0 %5745
      %5747 = vrot.lane.b32.xlu0 %v5608, 127
      %v5748 = vpop.permute.xlu0 %5747
      %5749 = vrot.lane.b32.xlu0 %v5609, 127
      %v5750 = vpop.permute.xlu0 %5749
      %5751 = vrot.lane.b32.xlu0 %v5610, 127
      %v5752 = vpop.permute.xlu0 %5751
      %5753 = vrot.lane.b32.xlu0 %v5611, 127
      %v5754 = vpop.permute.xlu0 %5753
      %5755 = vrot.lane.b32.xlu0 %v5612, 127
      %v5756 = vpop.permute.xlu0 %5755
      %5757 = vrot.lane.b32.xlu0 %v5613, 127
      %v5758 = vpop.permute.xlu0 %5757
      %v5759 = vsel %vm477, %v5688, %v5690
      %v5760 = vsel %vm477, %v5690, %v5692
      %v5761 = vsel %vm477, %v5692, %v5694
      %v5762 = vsel %vm477, %v5694, %v5696
      %v5763 = vsel %vm477, %v5696, %v5698
      %v5764 = vsel %vm477, %v5698, %v5700
      %v5765 = vsel %vm477, %v5700, %v5702
      %v5766 = vsel %vm477, %v5702, %v5704
      %v5767 = vsel %vm477, %v5704, %v5706
      %v5768 = vsel %vm477, %v5706, %v5708
      %v5769 = vsel %vm477, %v5708, %v5710
      %v5770 = vsel %vm477, %v5710, %v5712
      %v5771 = vsel %vm477, %v5712, %v5714
      %v5772 = vsel %vm477, %v5714, %v5716
      %v5773 = vsel %vm477, %v5716, %v5718
      %v5774 = vsel %vm477, %v5718, %v5720
      %v5775 = vsel %vm477, %v5720, %v5722
      %v5776 = vsel %vm477, %v5722, %v5724
      %v5777 = vsel %vm477, %v5724, %v5726
      %v5778 = vsel %vm477, %v5726, %v5728
      %v5779 = vsel %vm477, %v5728, %v5730
      %v5780 = vsel %vm477, %v5730, %v5732
      %v5781 = vsel %vm477, %v5732, %v5734
      %v5782 = vsel %vm477, %v5734, %v5736
      %v5783 = vsel %vm477, %v5736, %v5738
      %v5784 = vsel %vm477, %v5738, %v5740
      %v5785 = vsel %vm477, %v5740, %v5742
      %v5786 = vsel %vm477, %v5742, %v5744
      %v5787 = vsel %vm477, %v5744, %v5746
      %v5788 = vsel %vm477, %v5746, %v5748
      %v5789 = vsel %vm477, %v5748, %v5750
      %v5790 = vsel %vm477, %v5750, %v5752
      %v5791 = vsel %vm477, %v5752, %v5754
      %v5792 = vsel %vm477, %v5754, %v5756
      %v5793 = vsel %vm477, %v5756, %v5758
      %5831 = vrot.lane.b32.xlu0 %v5614, 126
      %v5832 = vpop.permute.xlu0 %5831
      %5833 = vrot.lane.b32.xlu0 %v5615, 126
      %v5834 = vpop.permute.xlu0 %5833
      %5835 = vrot.lane.b32.xlu0 %v5616, 126
      %v5836 = vpop.permute.xlu0 %5835
      %5837 = vrot.lane.b32.xlu0 %v5617, 126
      %v5838 = vpop.permute.xlu0 %5837
      %5839 = vrot.lane.b32.xlu0 %v5618, 126
      %v5840 = vpop.permute.xlu0 %5839
      %5841 = vrot.lane.b32.xlu0 %v5619, 126
      %v5842 = vpop.permute.xlu0 %5841
      %5843 = vrot.lane.b32.xlu0 %v5620, 126
      %v5844 = vpop.permute.xlu0 %5843
      %5845 = vrot.lane.b32.xlu0 %v5621, 126
      %v5846 = vpop.permute.xlu0 %5845
      %5847 = vrot.lane.b32.xlu0 %v5622, 126
      %v5848 = vpop.permute.xlu0 %5847
      %5849 = vrot.lane.b32.xlu0 %v5623, 126
      %v5850 = vpop.permute.xlu0 %5849
      %5851 = vrot.lane.b32.xlu0 %v5624, 126
      %v5852 = vpop.permute.xlu0 %5851
      %5853 = vrot.lane.b32.xlu0 %v5625, 126
      %v5854 = vpop.permute.xlu0 %5853
      %5855 = vrot.lane.b32.xlu0 %v5626, 126
      %v5856 = vpop.permute.xlu0 %5855
      %5857 = vrot.lane.b32.xlu0 %v5627, 126
      %v5858 = vpop.permute.xlu0 %5857
      %5859 = vrot.lane.b32.xlu0 %v5628, 126
      %v5860 = vpop.permute.xlu0 %5859
      %5861 = vrot.lane.b32.xlu0 %v5629, 126
      %v5862 = vpop.permute.xlu0 %5861
      %5863 = vrot.lane.b32.xlu0 %v5630, 126
      %v5864 = vpop.permute.xlu0 %5863
      %5865 = vrot.lane.b32.xlu0 %v5631, 126
      %v5866 = vpop.permute.xlu0 %5865
      %5867 = vrot.lane.b32.xlu0 %v5632, 126
      %v5868 = vpop.permute.xlu0 %5867
      %5869 = vrot.lane.b32.xlu0 %v5633, 126
      %v5870 = vpop.permute.xlu0 %5869
      %5871 = vrot.lane.b32.xlu0 %v5634, 126
      %v5872 = vpop.permute.xlu0 %5871
      %5873 = vrot.lane.b32.xlu0 %v5635, 126
      %v5874 = vpop.permute.xlu0 %5873
      %5875 = vrot.lane.b32.xlu0 %v5636, 126
      %v5876 = vpop.permute.xlu0 %5875
      %5877 = vrot.lane.b32.xlu0 %v5637, 126
      %v5878 = vpop.permute.xlu0 %5877
      %5879 = vrot.lane.b32.xlu0 %v5638, 126
      %v5880 = vpop.permute.xlu0 %5879
      %5881 = vrot.lane.b32.xlu0 %v5639, 126
      %v5882 = vpop.permute.xlu0 %5881
      %5883 = vrot.lane.b32.xlu0 %v5640, 126
      %v5884 = vpop.permute.xlu0 %5883
      %5885 = vrot.lane.b32.xlu0 %v5641, 126
      %v5886 = vpop.permute.xlu0 %5885
      %5887 = vrot.lane.b32.xlu0 %v5642, 126
      %v5888 = vpop.permute.xlu0 %5887
      %5889 = vrot.lane.b32.xlu0 %v5643, 126
      %v5890 = vpop.permute.xlu0 %5889
      %5891 = vrot.lane.b32.xlu0 %v5644, 126
      %v5892 = vpop.permute.xlu0 %5891
      %5893 = vrot.lane.b32.xlu0 %v5645, 126
      %v5894 = vpop.permute.xlu0 %5893
      %5895 = vrot.lane.b32.xlu0 %v5646, 126
      %v5896 = vpop.permute.xlu0 %5895
      %5897 = vrot.lane.b32.xlu0 %v5647, 126
      %v5898 = vpop.permute.xlu0 %5897
      %5899 = vrot.lane.b32.xlu0 %v5648, 126
      %v5900 = vpop.permute.xlu0 %5899
      %5901 = vrot.lane.b32.xlu0 %v5649, 126
      %v5902 = vpop.permute.xlu0 %5901
      %5903 = vrot.lane.b32.xlu0 %v5650, 126
      %v5904 = vpop.permute.xlu0 %5903
      %v5905 = vsel %vm624, %v5832, %v5834
      %v5906 = vsel %vm624, %v5834, %v5836
      %v5907 = vsel %vm624, %v5836, %v5838
      %v5908 = vsel %vm624, %v5838, %v5840
      %v5909 = vsel %vm624, %v5840, %v5842
      %v5910 = vsel %vm624, %v5842, %v5844
      %v5911 = vsel %vm624, %v5844, %v5846
      %v5912 = vsel %vm624, %v5846, %v5848
      %v5913 = vsel %vm624, %v5848, %v5850
      %v5914 = vsel %vm624, %v5850, %v5852
      %v5915 = vsel %vm624, %v5852, %v5854
      %v5916 = vsel %vm624, %v5854, %v5856
      %v5917 = vsel %vm624, %v5856, %v5858
      %v5918 = vsel %vm624, %v5858, %v5860
      %v5919 = vsel %vm624, %v5860, %v5862
      %v5920 = vsel %vm624, %v5862, %v5864
      %v5921 = vsel %vm624, %v5864, %v5866
      %v5922 = vsel %vm624, %v5866, %v5868
      %v5923 = vsel %vm624, %v5868, %v5870
      %v5924 = vsel %vm624, %v5870, %v5872
      %v5925 = vsel %vm624, %v5872, %v5874
      %v5926 = vsel %vm624, %v5874, %v5876
      %v5927 = vsel %vm624, %v5876, %v5878
      %v5928 = vsel %vm624, %v5878, %v5880
      %v5929 = vsel %vm624, %v5880, %v5882
      %v5930 = vsel %vm624, %v5882, %v5884
      %v5931 = vsel %vm624, %v5884, %v5886
      %v5932 = vsel %vm624, %v5886, %v5888
      %v5933 = vsel %vm624, %v5888, %v5890
      %v5934 = vsel %vm624, %v5890, %v5892
      %v5935 = vsel %vm624, %v5892, %v5894
      %v5936 = vsel %vm624, %v5894, %v5896
      %v5937 = vsel %vm624, %v5896, %v5898
      %v5938 = vsel %vm624, %v5898, %v5900
      %v5939 = vsel %vm624, %v5900, %v5902
      %v5940 = vsel %vm624, %v5902, %v5904
      %v5941 = vld [vmem:[%s2] sm:$0xff]
      %s5942 = scalar_lea.vmem %s2, 8
      %v5943 = vld [vmem:[%s5942] sm:$0xff]
      %5944 = vrot.lane.b32.xlu0 %v5578, 1
      %v5945 = vpop.permute.xlu0 %5944
      %5946 = vrot.lane.b32.xlu0 %v5579, 1
      %v5947 = vpop.permute.xlu0 %5946
      %5948 = vrot.lane.b32.xlu0 %v5580, 1
      %v5949 = vpop.permute.xlu0 %5948
      %5950 = vrot.lane.b32.xlu0 %v5581, 1
      %v5951 = vpop.permute.xlu0 %5950
      %5952 = vrot.lane.b32.xlu0 %v5582, 1
      %v5953 = vpop.permute.xlu0 %5952
      %5954 = vrot.lane.b32.xlu0 %v5583, 1
      %v5955 = vpop.permute.xlu0 %5954
      %5956 = vrot.lane.b32.xlu0 %v5584, 1
      %v5957 = vpop.permute.xlu0 %5956
      %5958 = vrot.lane.b32.xlu0 %v5585, 1
      %v5959 = vpop.permute.xlu0 %5958
      %5960 = vrot.lane.b32.xlu0 %v5586, 1
      %v5961 = vpop.permute.xlu0 %5960
      %5962 = vrot.lane.b32.xlu0 %v5587, 1
      %v5963 = vpop.permute.xlu0 %5962
      %5964 = vrot.lane.b32.xlu0 %v5588, 1
      %v5965 = vpop.permute.xlu0 %5964
      %5966 = vrot.lane.b32.xlu0 %v5589, 1
      %v5967 = vpop.permute.xlu0 %5966
      %5968 = vrot.lane.b32.xlu0 %v5590, 1
      %v5969 = vpop.permute.xlu0 %5968
      %5970 = vrot.lane.b32.xlu0 %v5591, 1
      %v5971 = vpop.permute.xlu0 %5970
      %5972 = vrot.lane.b32.xlu0 %v5592, 1
      %v5973 = vpop.permute.xlu0 %5972
      %5974 = vrot.lane.b32.xlu0 %v5593, 1
      %v5975 = vpop.permute.xlu0 %5974
      %5976 = vrot.lane.b32.xlu0 %v5594, 1
      %v5977 = vpop.permute.xlu0 %5976
      %5978 = vrot.lane.b32.xlu0 %v5595, 1
      %v5979 = vpop.permute.xlu0 %5978
      %5980 = vrot.lane.b32.xlu0 %v5596, 1
      %v5981 = vpop.permute.xlu0 %5980
      %5982 = vrot.lane.b32.xlu0 %v5597, 1
      %v5983 = vpop.permute.xlu0 %5982
      %5984 = vrot.lane.b32.xlu0 %v5598, 1
      %v5985 = vpop.permute.xlu0 %5984
      %5986 = vrot.lane.b32.xlu0 %v5599, 1
      %v5987 = vpop.permute.xlu0 %5986
      %5988 = vrot.lane.b32.xlu0 %v5600, 1
      %v5989 = vpop.permute.xlu0 %5988
      %5990 = vrot.lane.b32.xlu0 %v5601, 1
      %v5991 = vpop.permute.xlu0 %5990
      %5992 = vrot.lane.b32.xlu0 %v5602, 1
      %v5993 = vpop.permute.xlu0 %5992
      %5994 = vrot.lane.b32.xlu0 %v5603, 1
      %v5995 = vpop.permute.xlu0 %5994
      %5996 = vrot.lane.b32.xlu0 %v5604, 1
      %v5997 = vpop.permute.xlu0 %5996
      %5998 = vrot.lane.b32.xlu0 %v5605, 1
      %v5999 = vpop.permute.xlu0 %5998
      %6000 = vrot.lane.b32.xlu0 %v5606, 1
      %v6001 = vpop.permute.xlu0 %6000
      %6002 = vrot.lane.b32.xlu0 %v5607, 1
      %v6003 = vpop.permute.xlu0 %6002
      %6004 = vrot.lane.b32.xlu0 %v5608, 1
      %v6005 = vpop.permute.xlu0 %6004
      %6006 = vrot.lane.b32.xlu0 %v5609, 1
      %v6007 = vpop.permute.xlu0 %6006
      %6008 = vrot.lane.b32.xlu0 %v5610, 1
      %v6009 = vpop.permute.xlu0 %6008
      %6010 = vrot.lane.b32.xlu0 %v5611, 1
      %v6011 = vpop.permute.xlu0 %6010
      %6012 = vrot.lane.b32.xlu0 %v5612, 1
      %v6013 = vpop.permute.xlu0 %6012
      %6014 = vrot.lane.b32.xlu0 %v5759, 1
      %v6015 = vpop.permute.xlu0 %6014
      %6016 = vrot.lane.b32.xlu0 %v5760, 1
      %v6017 = vpop.permute.xlu0 %6016
      %6018 = vrot.lane.b32.xlu0 %v5761, 1
      %v6019 = vpop.permute.xlu0 %6018
      %6020 = vrot.lane.b32.xlu0 %v5762, 1
      %v6021 = vpop.permute.xlu0 %6020
      %6022 = vrot.lane.b32.xlu0 %v5763, 1
      %v6023 = vpop.permute.xlu0 %6022
      %6024 = vrot.lane.b32.xlu0 %v5764, 1
      %v6025 = vpop.permute.xlu0 %6024
      %6026 = vrot.lane.b32.xlu0 %v5765, 1
      %v6027 = vpop.permute.xlu0 %6026
      %6028 = vrot.lane.b32.xlu0 %v5766, 1
      %v6029 = vpop.permute.xlu0 %6028
      %6030 = vrot.lane.b32.xlu0 %v5767, 1
      %v6031 = vpop.permute.xlu0 %6030
      %6032 = vrot.lane.b32.xlu0 %v5768, 1
      %v6033 = vpop.permute.xlu0 %6032
      %6034 = vrot.lane.b32.xlu0 %v5769, 1
      %v6035 = vpop.permute.xlu0 %6034
      %6036 = vrot.lane.b32.xlu0 %v5770, 1
      %v6037 = vpop.permute.xlu0 %6036
      %6038 = vrot.lane.b32.xlu0 %v5771, 1
      %v6039 = vpop.permute.xlu0 %6038
      %6040 = vrot.lane.b32.xlu0 %v5772, 1
      %v6041 = vpop.permute.xlu0 %6040
      %6042 = vrot.lane.b32.xlu0 %v5773, 1
      %v6043 = vpop.permute.xlu0 %6042
      %6044 = vrot.lane.b32.xlu0 %v5774, 1
      %v6045 = vpop.permute.xlu0 %6044
      %6046 = vrot.lane.b32.xlu0 %v5775, 1
      %v6047 = vpop.permute.xlu0 %6046
      %6048 = vrot.lane.b32.xlu0 %v5776, 1
      %v6049 = vpop.permute.xlu0 %6048
      %6050 = vrot.lane.b32.xlu0 %v5777, 1
      %v6051 = vpop.permute.xlu0 %6050
      %6052 = vrot.lane.b32.xlu0 %v5778, 1
      %v6053 = vpop.permute.xlu0 %6052
      %6054 = vrot.lane.b32.xlu0 %v5779, 1
      %v6055 = vpop.permute.xlu0 %6054
      %6056 = vrot.lane.b32.xlu0 %v5780, 1
      %v6057 = vpop.permute.xlu0 %6056
      %6058 = vrot.lane.b32.xlu0 %v5781, 1
      %v6059 = vpop.permute.xlu0 %6058
      %6060 = vrot.lane.b32.xlu0 %v5782, 1
      %v6061 = vpop.permute.xlu0 %6060
      %6062 = vrot.lane.b32.xlu0 %v5783, 1
      %v6063 = vpop.permute.xlu0 %6062
      %6064 = vrot.lane.b32.xlu0 %v5784, 1
      %v6065 = vpop.permute.xlu0 %6064
      %6066 = vrot.lane.b32.xlu0 %v5785, 1
      %v6067 = vpop.permute.xlu0 %6066
      %6068 = vrot.lane.b32.xlu0 %v5786, 1
      %v6069 = vpop.permute.xlu0 %6068
      %6070 = vrot.lane.b32.xlu0 %v5787, 1
      %v6071 = vpop.permute.xlu0 %6070
      %6072 = vrot.lane.b32.xlu0 %v5788, 1
      %v6073 = vpop.permute.xlu0 %6072
      %6074 = vrot.lane.b32.xlu0 %v5789, 1
      %v6075 = vpop.permute.xlu0 %6074
      %6076 = vrot.lane.b32.xlu0 %v5790, 1
      %v6077 = vpop.permute.xlu0 %6076
      %6078 = vrot.lane.b32.xlu0 %v5791, 1
      %v6079 = vpop.permute.xlu0 %6078
      %6080 = vrot.lane.b32.xlu0 %v5792, 1
      %v6081 = vpop.permute.xlu0 %6080
      %6082 = vrot.lane.b32.xlu0 %v5793, 1
      %v6083 = vpop.permute.xlu0 %6082
      %6084 = vrot.lane.b32.xlu0 %v5905, 1
      %v6085 = vpop.permute.xlu0 %6084
      %6086 = vrot.lane.b32.xlu0 %v5906, 1
      %v6087 = vpop.permute.xlu0 %6086
      %6088 = vrot.lane.b32.xlu0 %v5907, 1
      %v6089 = vpop.permute.xlu0 %6088
      %6090 = vrot.lane.b32.xlu0 %v5908, 1
      %v6091 = vpop.permute.xlu0 %6090
      %6092 = vrot.lane.b32.xlu0 %v5909, 1
      %v6093 = vpop.permute.xlu0 %6092
      %6094 = vrot.lane.b32.xlu0 %v5910, 1
      %v6095 = vpop.permute.xlu0 %6094
      %6096 = vrot.lane.b32.xlu0 %v5911, 1
      %v6097 = vpop.permute.xlu0 %6096
      %6098 = vrot.lane.b32.xlu0 %v5912, 1
      %v6099 = vpop.permute.xlu0 %6098
      %6100 = vrot.lane.b32.xlu0 %v5913, 1
      %v6101 = vpop.permute.xlu0 %6100
      %6102 = vrot.lane.b32.xlu0 %v5914, 1
      %v6103 = vpop.permute.xlu0 %6102
      %6104 = vrot.lane.b32.xlu0 %v5915, 1
      %v6105 = vpop.permute.xlu0 %6104
      %6106 = vrot.lane.b32.xlu0 %v5916, 1
      %v6107 = vpop.permute.xlu0 %6106
      %6108 = vrot.lane.b32.xlu0 %v5917, 1
      %v6109 = vpop.permute.xlu0 %6108
      %6110 = vrot.lane.b32.xlu0 %v5918, 1
      %v6111 = vpop.permute.xlu0 %6110
      %6112 = vrot.lane.b32.xlu0 %v5919, 1
      %v6113 = vpop.permute.xlu0 %6112
      %6114 = vrot.lane.b32.xlu0 %v5920, 1
      %v6115 = vpop.permute.xlu0 %6114
      %6116 = vrot.lane.b32.xlu0 %v5921, 1
      %v6117 = vpop.permute.xlu0 %6116
      %6118 = vrot.lane.b32.xlu0 %v5922, 1
      %v6119 = vpop.permute.xlu0 %6118
      %6120 = vrot.lane.b32.xlu0 %v5923, 1
      %v6121 = vpop.permute.xlu0 %6120
      %6122 = vrot.lane.b32.xlu0 %v5924, 1
      %v6123 = vpop.permute.xlu0 %6122
      %6124 = vrot.lane.b32.xlu0 %v5925, 1
      %v6125 = vpop.permute.xlu0 %6124
      %6126 = vrot.lane.b32.xlu0 %v5926, 1
      %v6127 = vpop.permute.xlu0 %6126
      %6128 = vrot.lane.b32.xlu0 %v5927, 1
      %v6129 = vpop.permute.xlu0 %6128
      %6130 = vrot.lane.b32.xlu0 %v5928, 1
      %v6131 = vpop.permute.xlu0 %6130
      %6132 = vrot.lane.b32.xlu0 %v5929, 1
      %v6133 = vpop.permute.xlu0 %6132
      %6134 = vrot.lane.b32.xlu0 %v5930, 1
      %v6135 = vpop.permute.xlu0 %6134
      %6136 = vrot.lane.b32.xlu0 %v5931, 1
      %v6137 = vpop.permute.xlu0 %6136
      %6138 = vrot.lane.b32.xlu0 %v5932, 1
      %v6139 = vpop.permute.xlu0 %6138
      %6140 = vrot.lane.b32.xlu0 %v5933, 1
      %v6141 = vpop.permute.xlu0 %6140
      %6142 = vrot.lane.b32.xlu0 %v5934, 1
      %v6143 = vpop.permute.xlu0 %6142
      %6144 = vrot.lane.b32.xlu0 %v5935, 1
      %v6145 = vpop.permute.xlu0 %6144
      %6146 = vrot.lane.b32.xlu0 %v5936, 1
      %v6147 = vpop.permute.xlu0 %6146
      %6148 = vrot.lane.b32.xlu0 %v5937, 1
      %v6149 = vpop.permute.xlu0 %6148
      %6150 = vrot.lane.b32.xlu0 %v5938, 1
      %v6151 = vpop.permute.xlu0 %6150
      %6152 = vrot.lane.b32.xlu0 %v5939, 1
      %v6153 = vpop.permute.xlu0 %6152
      %v6154 = vsel %vm874, %v5945, %v5947
      %v6155 = vsel %vm874, %v5947, %v5949
      %v6156 = vsel %vm874, %v5949, %v5951
      %v6157 = vsel %vm874, %v5951, %v5953
      %v6158 = vsel %vm874, %v5953, %v5955
      %v6159 = vsel %vm874, %v5955, %v5957
      %v6160 = vsel %vm874, %v5957, %v5959
      %v6161 = vsel %vm874, %v5959, %v5961
      %v6162 = vsel %vm874, %v5961, %v5963
      %v6163 = vsel %vm874, %v5963, %v5965
      %v6164 = vsel %vm874, %v5965, %v5967
      %v6165 = vsel %vm874, %v5967, %v5969
      %v6166 = vsel %vm874, %v5969, %v5971
      %v6167 = vsel %vm874, %v5971, %v5973
      %v6168 = vsel %vm874, %v5973, %v5975
      %v6169 = vsel %vm874, %v5975, %v5977
      %v6170 = vsel %vm874, %v5977, %v5979
      %v6171 = vsel %vm874, %v5979, %v5981
      %v6172 = vsel %vm874, %v5981, %v5983
      %v6173 = vsel %vm874, %v5983, %v5985
      %v6174 = vsel %vm874, %v5985, %v5987
      %v6175 = vsel %vm874, %v5987, %v5989
      %v6176 = vsel %vm874, %v5989, %v5991
      %v6177 = vsel %vm874, %v5991, %v5993
      %v6178 = vsel %vm874, %v5993, %v5995
      %v6179 = vsel %vm874, %v5995, %v5997
      %v6180 = vsel %vm874, %v5997, %v5999
      %v6181 = vsel %vm874, %v5999, %v6001
      %v6182 = vsel %vm874, %v6001, %v6003
      %v6183 = vsel %vm874, %v6003, %v6005
      %v6184 = vsel %vm874, %v6005, %v6007
      %v6185 = vsel %vm874, %v6007, %v6009
      %v6186 = vsel %vm874, %v6009, %v6011
      %v6187 = vsel %vm874, %v6011, %v6013
      %v6188 = vsel %vm874, %v6015, %v6017
      %v6189 = vsel %vm874, %v6017, %v6019
      %v6190 = vsel %vm874, %v6019, %v6021
      %v6191 = vsel %vm874, %v6021, %v6023
      %v6192 = vsel %vm874, %v6023, %v6025
      %v6193 = vsel %vm874, %v6025, %v6027
      %v6194 = vsel %vm874, %v6027, %v6029
      %v6195 = vsel %vm874, %v6029, %v6031
      %v6196 = vsel %vm874, %v6031, %v6033
      %v6197 = vsel %vm874, %v6033, %v6035
      %v6198 = vsel %vm874, %v6035, %v6037
      %v6199 = vsel %vm874, %v6037, %v6039
      %v6200 = vsel %vm874, %v6039, %v6041
      %v6201 = vsel %vm874, %v6041, %v6043
      %v6202 = vsel %vm874, %v6043, %v6045
      %v6203 = vsel %vm874, %v6045, %v6047
      %v6204 = vsel %vm874, %v6047, %v6049
      %v6205 = vsel %vm874, %v6049, %v6051
      %v6206 = vsel %vm874, %v6051, %v6053
      %v6207 = vsel %vm874, %v6053, %v6055
      %v6208 = vsel %vm874, %v6055, %v6057
      %v6209 = vsel %vm874, %v6057, %v6059
      %v6210 = vsel %vm874, %v6059, %v6061
      %v6211 = vsel %vm874, %v6061, %v6063
      %v6212 = vsel %vm874, %v6063, %v6065
      %v6213 = vsel %vm874, %v6065, %v6067
      %v6214 = vsel %vm874, %v6067, %v6069
      %v6215 = vsel %vm874, %v6069, %v6071
      %v6216 = vsel %vm874, %v6071, %v6073
      %v6217 = vsel %vm874, %v6073, %v6075
      %v6218 = vsel %vm874, %v6075, %v6077
      %v6219 = vsel %vm874, %v6077, %v6079
      %v6220 = vsel %vm874, %v6079, %v6081
      %v6221 = vsel %vm874, %v6081, %v6083
      %v6222 = vsel %vm874, %v6085, %v6087
      %v6223 = vsel %vm874, %v6087, %v6089
      %v6224 = vsel %vm874, %v6089, %v6091
      %v6225 = vsel %vm874, %v6091, %v6093
      %v6226 = vsel %vm874, %v6093, %v6095
      %v6227 = vsel %vm874, %v6095, %v6097
      %v6228 = vsel %vm874, %v6097, %v6099
      %v6229 = vsel %vm874, %v6099, %v6101
      %v6230 = vsel %vm874, %v6101, %v6103
      %v6231 = vsel %vm874, %v6103, %v6105
      %v6232 = vsel %vm874, %v6105, %v6107
      %v6233 = vsel %vm874, %v6107, %v6109
      %v6234 = vsel %vm874, %v6109, %v6111
      %v6235 = vsel %vm874, %v6111, %v6113
      %v6236 = vsel %vm874, %v6113, %v6115
      %v6237 = vsel %vm874, %v6115, %v6117
      %v6238 = vsel %vm874, %v6117, %v6119
      %v6239 = vsel %vm874, %v6119, %v6121
      %v6240 = vsel %vm874, %v6121, %v6123
      %v6241 = vsel %vm874, %v6123, %v6125
      %v6242 = vsel %vm874, %v6125, %v6127
      %v6243 = vsel %vm874, %v6127, %v6129
      %v6244 = vsel %vm874, %v6129, %v6131
      %v6245 = vsel %vm874, %v6131, %v6133
      %v6246 = vsel %vm874, %v6133, %v6135
      %v6247 = vsel %vm874, %v6135, %v6137
      %v6248 = vsel %vm874, %v6137, %v6139
      %v6249 = vsel %vm874, %v6139, %v6141
      %v6250 = vsel %vm874, %v6141, %v6143
      %v6251 = vsel %vm874, %v6143, %v6145
      %v6252 = vsel %vm874, %v6145, %v6147
      %v6253 = vsel %vm874, %v6147, %v6149
      %v6254 = vsel %vm874, %v6149, %v6151
      %v6255 = vsel %vm874, %v6151, %v6153
      %v6359 = vsel %vm1079, %v5943, 0
      %6361 = vmatprep.subr.mxu0 %v6155
      %6362 = vmatpush1.msra.mxu0 %v6154
      %6363 = vmatprep.subr.mxu0 %v6189
      %6364 = vmatpush1.msra.mxu0 %v6188
      %6365 = vmatprep.subr.mxu0 %v6223
      %6366 = vmatpush1.msra.mxu0 %v6222
      %6367 = vmatprep.subr.mxu0 0.0
      %6368 = vmatpush1.msra.mxu0 0.0
      %6369 = vmatprep.subr.mxu0 0.0
      %6370 = vmatpush1.msra.mxu0 0.0
      %6371 = vmatprep.subr.mxu0 0.0
      %6372 = vmatpush1.msra.mxu0 0.0
      %6373 = vmatprep.subr.mxu0 0.0
      %6374 = vmatpush1.msra.mxu0 0.0
      %6375 = vmatprep.subr.mxu0 0.0
      %6376 = vmatpush1.msra.mxu0 0.0
      %6377 = vmatprep.subr.mxu0 0.0
      %6378 = vmatpush1.msra.mxu0 0.0
      %6379 = vmatprep.subr.mxu0 0.0
      %6380 = vmatpush1.msra.mxu0 0.0
      %6381 = vmatprep.subr.mxu0 0.0
      %6382 = vmatpush1.msra.mxu0 0.0
      %6383 = vmatprep.subr.mxu0 0.0
      %6384 = vmatpush1.msra.mxu0 0.0
      %6385 = vmatprep.subr.mxu0 0.0
      %6386 = vmatpush1.msra.mxu0 0.0
      %6387 = vmatprep.subr.mxu0 0.0
      %6388 = vmatpush1.msra.mxu0 0.0
      %6389 = vmatprep.subr.mxu0 0.0
      %6390 = vmatpush1.msra.mxu0 0.0
      %6391 = vmatprep.subr.mxu0 0.0
      %6392 = vmatpush1.msra.mxu0 0.0
      %6393 = vmatprep.subr.mxu0 0.0
      %6394 = vmatpush1.msra.mxu0 0.0
      %6395 = vmatprep.subr.mxu0 0.0
      %6396 = vmatpush1.msra.mxu0 0.0
      %6397 = vmatprep.subr.mxu0 0.0
      %6398 = vmatpush1.msra.mxu0 0.0
      %6399 = vmatprep.subr.mxu0 0.0
      %6400 = vmatpush1.msra.mxu0 0.0
      %6401 = vmatprep.subr.mxu0 0.0
      %6402 = vmatpush1.msra.mxu0 0.0
      %6403 = vmatprep.subr.mxu0 0.0
      %6404 = vmatpush1.msra.mxu0 0.0
      %6405 = vmatprep.subr.mxu0 0.0
      %6406 = vmatpush1.msra.mxu0 0.0
      %6407 = vmatprep.subr.mxu0 0.0
      %6408 = vmatpush1.msra.mxu0 0.0
      %6409 = vmatprep.subr.mxu0 0.0
      %6410 = vmatpush1.msra.mxu0 0.0
      %6411 = vmatprep.subr.mxu0 0.0
      %6412 = vmatpush1.msra.mxu0 0.0
      %6413 = vmatprep.subr.mxu0 0.0
      %6414 = vmatpush1.msra.mxu0 0.0
      %6415 = vmatprep.subr.mxu0 0.0
      %6416 = vmatpush1.msra.mxu0 0.0
      %6417 = vmatprep.subr.mxu0 0.0
      %6418 = vmatpush1.msra.mxu0 0.0
      %6419 = vmatprep.subr.mxu0 0.0
      %6420 = vmatpush1.msra.mxu0 0.0
      %6421 = vmatprep.subr.mxu0 0.0
      %6422 = vmatpush1.msra.mxu0 0.0
      %6423 = vmatprep.subr.mxu0 0.0
      %6424 = vmatpush1.msra.mxu0 0.0
      %6425 = vmatprep.mubr.f32.mxu0 0.0
      %6426 = vmatmul.mubr.f32.gmra.mrb[0].mxu0 %v6359
      %v6427 = vpop.f32.mrb[0].mxu0
      %v6428 = vadd.f32 0.0, %v6427
      %v6429 = vpop.f32.mrb[0].mxu0
      %v6430 = vadd.f32 0.0, %v6429
      %6431 = vdwg.mxu0
      %6432 = vmatprep.subr.mxu0 %v6157
      %6433 = vmatpush1.msra.mxu0 %v6156
      %6434 = vmatprep.subr.mxu0 %v6191
      %6435 = vmatpush1.msra.mxu0 %v6190
      %6436 = vmatprep.subr.mxu0 %v6225
      %6437 = vmatpush1.msra.mxu0 %v6224
      %6438 = vmatprep.subr.mxu0 0.0
      %6439 = vmatpush1.msra.mxu0 0.0
      %6440 = vmatprep.subr.mxu0 0.0
      %6441 = vmatpush1.msra.mxu0 0.0
      %6442 = vmatprep.subr.mxu0 0.0
      %6443 = vmatpush1.msra.mxu0 0.0
      %6444 = vmatprep.subr.mxu0 0.0
      %6445 = vmatpush1.msra.mxu0 0.0
      %6446 = vmatprep.subr.mxu0 0.0
      %6447 = vmatpush1.msra.mxu0 0.0
      %6448 = vmatprep.subr.mxu0 0.0
      %6449 = vmatpush1.msra.mxu0 0.0
      %6450 = vmatprep.subr.mxu0 0.0
      %6451 = vmatpush1.msra.mxu0 0.0
      %6452 = vmatprep.subr.mxu0 0.0
      %6453 = vmatpush1.msra.mxu0 0.0
      %6454 = vmatprep.subr.mxu0 0.0
      %6455 = vmatpush1.msra.mxu0 0.0
      %6456 = vmatprep.subr.mxu0 0.0
      %6457 = vmatpush1.msra.mxu0 0.0
      %6458 = vmatprep.subr.mxu0 0.0
      %6459 = vmatpush1.msra.mxu0 0.0
      %6460 = vmatprep.subr.mxu0 0.0
      %6461 = vmatpush1.msra.mxu0 0.0
      %6462 = vmatprep.subr.mxu0 0.0
      %6463 = vmatpush1.msra.mxu0 0.0
      %6464 = vmatprep.subr.mxu0 0.0
      %6465 = vmatpush1.msra.mxu0 0.0
      %6466 = vmatprep.subr.mxu0 0.0
      %6467 = vmatpush1.msra.mxu0 0.0
      %6468 = vmatprep.subr.mxu0 0.0
      %6469 = vmatpush1.msra.mxu0 0.0
      %6470 = vmatprep.subr.mxu0 0.0
      %6471 = vmatpush1.msra.mxu0 0.0
      %6472 = vmatprep.subr.mxu0 0.0
      %6473 = vmatpush1.msra.mxu0 0.0
      %6474 = vmatprep.subr.mxu0 0.0
      %6475 = vmatpush1.msra.mxu0 0.0
      %6476 = vmatprep.subr.mxu0 0.0
      %6477 = vmatpush1.msra.mxu0 0.0
      %6478 = vmatprep.subr.mxu0 0.0
      %6479 = vmatpush1.msra.mxu0 0.0
      %6480 = vmatprep.subr.mxu0 0.0
      %6481 = vmatpush1.msra.mxu0 0.0
      %6482 = vmatprep.subr.mxu0 0.0
      %6483 = vmatpush1.msra.mxu0 0.0
      %6484 = vmatprep.subr.mxu0 0.0
      %6485 = vmatpush1.msra.mxu0 0.0
      %6486 = vmatprep.subr.mxu0 0.0
      %6487 = vmatpush1.msra.mxu0 0.0
      %6488 = vmatprep.subr.mxu0 0.0
      %6489 = vmatpush1.msra.mxu0 0.0
      %6490 = vmatprep.subr.mxu0 0.0
      %6491 = vmatpush1.msra.mxu0 0.0
      %6492 = vmatprep.subr.mxu0 0.0
      %6493 = vmatpush1.msra.mxu0 0.0
      %6494 = vmatprep.subr.mxu0 0.0
      %6495 = vmatpush1.msra.mxu0 0.0
      %6496 = vmatprep.mubr.f32.mxu0 0.0
      %6497 = vmatmul.mubr.f32.gmra.mrb[0].mxu0 %v6359
      %v6498 = vpop.f32.mrb[0].mxu0
      %v6499 = vadd.f32 0.0, %v6498
      %v6500 = vpop.f32.mrb[0].mxu0
      %v6501 = vadd.f32 0.0, %v6500
      %6502 = vdwg.mxu0
      %6503 = vmatprep.subr.mxu0 %v6159
      %6504 = vmatpush1.msra.mxu0 %v6158
      %6505 = vmatprep.subr.mxu0 %v6193
      %6506 = vmatpush1.msra.mxu0 %v6192
      %6507 = vmatprep.subr.mxu0 %v6227
      %6508 = vmatpush1.msra.mxu0 %v6226
      %6509 = vmatprep.subr.mxu0 0.0
      %6510 = vmatpush1.msra.mxu0 0.0
      %6511 = vmatprep.subr.mxu0 0.0
      %6512 = vmatpush1.msra.mxu0 0.0
      %6513 = vmatprep.subr.mxu0 0.0
      %6514 = vmatpush1.msra.mxu0 0.0
      %6515 = vmatprep.subr.mxu0 0.0
      %6516 = vmatpush1.msra.mxu0 0.0
      %6517 = vmatprep.subr.mxu0 0.0
      %6518 = vmatpush1.msra.mxu0 0.0
      %6519 = vmatprep.subr.mxu0 0.0
      %6520 = vmatpush1.msra.mxu0 0.0
      %6521 = vmatprep.subr.mxu0 0.0
      %6522 = vmatpush1.msra.mxu0 0.0
      %6523 = vmatprep.subr.mxu0 0.0
      %6524 = vmatpush1.msra.mxu0 0.0
      %6525 = vmatprep.subr.mxu0 0.0
      %6526 = vmatpush1.msra.mxu0 0.0
      %6527 = vmatprep.subr.mxu0 0.0
      %6528 = vmatpush1.msra.mxu0 0.0
      %6529 = vmatprep.subr.mxu0 0.0
      %6530 = vmatpush1.msra.mxu0 0.0
      %6531 = vmatprep.subr.mxu0 0.0
      %6532 = vmatpush1.msra.mxu0 0.0
      %6533 = vmatprep.subr.mxu0 0.0
      %6534 = vmatpush1.msra.mxu0 0.0
      %6535 = vmatprep.subr.mxu0 0.0
      %6536 = vmatpush1.msra.mxu0 0.0
      %6537 = vmatprep.subr.mxu0 0.0
      %6538 = vmatpush1.msra.mxu0 0.0
      %6539 = vmatprep.subr.mxu0 0.0
      %6540 = vmatpush1.msra.mxu0 0.0
      %6541 = vmatprep.subr.mxu0 0.0
      %6542 = vmatpush1.msra.mxu0 0.0
      %6543 = vmatprep.subr.mxu0 0.0
      %6544 = vmatpush1.msra.mxu0 0.0
      %6545 = vmatprep.subr.mxu0 0.0
      %6546 = vmatpush1.msra.mxu0 0.0
      %6547 = vmatprep.subr.mxu0 0.0
      %6548 = vmatpush1.msra.mxu0 0.0
      %6549 = vmatprep.subr.mxu0 0.0
      %6550 = vmatpush1.msra.mxu0 0.0
      %6551 = vmatprep.subr.mxu0 0.0
      %6552 = vmatpush1.msra.mxu0 0.0
      %6553 = vmatprep.subr.mxu0 0.0
      %6554 = vmatpush1.msra.mxu0 0.0
      %6555 = vmatprep.subr.mxu0 0.0
      %6556 = vmatpush1.msra.mxu0 0.0
      %6557 = vmatprep.subr.mxu0 0.0
      %6558 = vmatpush1.msra.mxu0 0.0
      %6559 = vmatprep.subr.mxu0 0.0
      %6560 = vmatpush1.msra.mxu0 0.0
      %6561 = vmatprep.subr.mxu0 0.0
      %6562 = vmatpush1.msra.mxu0 0.0
      %6563 = vmatprep.subr.mxu0 0.0
      %6564 = vmatpush1.msra.mxu0 0.0
      %6565 = vmatprep.subr.mxu0 0.0
      %6566 = vmatpush1.msra.mxu0 0.0
      %6567 = vmatprep.mubr.f32.mxu0 0.0
      %6568 = vmatmul.mubr.f32.gmra.mrb[0].mxu0 %v6359
      %v6569 = vpop.f32.mrb[0].mxu0
      %v6570 = vadd.f32 0.0, %v6569
      %v6571 = vpop.f32.mrb[0].mxu0
      %v6572 = vadd.f32 0.0, %v6571
      %6573 = vdwg.mxu0
      %6574 = vmatprep.subr.mxu0 %v6161
      %6575 = vmatpush1.msra.mxu0 %v6160
      %6576 = vmatprep.subr.mxu0 %v6195
      %6577 = vmatpush1.msra.mxu0 %v6194
      %6578 = vmatprep.subr.mxu0 %v6229
      %6579 = vmatpush1.msra.mxu0 %v6228
      %6580 = vmatprep.subr.mxu0 0.0
      %6581 = vmatpush1.msra.mxu0 0.0
      %6582 = vmatprep.subr.mxu0 0.0
      %6583 = vmatpush1.msra.mxu0 0.0
      %6584 = vmatprep.subr.mxu0 0.0
      %6585 = vmatpush1.msra.mxu0 0.0
      %6586 = vmatprep.subr.mxu0 0.0
      %6587 = vmatpush1.msra.mxu0 0.0
      %6588 = vmatprep.subr.mxu0 0.0
      %6589 = vmatpush1.msra.mxu0 0.0
      %6590 = vmatprep.subr.mxu0 0.0
      %6591 = vmatpush1.msra.mxu0 0.0
      %6592 = vmatprep.subr.mxu0 0.0
      %6593 = vmatpush1.msra.mxu0 0.0
      %6594 = vmatprep.subr.mxu0 0.0
      %6595 = vmatpush1.msra.mxu0 0.0
      %6596 = vmatprep.subr.mxu0 0.0
      %6597 = vmatpush1.msra.mxu0 0.0
      %6598 = vmatprep.subr.mxu0 0.0
      %6599 = vmatpush1.msra.mxu0 0.0
      %6600 = vmatprep.subr.mxu0 0.0
      %6601 = vmatpush1.msra.mxu0 0.0
      %6602 = vmatprep.subr.mxu0 0.0
      %6603 = vmatpush1.msra.mxu0 0.0
      %6604 = vmatprep.subr.mxu0 0.0
      %6605 = vmatpush1.msra.mxu0 0.0
      %6606 = vmatprep.subr.mxu0 0.0
      %6607 = vmatpush1.msra.mxu0 0.0
      %6608 = vmatprep.subr.mxu0 0.0
      %6609 = vmatpush1.msra.mxu0 0.0
      %6610 = vmatprep.subr.mxu0 0.0
      %6611 = vmatpush1.msra.mxu0 0.0
      %6612 = vmatprep.subr.mxu0 0.0
      %6613 = vmatpush1.msra.mxu0 0.0
      %6614 = vmatprep.subr.mxu0 0.0
      %6615 = vmatpush1.msra.mxu0 0.0
      %6616 = vmatprep.subr.mxu0 0.0
      %6617 = vmatpush1.msra.mxu0 0.0
      %6618 = vmatprep.subr.mxu0 0.0
      %6619 = vmatpush1.msra.mxu0 0.0
      %6620 = vmatprep.subr.mxu0 0.0
      %6621 = vmatpush1.msra.mxu0 0.0
      %6622 = vmatprep.subr.mxu0 0.0
      %6623 = vmatpush1.msra.mxu0 0.0
      %6624 = vmatprep.subr.mxu0 0.0
      %6625 = vmatpush1.msra.mxu0 0.0
      %6626 = vmatprep.subr.mxu0 0.0
      %6627 = vmatpush1.msra.mxu0 0.0
      %6628 = vmatprep.subr.mxu0 0.0
      %6629 = vmatpush1.msra.mxu0 0.0
      %6630 = vmatprep.subr.mxu0 0.0
      %6631 = vmatpush1.msra.mxu0 0.0
      %6632 = vmatprep.subr.mxu0 0.0
      %6633 = vmatpush1.msra.mxu0 0.0
      %6634 = vmatprep.subr.mxu0 0.0
      %6635 = vmatpush1.msra.mxu0 0.0
      %6636 = vmatprep.subr.mxu0 0.0
      %6637 = vmatpush1.msra.mxu0 0.0
      %6638 = vmatprep.mubr.f32.mxu0 0.0
      %6639 = vmatmul.mubr.f32.gmra.mrb[0].mxu0 %v6359
      %v6640 = vpop.f32.mrb[0].mxu0
      %v6641 = vadd.f32 0.0, %v6640
      %v6642 = vpop.f32.mrb[0].mxu0
      %v6643 = vadd.f32 0.0, %v6642
      %6644 = vdwg.mxu0
      %6645 = vmatprep.subr.mxu0 %v6163
      %6646 = vmatpush1.msra.mxu0 %v6162
      %6647 = vmatprep.subr.mxu0 %v6197
      %6648 = vmatpush1.msra.mxu0 %v6196
      %6649 = vmatprep.subr.mxu0 %v6231
      %6650 = vmatpush1.msra.mxu0 %v6230
      %6651 = vmatprep.subr.mxu0 0.0
      %6652 = vmatpush1.msra.mxu0 0.0
      %6653 = vmatprep.subr.mxu0 0.0
      %6654 = vmatpush1.msra.mxu0 0.0
      %6655 = vmatprep.subr.mxu0 0.0
      %6656 = vmatpush1.msra.mxu0 0.0
      %6657 = vmatprep.subr.mxu0 0.0
      %6658 = vmatpush1.msra.mxu0 0.0
      %6659 = vmatprep.subr.mxu0 0.0
      %6660 = vmatpush1.msra.mxu0 0.0
      %6661 = vmatprep.subr.mxu0 0.0
      %6662 = vmatpush1.msra.mxu0 0.0
      %6663 = vmatprep.subr.mxu0 0.0
      %6664 = vmatpush1.msra.mxu0 0.0
      %6665 = vmatprep.subr.mxu0 0.0
      %6666 = vmatpush1.msra.mxu0 0.0
      %6667 = vmatprep.subr.mxu0 0.0
      %6668 = vmatpush1.msra.mxu0 0.0
      %6669 = vmatprep.subr.mxu0 0.0
      %6670 = vmatpush1.msra.mxu0 0.0
      %6671 = vmatprep.subr.mxu0 0.0
      %6672 = vmatpush1.msra.mxu0 0.0
      %6673 = vmatprep.subr.mxu0 0.0
      %6674 = vmatpush1.msra.mxu0 0.0
      %6675 = vmatprep.subr.mxu0 0.0
      %6676 = vmatpush1.msra.mxu0 0.0
      %6677 = vmatprep.subr.mxu0 0.0
      %6678 = vmatpush1.msra.mxu0 0.0
      %6679 = vmatprep.subr.mxu0 0.0
      %6680 = vmatpush1.msra.mxu0 0.0
      %6681 = vmatprep.subr.mxu0 0.0
      %6682 = vmatpush1.msra.mxu0 0.0
      %6683 = vmatprep.subr.mxu0 0.0
      %6684 = vmatpush1.msra.mxu0 0.0
      %6685 = vmatprep.subr.mxu0 0.0
      %6686 = vmatpush1.msra.mxu0 0.0
      %6687 = vmatprep.subr.mxu0 0.0
      %6688 = vmatpush1.msra.mxu0 0.0
      %6689 = vmatprep.subr.mxu0 0.0
      %6690 = vmatpush1.msra.mxu0 0.0
      %6691 = vmatprep.subr.mxu0 0.0
      %6692 = vmatpush1.msra.mxu0 0.0
      %6693 = vmatprep.subr.mxu0 0.0
      %6694 = vmatpush1.msra.mxu0 0.0
      %6695 = vmatprep.subr.mxu0 0.0
      %6696 = vmatpush1.msra.mxu0 0.0
      %6697 = vmatprep.subr.mxu0 0.0
      %6698 = vmatpush1.msra.mxu0 0.0
      %6699 = vmatprep.subr.mxu0 0.0
      %6700 = vmatpush1.msra.mxu0 0.0
      %6701 = vmatprep.subr.mxu0 0.0
      %6702 = vmatpush1.msra.mxu0 0.0
      %6703 = vmatprep.subr.mxu0 0.0
      %6704 = vmatpush1.msra.mxu0 0.0
      %6705 = vmatprep.subr.mxu0 0.0
      %6706 = vmatpush1.msra.mxu0 0.0
      %6707 = vmatprep.subr.mxu0 0.0
      %6708 = vmatpush1.msra.mxu0 0.0
      %6709 = vmatprep.mubr.f32.mxu0 0.0
      %6710 = vmatmul.mubr.f32.gmra.mrb[0].mxu0 %v6359
      %v6711 = vpop.f32.mrb[0].mxu0
      %v6712 = vadd.f32 0.0, %v6711
      %v6713 = vpop.f32.mrb[0].mxu0
      %v6714 = vadd.f32 0.0, %v6713
      %6715 = vdwg.mxu0
      %6716 = vmatprep.subr.mxu0 %v6165
      %6717 = vmatpush1.msra.mxu0 %v6164
      %6718 = vmatprep.subr.mxu0 %v6199
      %6719 = vmatpush1.msra.mxu0 %v6198
      %6720 = vmatprep.subr.mxu0 %v6233
      %6721 = vmatpush1.msra.mxu0 %v6232
      %6722 = vmatprep.subr.mxu0 0.0
      %6723 = vmatpush1.msra.mxu0 0.0
      %6724 = vmatprep.subr.mxu0 0.0
      %6725 = vmatpush1.msra.mxu0 0.0
      %6726 = vmatprep.subr.mxu0 0.0
      %6727 = vmatpush1.msra.mxu0 0.0
      %6728 = vmatprep.subr.mxu0 0.0
      %6729 = vmatpush1.msra.mxu0 0.0
      %6730 = vmatprep.subr.mxu0 0.0
      %6731 = vmatpush1.msra.mxu0 0.0
      %6732 = vmatprep.subr.mxu0 0.0
      %6733 = vmatpush1.msra.mxu0 0.0
      %6734 = vmatprep.subr.mxu0 0.0
      %6735 = vmatpush1.msra.mxu0 0.0
      %6736 = vmatprep.subr.mxu0 0.0
      %6737 = vmatpush1.msra.mxu0 0.0
      %6738 = vmatprep.subr.mxu0 0.0
      %6739 = vmatpush1.msra.mxu0 0.0
      %6740 = vmatprep.subr.mxu0 0.0
      %6741 = vmatpush1.msra.mxu0 0.0
      %6742 = vmatprep.subr.mxu0 0.0
      %6743 = vmatpush1.msra.mxu0 0.0
      %6744 = vmatprep.subr.mxu0 0.0
      %6745 = vmatpush1.msra.mxu0 0.0
      %6746 = vmatprep.subr.mxu0 0.0
      %6747 = vmatpush1.msra.mxu0 0.0
      %6748 = vmatprep.subr.mxu0 0.0
      %6749 = vmatpush1.msra.mxu0 0.0
      %6750 = vmatprep.subr.mxu0 0.0
      %6751 = vmatpush1.msra.mxu0 0.0
      %6752 = vmatprep.subr.mxu0 0.0
      %6753 = vmatpush1.msra.mxu0 0.0
      %6754 = vmatprep.subr.mxu0 0.0
      %6755 = vmatpush1.msra.mxu0 0.0
      %6756 = vmatprep.subr.mxu0 0.0
      %6757 = vmatpush1.msra.mxu0 0.0
      %6758 = vmatprep.subr.mxu0 0.0
      %6759 = vmatpush1.msra.mxu0 0.0
      %6760 = vmatprep.subr.mxu0 0.0
      %6761 = vmatpush1.msra.mxu0 0.0
      %6762 = vmatprep.subr.mxu0 0.0
      %6763 = vmatpush1.msra.mxu0 0.0
      %6764 = vmatprep.subr.mxu0 0.0
      %6765 = vmatpush1.msra.mxu0 0.0
      %6766 = vmatprep.subr.mxu0 0.0
      %6767 = vmatpush1.msra.mxu0 0.0
      %6768 = vmatprep.subr.mxu0 0.0
      %6769 = vmatpush1.msra.mxu0 0.0
      %6770 = vmatprep.subr.mxu0 0.0
      %6771 = vmatpush1.msra.mxu0 0.0
      %6772 = vmatprep.subr.mxu0 0.0
      %6773 = vmatpush1.msra.mxu0 0.0
      %6774 = vmatprep.subr.mxu0 0.0
      %6775 = vmatpush1.msra.mxu0 0.0
      %6776 = vmatprep.subr.mxu0 0.0
      %6777 = vmatpush1.msra.mxu0 0.0
      %6778 = vmatprep.subr.mxu0 0.0
      %6779 = vmatpush1.msra.mxu0 0.0
      %6780 = vmatprep.mubr.f32.mxu0 0.0
      %6781 = vmatmul.mubr.f32.gmra.mrb[0].mxu0 %v6359
      %v6782 = vpop.f32.mrb[0].mxu0
      %v6783 = vadd.f32 0.0, %v6782
      %v6784 = vpop.f32.mrb[0].mxu0
      %v6785 = vadd.f32 0.0, %v6784
      %6786 = vdwg.mxu0
      %6787 = vmatprep.subr.mxu0 %v6167
      %6788 = vmatpush1.msra.mxu0 %v6166
      %6789 = vmatprep.subr.mxu0 %v6201
      %6790 = vmatpush1.msra.mxu0 %v6200
      %6791 = vmatprep.subr.mxu0 %v6235
      %6792 = vmatpush1.msra.mxu0 %v6234
      %6793 = vmatprep.subr.mxu0 0.0
      %6794 = vmatpush1.msra.mxu0 0.0
      %6795 = vmatprep.subr.mxu0 0.0
      %6796 = vmatpush1.msra.mxu0 0.0
      %6797 = vmatprep.subr.mxu0 0.0
      %6798 = vmatpush1.msra.mxu0 0.0
      %6799 = vmatprep.subr.mxu0 0.0
      %6800 = vmatpush1.msra.mxu0 0.0
      %6801 = vmatprep.subr.mxu0 0.0
      %6802 = vmatpush1.msra.mxu0 0.0
      %6803 = vmatprep.subr.mxu0 0.0
      %6804 = vmatpush1.msra.mxu0 0.0
      %6805 = vmatprep.subr.mxu0 0.0
      %6806 = vmatpush1.msra.mxu0 0.0
      %6807 = vmatprep.subr.mxu0 0.0
      %6808 = vmatpush1.msra.mxu0 0.0
      %6809 = vmatprep.subr.mxu0 0.0
      %6810 = vmatpush1.msra.mxu0 0.0
      %6811 = vmatprep.subr.mxu0 0.0
      %6812 = vmatpush1.msra.mxu0 0.0
      %6813 = vmatprep.subr.mxu0 0.0
      %6814 = vmatpush1.msra.mxu0 0.0
      %6815 = vmatprep.subr.mxu0 0.0
      %6816 = vmatpush1.msra.mxu0 0.0
      %6817 = vmatprep.subr.mxu0 0.0
      %6818 = vmatpush1.msra.mxu0 0.0
      %6819 = vmatprep.subr.mxu0 0.0
      %6820 = vmatpush1.msra.mxu0 0.0
      %6821 = vmatprep.subr.mxu0 0.0
      %6822 = vmatpush1.msra.mxu0 0.0
      %6823 = vmatprep.subr.mxu0 0.0
      %6824 = vmatpush1.msra.mxu0 0.0
      %6825 = vmatprep.subr.mxu0 0.0
      %6826 = vmatpush1.msra.mxu0 0.0
      %6827 = vmatprep.subr.mxu0 0.0
      %6828 = vmatpush1.msra.mxu0 0.0
      %6829 = vmatprep.subr.mxu0 0.0
      %6830 = vmatpush1.msra.mxu0 0.0
      %6831 = vmatprep.subr.mxu0 0.0
      %6832 = vmatpush1.msra.mxu0 0.0
      %6833 = vmatprep.subr.mxu0 0.0
      %6834 = vmatpush1.msra.mxu0 0.0
      %6835 = vmatprep.subr.mxu0 0.0
      %6836 = vmatpush1.msra.mxu0 0.0
      %6837 = vmatprep.subr.mxu0 0.0
      %6838 = vmatpush1.msra.mxu0 0.0
      %6839 = vmatprep.subr.mxu0 0.0
      %6840 = vmatpush1.msra.mxu0 0.0
      %6841 = vmatprep.subr.mxu0 0.0
      %6842 = vmatpush1.msra.mxu0 0.0
      %6843 = vmatprep.subr.mxu0 0.0
      %6844 = vmatpush1.msra.mxu0 0.0
      %6845 = vmatprep.subr.mxu0 0.0
      %6846 = vmatpush1.msra.mxu0 0.0
      %6847 = vmatprep.subr.mxu0 0.0
      %6848 = vmatpush1.msra.mxu0 0.0
      %6849 = vmatprep.subr.mxu0 0.0
      %6850 = vmatpush1.msra.mxu0 0.0
      %6851 = vmatprep.mubr.f32.mxu0 0.0
      %6852 = vmatmul.mubr.f32.gmra.mrb[0].mxu0 %v6359
      %v6853 = vpop.f32.mrb[0].mxu0
      %v6854 = vadd.f32 0.0, %v6853
      %v6855 = vpop.f32.mrb[0].mxu0
      %v6856 = vadd.f32 0.0, %v6855
      %6857 = vdwg.mxu0
      %6858 = vmatprep.subr.mxu0 %v6169
      %6859 = vmatpush1.msra.mxu0 %v6168
      %6860 = vmatprep.subr.mxu0 %v6203
      %6861 = vmatpush1.msra.mxu0 %v6202
      %6862 = vmatprep.subr.mxu0 %v6237
      %6863 = vmatpush1.msra.mxu0 %v6236
      %6864 = vmatprep.subr.mxu0 0.0
      %6865 = vmatpush1.msra.mxu0 0.0
      %6866 = vmatprep.subr.mxu0 0.0
      %6867 = vmatpush1.msra.mxu0 0.0
      %6868 = vmatprep.subr.mxu0 0.0
      %6869 = vmatpush1.msra.mxu0 0.0
      %6870 = vmatprep.subr.mxu0 0.0
      %6871 = vmatpush1.msra.mxu0 0.0
      %6872 = vmatprep.subr.mxu0 0.0
      %6873 = vmatpush1.msra.mxu0 0.0
      %6874 = vmatprep.subr.mxu0 0.0
      %6875 = vmatpush1.msra.mxu0 0.0
      %6876 = vmatprep.subr.mxu0 0.0
      %6877 = vmatpush1.msra.mxu0 0.0
      %6878 = vmatprep.subr.mxu0 0.0
      %6879 = vmatpush1.msra.mxu0 0.0
      %6880 = vmatprep.subr.mxu0 0.0
      %6881 = vmatpush1.msra.mxu0 0.0
      %6882 = vmatprep.subr.mxu0 0.0
      %6883 = vmatpush1.msra.mxu0 0.0
      %6884 = vmatprep.subr.mxu0 0.0
      %6885 = vmatpush1.msra.mxu0 0.0
      %6886 = vmatprep.subr.mxu0 0.0
      %6887 = vmatpush1.msra.mxu0 0.0
      %6888 = vmatprep.subr.mxu0 0.0
      %6889 = vmatpush1.msra.mxu0 0.0
      %6890 = vmatprep.subr.mxu0 0.0
      %6891 = vmatpush1.msra.mxu0 0.0
      %6892 = vmatprep.subr.mxu0 0.0
      %6893 = vmatpush1.msra.mxu0 0.0
      %6894 = vmatprep.subr.mxu0 0.0
      %6895 = vmatpush1.msra.mxu0 0.0
      %6896 = vmatprep.subr.mxu0 0.0
      %6897 = vmatpush1.msra.mxu0 0.0
      %6898 = vmatprep.subr.mxu0 0.0
      %6899 = vmatpush1.msra.mxu0 0.0
      %6900 = vmatprep.subr.mxu0 0.0
      %6901 = vmatpush1.msra.mxu0 0.0
      %6902 = vmatprep.subr.mxu0 0.0
      %6903 = vmatpush1.msra.mxu0 0.0
      %6904 = vmatprep.subr.mxu0 0.0
      %6905 = vmatpush1.msra.mxu0 0.0
      %6906 = vmatprep.subr.mxu0 0.0
      %6907 = vmatpush1.msra.mxu0 0.0
      %6908 = vmatprep.subr.mxu0 0.0
      %6909 = vmatpush1.msra.mxu0 0.0
      %6910 = vmatprep.subr.mxu0 0.0
      %6911 = vmatpush1.msra.mxu0 0.0
      %6912 = vmatprep.subr.mxu0 0.0
      %6913 = vmatpush1.msra.mxu0 0.0
      %6914 = vmatprep.subr.mxu0 0.0
      %6915 = vmatpush1.msra.mxu0 0.0
      %6916 = vmatprep.subr.mxu0 0.0
      %6917 = vmatpush1.msra.mxu0 0.0
      %6918 = vmatprep.subr.mxu0 0.0
      %6919 = vmatpush1.msra.mxu0 0.0
      %6920 = vmatprep.subr.mxu0 0.0
      %6921 = vmatpush1.msra.mxu0 0.0
      %6922 = vmatprep.mubr.f32.mxu0 0.0
      %6923 = vmatmul.mubr.f32.gmra.mrb[0].mxu0 %v6359
      %v6924 = vpop.f32.mrb[0].mxu0
      %v6925 = vadd.f32 0.0, %v6924
      %v6926 = vpop.f32.mrb[0].mxu0
      %v6927 = vadd.f32 0.0, %v6926
      %6928 = vdwg.mxu0
      %6929 = vmatprep.subr.mxu0 %v6171
      %6930 = vmatpush1.msra.mxu0 %v6170
      %6931 = vmatprep.subr.mxu0 %v6205
      %6932 = vmatpush1.msra.mxu0 %v6204
      %6933 = vmatprep.subr.mxu0 %v6239
      %6934 = vmatpush1.msra.mxu0 %v6238
      %6935 = vmatprep.subr.mxu0 0.0
      %6936 = vmatpush1.msra.mxu0 0.0
      %6937 = vmatprep.subr.mxu0 0.0
      %6938 = vmatpush1.msra.mxu0 0.0
      %6939 = vmatprep.subr.mxu0 0.0
      %6940 = vmatpush1.msra.mxu0 0.0
      %6941 = vmatprep.subr.mxu0 0.0
      %6942 = vmatpush1.msra.mxu0 0.0
      %6943 = vmatprep.subr.mxu0 0.0
      %6944 = vmatpush1.msra.mxu0 0.0
      %6945 = vmatprep.subr.mxu0 0.0
      %6946 = vmatpush1.msra.mxu0 0.0
      %6947 = vmatprep.subr.mxu0 0.0
      %6948 = vmatpush1.msra.mxu0 0.0
      %6949 = vmatprep.subr.mxu0 0.0
      %6950 = vmatpush1.msra.mxu0 0.0
      %6951 = vmatprep.subr.mxu0 0.0
      %6952 = vmatpush1.msra.mxu0 0.0
      %6953 = vmatprep.subr.mxu0 0.0
      %6954 = vmatpush1.msra.mxu0 0.0
      %6955 = vmatprep.subr.mxu0 0.0
      %6956 = vmatpush1.msra.mxu0 0.0
      %6957 = vmatprep.subr.mxu0 0.0
      %6958 = vmatpush1.msra.mxu0 0.0
      %6959 = vmatprep.subr.mxu0 0.0
      %6960 = vmatpush1.msra.mxu0 0.0
      %6961 = vmatprep.subr.mxu0 0.0
      %6962 = vmatpush1.msra.mxu0 0.0
      %6963 = vmatprep.subr.mxu0 0.0
      %6964 = vmatpush1.msra.mxu0 0.0
      %6965 = vmatprep.subr.mxu0 0.0
      %6966 = vmatpush1.msra.mxu0 0.0
      %6967 = vmatprep.subr.mxu0 0.0
      %6968 = vmatpush1.msra.mxu0 0.0
      %6969 = vmatprep.subr.mxu0 0.0
      %6970 = vmatpush1.msra.mxu0 0.0
      %6971 = vmatprep.subr.mxu0 0.0
      %6972 = vmatpush1.msra.mxu0 0.0
      %6973 = vmatprep.subr.mxu0 0.0
      %6974 = vmatpush1.msra.mxu0 0.0
      %6975 = vmatprep.subr.mxu0 0.0
      %6976 = vmatpush1.msra.mxu0 0.0
      %6977 = vmatprep.subr.mxu0 0.0
      %6978 = vmatpush1.msra.mxu0 0.0
      %6979 = vmatprep.subr.mxu0 0.0
      %6980 = vmatpush1.msra.mxu0 0.0
      %6981 = vmatprep.subr.mxu0 0.0
      %6982 = vmatpush1.msra.mxu0 0.0
      %6983 = vmatprep.subr.mxu0 0.0
      %6984 = vmatpush1.msra.mxu0 0.0
      %6985 = vmatprep.subr.mxu0 0.0
      %6986 = vmatpush1.msra.mxu0 0.0
      %6987 = vmatprep.subr.mxu0 0.0
      %6988 = vmatpush1.msra.mxu0 0.0
      %6989 = vmatprep.subr.mxu0 0.0
      %6990 = vmatpush1.msra.mxu0 0.0
      %6991 = vmatprep.subr.mxu0 0.0
      %6992 = vmatpush1.msra.mxu0 0.0
      %6993 = vmatprep.mubr.f32.mxu0 0.0
      %6994 = vmatmul.mubr.f32.gmra.mrb[0].mxu0 %v6359
      %v6995 = vpop.f32.mrb[0].mxu0
      %v6996 = vadd.f32 0.0, %v6995
      %v6997 = vpop.f32.mrb[0].mxu0
      %v6998 = vadd.f32 0.0, %v6997
      %6999 = vdwg.mxu0
      %7000 = vmatprep.subr.mxu0 %v6173
      %7001 = vmatpush1.msra.mxu0 %v6172
      %7002 = vmatprep.subr.mxu0 %v6207
      %7003 = vmatpush1.msra.mxu0 %v6206
      %7004 = vmatprep.subr.mxu0 %v6241
      %7005 = vmatpush1.msra.mxu0 %v6240
      %7006 = vmatprep.subr.mxu0 0.0
      %7007 = vmatpush1.msra.mxu0 0.0
      %7008 = vmatprep.subr.mxu0 0.0
      %7009 = vmatpush1.msra.mxu0 0.0
      %7010 = vmatprep.subr.mxu0 0.0
      %7011 = vmatpush1.msra.mxu0 0.0
      %7012 = vmatprep.subr.mxu0 0.0
      %7013 = vmatpush1.msra.mxu0 0.0
      %7014 = vmatprep.subr.mxu0 0.0
      %7015 = vmatpush1.msra.mxu0 0.0
      %7016 = vmatprep.subr.mxu0 0.0
      %7017 = vmatpush1.msra.mxu0 0.0
      %7018 = vmatprep.subr.mxu0 0.0
      %7019 = vmatpush1.msra.mxu0 0.0
      %7020 = vmatprep.subr.mxu0 0.0
      %7021 = vmatpush1.msra.mxu0 0.0
      %7022 = vmatprep.subr.mxu0 0.0
      %7023 = vmatpush1.msra.mxu0 0.0
      %7024 = vmatprep.subr.mxu0 0.0
      %7025 = vmatpush1.msra.mxu0 0.0
      %7026 = vmatprep.subr.mxu0 0.0
      %7027 = vmatpush1.msra.mxu0 0.0
      %7028 = vmatprep.subr.mxu0 0.0
      %7029 = vmatpush1.msra.mxu0 0.0
      %7030 = vmatprep.subr.mxu0 0.0
      %7031 = vmatpush1.msra.mxu0 0.0
      %7032 = vmatprep.subr.mxu0 0.0
      %7033 = vmatpush1.msra.mxu0 0.0
      %7034 = vmatprep.subr.mxu0 0.0
      %7035 = vmatpush1.msra.mxu0 0.0
      %7036 = vmatprep.subr.mxu0 0.0
      %7037 = vmatpush1.msra.mxu0 0.0
      %7038 = vmatprep.subr.mxu0 0.0
      %7039 = vmatpush1.msra.mxu0 0.0
      %7040 = vmatprep.subr.mxu0 0.0
      %7041 = vmatpush1.msra.mxu0 0.0
      %7042 = vmatprep.subr.mxu0 0.0
      %7043 = vmatpush1.msra.mxu0 0.0
      %7044 = vmatprep.subr.mxu0 0.0
      %7045 = vmatpush1.msra.mxu0 0.0
      %7046 = vmatprep.subr.mxu0 0.0
      %7047 = vmatpush1.msra.mxu0 0.0
      %7048 = vmatprep.subr.mxu0 0.0
      %7049 = vmatpush1.msra.mxu0 0.0
      %7050 = vmatprep.subr.mxu0 0.0
      %7051 = vmatpush1.msra.mxu0 0.0
      %7052 = vmatprep.subr.mxu0 0.0
      %7053 = vmatpush1.msra.mxu0 0.0
      %7054 = vmatprep.subr.mxu0 0.0
      %7055 = vmatpush1.msra.mxu0 0.0
      %7056 = vmatprep.subr.mxu0 0.0
      %7057 = vmatpush1.msra.mxu0 0.0
      %7058 = vmatprep.subr.mxu0 0.0
      %7059 = vmatpush1.msra.mxu0 0.0
      %7060 = vmatprep.subr.mxu0 0.0
      %7061 = vmatpush1.msra.mxu0 0.0
      %7062 = vmatprep.subr.mxu0 0.0
      %7063 = vmatpush1.msra.mxu0 0.0
      %7064 = vmatprep.mubr.f32.mxu0 0.0
      %7065 = vmatmul.mubr.f32.gmra.mrb[0].mxu0 %v6359
      %v7066 = vpop.f32.mrb[0].mxu0
      %v7067 = vadd.f32 0.0, %v7066
      %v7068 = vpop.f32.mrb[0].mxu0
      %v7069 = vadd.f32 0.0, %v7068
      %7070 = vdwg.mxu0
      %7071 = vmatprep.subr.mxu0 %v6175
      %7072 = vmatpush1.msra.mxu0 %v6174
      %7073 = vmatprep.subr.mxu0 %v6209
      %7074 = vmatpush1.msra.mxu0 %v6208
      %7075 = vmatprep.subr.mxu0 %v6243
      %7076 = vmatpush1.msra.mxu0 %v6242
      %7077 = vmatprep.subr.mxu0 0.0
      %7078 = vmatpush1.msra.mxu0 0.0
      %7079 = vmatprep.subr.mxu0 0.0
      %7080 = vmatpush1.msra.mxu0 0.0
      %7081 = vmatprep.subr.mxu0 0.0
      %7082 = vmatpush1.msra.mxu0 0.0
      %7083 = vmatprep.subr.mxu0 0.0
      %7084 = vmatpush1.msra.mxu0 0.0
      %7085 = vmatprep.subr.mxu0 0.0
      %7086 = vmatpush1.msra.mxu0 0.0
      %7087 = vmatprep.subr.mxu0 0.0
      %7088 = vmatpush1.msra.mxu0 0.0
      %7089 = vmatprep.subr.mxu0 0.0
      %7090 = vmatpush1.msra.mxu0 0.0
      %7091 = vmatprep.subr.mxu0 0.0
      %7092 = vmatpush1.msra.mxu0 0.0
      %7093 = vmatprep.subr.mxu0 0.0
      %7094 = vmatpush1.msra.mxu0 0.0
      %7095 = vmatprep.subr.mxu0 0.0
      %7096 = vmatpush1.msra.mxu0 0.0
      %7097 = vmatprep.subr.mxu0 0.0
      %7098 = vmatpush1.msra.mxu0 0.0
      %7099 = vmatprep.subr.mxu0 0.0
      %7100 = vmatpush1.msra.mxu0 0.0
      %7101 = vmatprep.subr.mxu0 0.0
      %7102 = vmatpush1.msra.mxu0 0.0
      %7103 = vmatprep.subr.mxu0 0.0
      %7104 = vmatpush1.msra.mxu0 0.0
      %7105 = vmatprep.subr.mxu0 0.0
      %7106 = vmatpush1.msra.mxu0 0.0
      %7107 = vmatprep.subr.mxu0 0.0
      %7108 = vmatpush1.msra.mxu0 0.0
      %7109 = vmatprep.subr.mxu0 0.0
      %7110 = vmatpush1.msra.mxu0 0.0
      %7111 = vmatprep.subr.mxu0 0.0
      %7112 = vmatpush1.msra.mxu0 0.0
      %7113 = vmatprep.subr.mxu0 0.0
      %7114 = vmatpush1.msra.mxu0 0.0
      %7115 = vmatprep.subr.mxu0 0.0
      %7116 = vmatpush1.msra.mxu0 0.0
      %7117 = vmatprep.subr.mxu0 0.0
      %7118 = vmatpush1.msra.mxu0 0.0
      %7119 = vmatprep.subr.mxu0 0.0
      %7120 = vmatpush1.msra.mxu0 0.0
      %7121 = vmatprep.subr.mxu0 0.0
      %7122 = vmatpush1.msra.mxu0 0.0
      %7123 = vmatprep.subr.mxu0 0.0
      %7124 = vmatpush1.msra.mxu0 0.0
      %7125 = vmatprep.subr.mxu0 0.0
      %7126 = vmatpush1.msra.mxu0 0.0
      %7127 = vmatprep.subr.mxu0 0.0
      %7128 = vmatpush1.msra.mxu0 0.0
      %7129 = vmatprep.subr.mxu0 0.0
      %7130 = vmatpush1.msra.mxu0 0.0
      %7131 = vmatprep.subr.mxu0 0.0
      %7132 = vmatpush1.msra.mxu0 0.0
      %7133 = vmatprep.subr.mxu0 0.0
      %7134 = vmatpush1.msra.mxu0 0.0
      %7135 = vmatprep.mubr.f32.mxu0 0.0
      %7136 = vmatmul.mubr.f32.gmra.mrb[0].mxu0 %v6359
      %v7137 = vpop.f32.mrb[0].mxu0
      %v7138 = vadd.f32 0.0, %v7137
      %v7139 = vpop.f32.mrb[0].mxu0
      %v7140 = vadd.f32 0.0, %v7139
      %7141 = vdwg.mxu0
      %7142 = vmatprep.subr.mxu0 %v6177
      %7143 = vmatpush1.msra.mxu0 %v6176
      %7144 = vmatprep.subr.mxu0 %v6211
      %7145 = vmatpush1.msra.mxu0 %v6210
      %7146 = vmatprep.subr.mxu0 %v6245
      %7147 = vmatpush1.msra.mxu0 %v6244
      %7148 = vmatprep.subr.mxu0 0.0
      %7149 = vmatpush1.msra.mxu0 0.0
      %7150 = vmatprep.subr.mxu0 0.0
      %7151 = vmatpush1.msra.mxu0 0.0
      %7152 = vmatprep.subr.mxu0 0.0
      %7153 = vmatpush1.msra.mxu0 0.0
      %7154 = vmatprep.subr.mxu0 0.0
      %7155 = vmatpush1.msra.mxu0 0.0
      %7156 = vmatprep.subr.mxu0 0.0
      %7157 = vmatpush1.msra.mxu0 0.0
      %7158 = vmatprep.subr.mxu0 0.0
      %7159 = vmatpush1.msra.mxu0 0.0
      %7160 = vmatprep.subr.mxu0 0.0
      %7161 = vmatpush1.msra.mxu0 0.0
      %7162 = vmatprep.subr.mxu0 0.0
      %7163 = vmatpush1.msra.mxu0 0.0
      %7164 = vmatprep.subr.mxu0 0.0
      %7165 = vmatpush1.msra.mxu0 0.0
      %7166 = vmatprep.subr.mxu0 0.0
      %7167 = vmatpush1.msra.mxu0 0.0
      %7168 = vmatprep.subr.mxu0 0.0
      %7169 = vmatpush1.msra.mxu0 0.0
      %7170 = vmatprep.subr.mxu0 0.0
      %7171 = vmatpush1.msra.mxu0 0.0
      %7172 = vmatprep.subr.mxu0 0.0
      %7173 = vmatpush1.msra.mxu0 0.0
      %7174 = vmatprep.subr.mxu0 0.0
      %7175 = vmatpush1.msra.mxu0 0.0
      %7176 = vmatprep.subr.mxu0 0.0
      %7177 = vmatpush1.msra.mxu0 0.0
      %7178 = vmatprep.subr.mxu0 0.0
      %7179 = vmatpush1.msra.mxu0 0.0
      %7180 = vmatprep.subr.mxu0 0.0
      %7181 = vmatpush1.msra.mxu0 0.0
      %7182 = vmatprep.subr.mxu0 0.0
      %7183 = vmatpush1.msra.mxu0 0.0
      %7184 = vmatprep.subr.mxu0 0.0
      %7185 = vmatpush1.msra.mxu0 0.0
      %7186 = vmatprep.subr.mxu0 0.0
      %7187 = vmatpush1.msra.mxu0 0.0
      %7188 = vmatprep.subr.mxu0 0.0
      %7189 = vmatpush1.msra.mxu0 0.0
      %7190 = vmatprep.subr.mxu0 0.0
      %7191 = vmatpush1.msra.mxu0 0.0
      %7192 = vmatprep.subr.mxu0 0.0
      %7193 = vmatpush1.msra.mxu0 0.0
      %7194 = vmatprep.subr.mxu0 0.0
      %7195 = vmatpush1.msra.mxu0 0.0
      %7196 = vmatprep.subr.mxu0 0.0
      %7197 = vmatpush1.msra.mxu0 0.0
      %7198 = vmatprep.subr.mxu0 0.0
      %7199 = vmatpush1.msra.mxu0 0.0
      %7200 = vmatprep.subr.mxu0 0.0
      %7201 = vmatpush1.msra.mxu0 0.0
      %7202 = vmatprep.subr.mxu0 0.0
      %7203 = vmatpush1.msra.mxu0 0.0
      %7204 = vmatprep.subr.mxu0 0.0
      %7205 = vmatpush1.msra.mxu0 0.0
      %7206 = vmatprep.mubr.f32.mxu0 0.0
      %7207 = vmatmul.mubr.f32.gmra.mrb[0].mxu0 %v6359
      %v7208 = vpop.f32.mrb[0].mxu0
      %v7209 = vadd.f32 0.0, %v7208
      %v7210 = vpop.f32.mrb[0].mxu0
      %v7211 = vadd.f32 0.0, %v7210
      %7212 = vdwg.mxu0
      %7213 = vmatprep.subr.mxu0 %v6179
      %7214 = vmatpush1.msra.mxu0 %v6178
      %7215 = vmatprep.subr.mxu0 %v6213
      %7216 = vmatpush1.msra.mxu0 %v6212
      %7217 = vmatprep.subr.mxu0 %v6247
      %7218 = vmatpush1.msra.mxu0 %v6246
      %7219 = vmatprep.subr.mxu0 0.0
      %7220 = vmatpush1.msra.mxu0 0.0
      %7221 = vmatprep.subr.mxu0 0.0
      %7222 = vmatpush1.msra.mxu0 0.0
      %7223 = vmatprep.subr.mxu0 0.0
      %7224 = vmatpush1.msra.mxu0 0.0
      %7225 = vmatprep.subr.mxu0 0.0
      %7226 = vmatpush1.msra.mxu0 0.0
      %7227 = vmatprep.subr.mxu0 0.0
      %7228 = vmatpush1.msra.mxu0 0.0
      %7229 = vmatprep.subr.mxu0 0.0
      %7230 = vmatpush1.msra.mxu0 0.0
      %7231 = vmatprep.subr.mxu0 0.0
      %7232 = vmatpush1.msra.mxu0 0.0
      %7233 = vmatprep.subr.mxu0 0.0
      %7234 = vmatpush1.msra.mxu0 0.0
      %7235 = vmatprep.subr.mxu0 0.0
      %7236 = vmatpush1.msra.mxu0 0.0
      %7237 = vmatprep.subr.mxu0 0.0
      %7238 = vmatpush1.msra.mxu0 0.0
      %7239 = vmatprep.subr.mxu0 0.0
      %7240 = vmatpush1.msra.mxu0 0.0
      %7241 = vmatprep.subr.mxu0 0.0
      %7242 = vmatpush1.msra.mxu0 0.0
      %7243 = vmatprep.subr.mxu0 0.0
      %7244 = vmatpush1.msra.mxu0 0.0
      %7245 = vmatprep.subr.mxu0 0.0
      %7246 = vmatpush1.msra.mxu0 0.0
      %7247 = vmatprep.subr.mxu0 0.0
      %7248 = vmatpush1.msra.mxu0 0.0
      %7249 = vmatprep.subr.mxu0 0.0
      %7250 = vmatpush1.msra.mxu0 0.0
      %7251 = vmatprep.subr.mxu0 0.0
      %7252 = vmatpush1.msra.mxu0 0.0
      %7253 = vmatprep.subr.mxu0 0.0
      %7254 = vmatpush1.msra.mxu0 0.0
      %7255 = vmatprep.subr.mxu0 0.0
      %7256 = vmatpush1.msra.mxu0 0.0
      %7257 = vmatprep.subr.mxu0 0.0
      %7258 = vmatpush1.msra.mxu0 0.0
      %7259 = vmatprep.subr.mxu0 0.0
      %7260 = vmatpush1.msra.mxu0 0.0
      %7261 = vmatprep.subr.mxu0 0.0
      %7262 = vmatpush1.msra.mxu0 0.0
      %7263 = vmatprep.subr.mxu0 0.0
      %7264 = vmatpush1.msra.mxu0 0.0
      %7265 = vmatprep.subr.mxu0 0.0
      %7266 = vmatpush1.msra.mxu0 0.0
      %7267 = vmatprep.subr.mxu0 0.0
      %7268 = vmatpush1.msra.mxu0 0.0
      %7269 = vmatprep.subr.mxu0 0.0
      %7270 = vmatpush1.msra.mxu0 0.0
      %7271 = vmatprep.subr.mxu0 0.0
      %7272 = vmatpush1.msra.mxu0 0.0
      %7273 = vmatprep.subr.mxu0 0.0
      %7274 = vmatpush1.msra.mxu0 0.0
      %7275 = vmatprep.subr.mxu0 0.0
      %7276 = vmatpush1.msra.mxu0 0.0
      %7277 = vmatprep.mubr.f32.mxu0 0.0
      %7278 = vmatmul.mubr.f32.gmra.mrb[0].mxu0 %v6359
      %v7279 = vpop.f32.mrb[0].mxu0
      %v7280 = vadd.f32 0.0, %v7279
      %v7281 = vpop.f32.mrb[0].mxu0
      %v7282 = vadd.f32 0.0, %v7281
      %7283 = vdwg.mxu0
      %7284 = vmatprep.subr.mxu0 %v6181
      %7285 = vmatpush1.msra.mxu0 %v6180
      %7286 = vmatprep.subr.mxu0 %v6215
      %7287 = vmatpush1.msra.mxu0 %v6214
      %7288 = vmatprep.subr.mxu0 %v6249
      %7289 = vmatpush1.msra.mxu0 %v6248
      %7290 = vmatprep.subr.mxu0 0.0
      %7291 = vmatpush1.msra.mxu0 0.0
      %7292 = vmatprep.subr.mxu0 0.0
      %7293 = vmatpush1.msra.mxu0 0.0
      %7294 = vmatprep.subr.mxu0 0.0
      %7295 = vmatpush1.msra.mxu0 0.0
      %7296 = vmatprep.subr.mxu0 0.0
      %7297 = vmatpush1.msra.mxu0 0.0
      %7298 = vmatprep.subr.mxu0 0.0
      %7299 = vmatpush1.msra.mxu0 0.0
      %7300 = vmatprep.subr.mxu0 0.0
      %7301 = vmatpush1.msra.mxu0 0.0
      %7302 = vmatprep.subr.mxu0 0.0
      %7303 = vmatpush1.msra.mxu0 0.0
      %7304 = vmatprep.subr.mxu0 0.0
      %7305 = vmatpush1.msra.mxu0 0.0
      %7306 = vmatprep.subr.mxu0 0.0
      %7307 = vmatpush1.msra.mxu0 0.0
      %7308 = vmatprep.subr.mxu0 0.0
      %7309 = vmatpush1.msra.mxu0 0.0
      %7310 = vmatprep.subr.mxu0 0.0
      %7311 = vmatpush1.msra.mxu0 0.0
      %7312 = vmatprep.subr.mxu0 0.0
      %7313 = vmatpush1.msra.mxu0 0.0
      %7314 = vmatprep.subr.mxu0 0.0
      %7315 = vmatpush1.msra.mxu0 0.0
      %7316 = vmatprep.subr.mxu0 0.0
      %7317 = vmatpush1.msra.mxu0 0.0
      %7318 = vmatprep.subr.mxu0 0.0
      %7319 = vmatpush1.msra.mxu0 0.0
      %7320 = vmatprep.subr.mxu0 0.0
      %7321 = vmatpush1.msra.mxu0 0.0
      %7322 = vmatprep.subr.mxu0 0.0
      %7323 = vmatpush1.msra.mxu0 0.0
      %7324 = vmatprep.subr.mxu0 0.0
      %7325 = vmatpush1.msra.mxu0 0.0
      %7326 = vmatprep.subr.mxu0 0.0
      %7327 = vmatpush1.msra.mxu0 0.0
      %7328 = vmatprep.subr.mxu0 0.0
      %7329 = vmatpush1.msra.mxu0 0.0
      %7330 = vmatprep.subr.mxu0 0.0
      %7331 = vmatpush1.msra.mxu0 0.0
      %7332 = vmatprep.subr.mxu0 0.0
      %7333 = vmatpush1.msra.mxu0 0.0
      %7334 = vmatprep.subr.mxu0 0.0
      %7335 = vmatpush1.msra.mxu0 0.0
      %7336 = vmatprep.subr.mxu0 0.0
      %7337 = vmatpush1.msra.mxu0 0.0
      %7338 = vmatprep.subr.mxu0 0.0
      %7339 = vmatpush1.msra.mxu0 0.0
      %7340 = vmatprep.subr.mxu0 0.0
      %7341 = vmatpush1.msra.mxu0 0.0
      %7342 = vmatprep.subr.mxu0 0.0
      %7343 = vmatpush1.msra.mxu0 0.0
      %7344 = vmatprep.subr.mxu0 0.0
      %7345 = vmatpush1.msra.mxu0 0.0
      %7346 = vmatprep.subr.mxu0 0.0
      %7347 = vmatpush1.msra.mxu0 0.0
      %7348 = vmatprep.mubr.f32.mxu0 0.0
      %7349 = vmatmul.mubr.f32.gmra.mrb[0].mxu0 %v6359
      %v7350 = vpop.f32.mrb[0].mxu0
      %v7351 = vadd.f32 0.0, %v7350
      %v7352 = vpop.f32.mrb[0].mxu0
      %v7353 = vadd.f32 0.0, %v7352
      %7354 = vdwg.mxu0
      %7355 = vmatprep.subr.mxu0 %v6183
      %7356 = vmatpush1.msra.mxu0 %v6182
      %7357 = vmatprep.subr.mxu0 %v6217
      %7358 = vmatpush1.msra.mxu0 %v6216
      %7359 = vmatprep.subr.mxu0 %v6251
      %7360 = vmatpush1.msra.mxu0 %v6250
      %7361 = vmatprep.subr.mxu0 0.0
      %7362 = vmatpush1.msra.mxu0 0.0
      %7363 = vmatprep.subr.mxu0 0.0
      %7364 = vmatpush1.msra.mxu0 0.0
      %7365 = vmatprep.subr.mxu0 0.0
      %7366 = vmatpush1.msra.mxu0 0.0
      %7367 = vmatprep.subr.mxu0 0.0
      %7368 = vmatpush1.msra.mxu0 0.0
      %7369 = vmatprep.subr.mxu0 0.0
      %7370 = vmatpush1.msra.mxu0 0.0
      %7371 = vmatprep.subr.mxu0 0.0
      %7372 = vmatpush1.msra.mxu0 0.0
      %7373 = vmatprep.subr.mxu0 0.0
      %7374 = vmatpush1.msra.mxu0 0.0
      %7375 = vmatprep.subr.mxu0 0.0
      %7376 = vmatpush1.msra.mxu0 0.0
      %7377 = vmatprep.subr.mxu0 0.0
      %7378 = vmatpush1.msra.mxu0 0.0
      %7379 = vmatprep.subr.mxu0 0.0
      %7380 = vmatpush1.msra.mxu0 0.0
      %7381 = vmatprep.subr.mxu0 0.0
      %7382 = vmatpush1.msra.mxu0 0.0
      %7383 = vmatprep.subr.mxu0 0.0
      %7384 = vmatpush1.msra.mxu0 0.0
      %7385 = vmatprep.subr.mxu0 0.0
      %7386 = vmatpush1.msra.mxu0 0.0
      %7387 = vmatprep.subr.mxu0 0.0
      %7388 = vmatpush1.msra.mxu0 0.0
      %7389 = vmatprep.subr.mxu0 0.0
      %7390 = vmatpush1.msra.mxu0 0.0
      %7391 = vmatprep.subr.mxu0 0.0
      %7392 = vmatpush1.msra.mxu0 0.0
      %7393 = vmatprep.subr.mxu0 0.0
      %7394 = vmatpush1.msra.mxu0 0.0
      %7395 = vmatprep.subr.mxu0 0.0
      %7396 = vmatpush1.msra.mxu0 0.0
      %7397 = vmatprep.subr.mxu0 0.0
      %7398 = vmatpush1.msra.mxu0 0.0
      %7399 = vmatprep.subr.mxu0 0.0
      %7400 = vmatpush1.msra.mxu0 0.0
      %7401 = vmatprep.subr.mxu0 0.0
      %7402 = vmatpush1.msra.mxu0 0.0
      %7403 = vmatprep.subr.mxu0 0.0
      %7404 = vmatpush1.msra.mxu0 0.0
      %7405 = vmatprep.subr.mxu0 0.0
      %7406 = vmatpush1.msra.mxu0 0.0
      %7407 = vmatprep.subr.mxu0 0.0
      %7408 = vmatpush1.msra.mxu0 0.0
      %7409 = vmatprep.subr.mxu0 0.0
      %7410 = vmatpush1.msra.mxu0 0.0
      %7411 = vmatprep.subr.mxu0 0.0
      %7412 = vmatpush1.msra.mxu0 0.0
      %7413 = vmatprep.subr.mxu0 0.0
      %7414 = vmatpush1.msra.mxu0 0.0
      %7415 = vmatprep.subr.mxu0 0.0
      %7416 = vmatpush1.msra.mxu0 0.0
      %7417 = vmatprep.subr.mxu0 0.0
      %7418 = vmatpush1.msra.mxu0 0.0
      %7419 = vmatprep.mubr.f32.mxu0 0.0
      %7420 = vmatmul.mubr.f32.gmra.mrb[0].mxu0 %v6359
      %v7421 = vpop.f32.mrb[0].mxu0
      %v7422 = vadd.f32 0.0, %v7421
      %v7423 = vpop.f32.mrb[0].mxu0
      %v7424 = vadd.f32 0.0, %v7423
      %7425 = vdwg.mxu0
      %7426 = vmatprep.subr.mxu0 %v6185
      %7427 = vmatpush1.msra.mxu0 %v6184
      %7428 = vmatprep.subr.mxu0 %v6219
      %7429 = vmatpush1.msra.mxu0 %v6218
      %7430 = vmatprep.subr.mxu0 %v6253
      %7431 = vmatpush1.msra.mxu0 %v6252
      %7432 = vmatprep.subr.mxu0 0.0
      %7433 = vmatpush1.msra.mxu0 0.0
      %7434 = vmatprep.subr.mxu0 0.0
      %7435 = vmatpush1.msra.mxu0 0.0
      %7436 = vmatprep.subr.mxu0 0.0
      %7437 = vmatpush1.msra.mxu0 0.0
      %7438 = vmatprep.subr.mxu0 0.0
      %7439 = vmatpush1.msra.mxu0 0.0
      %7440 = vmatprep.subr.mxu0 0.0
      %7441 = vmatpush1.msra.mxu0 0.0
      %7442 = vmatprep.subr.mxu0 0.0
      %7443 = vmatpush1.msra.mxu0 0.0
      %7444 = vmatprep.subr.mxu0 0.0
      %7445 = vmatpush1.msra.mxu0 0.0
      %7446 = vmatprep.subr.mxu0 0.0
      %7447 = vmatpush1.msra.mxu0 0.0
      %7448 = vmatprep.subr.mxu0 0.0
      %7449 = vmatpush1.msra.mxu0 0.0
      %7450 = vmatprep.subr.mxu0 0.0
      %7451 = vmatpush1.msra.mxu0 0.0
      %7452 = vmatprep.subr.mxu0 0.0
      %7453 = vmatpush1.msra.mxu0 0.0
      %7454 = vmatprep.subr.mxu0 0.0
      %7455 = vmatpush1.msra.mxu0 0.0
      %7456 = vmatprep.subr.mxu0 0.0
      %7457 = vmatpush1.msra.mxu0 0.0
      %7458 = vmatprep.subr.mxu0 0.0
      %7459 = vmatpush1.msra.mxu0 0.0
      %7460 = vmatprep.subr.mxu0 0.0
      %7461 = vmatpush1.msra.mxu0 0.0
      %7462 = vmatprep.subr.mxu0 0.0
      %7463 = vmatpush1.msra.mxu0 0.0
      %7464 = vmatprep.subr.mxu0 0.0
      %7465 = vmatpush1.msra.mxu0 0.0
      %7466 = vmatprep.subr.mxu0 0.0
      %7467 = vmatpush1.msra.mxu0 0.0
      %7468 = vmatprep.subr.mxu0 0.0
      %7469 = vmatpush1.msra.mxu0 0.0
      %7470 = vmatprep.subr.mxu0 0.0
      %7471 = vmatpush1.msra.mxu0 0.0
      %7472 = vmatprep.subr.mxu0 0.0
      %7473 = vmatpush1.msra.mxu0 0.0
      %7474 = vmatprep.subr.mxu0 0.0
      %7475 = vmatpush1.msra.mxu0 0.0
      %7476 = vmatprep.subr.mxu0 0.0
      %7477 = vmatpush1.msra.mxu0 0.0
      %7478 = vmatprep.subr.mxu0 0.0
      %7479 = vmatpush1.msra.mxu0 0.0
      %7480 = vmatprep.subr.mxu0 0.0
      %7481 = vmatpush1.msra.mxu0 0.0
      %7482 = vmatprep.subr.mxu0 0.0
      %7483 = vmatpush1.msra.mxu0 0.0
      %7484 = vmatprep.subr.mxu0 0.0
      %7485 = vmatpush1.msra.mxu0 0.0
      %7486 = vmatprep.subr.mxu0 0.0
      %7487 = vmatpush1.msra.mxu0 0.0
      %7488 = vmatprep.subr.mxu0 0.0
      %7489 = vmatpush1.msra.mxu0 0.0
      %7490 = vmatprep.mubr.f32.mxu0 0.0
      %7491 = vmatmul.mubr.f32.gmra.mrb[0].mxu0 %v6359
      %v7492 = vpop.f32.mrb[0].mxu0
      %v7493 = vadd.f32 0.0, %v7492
      %v7494 = vpop.f32.mrb[0].mxu0
      %v7495 = vadd.f32 0.0, %v7494
      %7496 = vdwg.mxu0
      %7497 = vmatprep.subr.mxu0 %v6187
      %7498 = vmatpush1.msra.mxu0 %v6186
      %7499 = vmatprep.subr.mxu0 %v6221
      %7500 = vmatpush1.msra.mxu0 %v6220
      %7501 = vmatprep.subr.mxu0 %v6255
      %7502 = vmatpush1.msra.mxu0 %v6254
      %7503 = vmatprep.subr.mxu0 0.0
      %7504 = vmatpush1.msra.mxu0 0.0
      %7505 = vmatprep.subr.mxu0 0.0
      %7506 = vmatpush1.msra.mxu0 0.0
      %7507 = vmatprep.subr.mxu0 0.0
      %7508 = vmatpush1.msra.mxu0 0.0
      %7509 = vmatprep.subr.mxu0 0.0
      %7510 = vmatpush1.msra.mxu0 0.0
      %7511 = vmatprep.subr.mxu0 0.0
      %7512 = vmatpush1.msra.mxu0 0.0
      %7513 = vmatprep.subr.mxu0 0.0
      %7514 = vmatpush1.msra.mxu0 0.0
      %7515 = vmatprep.subr.mxu0 0.0
      %7516 = vmatpush1.msra.mxu0 0.0
      %7517 = vmatprep.subr.mxu0 0.0
      %7518 = vmatpush1.msra.mxu0 0.0
      %7519 = vmatprep.subr.mxu0 0.0
      %7520 = vmatpush1.msra.mxu0 0.0
      %7521 = vmatprep.subr.mxu0 0.0
      %7522 = vmatpush1.msra.mxu0 0.0
      %7523 = vmatprep.subr.mxu0 0.0
      %7524 = vmatpush1.msra.mxu0 0.0
      %7525 = vmatprep.subr.mxu0 0.0
      %7526 = vmatpush1.msra.mxu0 0.0
      %7527 = vmatprep.subr.mxu0 0.0
      %7528 = vmatpush1.msra.mxu0 0.0
      %7529 = vmatprep.subr.mxu0 0.0
      %7530 = vmatpush1.msra.mxu0 0.0
      %7531 = vmatprep.subr.mxu0 0.0
      %7532 = vmatpush1.msra.mxu0 0.0
      %7533 = vmatprep.subr.mxu0 0.0
      %7534 = vmatpush1.msra.mxu0 0.0
      %7535 = vmatprep.subr.mxu0 0.0
      %7536 = vmatpush1.msra.mxu0 0.0
      %7537 = vmatprep.subr.mxu0 0.0
      %7538 = vmatpush1.msra.mxu0 0.0
      %7539 = vmatprep.subr.mxu0 0.0
      %7540 = vmatpush1.msra.mxu0 0.0
      %7541 = vmatprep.subr.mxu0 0.0
      %7542 = vmatpush1.msra.mxu0 0.0
      %7543 = vmatprep.subr.mxu0 0.0
      %7544 = vmatpush1.msra.mxu0 0.0
      %7545 = vmatprep.subr.mxu0 0.0
      %7546 = vmatpush1.msra.mxu0 0.0
      %7547 = vmatprep.subr.mxu0 0.0
      %7548 = vmatpush1.msra.mxu0 0.0
      %7549 = vmatprep.subr.mxu0 0.0
      %7550 = vmatpush1.msra.mxu0 0.0
      %7551 = vmatprep.subr.mxu0 0.0
      %7552 = vmatpush1.msra.mxu0 0.0
      %7553 = vmatprep.subr.mxu0 0.0
      %7554 = vmatpush1.msra.mxu0 0.0
      %7555 = vmatprep.subr.mxu0 0.0
      %7556 = vmatpush1.msra.mxu0 0.0
      %7557 = vmatprep.subr.mxu0 0.0
      %7558 = vmatpush1.msra.mxu0 0.0
      %7559 = vmatprep.subr.mxu0 0.0
      %7560 = vmatpush1.msra.mxu0 0.0
      %7561 = vmatprep.mubr.f32.mxu0 0.0
      %7562 = vmatmul.mubr.f32.gmra.mrb[0].mxu0 %v6359
      %v7563 = vpop.f32.mrb[0].mxu0
      %v7564 = vadd.f32 0.0, %v7563
      %v7565 = vpop.f32.mrb[0].mxu0
      %v7566 = vadd.f32 0.0, %v7565
      %7567 = vdwg.mxu0
      %7569 = vrot.lane.b32.xlu0 %v5577, 1
      %v7570 = vpop.permute.xlu0 %7569
      %7571 = vrot.lane.b32.xlu0 %v5688, 1
      %v7572 = vpop.permute.xlu0 %7571
      %7573 = vrot.lane.b32.xlu0 %v5832, 1
      %v7574 = vpop.permute.xlu0 %7573
      %v7575 = vsel %vm874, %v7570, %v5945
      %v7576 = vsel %vm874, %v7572, %v6015
      %v7577 = vsel %vm874, %v7574, %v6085
      %v7582 = vsel %vm1079, %v5941, 0
      %7584 = vmatprep.subr.mxu0 %v6154
      %7585 = vmatpush1.msra.mxu0 %v7575
      %7586 = vmatprep.subr.mxu0 %v6188
      %7587 = vmatpush1.msra.mxu0 %v7576
      %7588 = vmatprep.subr.mxu0 %v6222
      %7589 = vmatpush1.msra.mxu0 %v7577
      %7590 = vmatprep.subr.mxu0 0.0
      %7591 = vmatpush1.msra.mxu0 0.0
      %7592 = vmatprep.subr.mxu0 0.0
      %7593 = vmatpush1.msra.mxu0 0.0
      %7594 = vmatprep.subr.mxu0 0.0
      %7595 = vmatpush1.msra.mxu0 0.0
      %7596 = vmatprep.subr.mxu0 0.0
      %7597 = vmatpush1.msra.mxu0 0.0
      %7598 = vmatprep.subr.mxu0 0.0
      %7599 = vmatpush1.msra.mxu0 0.0
      %7600 = vmatprep.subr.mxu0 0.0
      %7601 = vmatpush1.msra.mxu0 0.0
      %7602 = vmatprep.subr.mxu0 0.0
      %7603 = vmatpush1.msra.mxu0 0.0
      %7604 = vmatprep.subr.mxu0 0.0
      %7605 = vmatpush1.msra.mxu0 0.0
      %7606 = vmatprep.subr.mxu0 0.0
      %7607 = vmatpush1.msra.mxu0 0.0
      %7608 = vmatprep.subr.mxu0 0.0
      %7609 = vmatpush1.msra.mxu0 0.0
      %7610 = vmatprep.subr.mxu0 0.0
      %7611 = vmatpush1.msra.mxu0 0.0
      %7612 = vmatprep.subr.mxu0 0.0
      %7613 = vmatpush1.msra.mxu0 0.0
      %7614 = vmatprep.subr.mxu0 0.0
      %7615 = vmatpush1.msra.mxu0 0.0
      %7616 = vmatprep.subr.mxu0 0.0
      %7617 = vmatpush1.msra.mxu0 0.0
      %7618 = vmatprep.subr.mxu0 0.0
      %7619 = vmatpush1.msra.mxu0 0.0
      %7620 = vmatprep.subr.mxu0 0.0
      %7621 = vmatpush1.msra.mxu0 0.0
      %7622 = vmatprep.subr.mxu0 0.0
      %7623 = vmatpush1.msra.mxu0 0.0
      %7624 = vmatprep.subr.mxu0 0.0
      %7625 = vmatpush1.msra.mxu0 0.0
      %7626 = vmatprep.subr.mxu0 0.0
      %7627 = vmatpush1.msra.mxu0 0.0
      %7628 = vmatprep.subr.mxu0 0.0
      %7629 = vmatpush1.msra.mxu0 0.0
      %7630 = vmatprep.subr.mxu0 0.0
      %7631 = vmatpush1.msra.mxu0 0.0
      %7632 = vmatprep.subr.mxu0 0.0
      %7633 = vmatpush1.msra.mxu0 0.0
      %7634 = vmatprep.subr.mxu0 0.0
      %7635 = vmatpush1.msra.mxu0 0.0
      %7636 = vmatprep.subr.mxu0 0.0
      %7637 = vmatpush1.msra.mxu0 0.0
      %7638 = vmatprep.subr.mxu0 0.0
      %7639 = vmatpush1.msra.mxu0 0.0
      %7640 = vmatprep.subr.mxu0 0.0
      %7641 = vmatpush1.msra.mxu0 0.0
      %7642 = vmatprep.subr.mxu0 0.0
      %7643 = vmatpush1.msra.mxu0 0.0
      %7644 = vmatprep.subr.mxu0 0.0
      %7645 = vmatpush1.msra.mxu0 0.0
      %7646 = vmatprep.subr.mxu0 0.0
      %7647 = vmatpush1.msra.mxu0 0.0
      %7648 = vmatprep.mubr.f32.mxu0 0.0
      %7649 = vmatmul.mubr.f32.gmra.mrb[0].mxu0 %v7582
      %v7650 = vpop.f32.mrb[0].mxu0
      %v7651 = vadd.f32 %v6428, %v7650
      %v7652 = vpop.f32.mrb[0].mxu0
      %v7653 = vadd.f32 %v6430, %v7652
      %7654 = vdwg.mxu0
      %7655 = vmatprep.subr.mxu0 %v6156
      %7656 = vmatpush1.msra.mxu0 %v6155
      %7657 = vmatprep.subr.mxu0 %v6190
      %7658 = vmatpush1.msra.mxu0 %v6189
      %7659 = vmatprep.subr.mxu0 %v6224
      %7660 = vmatpush1.msra.mxu0 %v6223
      %7661 = vmatprep.subr.mxu0 0.0
      %7662 = vmatpush1.msra.mxu0 0.0
      %7663 = vmatprep.subr.mxu0 0.0
      %7664 = vmatpush1.msra.mxu0 0.0
      %7665 = vmatprep.subr.mxu0 0.0
      %7666 = vmatpush1.msra.mxu0 0.0
      %7667 = vmatprep.subr.mxu0 0.0
      %7668 = vmatpush1.msra.mxu0 0.0
      %7669 = vmatprep.subr.mxu0 0.0
      %7670 = vmatpush1.msra.mxu0 0.0
      %7671 = vmatprep.subr.mxu0 0.0
      %7672 = vmatpush1.msra.mxu0 0.0
      %7673 = vmatprep.subr.mxu0 0.0
      %7674 = vmatpush1.msra.mxu0 0.0
      %7675 = vmatprep.subr.mxu0 0.0
      %7676 = vmatpush1.msra.mxu0 0.0
      %7677 = vmatprep.subr.mxu0 0.0
      %7678 = vmatpush1.msra.mxu0 0.0
      %7679 = vmatprep.subr.mxu0 0.0
      %7680 = vmatpush1.msra.mxu0 0.0
      %7681 = vmatprep.subr.mxu0 0.0
      %7682 = vmatpush1.msra.mxu0 0.0
      %7683 = vmatprep.subr.mxu0 0.0
      %7684 = vmatpush1.msra.mxu0 0.0
      %7685 = vmatprep.subr.mxu0 0.0
      %7686 = vmatpush1.msra.mxu0 0.0
      %7687 = vmatprep.subr.mxu0 0.0
      %7688 = vmatpush1.msra.mxu0 0.0
      %7689 = vmatprep.subr.mxu0 0.0
      %7690 = vmatpush1.msra.mxu0 0.0
      %7691 = vmatprep.subr.mxu0 0.0
      %7692 = vmatpush1.msra.mxu0 0.0
      %7693 = vmatprep.subr.mxu0 0.0
      %7694 = vmatpush1.msra.mxu0 0.0
      %7695 = vmatprep.subr.mxu0 0.0
      %7696 = vmatpush1.msra.mxu0 0.0
      %7697 = vmatprep.subr.mxu0 0.0
      %7698 = vmatpush1.msra.mxu0 0.0
      %7699 = vmatprep.subr.mxu0 0.0
      %7700 = vmatpush1.msra.mxu0 0.0
      %7701 = vmatprep.subr.mxu0 0.0
      %7702 = vmatpush1.msra.mxu0 0.0
      %7703 = vmatprep.subr.mxu0 0.0
      %7704 = vmatpush1.msra.mxu0 0.0
      %7705 = vmatprep.subr.mxu0 0.0
      %7706 = vmatpush1.msra.mxu0 0.0
      %7707 = vmatprep.subr.mxu0 0.0
      %7708 = vmatpush1.msra.mxu0 0.0
      %7709 = vmatprep.subr.mxu0 0.0
      %7710 = vmatpush1.msra.mxu0 0.0
      %7711 = vmatprep.subr.mxu0 0.0
      %7712 = vmatpush1.msra.mxu0 0.0
      %7713 = vmatprep.subr.mxu0 0.0
      %7714 = vmatpush1.msra.mxu0 0.0
      %7715 = vmatprep.subr.mxu0 0.0
      %7716 = vmatpush1.msra.mxu0 0.0
      %7717 = vmatprep.subr.mxu0 0.0
      %7718 = vmatpush1.msra.mxu0 0.0
      %7719 = vmatprep.mubr.f32.mxu0 0.0
      %7720 = vmatmul.mubr.f32.gmra.mrb[0].mxu0 %v7582
      %v7721 = vpop.f32.mrb[0].mxu0
      %v7722 = vadd.f32 %v6499, %v7721
      %v7723 = vpop.f32.mrb[0].mxu0
      %v7724 = vadd.f32 %v6501, %v7723
      %7725 = vdwg.mxu0
      %7726 = vmatprep.subr.mxu0 %v6158
      %7727 = vmatpush1.msra.mxu0 %v6157
      %7728 = vmatprep.subr.mxu0 %v6192
      %7729 = vmatpush1.msra.mxu0 %v6191
      %7730 = vmatprep.subr.mxu0 %v6226
      %7731 = vmatpush1.msra.mxu0 %v6225
      %7732 = vmatprep.subr.mxu0 0.0
      %7733 = vmatpush1.msra.mxu0 0.0
      %7734 = vmatprep.subr.mxu0 0.0
      %7735 = vmatpush1.msra.mxu0 0.0
      %7736 = vmatprep.subr.mxu0 0.0
      %7737 = vmatpush1.msra.mxu0 0.0
      %7738 = vmatprep.subr.mxu0 0.0
      %7739 = vmatpush1.msra.mxu0 0.0
      %7740 = vmatprep.subr.mxu0 0.0
      %7741 = vmatpush1.msra.mxu0 0.0
      %7742 = vmatprep.subr.mxu0 0.0
      %7743 = vmatpush1.msra.mxu0 0.0
      %7744 = vmatprep.subr.mxu0 0.0
      %7745 = vmatpush1.msra.mxu0 0.0
      %7746 = vmatprep.subr.mxu0 0.0
      %7747 = vmatpush1.msra.mxu0 0.0
      %7748 = vmatprep.subr.mxu0 0.0
      %7749 = vmatpush1.msra.mxu0 0.0
      %7750 = vmatprep.subr.mxu0 0.0
      %7751 = vmatpush1.msra.mxu0 0.0
      %7752 = vmatprep.subr.mxu0 0.0
      %7753 = vmatpush1.msra.mxu0 0.0
      %7754 = vmatprep.subr.mxu0 0.0
      %7755 = vmatpush1.msra.mxu0 0.0
      %7756 = vmatprep.subr.mxu0 0.0
      %7757 = vmatpush1.msra.mxu0 0.0
      %7758 = vmatprep.subr.mxu0 0.0
      %7759 = vmatpush1.msra.mxu0 0.0
      %7760 = vmatprep.subr.mxu0 0.0
      %7761 = vmatpush1.msra.mxu0 0.0
      %7762 = vmatprep.subr.mxu0 0.0
      %7763 = vmatpush1.msra.mxu0 0.0
      %7764 = vmatprep.subr.mxu0 0.0
      %7765 = vmatpush1.msra.mxu0 0.0
      %7766 = vmatprep.subr.mxu0 0.0
      %7767 = vmatpush1.msra.mxu0 0.0
      %7768 = vmatprep.subr.mxu0 0.0
      %7769 = vmatpush1.msra.mxu0 0.0
      %7770 = vmatprep.subr.mxu0 0.0
      %7771 = vmatpush1.msra.mxu0 0.0
      %7772 = vmatprep.subr.mxu0 0.0
      %7773 = vmatpush1.msra.mxu0 0.0
      %7774 = vmatprep.subr.mxu0 0.0
      %7775 = vmatpush1.msra.mxu0 0.0
      %7776 = vmatprep.subr.mxu0 0.0
      %7777 = vmatpush1.msra.mxu0 0.0
      %7778 = vmatprep.subr.mxu0 0.0
      %7779 = vmatpush1.msra.mxu0 0.0
      %7780 = vmatprep.subr.mxu0 0.0
      %7781 = vmatpush1.msra.mxu0 0.0
      %7782 = vmatprep.subr.mxu0 0.0
      %7783 = vmatpush1.msra.mxu0 0.0
      %7784 = vmatprep.subr.mxu0 0.0
      %7785 = vmatpush1.msra.mxu0 0.0
      %7786 = vmatprep.subr.mxu0 0.0
      %7787 = vmatpush1.msra.mxu0 0.0
      %7788 = vmatprep.subr.mxu0 0.0
      %7789 = vmatpush1.msra.mxu0 0.0
      %7790 = vmatprep.mubr.f32.mxu0 0.0
      %7791 = vmatmul.mubr.f32.gmra.mrb[0].mxu0 %v7582
      %v7792 = vpop.f32.mrb[0].mxu0
      %v7793 = vadd.f32 %v6570, %v7792
      %v7794 = vpop.f32.mrb[0].mxu0
      %v7795 = vadd.f32 %v6572, %v7794
      %7796 = vdwg.mxu0
      %7797 = vmatprep.subr.mxu0 %v6160
      %7798 = vmatpush1.msra.mxu0 %v6159
      %7799 = vmatprep.subr.mxu0 %v6194
      %7800 = vmatpush1.msra.mxu0 %v6193
      %7801 = vmatprep.subr.mxu0 %v6228
      %7802 = vmatpush1.msra.mxu0 %v6227
      %7803 = vmatprep.subr.mxu0 0.0
      %7804 = vmatpush1.msra.mxu0 0.0
      %7805 = vmatprep.subr.mxu0 0.0
      %7806 = vmatpush1.msra.mxu0 0.0
      %7807 = vmatprep.subr.mxu0 0.0
      %7808 = vmatpush1.msra.mxu0 0.0
      %7809 = vmatprep.subr.mxu0 0.0
      %7810 = vmatpush1.msra.mxu0 0.0
      %7811 = vmatprep.subr.mxu0 0.0
      %7812 = vmatpush1.msra.mxu0 0.0
      %7813 = vmatprep.subr.mxu0 0.0
      %7814 = vmatpush1.msra.mxu0 0.0
      %7815 = vmatprep.subr.mxu0 0.0
      %7816 = vmatpush1.msra.mxu0 0.0
      %7817 = vmatprep.subr.mxu0 0.0
      %7818 = vmatpush1.msra.mxu0 0.0
      %7819 = vmatprep.subr.mxu0 0.0
      %7820 = vmatpush1.msra.mxu0 0.0
      %7821 = vmatprep.subr.mxu0 0.0
      %7822 = vmatpush1.msra.mxu0 0.0
      %7823 = vmatprep.subr.mxu0 0.0
      %7824 = vmatpush1.msra.mxu0 0.0
      %7825 = vmatprep.subr.mxu0 0.0
      %7826 = vmatpush1.msra.mxu0 0.0
      %7827 = vmatprep.subr.mxu0 0.0
      %7828 = vmatpush1.msra.mxu0 0.0
      %7829 = vmatprep.subr.mxu0 0.0
      %7830 = vmatpush1.msra.mxu0 0.0
      %7831 = vmatprep.subr.mxu0 0.0
      %7832 = vmatpush1.msra.mxu0 0.0
      %7833 = vmatprep.subr.mxu0 0.0
      %7834 = vmatpush1.msra.mxu0 0.0
      %7835 = vmatprep.subr.mxu0 0.0
      %7836 = vmatpush1.msra.mxu0 0.0
      %7837 = vmatprep.subr.mxu0 0.0
      %7838 = vmatpush1.msra.mxu0 0.0
      %7839 = vmatprep.subr.mxu0 0.0
      %7840 = vmatpush1.msra.mxu0 0.0
      %7841 = vmatprep.subr.mxu0 0.0
      %7842 = vmatpush1.msra.mxu0 0.0
      %7843 = vmatprep.subr.mxu0 0.0
      %7844 = vmatpush1.msra.mxu0 0.0
      %7845 = vmatprep.subr.mxu0 0.0
      %7846 = vmatpush1.msra.mxu0 0.0
      %7847 = vmatprep.subr.mxu0 0.0
      %7848 = vmatpush1.msra.mxu0 0.0
      %7849 = vmatprep.subr.mxu0 0.0
      %7850 = vmatpush1.msra.mxu0 0.0
      %7851 = vmatprep.subr.mxu0 0.0
      %7852 = vmatpush1.msra.mxu0 0.0
      %7853 = vmatprep.subr.mxu0 0.0
      %7854 = vmatpush1.msra.mxu0 0.0
      %7855 = vmatprep.subr.mxu0 0.0
      %7856 = vmatpush1.msra.mxu0 0.0
      %7857 = vmatprep.subr.mxu0 0.0
      %7858 = vmatpush1.msra.mxu0 0.0
      %7859 = vmatprep.subr.mxu0 0.0
      %7860 = vmatpush1.msra.mxu0 0.0
      %7861 = vmatprep.mubr.f32.mxu0 0.0
      %7862 = vmatmul.mubr.f32.gmra.mrb[0].mxu0 %v7582
      %v7863 = vpop.f32.mrb[0].mxu0
      %v7864 = vadd.f32 %v6641, %v7863
      %v7865 = vpop.f32.mrb[0].mxu0
      %v7866 = vadd.f32 %v6643, %v7865
      %7867 = vdwg.mxu0
      %7868 = vmatprep.subr.mxu0 %v6162
      %7869 = vmatpush1.msra.mxu0 %v6161
      %7870 = vmatprep.subr.mxu0 %v6196
      %7871 = vmatpush1.msra.mxu0 %v6195
      %7872 = vmatprep.subr.mxu0 %v6230
      %7873 = vmatpush1.msra.mxu0 %v6229
      %7874 = vmatprep.subr.mxu0 0.0
      %7875 = vmatpush1.msra.mxu0 0.0
      %7876 = vmatprep.subr.mxu0 0.0
      %7877 = vmatpush1.msra.mxu0 0.0
      %7878 = vmatprep.subr.mxu0 0.0
      %7879 = vmatpush1.msra.mxu0 0.0
      %7880 = vmatprep.subr.mxu0 0.0
      %7881 = vmatpush1.msra.mxu0 0.0
      %7882 = vmatprep.subr.mxu0 0.0
      %7883 = vmatpush1.msra.mxu0 0.0
      %7884 = vmatprep.subr.mxu0 0.0
      %7885 = vmatpush1.msra.mxu0 0.0
      %7886 = vmatprep.subr.mxu0 0.0
      %7887 = vmatpush1.msra.mxu0 0.0
      %7888 = vmatprep.subr.mxu0 0.0
      %7889 = vmatpush1.msra.mxu0 0.0
      %7890 = vmatprep.subr.mxu0 0.0
      %7891 = vmatpush1.msra.mxu0 0.0
      %7892 = vmatprep.subr.mxu0 0.0
      %7893 = vmatpush1.msra.mxu0 0.0
      %7894 = vmatprep.subr.mxu0 0.0
      %7895 = vmatpush1.msra.mxu0 0.0
      %7896 = vmatprep.subr.mxu0 0.0
      %7897 = vmatpush1.msra.mxu0 0.0
      %7898 = vmatprep.subr.mxu0 0.0
      %7899 = vmatpush1.msra.mxu0 0.0
      %7900 = vmatprep.subr.mxu0 0.0
      %7901 = vmatpush1.msra.mxu0 0.0
      %7902 = vmatprep.subr.mxu0 0.0
      %7903 = vmatpush1.msra.mxu0 0.0
      %7904 = vmatprep.subr.mxu0 0.0
      %7905 = vmatpush1.msra.mxu0 0.0
      %7906 = vmatprep.subr.mxu0 0.0
      %7907 = vmatpush1.msra.mxu0 0.0
      %7908 = vmatprep.subr.mxu0 0.0
      %7909 = vmatpush1.msra.mxu0 0.0
      %7910 = vmatprep.subr.mxu0 0.0
      %7911 = vmatpush1.msra.mxu0 0.0
      %7912 = vmatprep.subr.mxu0 0.0
      %7913 = vmatpush1.msra.mxu0 0.0
      %7914 = vmatprep.subr.mxu0 0.0
      %7915 = vmatpush1.msra.mxu0 0.0
      %7916 = vmatprep.subr.mxu0 0.0
      %7917 = vmatpush1.msra.mxu0 0.0
      %7918 = vmatprep.subr.mxu0 0.0
      %7919 = vmatpush1.msra.mxu0 0.0
      %7920 = vmatprep.subr.mxu0 0.0
      %7921 = vmatpush1.msra.mxu0 0.0
      %7922 = vmatprep.subr.mxu0 0.0
      %7923 = vmatpush1.msra.mxu0 0.0
      %7924 = vmatprep.subr.mxu0 0.0
      %7925 = vmatpush1.msra.mxu0 0.0
      %7926 = vmatprep.subr.mxu0 0.0
      %7927 = vmatpush1.msra.mxu0 0.0
      %7928 = vmatprep.subr.mxu0 0.0
      %7929 = vmatpush1.msra.mxu0 0.0
      %7930 = vmatprep.subr.mxu0 0.0
      %7931 = vmatpush1.msra.mxu0 0.0
      %7932 = vmatprep.mubr.f32.mxu0 0.0
      %7933 = vmatmul.mubr.f32.gmra.mrb[0].mxu0 %v7582
      %v7934 = vpop.f32.mrb[0].mxu0
      %v7935 = vadd.f32 %v6712, %v7934
      %v7936 = vpop.f32.mrb[0].mxu0
      %v7937 = vadd.f32 %v6714, %v7936
      %7938 = vdwg.mxu0
      %7939 = vmatprep.subr.mxu0 %v6164
      %7940 = vmatpush1.msra.mxu0 %v6163
      %7941 = vmatprep.subr.mxu0 %v6198
      %7942 = vmatpush1.msra.mxu0 %v6197
      %7943 = vmatprep.subr.mxu0 %v6232
      %7944 = vmatpush1.msra.mxu0 %v6231
      %7945 = vmatprep.subr.mxu0 0.0
      %7946 = vmatpush1.msra.mxu0 0.0
      %7947 = vmatprep.subr.mxu0 0.0
      %7948 = vmatpush1.msra.mxu0 0.0
      %7949 = vmatprep.subr.mxu0 0.0
      %7950 = vmatpush1.msra.mxu0 0.0
      %7951 = vmatprep.subr.mxu0 0.0
      %7952 = vmatpush1.msra.mxu0 0.0
      %7953 = vmatprep.subr.mxu0 0.0
      %7954 = vmatpush1.msra.mxu0 0.0
      %7955 = vmatprep.subr.mxu0 0.0
      %7956 = vmatpush1.msra.mxu0 0.0
      %7957 = vmatprep.subr.mxu0 0.0
      %7958 = vmatpush1.msra.mxu0 0.0
      %7959 = vmatprep.subr.mxu0 0.0
      %7960 = vmatpush1.msra.mxu0 0.0
      %7961 = vmatprep.subr.mxu0 0.0
      %7962 = vmatpush1.msra.mxu0 0.0
      %7963 = vmatprep.subr.mxu0 0.0
      %7964 = vmatpush1.msra.mxu0 0.0
      %7965 = vmatprep.subr.mxu0 0.0
      %7966 = vmatpush1.msra.mxu0 0.0
      %7967 = vmatprep.subr.mxu0 0.0
      %7968 = vmatpush1.msra.mxu0 0.0
      %7969 = vmatprep.subr.mxu0 0.0
      %7970 = vmatpush1.msra.mxu0 0.0
      %7971 = vmatprep.subr.mxu0 0.0
      %7972 = vmatpush1.msra.mxu0 0.0
      %7973 = vmatprep.subr.mxu0 0.0
      %7974 = vmatpush1.msra.mxu0 0.0
      %7975 = vmatprep.subr.mxu0 0.0
      %7976 = vmatpush1.msra.mxu0 0.0
      %7977 = vmatprep.subr.mxu0 0.0
      %7978 = vmatpush1.msra.mxu0 0.0
      %7979 = vmatprep.subr.mxu0 0.0
      %7980 = vmatpush1.msra.mxu0 0.0
      %7981 = vmatprep.subr.mxu0 0.0
      %7982 = vmatpush1.msra.mxu0 0.0
      %7983 = vmatprep.subr.mxu0 0.0
      %7984 = vmatpush1.msra.mxu0 0.0
      %7985 = vmatprep.subr.mxu0 0.0
      %7986 = vmatpush1.msra.mxu0 0.0
      %7987 = vmatprep.subr.mxu0 0.0
      %7988 = vmatpush1.msra.mxu0 0.0
      %7989 = vmatprep.subr.mxu0 0.0
      %7990 = vmatpush1.msra.mxu0 0.0
      %7991 = vmatprep.subr.mxu0 0.0
      %7992 = vmatpush1.msra.mxu0 0.0
      %7993 = vmatprep.subr.mxu0 0.0
      %7994 = vmatpush1.msra.mxu0 0.0
      %7995 = vmatprep.subr.mxu0 0.0
      %7996 = vmatpush1.msra.mxu0 0.0
      %7997 = vmatprep.subr.mxu0 0.0
      %7998 = vmatpush1.msra.mxu0 0.0
      %7999 = vmatprep.subr.mxu0 0.0
      %8000 = vmatpush1.msra.mxu0 0.0
      %8001 = vmatprep.subr.mxu0 0.0
      %8002 = vmatpush1.msra.mxu0 0.0
      %8003 = vmatprep.mubr.f32.mxu0 0.0
      %8004 = vmatmul.mubr.f32.gmra.mrb[0].mxu0 %v7582
      %v8005 = vpop.f32.mrb[0].mxu0
      %v8006 = vadd.f32 %v6783, %v8005
      %v8007 = vpop.f32.mrb[0].mxu0
      %v8008 = vadd.f32 %v6785, %v8007
      %8009 = vdwg.mxu0
      %8010 = vmatprep.subr.mxu0 %v6166
      %8011 = vmatpush1.msra.mxu0 %v6165
      %8012 = vmatprep.subr.mxu0 %v6200
      %8013 = vmatpush1.msra.mxu0 %v6199
      %8014 = vmatprep.subr.mxu0 %v6234
      %8015 = vmatpush1.msra.mxu0 %v6233
      %8016 = vmatprep.subr.mxu0 0.0
      %8017 = vmatpush1.msra.mxu0 0.0
      %8018 = vmatprep.subr.mxu0 0.0
      %8019 = vmatpush1.msra.mxu0 0.0
      %8020 = vmatprep.subr.mxu0 0.0
      %8021 = vmatpush1.msra.mxu0 0.0
      %8022 = vmatprep.subr.mxu0 0.0
      %8023 = vmatpush1.msra.mxu0 0.0
      %8024 = vmatprep.subr.mxu0 0.0
      %8025 = vmatpush1.msra.mxu0 0.0
      %8026 = vmatprep.subr.mxu0 0.0
      %8027 = vmatpush1.msra.mxu0 0.0
      %8028 = vmatprep.subr.mxu0 0.0
      %8029 = vmatpush1.msra.mxu0 0.0
      %8030 = vmatprep.subr.mxu0 0.0
      %8031 = vmatpush1.msra.mxu0 0.0
      %8032 = vmatprep.subr.mxu0 0.0
      %8033 = vmatpush1.msra.mxu0 0.0
      %8034 = vmatprep.subr.mxu0 0.0
      %8035 = vmatpush1.msra.mxu0 0.0
      %8036 = vmatprep.subr.mxu0 0.0
      %8037 = vmatpush1.msra.mxu0 0.0
      %8038 = vmatprep.subr.mxu0 0.0
      %8039 = vmatpush1.msra.mxu0 0.0
      %8040 = vmatprep.subr.mxu0 0.0
      %8041 = vmatpush1.msra.mxu0 0.0
      %8042 = vmatprep.subr.mxu0 0.0
      %8043 = vmatpush1.msra.mxu0 0.0
      %8044 = vmatprep.subr.mxu0 0.0
      %8045 = vmatpush1.msra.mxu0 0.0
      %8046 = vmatprep.subr.mxu0 0.0
      %8047 = vmatpush1.msra.mxu0 0.0
      %8048 = vmatprep.subr.mxu0 0.0
      %8049 = vmatpush1.msra.mxu0 0.0
      %8050 = vmatprep.subr.mxu0 0.0
      %8051 = vmatpush1.msra.mxu0 0.0
      %8052 = vmatprep.subr.mxu0 0.0
      %8053 = vmatpush1.msra.mxu0 0.0
      %8054 = vmatprep.subr.mxu0 0.0
      %8055 = vmatpush1.msra.mxu0 0.0
      %8056 = vmatprep.subr.mxu0 0.0
      %8057 = vmatpush1.msra.mxu0 0.0
      %8058 = vmatprep.subr.mxu0 0.0
      %8059 = vmatpush1.msra.mxu0 0.0
      %8060 = vmatprep.subr.mxu0 0.0
      %8061 = vmatpush1.msra.mxu0 0.0
      %8062 = vmatprep.subr.mxu0 0.0
      %8063 = vmatpush1.msra.mxu0 0.0
      %8064 = vmatprep.subr.mxu0 0.0
      %8065 = vmatpush1.msra.mxu0 0.0
      %8066 = vmatprep.subr.mxu0 0.0
      %8067 = vmatpush1.msra.mxu0 0.0
      %8068 = vmatprep.subr.mxu0 0.0
      %8069 = vmatpush1.msra.mxu0 0.0
      %8070 = vmatprep.subr.mxu0 0.0
      %8071 = vmatpush1.msra.mxu0 0.0
      %8072 = vmatprep.subr.mxu0 0.0
      %8073 = vmatpush1.msra.mxu0 0.0
      %8074 = vmatprep.mubr.f32.mxu0 0.0
      %8075 = vmatmul.mubr.f32.gmra.mrb[0].mxu0 %v7582
      %v8076 = vpop.f32.mrb[0].mxu0
      %v8077 = vadd.f32 %v6854, %v8076
      %v8078 = vpop.f32.mrb[0].mxu0
      %v8079 = vadd.f32 %v6856, %v8078
      %8080 = vdwg.mxu0
      %8081 = vmatprep.subr.mxu0 %v6168
      %8082 = vmatpush1.msra.mxu0 %v6167
      %8083 = vmatprep.subr.mxu0 %v6202
      %8084 = vmatpush1.msra.mxu0 %v6201
      %8085 = vmatprep.subr.mxu0 %v6236
      %8086 = vmatpush1.msra.mxu0 %v6235
      %8087 = vmatprep.subr.mxu0 0.0
      %8088 = vmatpush1.msra.mxu0 0.0
      %8089 = vmatprep.subr.mxu0 0.0
      %8090 = vmatpush1.msra.mxu0 0.0
      %8091 = vmatprep.subr.mxu0 0.0
      %8092 = vmatpush1.msra.mxu0 0.0
      %8093 = vmatprep.subr.mxu0 0.0
      %8094 = vmatpush1.msra.mxu0 0.0
      %8095 = vmatprep.subr.mxu0 0.0
      %8096 = vmatpush1.msra.mxu0 0.0
      %8097 = vmatprep.subr.mxu0 0.0
      %8098 = vmatpush1.msra.mxu0 0.0
      %8099 = vmatprep.subr.mxu0 0.0
      %8100 = vmatpush1.msra.mxu0 0.0
      %8101 = vmatprep.subr.mxu0 0.0
      %8102 = vmatpush1.msra.mxu0 0.0
      %8103 = vmatprep.subr.mxu0 0.0
      %8104 = vmatpush1.msra.mxu0 0.0
      %8105 = vmatprep.subr.mxu0 0.0
      %8106 = vmatpush1.msra.mxu0 0.0
      %8107 = vmatprep.subr.mxu0 0.0
      %8108 = vmatpush1.msra.mxu0 0.0
      %8109 = vmatprep.subr.mxu0 0.0
      %8110 = vmatpush1.msra.mxu0 0.0
      %8111 = vmatprep.subr.mxu0 0.0
      %8112 = vmatpush1.msra.mxu0 0.0
      %8113 = vmatprep.subr.mxu0 0.0
      %8114 = vmatpush1.msra.mxu0 0.0
      %8115 = vmatprep.subr.mxu0 0.0
      %8116 = vmatpush1.msra.mxu0 0.0
      %8117 = vmatprep.subr.mxu0 0.0
      %8118 = vmatpush1.msra.mxu0 0.0
      %8119 = vmatprep.subr.mxu0 0.0
      %8120 = vmatpush1.msra.mxu0 0.0
      %8121 = vmatprep.subr.mxu0 0.0
      %8122 = vmatpush1.msra.mxu0 0.0
      %8123 = vmatprep.subr.mxu0 0.0
      %8124 = vmatpush1.msra.mxu0 0.0
      %8125 = vmatprep.subr.mxu0 0.0
      %8126 = vmatpush1.msra.mxu0 0.0
      %8127 = vmatprep.subr.mxu0 0.0
      %8128 = vmatpush1.msra.mxu0 0.0
      %8129 = vmatprep.subr.mxu0 0.0
      %8130 = vmatpush1.msra.mxu0 0.0
      %8131 = vmatprep.subr.mxu0 0.0
      %8132 = vmatpush1.msra.mxu0 0.0
      %8133 = vmatprep.subr.mxu0 0.0
      %8134 = vmatpush1.msra.mxu0 0.0
      %8135 = vmatprep.subr.mxu0 0.0
      %8136 = vmatpush1.msra.mxu0 0.0
      %8137 = vmatprep.subr.mxu0 0.0
      %8138 = vmatpush1.msra.mxu0 0.0
      %8139 = vmatprep.subr.mxu0 0.0
      %8140 = vmatpush1.msra.mxu0 0.0
      %8141 = vmatprep.subr.mxu0 0.0
      %8142 = vmatpush1.msra.mxu0 0.0
      %8143 = vmatprep.subr.mxu0 0.0
      %8144 = vmatpush1.msra.mxu0 0.0
      %8145 = vmatprep.mubr.f32.mxu0 0.0
      %8146 = vmatmul.mubr.f32.gmra.mrb[0].mxu0 %v7582
      %v8147 = vpop.f32.mrb[0].mxu0
      %v8148 = vadd.f32 %v6925, %v8147
      %v8149 = vpop.f32.mrb[0].mxu0
      %v8150 = vadd.f32 %v6927, %v8149
      %8151 = vdwg.mxu0
      %8152 = vmatprep.subr.mxu0 %v6170
      %8153 = vmatpush1.msra.mxu0 %v6169
      %8154 = vmatprep.subr.mxu0 %v6204
      %8155 = vmatpush1.msra.mxu0 %v6203
      %8156 = vmatprep.subr.mxu0 %v6238
      %8157 = vmatpush1.msra.mxu0 %v6237
      %8158 = vmatprep.subr.mxu0 0.0
      %8159 = vmatpush1.msra.mxu0 0.0
      %8160 = vmatprep.subr.mxu0 0.0
      %8161 = vmatpush1.msra.mxu0 0.0
      %8162 = vmatprep.subr.mxu0 0.0
      %8163 = vmatpush1.msra.mxu0 0.0
      %8164 = vmatprep.subr.mxu0 0.0
      %8165 = vmatpush1.msra.mxu0 0.0
      %8166 = vmatprep.subr.mxu0 0.0
      %8167 = vmatpush1.msra.mxu0 0.0
      %8168 = vmatprep.subr.mxu0 0.0
      %8169 = vmatpush1.msra.mxu0 0.0
      %8170 = vmatprep.subr.mxu0 0.0
      %8171 = vmatpush1.msra.mxu0 0.0
      %8172 = vmatprep.subr.mxu0 0.0
      %8173 = vmatpush1.msra.mxu0 0.0
      %8174 = vmatprep.subr.mxu0 0.0
      %8175 = vmatpush1.msra.mxu0 0.0
      %8176 = vmatprep.subr.mxu0 0.0
      %8177 = vmatpush1.msra.mxu0 0.0
      %8178 = vmatprep.subr.mxu0 0.0
      %8179 = vmatpush1.msra.mxu0 0.0
      %8180 = vmatprep.subr.mxu0 0.0
      %8181 = vmatpush1.msra.mxu0 0.0
      %8182 = vmatprep.subr.mxu0 0.0
      %8183 = vmatpush1.msra.mxu0 0.0
      %8184 = vmatprep.subr.mxu0 0.0
      %8185 = vmatpush1.msra.mxu0 0.0
      %8186 = vmatprep.subr.mxu0 0.0
      %8187 = vmatpush1.msra.mxu0 0.0
      %8188 = vmatprep.subr.mxu0 0.0
      %8189 = vmatpush1.msra.mxu0 0.0
      %8190 = vmatprep.subr.mxu0 0.0
      %8191 = vmatpush1.msra.mxu0 0.0
      %8192 = vmatprep.subr.mxu0 0.0
      %8193 = vmatpush1.msra.mxu0 0.0
      %8194 = vmatprep.subr.mxu0 0.0
      %8195 = vmatpush1.msra.mxu0 0.0
      %8196 = vmatprep.subr.mxu0 0.0
      %8197 = vmatpush1.msra.mxu0 0.0
      %8198 = vmatprep.subr.mxu0 0.0
      %8199 = vmatpush1.msra.mxu0 0.0
      %8200 = vmatprep.subr.mxu0 0.0
      %8201 = vmatpush1.msra.mxu0 0.0
      %8202 = vmatprep.subr.mxu0 0.0
      %8203 = vmatpush1.msra.mxu0 0.0
      %8204 = vmatprep.subr.mxu0 0.0
      %8205 = vmatpush1.msra.mxu0 0.0
      %8206 = vmatprep.subr.mxu0 0.0
      %8207 = vmatpush1.msra.mxu0 0.0
      %8208 = vmatprep.subr.mxu0 0.0
      %8209 = vmatpush1.msra.mxu0 0.0
      %8210 = vmatprep.subr.mxu0 0.0
      %8211 = vmatpush1.msra.mxu0 0.0
      %8212 = vmatprep.subr.mxu0 0.0
      %8213 = vmatpush1.msra.mxu0 0.0
      %8214 = vmatprep.subr.mxu0 0.0
      %8215 = vmatpush1.msra.mxu0 0.0
      %8216 = vmatprep.mubr.f32.mxu0 0.0
      %8217 = vmatmul.mubr.f32.gmra.mrb[0].mxu0 %v7582
      %v8218 = vpop.f32.mrb[0].mxu0
      %v8219 = vadd.f32 %v6996, %v8218
      %v8220 = vpop.f32.mrb[0].mxu0
      %v8221 = vadd.f32 %v6998, %v8220
      %8222 = vdwg.mxu0
      %8223 = vmatprep.subr.mxu0 %v6172
      %8224 = vmatpush1.msra.mxu0 %v6171
      %8225 = vmatprep.subr.mxu0 %v6206
      %8226 = vmatpush1.msra.mxu0 %v6205
      %8227 = vmatprep.subr.mxu0 %v6240
      %8228 = vmatpush1.msra.mxu0 %v6239
      %8229 = vmatprep.subr.mxu0 0.0
      %8230 = vmatpush1.msra.mxu0 0.0
      %8231 = vmatprep.subr.mxu0 0.0
      %8232 = vmatpush1.msra.mxu0 0.0
      %8233 = vmatprep.subr.mxu0 0.0
      %8234 = vmatpush1.msra.mxu0 0.0
      %8235 = vmatprep.subr.mxu0 0.0
      %8236 = vmatpush1.msra.mxu0 0.0
      %8237 = vmatprep.subr.mxu0 0.0
      %8238 = vmatpush1.msra.mxu0 0.0
      %8239 = vmatprep.subr.mxu0 0.0
      %8240 = vmatpush1.msra.mxu0 0.0
      %8241 = vmatprep.subr.mxu0 0.0
      %8242 = vmatpush1.msra.mxu0 0.0
      %8243 = vmatprep.subr.mxu0 0.0
      %8244 = vmatpush1.msra.mxu0 0.0
      %8245 = vmatprep.subr.mxu0 0.0
      %8246 = vmatpush1.msra.mxu0 0.0
      %8247 = vmatprep.subr.mxu0 0.0
      %8248 = vmatpush1.msra.mxu0 0.0
      %8249 = vmatprep.subr.mxu0 0.0
      %8250 = vmatpush1.msra.mxu0 0.0
      %8251 = vmatprep.subr.mxu0 0.0
      %8252 = vmatpush1.msra.mxu0 0.0
      %8253 = vmatprep.subr.mxu0 0.0
      %8254 = vmatpush1.msra.mxu0 0.0
      %8255 = vmatprep.subr.mxu0 0.0
      %8256 = vmatpush1.msra.mxu0 0.0
      %8257 = vmatprep.subr.mxu0 0.0
      %8258 = vmatpush1.msra.mxu0 0.0
      %8259 = vmatprep.subr.mxu0 0.0
      %8260 = vmatpush1.msra.mxu0 0.0
      %8261 = vmatprep.subr.mxu0 0.0
      %8262 = vmatpush1.msra.mxu0 0.0
      %8263 = vmatprep.subr.mxu0 0.0
      %8264 = vmatpush1.msra.mxu0 0.0
      %8265 = vmatprep.subr.mxu0 0.0
      %8266 = vmatpush1.msra.mxu0 0.0
      %8267 = vmatprep.subr.mxu0 0.0
      %8268 = vmatpush1.msra.mxu0 0.0
      %8269 = vmatprep.subr.mxu0 0.0
      %8270 = vmatpush1.msra.mxu0 0.0
      %8271 = vmatprep.subr.mxu0 0.0
      %8272 = vmatpush1.msra.mxu0 0.0
      %8273 = vmatprep.subr.mxu0 0.0
      %8274 = vmatpush1.msra.mxu0 0.0
      %8275 = vmatprep.subr.mxu0 0.0
      %8276 = vmatpush1.msra.mxu0 0.0
      %8277 = vmatprep.subr.mxu0 0.0
      %8278 = vmatpush1.msra.mxu0 0.0
      %8279 = vmatprep.subr.mxu0 0.0
      %8280 = vmatpush1.msra.mxu0 0.0
      %8281 = vmatprep.subr.mxu0 0.0
      %8282 = vmatpush1.msra.mxu0 0.0
      %8283 = vmatprep.subr.mxu0 0.0
      %8284 = vmatpush1.msra.mxu0 0.0
      %8285 = vmatprep.subr.mxu0 0.0
      %8286 = vmatpush1.msra.mxu0 0.0
      %8287 = vmatprep.mubr.f32.mxu0 0.0
      %8288 = vmatmul.mubr.f32.gmra.mrb[0].mxu0 %v7582
      %v8289 = vpop.f32.mrb[0].mxu0
      %v8290 = vadd.f32 %v7067, %v8289
      %v8291 = vpop.f32.mrb[0].mxu0
      %v8292 = vadd.f32 %v7069, %v8291
      %8293 = vdwg.mxu0
      %8294 = vmatprep.subr.mxu0 %v6174
      %8295 = vmatpush1.msra.mxu0 %v6173
      %8296 = vmatprep.subr.mxu0 %v6208
      %8297 = vmatpush1.msra.mxu0 %v6207
      %8298 = vmatprep.subr.mxu0 %v6242
      %8299 = vmatpush1.msra.mxu0 %v6241
      %8300 = vmatprep.subr.mxu0 0.0
      %8301 = vmatpush1.msra.mxu0 0.0
      %8302 = vmatprep.subr.mxu0 0.0
      %8303 = vmatpush1.msra.mxu0 0.0
      %8304 = vmatprep.subr.mxu0 0.0
      %8305 = vmatpush1.msra.mxu0 0.0
      %8306 = vmatprep.subr.mxu0 0.0
      %8307 = vmatpush1.msra.mxu0 0.0
      %8308 = vmatprep.subr.mxu0 0.0
      %8309 = vmatpush1.msra.mxu0 0.0
      %8310 = vmatprep.subr.mxu0 0.0
      %8311 = vmatpush1.msra.mxu0 0.0
      %8312 = vmatprep.subr.mxu0 0.0
      %8313 = vmatpush1.msra.mxu0 0.0
      %8314 = vmatprep.subr.mxu0 0.0
      %8315 = vmatpush1.msra.mxu0 0.0
      %8316 = vmatprep.subr.mxu0 0.0
      %8317 = vmatpush1.msra.mxu0 0.0
      %8318 = vmatprep.subr.mxu0 0.0
      %8319 = vmatpush1.msra.mxu0 0.0
      %8320 = vmatprep.subr.mxu0 0.0
      %8321 = vmatpush1.msra.mxu0 0.0
      %8322 = vmatprep.subr.mxu0 0.0
      %8323 = vmatpush1.msra.mxu0 0.0
      %8324 = vmatprep.subr.mxu0 0.0
      %8325 = vmatpush1.msra.mxu0 0.0
      %8326 = vmatprep.subr.mxu0 0.0
      %8327 = vmatpush1.msra.mxu0 0.0
      %8328 = vmatprep.subr.mxu0 0.0
      %8329 = vmatpush1.msra.mxu0 0.0
      %8330 = vmatprep.subr.mxu0 0.0
      %8331 = vmatpush1.msra.mxu0 0.0
      %8332 = vmatprep.subr.mxu0 0.0
      %8333 = vmatpush1.msra.mxu0 0.0
      %8334 = vmatprep.subr.mxu0 0.0
      %8335 = vmatpush1.msra.mxu0 0.0
      %8336 = vmatprep.subr.mxu0 0.0
      %8337 = vmatpush1.msra.mxu0 0.0
      %8338 = vmatprep.subr.mxu0 0.0
      %8339 = vmatpush1.msra.mxu0 0.0
      %8340 = vmatprep.subr.mxu0 0.0
      %8341 = vmatpush1.msra.mxu0 0.0
      %8342 = vmatprep.subr.mxu0 0.0
      %8343 = vmatpush1.msra.mxu0 0.0
      %8344 = vmatprep.subr.mxu0 0.0
      %8345 = vmatpush1.msra.mxu0 0.0
      %8346 = vmatprep.subr.mxu0 0.0
      %8347 = vmatpush1.msra.mxu0 0.0
      %8348 = vmatprep.subr.mxu0 0.0
      %8349 = vmatpush1.msra.mxu0 0.0
      %8350 = vmatprep.subr.mxu0 0.0
      %8351 = vmatpush1.msra.mxu0 0.0
      %8352 = vmatprep.subr.mxu0 0.0
      %8353 = vmatpush1.msra.mxu0 0.0
      %8354 = vmatprep.subr.mxu0 0.0
      %8355 = vmatpush1.msra.mxu0 0.0
      %8356 = vmatprep.subr.mxu0 0.0
      %8357 = vmatpush1.msra.mxu0 0.0
      %8358 = vmatprep.mubr.f32.mxu0 0.0
      %8359 = vmatmul.mubr.f32.gmra.mrb[0].mxu0 %v7582
      %v8360 = vpop.f32.mrb[0].mxu0
      %v8361 = vadd.f32 %v7138, %v8360
      %v8362 = vpop.f32.mrb[0].mxu0
      %v8363 = vadd.f32 %v7140, %v8362
      %8364 = vdwg.mxu0
      %8365 = vmatprep.subr.mxu0 %v6176
      %8366 = vmatpush1.msra.mxu0 %v6175
      %8367 = vmatprep.subr.mxu0 %v6210
      %8368 = vmatpush1.msra.mxu0 %v6209
      %8369 = vmatprep.subr.mxu0 %v6244
      %8370 = vmatpush1.msra.mxu0 %v6243
      %8371 = vmatprep.subr.mxu0 0.0
      %8372 = vmatpush1.msra.mxu0 0.0
      %8373 = vmatprep.subr.mxu0 0.0
      %8374 = vmatpush1.msra.mxu0 0.0
      %8375 = vmatprep.subr.mxu0 0.0
      %8376 = vmatpush1.msra.mxu0 0.0
      %8377 = vmatprep.subr.mxu0 0.0
      %8378 = vmatpush1.msra.mxu0 0.0
      %8379 = vmatprep.subr.mxu0 0.0
      %8380 = vmatpush1.msra.mxu0 0.0
      %8381 = vmatprep.subr.mxu0 0.0
      %8382 = vmatpush1.msra.mxu0 0.0
      %8383 = vmatprep.subr.mxu0 0.0
      %8384 = vmatpush1.msra.mxu0 0.0
      %8385 = vmatprep.subr.mxu0 0.0
      %8386 = vmatpush1.msra.mxu0 0.0
      %8387 = vmatprep.subr.mxu0 0.0
      %8388 = vmatpush1.msra.mxu0 0.0
      %8389 = vmatprep.subr.mxu0 0.0
      %8390 = vmatpush1.msra.mxu0 0.0
      %8391 = vmatprep.subr.mxu0 0.0
      %8392 = vmatpush1.msra.mxu0 0.0
      %8393 = vmatprep.subr.mxu0 0.0
      %8394 = vmatpush1.msra.mxu0 0.0
      %8395 = vmatprep.subr.mxu0 0.0
      %8396 = vmatpush1.msra.mxu0 0.0
      %8397 = vmatprep.subr.mxu0 0.0
      %8398 = vmatpush1.msra.mxu0 0.0
      %8399 = vmatprep.subr.mxu0 0.0
      %8400 = vmatpush1.msra.mxu0 0.0
      %8401 = vmatprep.subr.mxu0 0.0
      %8402 = vmatpush1.msra.mxu0 0.0
      %8403 = vmatprep.subr.mxu0 0.0
      %8404 = vmatpush1.msra.mxu0 0.0
      %8405 = vmatprep.subr.mxu0 0.0
      %8406 = vmatpush1.msra.mxu0 0.0
      %8407 = vmatprep.subr.mxu0 0.0
      %8408 = vmatpush1.msra.mxu0 0.0
      %8409 = vmatprep.subr.mxu0 0.0
      %8410 = vmatpush1.msra.mxu0 0.0
      %8411 = vmatprep.subr.mxu0 0.0
      %8412 = vmatpush1.msra.mxu0 0.0
      %8413 = vmatprep.subr.mxu0 0.0
      %8414 = vmatpush1.msra.mxu0 0.0
      %8415 = vmatprep.subr.mxu0 0.0
      %8416 = vmatpush1.msra.mxu0 0.0
      %8417 = vmatprep.subr.mxu0 0.0
      %8418 = vmatpush1.msra.mxu0 0.0
      %8419 = vmatprep.subr.mxu0 0.0
      %8420 = vmatpush1.msra.mxu0 0.0
      %8421 = vmatprep.subr.mxu0 0.0
      %8422 = vmatpush1.msra.mxu0 0.0
      %8423 = vmatprep.subr.mxu0 0.0
      %8424 = vmatpush1.msra.mxu0 0.0
      %8425 = vmatprep.subr.mxu0 0.0
      %8426 = vmatpush1.msra.mxu0 0.0
      %8427 = vmatprep.subr.mxu0 0.0
      %8428 = vmatpush1.msra.mxu0 0.0
      %8429 = vmatprep.mubr.f32.mxu0 0.0
      %8430 = vmatmul.mubr.f32.gmra.mrb[0].mxu0 %v7582
      %v8431 = vpop.f32.mrb[0].mxu0
      %v8432 = vadd.f32 %v7209, %v8431
      %v8433 = vpop.f32.mrb[0].mxu0
      %v8434 = vadd.f32 %v7211, %v8433
      %8435 = vdwg.mxu0
      %8436 = vmatprep.subr.mxu0 %v6178
      %8437 = vmatpush1.msra.mxu0 %v6177
      %8438 = vmatprep.subr.mxu0 %v6212
      %8439 = vmatpush1.msra.mxu0 %v6211
      %8440 = vmatprep.subr.mxu0 %v6246
      %8441 = vmatpush1.msra.mxu0 %v6245
      %8442 = vmatprep.subr.mxu0 0.0
      %8443 = vmatpush1.msra.mxu0 0.0
      %8444 = vmatprep.subr.mxu0 0.0
      %8445 = vmatpush1.msra.mxu0 0.0
      %8446 = vmatprep.subr.mxu0 0.0
      %8447 = vmatpush1.msra.mxu0 0.0
      %8448 = vmatprep.subr.mxu0 0.0
      %8449 = vmatpush1.msra.mxu0 0.0
      %8450 = vmatprep.subr.mxu0 0.0
      %8451 = vmatpush1.msra.mxu0 0.0
      %8452 = vmatprep.subr.mxu0 0.0
      %8453 = vmatpush1.msra.mxu0 0.0
      %8454 = vmatprep.subr.mxu0 0.0
      %8455 = vmatpush1.msra.mxu0 0.0
      %8456 = vmatprep.subr.mxu0 0.0
      %8457 = vmatpush1.msra.mxu0 0.0
      %8458 = vmatprep.subr.mxu0 0.0
      %8459 = vmatpush1.msra.mxu0 0.0
      %8460 = vmatprep.subr.mxu0 0.0
      %8461 = vmatpush1.msra.mxu0 0.0
      %8462 = vmatprep.subr.mxu0 0.0
      %8463 = vmatpush1.msra.mxu0 0.0
      %8464 = vmatprep.subr.mxu0 0.0
      %8465 = vmatpush1.msra.mxu0 0.0
      %8466 = vmatprep.subr.mxu0 0.0
      %8467 = vmatpush1.msra.mxu0 0.0
      %8468 = vmatprep.subr.mxu0 0.0
      %8469 = vmatpush1.msra.mxu0 0.0
      %8470 = vmatprep.subr.mxu0 0.0
      %8471 = vmatpush1.msra.mxu0 0.0
      %8472 = vmatprep.subr.mxu0 0.0
      %8473 = vmatpush1.msra.mxu0 0.0
      %8474 = vmatprep.subr.mxu0 0.0
      %8475 = vmatpush1.msra.mxu0 0.0
      %8476 = vmatprep.subr.mxu0 0.0
      %8477 = vmatpush1.msra.mxu0 0.0
      %8478 = vmatprep.subr.mxu0 0.0
      %8479 = vmatpush1.msra.mxu0 0.0
      %8480 = vmatprep.subr.mxu0 0.0
      %8481 = vmatpush1.msra.mxu0 0.0
      %8482 = vmatprep.subr.mxu0 0.0
      %8483 = vmatpush1.msra.mxu0 0.0
      %8484 = vmatprep.subr.mxu0 0.0
      %8485 = vmatpush1.msra.mxu0 0.0
      %8486 = vmatprep.subr.mxu0 0.0
      %8487 = vmatpush1.msra.mxu0 0.0
      %8488 = vmatprep.subr.mxu0 0.0
      %8489 = vmatpush1.msra.mxu0 0.0
      %8490 = vmatprep.subr.mxu0 0.0
      %8491 = vmatpush1.msra.mxu0 0.0
      %8492 = vmatprep.subr.mxu0 0.0
      %8493 = vmatpush1.msra.mxu0 0.0
      %8494 = vmatprep.subr.mxu0 0.0
      %8495 = vmatpush1.msra.mxu0 0.0
      %8496 = vmatprep.subr.mxu0 0.0
      %8497 = vmatpush1.msra.mxu0 0.0
      %8498 = vmatprep.subr.mxu0 0.0
      %8499 = vmatpush1.msra.mxu0 0.0
      %8500 = vmatprep.mubr.f32.mxu0 0.0
      %8501 = vmatmul.mubr.f32.gmra.mrb[0].mxu0 %v7582
      %v8502 = vpop.f32.mrb[0].mxu0
      %v8503 = vadd.f32 %v7280, %v8502
      %v8504 = vpop.f32.mrb[0].mxu0
      %v8505 = vadd.f32 %v7282, %v8504
      %8506 = vdwg.mxu0
      %8507 = vmatprep.subr.mxu0 %v6180
      %8508 = vmatpush1.msra.mxu0 %v6179
      %8509 = vmatprep.subr.mxu0 %v6214
      %8510 = vmatpush1.msra.mxu0 %v6213
      %8511 = vmatprep.subr.mxu0 %v6248
      %8512 = vmatpush1.msra.mxu0 %v6247
      %8513 = vmatprep.subr.mxu0 0.0
      %8514 = vmatpush1.msra.mxu0 0.0
      %8515 = vmatprep.subr.mxu0 0.0
      %8516 = vmatpush1.msra.mxu0 0.0
      %8517 = vmatprep.subr.mxu0 0.0
      %8518 = vmatpush1.msra.mxu0 0.0
      %8519 = vmatprep.subr.mxu0 0.0
      %8520 = vmatpush1.msra.mxu0 0.0
      %8521 = vmatprep.subr.mxu0 0.0
      %8522 = vmatpush1.msra.mxu0 0.0
      %8523 = vmatprep.subr.mxu0 0.0
      %8524 = vmatpush1.msra.mxu0 0.0
      %8525 = vmatprep.subr.mxu0 0.0
      %8526 = vmatpush1.msra.mxu0 0.0
      %8527 = vmatprep.subr.mxu0 0.0
      %8528 = vmatpush1.msra.mxu0 0.0
      %8529 = vmatprep.subr.mxu0 0.0
      %8530 = vmatpush1.msra.mxu0 0.0
      %8531 = vmatprep.subr.mxu0 0.0
      %8532 = vmatpush1.msra.mxu0 0.0
      %8533 = vmatprep.subr.mxu0 0.0
      %8534 = vmatpush1.msra.mxu0 0.0
      %8535 = vmatprep.subr.mxu0 0.0
      %8536 = vmatpush1.msra.mxu0 0.0
      %8537 = vmatprep.subr.mxu0 0.0
      %8538 = vmatpush1.msra.mxu0 0.0
      %8539 = vmatprep.subr.mxu0 0.0
      %8540 = vmatpush1.msra.mxu0 0.0
      %8541 = vmatprep.subr.mxu0 0.0
      %8542 = vmatpush1.msra.mxu0 0.0
      %8543 = vmatprep.subr.mxu0 0.0
      %8544 = vmatpush1.msra.mxu0 0.0
      %8545 = vmatprep.subr.mxu0 0.0
      %8546 = vmatpush1.msra.mxu0 0.0
      %8547 = vmatprep.subr.mxu0 0.0
      %8548 = vmatpush1.msra.mxu0 0.0
      %8549 = vmatprep.subr.mxu0 0.0
      %8550 = vmatpush1.msra.mxu0 0.0
      %8551 = vmatprep.subr.mxu0 0.0
      %8552 = vmatpush1.msra.mxu0 0.0
      %8553 = vmatprep.subr.mxu0 0.0
      %8554 = vmatpush1.msra.mxu0 0.0
      %8555 = vmatprep.subr.mxu0 0.0
      %8556 = vmatpush1.msra.mxu0 0.0
      %8557 = vmatprep.subr.mxu0 0.0
      %8558 = vmatpush1.msra.mxu0 0.0
      %8559 = vmatprep.subr.mxu0 0.0
      %8560 = vmatpush1.msra.mxu0 0.0
      %8561 = vmatprep.subr.mxu0 0.0
      %8562 = vmatpush1.msra.mxu0 0.0
      %8563 = vmatprep.subr.mxu0 0.0
      %8564 = vmatpush1.msra.mxu0 0.0
      %8565 = vmatprep.subr.mxu0 0.0
      %8566 = vmatpush1.msra.mxu0 0.0
      %8567 = vmatprep.subr.mxu0 0.0
      %8568 = vmatpush1.msra.mxu0 0.0
      %8569 = vmatprep.subr.mxu0 0.0
      %8570 = vmatpush1.msra.mxu0 0.0
      %8571 = vmatprep.mubr.f32.mxu0 0.0
      %8572 = vmatmul.mubr.f32.gmra.mrb[0].mxu0 %v7582
      %v8573 = vpop.f32.mrb[0].mxu0
      %v8574 = vadd.f32 %v7351, %v8573
      %v8575 = vpop.f32.mrb[0].mxu0
      %v8576 = vadd.f32 %v7353, %v8575
      %8577 = vdwg.mxu0
      %8578 = vmatprep.subr.mxu0 %v6182
      %8579 = vmatpush1.msra.mxu0 %v6181
      %8580 = vmatprep.subr.mxu0 %v6216
      %8581 = vmatpush1.msra.mxu0 %v6215
      %8582 = vmatprep.subr.mxu0 %v6250
      %8583 = vmatpush1.msra.mxu0 %v6249
      %8584 = vmatprep.subr.mxu0 0.0
      %8585 = vmatpush1.msra.mxu0 0.0
      %8586 = vmatprep.subr.mxu0 0.0
      %8587 = vmatpush1.msra.mxu0 0.0
      %8588 = vmatprep.subr.mxu0 0.0
      %8589 = vmatpush1.msra.mxu0 0.0
      %8590 = vmatprep.subr.mxu0 0.0
      %8591 = vmatpush1.msra.mxu0 0.0
      %8592 = vmatprep.subr.mxu0 0.0
      %8593 = vmatpush1.msra.mxu0 0.0
      %8594 = vmatprep.subr.mxu0 0.0
      %8595 = vmatpush1.msra.mxu0 0.0
      %8596 = vmatprep.subr.mxu0 0.0
      %8597 = vmatpush1.msra.mxu0 0.0
      %8598 = vmatprep.subr.mxu0 0.0
      %8599 = vmatpush1.msra.mxu0 0.0
      %8600 = vmatprep.subr.mxu0 0.0
      %8601 = vmatpush1.msra.mxu0 0.0
      %8602 = vmatprep.subr.mxu0 0.0
      %8603 = vmatpush1.msra.mxu0 0.0
      %8604 = vmatprep.subr.mxu0 0.0
      %8605 = vmatpush1.msra.mxu0 0.0
      %8606 = vmatprep.subr.mxu0 0.0
      %8607 = vmatpush1.msra.mxu0 0.0
      %8608 = vmatprep.subr.mxu0 0.0
      %8609 = vmatpush1.msra.mxu0 0.0
      %8610 = vmatprep.subr.mxu0 0.0
      %8611 = vmatpush1.msra.mxu0 0.0
      %8612 = vmatprep.subr.mxu0 0.0
      %8613 = vmatpush1.msra.mxu0 0.0
      %8614 = vmatprep.subr.mxu0 0.0
      %8615 = vmatpush1.msra.mxu0 0.0
      %8616 = vmatprep.subr.mxu0 0.0
      %8617 = vmatpush1.msra.mxu0 0.0
      %8618 = vmatprep.subr.mxu0 0.0
      %8619 = vmatpush1.msra.mxu0 0.0
      %8620 = vmatprep.subr.mxu0 0.0
      %8621 = vmatpush1.msra.mxu0 0.0
      %8622 = vmatprep.subr.mxu0 0.0
      %8623 = vmatpush1.msra.mxu0 0.0
      %8624 = vmatprep.subr.mxu0 0.0
      %8625 = vmatpush1.msra.mxu0 0.0
      %8626 = vmatprep.subr.mxu0 0.0
      %8627 = vmatpush1.msra.mxu0 0.0
      %8628 = vmatprep.subr.mxu0 0.0
      %8629 = vmatpush1.msra.mxu0 0.0
      %8630 = vmatprep.subr.mxu0 0.0
      %8631 = vmatpush1.msra.mxu0 0.0
      %8632 = vmatprep.subr.mxu0 0.0
      %8633 = vmatpush1.msra.mxu0 0.0
      %8634 = vmatprep.subr.mxu0 0.0
      %8635 = vmatpush1.msra.mxu0 0.0
      %8636 = vmatprep.subr.mxu0 0.0
      %8637 = vmatpush1.msra.mxu0 0.0
      %8638 = vmatprep.subr.mxu0 0.0
      %8639 = vmatpush1.msra.mxu0 0.0
      %8640 = vmatprep.subr.mxu0 0.0
      %8641 = vmatpush1.msra.mxu0 0.0
      %8642 = vmatprep.mubr.f32.mxu0 0.0
      %8643 = vmatmul.mubr.f32.gmra.mrb[0].mxu0 %v7582
      %v8644 = vpop.f32.mrb[0].mxu0
      %v8645 = vadd.f32 %v7422, %v8644
      %v8646 = vpop.f32.mrb[0].mxu0
      %v8647 = vadd.f32 %v7424, %v8646
      %8648 = vdwg.mxu0
      %8649 = vmatprep.subr.mxu0 %v6184
      %8650 = vmatpush1.msra.mxu0 %v6183
      %8651 = vmatprep.subr.mxu0 %v6218
      %8652 = vmatpush1.msra.mxu0 %v6217
      %8653 = vmatprep.subr.mxu0 %v6252
      %8654 = vmatpush1.msra.mxu0 %v6251
      %8655 = vmatprep.subr.mxu0 0.0
      %8656 = vmatpush1.msra.mxu0 0.0
      %8657 = vmatprep.subr.mxu0 0.0
      %8658 = vmatpush1.msra.mxu0 0.0
      %8659 = vmatprep.subr.mxu0 0.0
      %8660 = vmatpush1.msra.mxu0 0.0
      %8661 = vmatprep.subr.mxu0 0.0
      %8662 = vmatpush1.msra.mxu0 0.0
      %8663 = vmatprep.subr.mxu0 0.0
      %8664 = vmatpush1.msra.mxu0 0.0
      %8665 = vmatprep.subr.mxu0 0.0
      %8666 = vmatpush1.msra.mxu0 0.0
      %8667 = vmatprep.subr.mxu0 0.0
      %8668 = vmatpush1.msra.mxu0 0.0
      %8669 = vmatprep.subr.mxu0 0.0
      %8670 = vmatpush1.msra.mxu0 0.0
      %8671 = vmatprep.subr.mxu0 0.0
      %8672 = vmatpush1.msra.mxu0 0.0
      %8673 = vmatprep.subr.mxu0 0.0
      %8674 = vmatpush1.msra.mxu0 0.0
      %8675 = vmatprep.subr.mxu0 0.0
      %8676 = vmatpush1.msra.mxu0 0.0
      %8677 = vmatprep.subr.mxu0 0.0
      %8678 = vmatpush1.msra.mxu0 0.0
      %8679 = vmatprep.subr.mxu0 0.0
      %8680 = vmatpush1.msra.mxu0 0.0
      %8681 = vmatprep.subr.mxu0 0.0
      %8682 = vmatpush1.msra.mxu0 0.0
      %8683 = vmatprep.subr.mxu0 0.0
      %8684 = vmatpush1.msra.mxu0 0.0
      %8685 = vmatprep.subr.mxu0 0.0
      %8686 = vmatpush1.msra.mxu0 0.0
      %8687 = vmatprep.subr.mxu0 0.0
      %8688 = vmatpush1.msra.mxu0 0.0
      %8689 = vmatprep.subr.mxu0 0.0
      %8690 = vmatpush1.msra.mxu0 0.0
      %8691 = vmatprep.subr.mxu0 0.0
      %8692 = vmatpush1.msra.mxu0 0.0
      %8693 = vmatprep.subr.mxu0 0.0
      %8694 = vmatpush1.msra.mxu0 0.0
      %8695 = vmatprep.subr.mxu0 0.0
      %8696 = vmatpush1.msra.mxu0 0.0
      %8697 = vmatprep.subr.mxu0 0.0
      %8698 = vmatpush1.msra.mxu0 0.0
      %8699 = vmatprep.subr.mxu0 0.0
      %8700 = vmatpush1.msra.mxu0 0.0
      %8701 = vmatprep.subr.mxu0 0.0
      %8702 = vmatpush1.msra.mxu0 0.0
      %8703 = vmatprep.subr.mxu0 0.0
      %8704 = vmatpush1.msra.mxu0 0.0
      %8705 = vmatprep.subr.mxu0 0.0
      %8706 = vmatpush1.msra.mxu0 0.0
      %8707 = vmatprep.subr.mxu0 0.0
      %8708 = vmatpush1.msra.mxu0 0.0
      %8709 = vmatprep.subr.mxu0 0.0
      %8710 = vmatpush1.msra.mxu0 0.0
      %8711 = vmatprep.subr.mxu0 0.0
      %8712 = vmatpush1.msra.mxu0 0.0
      %8713 = vmatprep.mubr.f32.mxu0 0.0
      %8714 = vmatmul.mubr.f32.gmra.mrb[0].mxu0 %v7582
      %v8715 = vpop.f32.mrb[0].mxu0
      %v8716 = vadd.f32 %v7493, %v8715
      %v8717 = vpop.f32.mrb[0].mxu0
      %v8718 = vadd.f32 %v7495, %v8717
      %8719 = vdwg.mxu0
      %8720 = vmatprep.subr.mxu0 %v6186
      %8721 = vmatpush1.msra.mxu0 %v6185
      %8722 = vmatprep.subr.mxu0 %v6220
      %8723 = vmatpush1.msra.mxu0 %v6219
      %8724 = vmatprep.subr.mxu0 %v6254
      %8725 = vmatpush1.msra.mxu0 %v6253
      %8726 = vmatprep.subr.mxu0 0.0
      %8727 = vmatpush1.msra.mxu0 0.0
      %8728 = vmatprep.subr.mxu0 0.0
      %8729 = vmatpush1.msra.mxu0 0.0
      %8730 = vmatprep.subr.mxu0 0.0
      %8731 = vmatpush1.msra.mxu0 0.0
      %8732 = vmatprep.subr.mxu0 0.0
      %8733 = vmatpush1.msra.mxu0 0.0
      %8734 = vmatprep.subr.mxu0 0.0
      %8735 = vmatpush1.msra.mxu0 0.0
      %8736 = vmatprep.subr.mxu0 0.0
      %8737 = vmatpush1.msra.mxu0 0.0
      %8738 = vmatprep.subr.mxu0 0.0
      %8739 = vmatpush1.msra.mxu0 0.0
      %8740 = vmatprep.subr.mxu0 0.0
      %8741 = vmatpush1.msra.mxu0 0.0
      %8742 = vmatprep.subr.mxu0 0.0
      %8743 = vmatpush1.msra.mxu0 0.0
      %8744 = vmatprep.subr.mxu0 0.0
      %8745 = vmatpush1.msra.mxu0 0.0
      %8746 = vmatprep.subr.mxu0 0.0
      %8747 = vmatpush1.msra.mxu0 0.0
      %8748 = vmatprep.subr.mxu0 0.0
      %8749 = vmatpush1.msra.mxu0 0.0
      %8750 = vmatprep.subr.mxu0 0.0
      %8751 = vmatpush1.msra.mxu0 0.0
      %8752 = vmatprep.subr.mxu0 0.0
      %8753 = vmatpush1.msra.mxu0 0.0
      %8754 = vmatprep.subr.mxu0 0.0
      %8755 = vmatpush1.msra.mxu0 0.0
      %8756 = vmatprep.subr.mxu0 0.0
      %8757 = vmatpush1.msra.mxu0 0.0
      %8758 = vmatprep.subr.mxu0 0.0
      %8759 = vmatpush1.msra.mxu0 0.0
      %8760 = vmatprep.subr.mxu0 0.0
      %8761 = vmatpush1.msra.mxu0 0.0
      %8762 = vmatprep.subr.mxu0 0.0
      %8763 = vmatpush1.msra.mxu0 0.0
      %8764 = vmatprep.subr.mxu0 0.0
      %8765 = vmatpush1.msra.mxu0 0.0
      %8766 = vmatprep.subr.mxu0 0.0
      %8767 = vmatpush1.msra.mxu0 0.0
      %8768 = vmatprep.subr.mxu0 0.0
      %8769 = vmatpush1.msra.mxu0 0.0
      %8770 = vmatprep.subr.mxu0 0.0
      %8771 = vmatpush1.msra.mxu0 0.0
      %8772 = vmatprep.subr.mxu0 0.0
      %8773 = vmatpush1.msra.mxu0 0.0
      %8774 = vmatprep.subr.mxu0 0.0
      %8775 = vmatpush1.msra.mxu0 0.0
      %8776 = vmatprep.subr.mxu0 0.0
      %8777 = vmatpush1.msra.mxu0 0.0
      %8778 = vmatprep.subr.mxu0 0.0
      %8779 = vmatpush1.msra.mxu0 0.0
      %8780 = vmatprep.subr.mxu0 0.0
      %8781 = vmatpush1.msra.mxu0 0.0
      %8782 = vmatprep.subr.mxu0 0.0
      %8783 = vmatpush1.msra.mxu0 0.0
      %8784 = vmatprep.mubr.f32.mxu0 0.0
      %8785 = vmatmul.mubr.f32.gmra.mrb[0].mxu0 %v7582
      %v8786 = vpop.f32.mrb[0].mxu0
      %v8787 = vadd.f32 %v7564, %v8786
      %v8788 = vpop.f32.mrb[0].mxu0
      %v8789 = vadd.f32 %v7566, %v8788
      %8790 = vdwg.mxu0
      %s8791 = scalar_lea.vmem %s2, 16
      %v8792 = vld [vmem:[%s8791] sm:$0xff]
      %8793 = vrot.lane.b32.xlu0 %v5613, 1
      %v8794 = vpop.permute.xlu0 %8793
      %8795 = vrot.lane.b32.xlu0 %v5758, 1
      %v8796 = vpop.permute.xlu0 %8795
      %8797 = vrot.lane.b32.xlu0 %v5940, 1
      %v8798 = vpop.permute.xlu0 %8797
      %v8799 = vsel %vm874, %v6013, %v8794
      %v8800 = vsel %vm874, %v6083, %v8796
      %v8801 = vsel %vm874, %v6153, %v8798
      %v8806 = vsel %vm1079, %v8792, 0
      %8808 = vmatprep.subr.mxu0 %v6156
      %8809 = vmatpush1.msra.mxu0 %v6155
      %8810 = vmatprep.subr.mxu0 %v6190
      %8811 = vmatpush1.msra.mxu0 %v6189
      %8812 = vmatprep.subr.mxu0 %v6224
      %8813 = vmatpush1.msra.mxu0 %v6223
      %8814 = vmatprep.subr.mxu0 0.0
      %8815 = vmatpush1.msra.mxu0 0.0
      %8816 = vmatprep.subr.mxu0 0.0
      %8817 = vmatpush1.msra.mxu0 0.0
      %8818 = vmatprep.subr.mxu0 0.0
      %8819 = vmatpush1.msra.mxu0 0.0
      %8820 = vmatprep.subr.mxu0 0.0
      %8821 = vmatpush1.msra.mxu0 0.0
      %8822 = vmatprep.subr.mxu0 0.0
      %8823 = vmatpush1.msra.mxu0 0.0
      %8824 = vmatprep.subr.mxu0 0.0
      %8825 = vmatpush1.msra.mxu0 0.0
      %8826 = vmatprep.subr.mxu0 0.0
      %8827 = vmatpush1.msra.mxu0 0.0
      %8828 = vmatprep.subr.mxu0 0.0
      %8829 = vmatpush1.msra.mxu0 0.0
      %8830 = vmatprep.subr.mxu0 0.0
      %8831 = vmatpush1.msra.mxu0 0.0
      %8832 = vmatprep.subr.mxu0 0.0
      %8833 = vmatpush1.msra.mxu0 0.0
      %8834 = vmatprep.subr.mxu0 0.0
      %8835 = vmatpush1.msra.mxu0 0.0
      %8836 = vmatprep.subr.mxu0 0.0
      %8837 = vmatpush1.msra.mxu0 0.0
      %8838 = vmatprep.subr.mxu0 0.0
      %8839 = vmatpush1.msra.mxu0 0.0
      %8840 = vmatprep.subr.mxu0 0.0
      %8841 = vmatpush1.msra.mxu0 0.0
      %8842 = vmatprep.subr.mxu0 0.0
      %8843 = vmatpush1.msra.mxu0 0.0
      %8844 = vmatprep.subr.mxu0 0.0
      %8845 = vmatpush1.msra.mxu0 0.0
      %8846 = vmatprep.subr.mxu0 0.0
      %8847 = vmatpush1.msra.mxu0 0.0
      %8848 = vmatprep.subr.mxu0 0.0
      %8849 = vmatpush1.msra.mxu0 0.0
      %8850 = vmatprep.subr.mxu0 0.0
      %8851 = vmatpush1.msra.mxu0 0.0
      %8852 = vmatprep.subr.mxu0 0.0
      %8853 = vmatpush1.msra.mxu0 0.0
      %8854 = vmatprep.subr.mxu0 0.0
      %8855 = vmatpush1.msra.mxu0 0.0
      %8856 = vmatprep.subr.mxu0 0.0
      %8857 = vmatpush1.msra.mxu0 0.0
      %8858 = vmatprep.subr.mxu0 0.0
      %8859 = vmatpush1.msra.mxu0 0.0
      %8860 = vmatprep.subr.mxu0 0.0
      %8861 = vmatpush1.msra.mxu0 0.0
      %8862 = vmatprep.subr.mxu0 0.0
      %8863 = vmatpush1.msra.mxu0 0.0
      %8864 = vmatprep.subr.mxu0 0.0
      %8865 = vmatpush1.msra.mxu0 0.0
      %8866 = vmatprep.subr.mxu0 0.0
      %8867 = vmatpush1.msra.mxu0 0.0
      %8868 = vmatprep.subr.mxu0 0.0
      %8869 = vmatpush1.msra.mxu0 0.0
      %8870 = vmatprep.subr.mxu0 0.0
      %8871 = vmatpush1.msra.mxu0 0.0
      %8872 = vmatprep.mubr.f32.mxu0 0.0
      %8873 = vmatmul.mubr.f32.gmra.mrb[0].mxu0 %v8806
      %v8874 = vpop.f32.mrb[0].mxu0
      %v8875 = vadd.f32 0.0, %v8874
      %v8876 = vpop.f32.mrb[0].mxu0
      %v8877 = vadd.f32 0.0, %v8876
      %8878 = vdwg.mxu0
      %8879 = vmatprep.subr.mxu0 %v6158
      %8880 = vmatpush1.msra.mxu0 %v6157
      %8881 = vmatprep.subr.mxu0 %v6192
      %8882 = vmatpush1.msra.mxu0 %v6191
      %8883 = vmatprep.subr.mxu0 %v6226
      %8884 = vmatpush1.msra.mxu0 %v6225
      %8885 = vmatprep.subr.mxu0 0.0
      %8886 = vmatpush1.msra.mxu0 0.0
      %8887 = vmatprep.subr.mxu0 0.0
      %8888 = vmatpush1.msra.mxu0 0.0
      %8889 = vmatprep.subr.mxu0 0.0
      %8890 = vmatpush1.msra.mxu0 0.0
      %8891 = vmatprep.subr.mxu0 0.0
      %8892 = vmatpush1.msra.mxu0 0.0
      %8893 = vmatprep.subr.mxu0 0.0
      %8894 = vmatpush1.msra.mxu0 0.0
      %8895 = vmatprep.subr.mxu0 0.0
      %8896 = vmatpush1.msra.mxu0 0.0
      %8897 = vmatprep.subr.mxu0 0.0
      %8898 = vmatpush1.msra.mxu0 0.0
      %8899 = vmatprep.subr.mxu0 0.0
      %8900 = vmatpush1.msra.mxu0 0.0
      %8901 = vmatprep.subr.mxu0 0.0
      %8902 = vmatpush1.msra.mxu0 0.0
      %8903 = vmatprep.subr.mxu0 0.0
      %8904 = vmatpush1.msra.mxu0 0.0
      %8905 = vmatprep.subr.mxu0 0.0
      %8906 = vmatpush1.msra.mxu0 0.0
      %8907 = vmatprep.subr.mxu0 0.0
      %8908 = vmatpush1.msra.mxu0 0.0
      %8909 = vmatprep.subr.mxu0 0.0
      %8910 = vmatpush1.msra.mxu0 0.0
      %8911 = vmatprep.subr.mxu0 0.0
      %8912 = vmatpush1.msra.mxu0 0.0
      %8913 = vmatprep.subr.mxu0 0.0
      %8914 = vmatpush1.msra.mxu0 0.0
      %8915 = vmatprep.subr.mxu0 0.0
      %8916 = vmatpush1.msra.mxu0 0.0
      %8917 = vmatprep.subr.mxu0 0.0
      %8918 = vmatpush1.msra.mxu0 0.0
      %8919 = vmatprep.subr.mxu0 0.0
      %8920 = vmatpush1.msra.mxu0 0.0
      %8921 = vmatprep.subr.mxu0 0.0
      %8922 = vmatpush1.msra.mxu0 0.0
      %8923 = vmatprep.subr.mxu0 0.0
      %8924 = vmatpush1.msra.mxu0 0.0
      %8925 = vmatprep.subr.mxu0 0.0
      %8926 = vmatpush1.msra.mxu0 0.0
      %8927 = vmatprep.subr.mxu0 0.0
      %8928 = vmatpush1.msra.mxu0 0.0
      %8929 = vmatprep.subr.mxu0 0.0
      %8930 = vmatpush1.msra.mxu0 0.0
      %8931 = vmatprep.subr.mxu0 0.0
      %8932 = vmatpush1.msra.mxu0 0.0
      %8933 = vmatprep.subr.mxu0 0.0
      %8934 = vmatpush1.msra.mxu0 0.0
      %8935 = vmatprep.subr.mxu0 0.0
      %8936 = vmatpush1.msra.mxu0 0.0
      %8937 = vmatprep.subr.mxu0 0.0
      %8938 = vmatpush1.msra.mxu0 0.0
      %8939 = vmatprep.subr.mxu0 0.0
      %8940 = vmatpush1.msra.mxu0 0.0
      %8941 = vmatprep.subr.mxu0 0.0
      %8942 = vmatpush1.msra.mxu0 0.0
      %8943 = vmatprep.mubr.f32.mxu0 0.0
      %8944 = vmatmul.mubr.f32.gmra.mrb[0].mxu0 %v8806
      %v8945 = vpop.f32.mrb[0].mxu0
      %v8946 = vadd.f32 0.0, %v8945
      %v8947 = vpop.f32.mrb[0].mxu0
      %v8948 = vadd.f32 0.0, %v8947
      %8949 = vdwg.mxu0
      %8950 = vmatprep.subr.mxu0 %v6160
      %8951 = vmatpush1.msra.mxu0 %v6159
      %8952 = vmatprep.subr.mxu0 %v6194
      %8953 = vmatpush1.msra.mxu0 %v6193
      %8954 = vmatprep.subr.mxu0 %v6228
      %8955 = vmatpush1.msra.mxu0 %v6227
      %8956 = vmatprep.subr.mxu0 0.0
      %8957 = vmatpush1.msra.mxu0 0.0
      %8958 = vmatprep.subr.mxu0 0.0
      %8959 = vmatpush1.msra.mxu0 0.0
      %8960 = vmatprep.subr.mxu0 0.0
      %8961 = vmatpush1.msra.mxu0 0.0
      %8962 = vmatprep.subr.mxu0 0.0
      %8963 = vmatpush1.msra.mxu0 0.0
      %8964 = vmatprep.subr.mxu0 0.0
      %8965 = vmatpush1.msra.mxu0 0.0
      %8966 = vmatprep.subr.mxu0 0.0
      %8967 = vmatpush1.msra.mxu0 0.0
      %8968 = vmatprep.subr.mxu0 0.0
      %8969 = vmatpush1.msra.mxu0 0.0
      %8970 = vmatprep.subr.mxu0 0.0
      %8971 = vmatpush1.msra.mxu0 0.0
      %8972 = vmatprep.subr.mxu0 0.0
      %8973 = vmatpush1.msra.mxu0 0.0
      %8974 = vmatprep.subr.mxu0 0.0
      %8975 = vmatpush1.msra.mxu0 0.0
      %8976 = vmatprep.subr.mxu0 0.0
      %8977 = vmatpush1.msra.mxu0 0.0
      %8978 = vmatprep.subr.mxu0 0.0
      %8979 = vmatpush1.msra.mxu0 0.0
      %8980 = vmatprep.subr.mxu0 0.0
      %8981 = vmatpush1.msra.mxu0 0.0
      %8982 = vmatprep.subr.mxu0 0.0
      %8983 = vmatpush1.msra.mxu0 0.0
      %8984 = vmatprep.subr.mxu0 0.0
      %8985 = vmatpush1.msra.mxu0 0.0
      %8986 = vmatprep.subr.mxu0 0.0
      %8987 = vmatpush1.msra.mxu0 0.0
      %8988 = vmatprep.subr.mxu0 0.0
      %8989 = vmatpush1.msra.mxu0 0.0
      %8990 = vmatprep.subr.mxu0 0.0
      %8991 = vmatpush1.msra.mxu0 0.0
      %8992 = vmatprep.subr.mxu0 0.0
      %8993 = vmatpush1.msra.mxu0 0.0
      %8994 = vmatprep.subr.mxu0 0.0
      %8995 = vmatpush1.msra.mxu0 0.0
      %8996 = vmatprep.subr.mxu0 0.0
      %8997 = vmatpush1.msra.mxu0 0.0
      %8998 = vmatprep.subr.mxu0 0.0
      %8999 = vmatpush1.msra.mxu0 0.0
      %9000 = vmatprep.subr.mxu0 0.0
      %9001 = vmatpush1.msra.mxu0 0.0
      %9002 = vmatprep.subr.mxu0 0.0
      %9003 = vmatpush1.msra.mxu0 0.0
      %9004 = vmatprep.subr.mxu0 0.0
      %9005 = vmatpush1.msra.mxu0 0.0
      %9006 = vmatprep.subr.mxu0 0.0
      %9007 = vmatpush1.msra.mxu0 0.0
      %9008 = vmatprep.subr.mxu0 0.0
      %9009 = vmatpush1.msra.mxu0 0.0
      %9010 = vmatprep.subr.mxu0 0.0
      %9011 = vmatpush1.msra.mxu0 0.0
      %9012 = vmatprep.subr.mxu0 0.0
      %9013 = vmatpush1.msra.mxu0 0.0
      %9014 = vmatprep.mubr.f32.mxu0 0.0
      %9015 = vmatmul.mubr.f32.gmra.mrb[0].mxu0 %v8806
      %v9016 = vpop.f32.mrb[0].mxu0
      %v9017 = vadd.f32 0.0, %v9016
      %v9018 = vpop.f32.mrb[0].mxu0
      %v9019 = vadd.f32 0.0, %v9018
      %9020 = vdwg.mxu0
      %9021 = vmatprep.subr.mxu0 %v6162
      %9022 = vmatpush1.msra.mxu0 %v6161
      %9023 = vmatprep.subr.mxu0 %v6196
      %9024 = vmatpush1.msra.mxu0 %v6195
      %9025 = vmatprep.subr.mxu0 %v6230
      %9026 = vmatpush1.msra.mxu0 %v6229
      %9027 = vmatprep.subr.mxu0 0.0
      %9028 = vmatpush1.msra.mxu0 0.0
      %9029 = vmatprep.subr.mxu0 0.0
      %9030 = vmatpush1.msra.mxu0 0.0
      %9031 = vmatprep.subr.mxu0 0.0
      %9032 = vmatpush1.msra.mxu0 0.0
      %9033 = vmatprep.subr.mxu0 0.0
      %9034 = vmatpush1.msra.mxu0 0.0
      %9035 = vmatprep.subr.mxu0 0.0
      %9036 = vmatpush1.msra.mxu0 0.0
      %9037 = vmatprep.subr.mxu0 0.0
      %9038 = vmatpush1.msra.mxu0 0.0
      %9039 = vmatprep.subr.mxu0 0.0
      %9040 = vmatpush1.msra.mxu0 0.0
      %9041 = vmatprep.subr.mxu0 0.0
      %9042 = vmatpush1.msra.mxu0 0.0
      %9043 = vmatprep.subr.mxu0 0.0
      %9044 = vmatpush1.msra.mxu0 0.0
      %9045 = vmatprep.subr.mxu0 0.0
      %9046 = vmatpush1.msra.mxu0 0.0
      %9047 = vmatprep.subr.mxu0 0.0
      %9048 = vmatpush1.msra.mxu0 0.0
      %9049 = vmatprep.subr.mxu0 0.0
      %9050 = vmatpush1.msra.mxu0 0.0
      %9051 = vmatprep.subr.mxu0 0.0
      %9052 = vmatpush1.msra.mxu0 0.0
      %9053 = vmatprep.subr.mxu0 0.0
      %9054 = vmatpush1.msra.mxu0 0.0
      %9055 = vmatprep.subr.mxu0 0.0
      %9056 = vmatpush1.msra.mxu0 0.0
      %9057 = vmatprep.subr.mxu0 0.0
      %9058 = vmatpush1.msra.mxu0 0.0
      %9059 = vmatprep.subr.mxu0 0.0
      %9060 = vmatpush1.msra.mxu0 0.0
      %9061 = vmatprep.subr.mxu0 0.0
      %9062 = vmatpush1.msra.mxu0 0.0
      %9063 = vmatprep.subr.mxu0 0.0
      %9064 = vmatpush1.msra.mxu0 0.0
      %9065 = vmatprep.subr.mxu0 0.0
      %9066 = vmatpush1.msra.mxu0 0.0
      %9067 = vmatprep.subr.mxu0 0.0
      %9068 = vmatpush1.msra.mxu0 0.0
      %9069 = vmatprep.subr.mxu0 0.0
      %9070 = vmatpush1.msra.mxu0 0.0
      %9071 = vmatprep.subr.mxu0 0.0
      %9072 = vmatpush1.msra.mxu0 0.0
      %9073 = vmatprep.subr.mxu0 0.0
      %9074 = vmatpush1.msra.mxu0 0.0
      %9075 = vmatprep.subr.mxu0 0.0
      %9076 = vmatpush1.msra.mxu0 0.0
      %9077 = vmatprep.subr.mxu0 0.0
      %9078 = vmatpush1.msra.mxu0 0.0
      %9079 = vmatprep.subr.mxu0 0.0
      %9080 = vmatpush1.msra.mxu0 0.0
      %9081 = vmatprep.subr.mxu0 0.0
      %9082 = vmatpush1.msra.mxu0 0.0
      %9083 = vmatprep.subr.mxu0 0.0
      %9084 = vmatpush1.msra.mxu0 0.0
      %9085 = vmatprep.mubr.f32.mxu0 0.0
      %9086 = vmatmul.mubr.f32.gmra.mrb[0].mxu0 %v8806
      %v9087 = vpop.f32.mrb[0].mxu0
      %v9088 = vadd.f32 0.0, %v9087
      %v9089 = vpop.f32.mrb[0].mxu0
      %v9090 = vadd.f32 0.0, %v9089
      %9091 = vdwg.mxu0
      %9092 = vmatprep.subr.mxu0 %v6164
      %9093 = vmatpush1.msra.mxu0 %v6163
      %9094 = vmatprep.subr.mxu0 %v6198
      %9095 = vmatpush1.msra.mxu0 %v6197
      %9096 = vmatprep.subr.mxu0 %v6232
      %9097 = vmatpush1.msra.mxu0 %v6231
      %9098 = vmatprep.subr.mxu0 0.0
      %9099 = vmatpush1.msra.mxu0 0.0
      %9100 = vmatprep.subr.mxu0 0.0
      %9101 = vmatpush1.msra.mxu0 0.0
      %9102 = vmatprep.subr.mxu0 0.0
      %9103 = vmatpush1.msra.mxu0 0.0
      %9104 = vmatprep.subr.mxu0 0.0
      %9105 = vmatpush1.msra.mxu0 0.0
      %9106 = vmatprep.subr.mxu0 0.0
      %9107 = vmatpush1.msra.mxu0 0.0
      %9108 = vmatprep.subr.mxu0 0.0
      %9109 = vmatpush1.msra.mxu0 0.0
      %9110 = vmatprep.subr.mxu0 0.0
      %9111 = vmatpush1.msra.mxu0 0.0
      %9112 = vmatprep.subr.mxu0 0.0
      %9113 = vmatpush1.msra.mxu0 0.0
      %9114 = vmatprep.subr.mxu0 0.0
      %9115 = vmatpush1.msra.mxu0 0.0
      %9116 = vmatprep.subr.mxu0 0.0
      %9117 = vmatpush1.msra.mxu0 0.0
      %9118 = vmatprep.subr.mxu0 0.0
      %9119 = vmatpush1.msra.mxu0 0.0
      %9120 = vmatprep.subr.mxu0 0.0
      %9121 = vmatpush1.msra.mxu0 0.0
      %9122 = vmatprep.subr.mxu0 0.0
      %9123 = vmatpush1.msra.mxu0 0.0
      %9124 = vmatprep.subr.mxu0 0.0
      %9125 = vmatpush1.msra.mxu0 0.0
      %9126 = vmatprep.subr.mxu0 0.0
      %9127 = vmatpush1.msra.mxu0 0.0
      %9128 = vmatprep.subr.mxu0 0.0
      %9129 = vmatpush1.msra.mxu0 0.0
      %9130 = vmatprep.subr.mxu0 0.0
      %9131 = vmatpush1.msra.mxu0 0.0
      %9132 = vmatprep.subr.mxu0 0.0
      %9133 = vmatpush1.msra.mxu0 0.0
      %9134 = vmatprep.subr.mxu0 0.0
      %9135 = vmatpush1.msra.mxu0 0.0
      %9136 = vmatprep.subr.mxu0 0.0
      %9137 = vmatpush1.msra.mxu0 0.0
      %9138 = vmatprep.subr.mxu0 0.0
      %9139 = vmatpush1.msra.mxu0 0.0
      %9140 = vmatprep.subr.mxu0 0.0
      %9141 = vmatpush1.msra.mxu0 0.0
      %9142 = vmatprep.subr.mxu0 0.0
      %9143 = vmatpush1.msra.mxu0 0.0
      %9144 = vmatprep.subr.mxu0 0.0
      %9145 = vmatpush1.msra.mxu0 0.0
      %9146 = vmatprep.subr.mxu0 0.0
      %9147 = vmatpush1.msra.mxu0 0.0
      %9148 = vmatprep.subr.mxu0 0.0
      %9149 = vmatpush1.msra.mxu0 0.0
      %9150 = vmatprep.subr.mxu0 0.0
      %9151 = vmatpush1.msra.mxu0 0.0
      %9152 = vmatprep.subr.mxu0 0.0
      %9153 = vmatpush1.msra.mxu0 0.0
      %9154 = vmatprep.subr.mxu0 0.0
      %9155 = vmatpush1.msra.mxu0 0.0
      %9156 = vmatprep.mubr.f32.mxu0 0.0
      %9157 = vmatmul.mubr.f32.gmra.mrb[0].mxu0 %v8806
      %v9158 = vpop.f32.mrb[0].mxu0
      %v9159 = vadd.f32 0.0, %v9158
      %v9160 = vpop.f32.mrb[0].mxu0
      %v9161 = vadd.f32 0.0, %v9160
      %9162 = vdwg.mxu0
      %9163 = vmatprep.subr.mxu0 %v6166
      %9164 = vmatpush1.msra.mxu0 %v6165
      %9165 = vmatprep.subr.mxu0 %v6200
      %9166 = vmatpush1.msra.mxu0 %v6199
      %9167 = vmatprep.subr.mxu0 %v6234
      %9168 = vmatpush1.msra.mxu0 %v6233
      %9169 = vmatprep.subr.mxu0 0.0
      %9170 = vmatpush1.msra.mxu0 0.0
      %9171 = vmatprep.subr.mxu0 0.0
      %9172 = vmatpush1.msra.mxu0 0.0
      %9173 = vmatprep.subr.mxu0 0.0
      %9174 = vmatpush1.msra.mxu0 0.0
      %9175 = vmatprep.subr.mxu0 0.0
      %9176 = vmatpush1.msra.mxu0 0.0
      %9177 = vmatprep.subr.mxu0 0.0
      %9178 = vmatpush1.msra.mxu0 0.0
      %9179 = vmatprep.subr.mxu0 0.0
      %9180 = vmatpush1.msra.mxu0 0.0
      %9181 = vmatprep.subr.mxu0 0.0
      %9182 = vmatpush1.msra.mxu0 0.0
      %9183 = vmatprep.subr.mxu0 0.0
      %9184 = vmatpush1.msra.mxu0 0.0
      %9185 = vmatprep.subr.mxu0 0.0
      %9186 = vmatpush1.msra.mxu0 0.0
      %9187 = vmatprep.subr.mxu0 0.0
      %9188 = vmatpush1.msra.mxu0 0.0
      %9189 = vmatprep.subr.mxu0 0.0
      %9190 = vmatpush1.msra.mxu0 0.0
      %9191 = vmatprep.subr.mxu0 0.0
      %9192 = vmatpush1.msra.mxu0 0.0
      %9193 = vmatprep.subr.mxu0 0.0
      %9194 = vmatpush1.msra.mxu0 0.0
      %9195 = vmatprep.subr.mxu0 0.0
      %9196 = vmatpush1.msra.mxu0 0.0
      %9197 = vmatprep.subr.mxu0 0.0
      %9198 = vmatpush1.msra.mxu0 0.0
      %9199 = vmatprep.subr.mxu0 0.0
      %9200 = vmatpush1.msra.mxu0 0.0
      %9201 = vmatprep.subr.mxu0 0.0
      %9202 = vmatpush1.msra.mxu0 0.0
      %9203 = vmatprep.subr.mxu0 0.0
      %9204 = vmatpush1.msra.mxu0 0.0
      %9205 = vmatprep.subr.mxu0 0.0
      %9206 = vmatpush1.msra.mxu0 0.0
      %9207 = vmatprep.subr.mxu0 0.0
      %9208 = vmatpush1.msra.mxu0 0.0
      %9209 = vmatprep.subr.mxu0 0.0
      %9210 = vmatpush1.msra.mxu0 0.0
      %9211 = vmatprep.subr.mxu0 0.0
      %9212 = vmatpush1.msra.mxu0 0.0
      %9213 = vmatprep.subr.mxu0 0.0
      %9214 = vmatpush1.msra.mxu0 0.0
      %9215 = vmatprep.subr.mxu0 0.0
      %9216 = vmatpush1.msra.mxu0 0.0
      %9217 = vmatprep.subr.mxu0 0.0
      %9218 = vmatpush1.msra.mxu0 0.0
      %9219 = vmatprep.subr.mxu0 0.0
      %9220 = vmatpush1.msra.mxu0 0.0
      %9221 = vmatprep.subr.mxu0 0.0
      %9222 = vmatpush1.msra.mxu0 0.0
      %9223 = vmatprep.subr.mxu0 0.0
      %9224 = vmatpush1.msra.mxu0 0.0
      %9225 = vmatprep.subr.mxu0 0.0
      %9226 = vmatpush1.msra.mxu0 0.0
      %9227 = vmatprep.mubr.f32.mxu0 0.0
      %9228 = vmatmul.mubr.f32.gmra.mrb[0].mxu0 %v8806
      %v9229 = vpop.f32.mrb[0].mxu0
      %v9230 = vadd.f32 0.0, %v9229
      %v9231 = vpop.f32.mrb[0].mxu0
      %v9232 = vadd.f32 0.0, %v9231
      %9233 = vdwg.mxu0
      %9234 = vmatprep.subr.mxu0 %v6168
      %9235 = vmatpush1.msra.mxu0 %v6167
      %9236 = vmatprep.subr.mxu0 %v6202
      %9237 = vmatpush1.msra.mxu0 %v6201
      %9238 = vmatprep.subr.mxu0 %v6236
      %9239 = vmatpush1.msra.mxu0 %v6235
      %9240 = vmatprep.subr.mxu0 0.0
      %9241 = vmatpush1.msra.mxu0 0.0
      %9242 = vmatprep.subr.mxu0 0.0
      %9243 = vmatpush1.msra.mxu0 0.0
      %9244 = vmatprep.subr.mxu0 0.0
      %9245 = vmatpush1.msra.mxu0 0.0
      %9246 = vmatprep.subr.mxu0 0.0
      %9247 = vmatpush1.msra.mxu0 0.0
      %9248 = vmatprep.subr.mxu0 0.0
      %9249 = vmatpush1.msra.mxu0 0.0
      %9250 = vmatprep.subr.mxu0 0.0
      %9251 = vmatpush1.msra.mxu0 0.0
      %9252 = vmatprep.subr.mxu0 0.0
      %9253 = vmatpush1.msra.mxu0 0.0
      %9254 = vmatprep.subr.mxu0 0.0
      %9255 = vmatpush1.msra.mxu0 0.0
      %9256 = vmatprep.subr.mxu0 0.0
      %9257 = vmatpush1.msra.mxu0 0.0
      %9258 = vmatprep.subr.mxu0 0.0
      %9259 = vmatpush1.msra.mxu0 0.0
      %9260 = vmatprep.subr.mxu0 0.0
      %9261 = vmatpush1.msra.mxu0 0.0
      %9262 = vmatprep.subr.mxu0 0.0
      %9263 = vmatpush1.msra.mxu0 0.0
      %9264 = vmatprep.subr.mxu0 0.0
      %9265 = vmatpush1.msra.mxu0 0.0
      %9266 = vmatprep.subr.mxu0 0.0
      %9267 = vmatpush1.msra.mxu0 0.0
      %9268 = vmatprep.subr.mxu0 0.0
      %9269 = vmatpush1.msra.mxu0 0.0
      %9270 = vmatprep.subr.mxu0 0.0
      %9271 = vmatpush1.msra.mxu0 0.0
      %9272 = vmatprep.subr.mxu0 0.0
      %9273 = vmatpush1.msra.mxu0 0.0
      %9274 = vmatprep.subr.mxu0 0.0
      %9275 = vmatpush1.msra.mxu0 0.0
      %9276 = vmatprep.subr.mxu0 0.0
      %9277 = vmatpush1.msra.mxu0 0.0
      %9278 = vmatprep.subr.mxu0 0.0
      %9279 = vmatpush1.msra.mxu0 0.0
      %9280 = vmatprep.subr.mxu0 0.0
      %9281 = vmatpush1.msra.mxu0 0.0
      %9282 = vmatprep.subr.mxu0 0.0
      %9283 = vmatpush1.msra.mxu0 0.0
      %9284 = vmatprep.subr.mxu0 0.0
      %9285 = vmatpush1.msra.mxu0 0.0
      %9286 = vmatprep.subr.mxu0 0.0
      %9287 = vmatpush1.msra.mxu0 0.0
      %9288 = vmatprep.subr.mxu0 0.0
      %9289 = vmatpush1.msra.mxu0 0.0
      %9290 = vmatprep.subr.mxu0 0.0
      %9291 = vmatpush1.msra.mxu0 0.0
      %9292 = vmatprep.subr.mxu0 0.0
      %9293 = vmatpush1.msra.mxu0 0.0
      %9294 = vmatprep.subr.mxu0 0.0
      %9295 = vmatpush1.msra.mxu0 0.0
      %9296 = vmatprep.subr.mxu0 0.0
      %9297 = vmatpush1.msra.mxu0 0.0
      %9298 = vmatprep.mubr.f32.mxu0 0.0
      %9299 = vmatmul.mubr.f32.gmra.mrb[0].mxu0 %v8806
      %v9300 = vpop.f32.mrb[0].mxu0
      %v9301 = vadd.f32 0.0, %v9300
      %v9302 = vpop.f32.mrb[0].mxu0
      %v9303 = vadd.f32 0.0, %v9302
      %9304 = vdwg.mxu0
      %9305 = vmatprep.subr.mxu0 %v6170
      %9306 = vmatpush1.msra.mxu0 %v6169
      %9307 = vmatprep.subr.mxu0 %v6204
      %9308 = vmatpush1.msra.mxu0 %v6203
      %9309 = vmatprep.subr.mxu0 %v6238
      %9310 = vmatpush1.msra.mxu0 %v6237
      %9311 = vmatprep.subr.mxu0 0.0
      %9312 = vmatpush1.msra.mxu0 0.0
      %9313 = vmatprep.subr.mxu0 0.0
      %9314 = vmatpush1.msra.mxu0 0.0
      %9315 = vmatprep.subr.mxu0 0.0
      %9316 = vmatpush1.msra.mxu0 0.0
      %9317 = vmatprep.subr.mxu0 0.0
      %9318 = vmatpush1.msra.mxu0 0.0
      %9319 = vmatprep.subr.mxu0 0.0
      %9320 = vmatpush1.msra.mxu0 0.0
      %9321 = vmatprep.subr.mxu0 0.0
      %9322 = vmatpush1.msra.mxu0 0.0
      %9323 = vmatprep.subr.mxu0 0.0
      %9324 = vmatpush1.msra.mxu0 0.0
      %9325 = vmatprep.subr.mxu0 0.0
      %9326 = vmatpush1.msra.mxu0 0.0
      %9327 = vmatprep.subr.mxu0 0.0
      %9328 = vmatpush1.msra.mxu0 0.0
      %9329 = vmatprep.subr.mxu0 0.0
      %9330 = vmatpush1.msra.mxu0 0.0
      %9331 = vmatprep.subr.mxu0 0.0
      %9332 = vmatpush1.msra.mxu0 0.0
      %9333 = vmatprep.subr.mxu0 0.0
      %9334 = vmatpush1.msra.mxu0 0.0
      %9335 = vmatprep.subr.mxu0 0.0
      %9336 = vmatpush1.msra.mxu0 0.0
      %9337 = vmatprep.subr.mxu0 0.0
      %9338 = vmatpush1.msra.mxu0 0.0
      %9339 = vmatprep.subr.mxu0 0.0
      %9340 = vmatpush1.msra.mxu0 0.0
      %9341 = vmatprep.subr.mxu0 0.0
      %9342 = vmatpush1.msra.mxu0 0.0
      %9343 = vmatprep.subr.mxu0 0.0
      %9344 = vmatpush1.msra.mxu0 0.0
      %9345 = vmatprep.subr.mxu0 0.0
      %9346 = vmatpush1.msra.mxu0 0.0
      %9347 = vmatprep.subr.mxu0 0.0
      %9348 = vmatpush1.msra.mxu0 0.0
      %9349 = vmatprep.subr.mxu0 0.0
      %9350 = vmatpush1.msra.mxu0 0.0
      %9351 = vmatprep.subr.mxu0 0.0
      %9352 = vmatpush1.msra.mxu0 0.0
      %9353 = vmatprep.subr.mxu0 0.0
      %9354 = vmatpush1.msra.mxu0 0.0
      %9355 = vmatprep.subr.mxu0 0.0
      %9356 = vmatpush1.msra.mxu0 0.0
      %9357 = vmatprep.subr.mxu0 0.0
      %9358 = vmatpush1.msra.mxu0 0.0
      %9359 = vmatprep.subr.mxu0 0.0
      %9360 = vmatpush1.msra.mxu0 0.0
      %9361 = vmatprep.subr.mxu0 0.0
      %9362 = vmatpush1.msra.mxu0 0.0
      %9363 = vmatprep.subr.mxu0 0.0
      %9364 = vmatpush1.msra.mxu0 0.0
      %9365 = vmatprep.subr.mxu0 0.0
      %9366 = vmatpush1.msra.mxu0 0.0
      %9367 = vmatprep.subr.mxu0 0.0
      %9368 = vmatpush1.msra.mxu0 0.0
      %9369 = vmatprep.mubr.f32.mxu0 0.0
      %9370 = vmatmul.mubr.f32.gmra.mrb[0].mxu0 %v8806
      %v9371 = vpop.f32.mrb[0].mxu0
      %v9372 = vadd.f32 0.0, %v9371
      %v9373 = vpop.f32.mrb[0].mxu0
      %v9374 = vadd.f32 0.0, %v9373
      %9375 = vdwg.mxu0
      %9376 = vmatprep.subr.mxu0 %v6172
      %9377 = vmatpush1.msra.mxu0 %v6171
      %9378 = vmatprep.subr.mxu0 %v6206
      %9379 = vmatpush1.msra.mxu0 %v6205
      %9380 = vmatprep.subr.mxu0 %v6240
      %9381 = vmatpush1.msra.mxu0 %v6239
      %9382 = vmatprep.subr.mxu0 0.0
      %9383 = vmatpush1.msra.mxu0 0.0
      %9384 = vmatprep.subr.mxu0 0.0
      %9385 = vmatpush1.msra.mxu0 0.0
      %9386 = vmatprep.subr.mxu0 0.0
      %9387 = vmatpush1.msra.mxu0 0.0
      %9388 = vmatprep.subr.mxu0 0.0
      %9389 = vmatpush1.msra.mxu0 0.0
      %9390 = vmatprep.subr.mxu0 0.0
      %9391 = vmatpush1.msra.mxu0 0.0
      %9392 = vmatprep.subr.mxu0 0.0
      %9393 = vmatpush1.msra.mxu0 0.0
      %9394 = vmatprep.subr.mxu0 0.0
      %9395 = vmatpush1.msra.mxu0 0.0
      %9396 = vmatprep.subr.mxu0 0.0
      %9397 = vmatpush1.msra.mxu0 0.0
      %9398 = vmatprep.subr.mxu0 0.0
      %9399 = vmatpush1.msra.mxu0 0.0
      %9400 = vmatprep.subr.mxu0 0.0
      %9401 = vmatpush1.msra.mxu0 0.0
      %9402 = vmatprep.subr.mxu0 0.0
      %9403 = vmatpush1.msra.mxu0 0.0
      %9404 = vmatprep.subr.mxu0 0.0
      %9405 = vmatpush1.msra.mxu0 0.0
      %9406 = vmatprep.subr.mxu0 0.0
      %9407 = vmatpush1.msra.mxu0 0.0
      %9408 = vmatprep.subr.mxu0 0.0
      %9409 = vmatpush1.msra.mxu0 0.0
      %9410 = vmatprep.subr.mxu0 0.0
      %9411 = vmatpush1.msra.mxu0 0.0
      %9412 = vmatprep.subr.mxu0 0.0
      %9413 = vmatpush1.msra.mxu0 0.0
      %9414 = vmatprep.subr.mxu0 0.0
      %9415 = vmatpush1.msra.mxu0 0.0
      %9416 = vmatprep.subr.mxu0 0.0
      %9417 = vmatpush1.msra.mxu0 0.0
      %9418 = vmatprep.subr.mxu0 0.0
      %9419 = vmatpush1.msra.mxu0 0.0
      %9420 = vmatprep.subr.mxu0 0.0
      %9421 = vmatpush1.msra.mxu0 0.0
      %9422 = vmatprep.subr.mxu0 0.0
      %9423 = vmatpush1.msra.mxu0 0.0
      %9424 = vmatprep.subr.mxu0 0.0
      %9425 = vmatpush1.msra.mxu0 0.0
      %9426 = vmatprep.subr.mxu0 0.0
      %9427 = vmatpush1.msra.mxu0 0.0
      %9428 = vmatprep.subr.mxu0 0.0
      %9429 = vmatpush1.msra.mxu0 0.0
      %9430 = vmatprep.subr.mxu0 0.0
      %9431 = vmatpush1.msra.mxu0 0.0
      %9432 = vmatprep.subr.mxu0 0.0
      %9433 = vmatpush1.msra.mxu0 0.0
      %9434 = vmatprep.subr.mxu0 0.0
      %9435 = vmatpush1.msra.mxu0 0.0
      %9436 = vmatprep.subr.mxu0 0.0
      %9437 = vmatpush1.msra.mxu0 0.0
      %9438 = vmatprep.subr.mxu0 0.0
      %9439 = vmatpush1.msra.mxu0 0.0
      %9440 = vmatprep.mubr.f32.mxu0 0.0
      %9441 = vmatmul.mubr.f32.gmra.mrb[0].mxu0 %v8806
      %v9442 = vpop.f32.mrb[0].mxu0
      %v9443 = vadd.f32 0.0, %v9442
      %v9444 = vpop.f32.mrb[0].mxu0
      %v9445 = vadd.f32 0.0, %v9444
      %9446 = vdwg.mxu0
      %9447 = vmatprep.subr.mxu0 %v6174
      %9448 = vmatpush1.msra.mxu0 %v6173
      %9449 = vmatprep.subr.mxu0 %v6208
      %9450 = vmatpush1.msra.mxu0 %v6207
      %9451 = vmatprep.subr.mxu0 %v6242
      %9452 = vmatpush1.msra.mxu0 %v6241
      %9453 = vmatprep.subr.mxu0 0.0
      %9454 = vmatpush1.msra.mxu0 0.0
      %9455 = vmatprep.subr.mxu0 0.0
      %9456 = vmatpush1.msra.mxu0 0.0
      %9457 = vmatprep.subr.mxu0 0.0
      %9458 = vmatpush1.msra.mxu0 0.0
      %9459 = vmatprep.subr.mxu0 0.0
      %9460 = vmatpush1.msra.mxu0 0.0
      %9461 = vmatprep.subr.mxu0 0.0
      %9462 = vmatpush1.msra.mxu0 0.0
      %9463 = vmatprep.subr.mxu0 0.0
      %9464 = vmatpush1.msra.mxu0 0.0
      %9465 = vmatprep.subr.mxu0 0.0
      %9466 = vmatpush1.msra.mxu0 0.0
      %9467 = vmatprep.subr.mxu0 0.0
      %9468 = vmatpush1.msra.mxu0 0.0
      %9469 = vmatprep.subr.mxu0 0.0
      %9470 = vmatpush1.msra.mxu0 0.0
      %9471 = vmatprep.subr.mxu0 0.0
      %9472 = vmatpush1.msra.mxu0 0.0
      %9473 = vmatprep.subr.mxu0 0.0
      %9474 = vmatpush1.msra.mxu0 0.0
      %9475 = vmatprep.subr.mxu0 0.0
      %9476 = vmatpush1.msra.mxu0 0.0
      %9477 = vmatprep.subr.mxu0 0.0
      %9478 = vmatpush1.msra.mxu0 0.0
      %9479 = vmatprep.subr.mxu0 0.0
      %9480 = vmatpush1.msra.mxu0 0.0
      %9481 = vmatprep.subr.mxu0 0.0
      %9482 = vmatpush1.msra.mxu0 0.0
      %9483 = vmatprep.subr.mxu0 0.0
      %9484 = vmatpush1.msra.mxu0 0.0
      %9485 = vmatprep.subr.mxu0 0.0
      %9486 = vmatpush1.msra.mxu0 0.0
      %9487 = vmatprep.subr.mxu0 0.0
      %9488 = vmatpush1.msra.mxu0 0.0
      %9489 = vmatprep.subr.mxu0 0.0
      %9490 = vmatpush1.msra.mxu0 0.0
      %9491 = vmatprep.subr.mxu0 0.0
      %9492 = vmatpush1.msra.mxu0 0.0
      %9493 = vmatprep.subr.mxu0 0.0
      %9494 = vmatpush1.msra.mxu0 0.0
      %9495 = vmatprep.subr.mxu0 0.0
      %9496 = vmatpush1.msra.mxu0 0.0
      %9497 = vmatprep.subr.mxu0 0.0
      %9498 = vmatpush1.msra.mxu0 0.0
      %9499 = vmatprep.subr.mxu0 0.0
      %9500 = vmatpush1.msra.mxu0 0.0
      %9501 = vmatprep.subr.mxu0 0.0
      %9502 = vmatpush1.msra.mxu0 0.0
      %9503 = vmatprep.subr.mxu0 0.0
      %9504 = vmatpush1.msra.mxu0 0.0
      %9505 = vmatprep.subr.mxu0 0.0
      %9506 = vmatpush1.msra.mxu0 0.0
      %9507 = vmatprep.subr.mxu0 0.0
      %9508 = vmatpush1.msra.mxu0 0.0
      %9509 = vmatprep.subr.mxu0 0.0
      %9510 = vmatpush1.msra.mxu0 0.0
      %9511 = vmatprep.mubr.f32.mxu0 0.0
      %9512 = vmatmul.mubr.f32.gmra.mrb[0].mxu0 %v8806
      %v9513 = vpop.f32.mrb[0].mxu0
      %v9514 = vadd.f32 0.0, %v9513
      %v9515 = vpop.f32.mrb[0].mxu0
      %v9516 = vadd.f32 0.0, %v9515
      %9517 = vdwg.mxu0
      %9518 = vmatprep.subr.mxu0 %v6176
      %9519 = vmatpush1.msra.mxu0 %v6175
      %9520 = vmatprep.subr.mxu0 %v6210
      %9521 = vmatpush1.msra.mxu0 %v6209
      %9522 = vmatprep.subr.mxu0 %v6244
      %9523 = vmatpush1.msra.mxu0 %v6243
      %9524 = vmatprep.subr.mxu0 0.0
      %9525 = vmatpush1.msra.mxu0 0.0
      %9526 = vmatprep.subr.mxu0 0.0
      %9527 = vmatpush1.msra.mxu0 0.0
      %9528 = vmatprep.subr.mxu0 0.0
      %9529 = vmatpush1.msra.mxu0 0.0
      %9530 = vmatprep.subr.mxu0 0.0
      %9531 = vmatpush1.msra.mxu0 0.0
      %9532 = vmatprep.subr.mxu0 0.0
      %9533 = vmatpush1.msra.mxu0 0.0
      %9534 = vmatprep.subr.mxu0 0.0
      %9535 = vmatpush1.msra.mxu0 0.0
      %9536 = vmatprep.subr.mxu0 0.0
      %9537 = vmatpush1.msra.mxu0 0.0
      %9538 = vmatprep.subr.mxu0 0.0
      %9539 = vmatpush1.msra.mxu0 0.0
      %9540 = vmatprep.subr.mxu0 0.0
      %9541 = vmatpush1.msra.mxu0 0.0
      %9542 = vmatprep.subr.mxu0 0.0
      %9543 = vmatpush1.msra.mxu0 0.0
      %9544 = vmatprep.subr.mxu0 0.0
      %9545 = vmatpush1.msra.mxu0 0.0
      %9546 = vmatprep.subr.mxu0 0.0
      %9547 = vmatpush1.msra.mxu0 0.0
      %9548 = vmatprep.subr.mxu0 0.0
      %9549 = vmatpush1.msra.mxu0 0.0
      %9550 = vmatprep.subr.mxu0 0.0
      %9551 = vmatpush1.msra.mxu0 0.0
      %9552 = vmatprep.subr.mxu0 0.0
      %9553 = vmatpush1.msra.mxu0 0.0
      %9554 = vmatprep.subr.mxu0 0.0
      %9555 = vmatpush1.msra.mxu0 0.0
      %9556 = vmatprep.subr.mxu0 0.0
      %9557 = vmatpush1.msra.mxu0 0.0
      %9558 = vmatprep.subr.mxu0 0.0
      %9559 = vmatpush1.msra.mxu0 0.0
      %9560 = vmatprep.subr.mxu0 0.0
      %9561 = vmatpush1.msra.mxu0 0.0
      %9562 = vmatprep.subr.mxu0 0.0
      %9563 = vmatpush1.msra.mxu0 0.0
      %9564 = vmatprep.subr.mxu0 0.0
      %9565 = vmatpush1.msra.mxu0 0.0
      %9566 = vmatprep.subr.mxu0 0.0
      %9567 = vmatpush1.msra.mxu0 0.0
      %9568 = vmatprep.subr.mxu0 0.0
      %9569 = vmatpush1.msra.mxu0 0.0
      %9570 = vmatprep.subr.mxu0 0.0
      %9571 = vmatpush1.msra.mxu0 0.0
      %9572 = vmatprep.subr.mxu0 0.0
      %9573 = vmatpush1.msra.mxu0 0.0
      %9574 = vmatprep.subr.mxu0 0.0
      %9575 = vmatpush1.msra.mxu0 0.0
      %9576 = vmatprep.subr.mxu0 0.0
      %9577 = vmatpush1.msra.mxu0 0.0
      %9578 = vmatprep.subr.mxu0 0.0
      %9579 = vmatpush1.msra.mxu0 0.0
      %9580 = vmatprep.subr.mxu0 0.0
      %9581 = vmatpush1.msra.mxu0 0.0
      %9582 = vmatprep.mubr.f32.mxu0 0.0
      %9583 = vmatmul.mubr.f32.gmra.mrb[0].mxu0 %v8806
      %v9584 = vpop.f32.mrb[0].mxu0
      %v9585 = vadd.f32 0.0, %v9584
      %v9586 = vpop.f32.mrb[0].mxu0
      %v9587 = vadd.f32 0.0, %v9586
      %9588 = vdwg.mxu0
      %9589 = vmatprep.subr.mxu0 %v6178
      %9590 = vmatpush1.msra.mxu0 %v6177
      %9591 = vmatprep.subr.mxu0 %v6212
      %9592 = vmatpush1.msra.mxu0 %v6211
      %9593 = vmatprep.subr.mxu0 %v6246
      %9594 = vmatpush1.msra.mxu0 %v6245
      %9595 = vmatprep.subr.mxu0 0.0
      %9596 = vmatpush1.msra.mxu0 0.0
      %9597 = vmatprep.subr.mxu0 0.0
      %9598 = vmatpush1.msra.mxu0 0.0
      %9599 = vmatprep.subr.mxu0 0.0
      %9600 = vmatpush1.msra.mxu0 0.0
      %9601 = vmatprep.subr.mxu0 0.0
      %9602 = vmatpush1.msra.mxu0 0.0
      %9603 = vmatprep.subr.mxu0 0.0
      %9604 = vmatpush1.msra.mxu0 0.0
      %9605 = vmatprep.subr.mxu0 0.0
      %9606 = vmatpush1.msra.mxu0 0.0
      %9607 = vmatprep.subr.mxu0 0.0
      %9608 = vmatpush1.msra.mxu0 0.0
      %9609 = vmatprep.subr.mxu0 0.0
      %9610 = vmatpush1.msra.mxu0 0.0
      %9611 = vmatprep.subr.mxu0 0.0
      %9612 = vmatpush1.msra.mxu0 0.0
      %9613 = vmatprep.subr.mxu0 0.0
      %9614 = vmatpush1.msra.mxu0 0.0
      %9615 = vmatprep.subr.mxu0 0.0
      %9616 = vmatpush1.msra.mxu0 0.0
      %9617 = vmatprep.subr.mxu0 0.0
      %9618 = vmatpush1.msra.mxu0 0.0
      %9619 = vmatprep.subr.mxu0 0.0
      %9620 = vmatpush1.msra.mxu0 0.0
      %9621 = vmatprep.subr.mxu0 0.0
      %9622 = vmatpush1.msra.mxu0 0.0
      %9623 = vmatprep.subr.mxu0 0.0
      %9624 = vmatpush1.msra.mxu0 0.0
      %9625 = vmatprep.subr.mxu0 0.0
      %9626 = vmatpush1.msra.mxu0 0.0
      %9627 = vmatprep.subr.mxu0 0.0
      %9628 = vmatpush1.msra.mxu0 0.0
      %9629 = vmatprep.subr.mxu0 0.0
      %9630 = vmatpush1.msra.mxu0 0.0
      %9631 = vmatprep.subr.mxu0 0.0
      %9632 = vmatpush1.msra.mxu0 0.0
      %9633 = vmatprep.subr.mxu0 0.0
      %9634 = vmatpush1.msra.mxu0 0.0
      %9635 = vmatprep.subr.mxu0 0.0
      %9636 = vmatpush1.msra.mxu0 0.0
      %9637 = vmatprep.subr.mxu0 0.0
      %9638 = vmatpush1.msra.mxu0 0.0
      %9639 = vmatprep.subr.mxu0 0.0
      %9640 = vmatpush1.msra.mxu0 0.0
      %9641 = vmatprep.subr.mxu0 0.0
      %9642 = vmatpush1.msra.mxu0 0.0
      %9643 = vmatprep.subr.mxu0 0.0
      %9644 = vmatpush1.msra.mxu0 0.0
      %9645 = vmatprep.subr.mxu0 0.0
      %9646 = vmatpush1.msra.mxu0 0.0
      %9647 = vmatprep.subr.mxu0 0.0
      %9648 = vmatpush1.msra.mxu0 0.0
      %9649 = vmatprep.subr.mxu0 0.0
      %9650 = vmatpush1.msra.mxu0 0.0
      %9651 = vmatprep.subr.mxu0 0.0
      %9652 = vmatpush1.msra.mxu0 0.0
      %9653 = vmatprep.mubr.f32.mxu0 0.0
      %9654 = vmatmul.mubr.f32.gmra.mrb[0].mxu0 %v8806
      %v9655 = vpop.f32.mrb[0].mxu0
      %v9656 = vadd.f32 0.0, %v9655
      %v9657 = vpop.f32.mrb[0].mxu0
      %v9658 = vadd.f32 0.0, %v9657
      %9659 = vdwg.mxu0
      %9660 = vmatprep.subr.mxu0 %v6180
      %9661 = vmatpush1.msra.mxu0 %v6179
      %9662 = vmatprep.subr.mxu0 %v6214
      %9663 = vmatpush1.msra.mxu0 %v6213
      %9664 = vmatprep.subr.mxu0 %v6248
      %9665 = vmatpush1.msra.mxu0 %v6247
      %9666 = vmatprep.subr.mxu0 0.0
      %9667 = vmatpush1.msra.mxu0 0.0
      %9668 = vmatprep.subr.mxu0 0.0
      %9669 = vmatpush1.msra.mxu0 0.0
      %9670 = vmatprep.subr.mxu0 0.0
      %9671 = vmatpush1.msra.mxu0 0.0
      %9672 = vmatprep.subr.mxu0 0.0
      %9673 = vmatpush1.msra.mxu0 0.0
      %9674 = vmatprep.subr.mxu0 0.0
      %9675 = vmatpush1.msra.mxu0 0.0
      %9676 = vmatprep.subr.mxu0 0.0
      %9677 = vmatpush1.msra.mxu0 0.0
      %9678 = vmatprep.subr.mxu0 0.0
      %9679 = vmatpush1.msra.mxu0 0.0
      %9680 = vmatprep.subr.mxu0 0.0
      %9681 = vmatpush1.msra.mxu0 0.0
      %9682 = vmatprep.subr.mxu0 0.0
      %9683 = vmatpush1.msra.mxu0 0.0
      %9684 = vmatprep.subr.mxu0 0.0
      %9685 = vmatpush1.msra.mxu0 0.0
      %9686 = vmatprep.subr.mxu0 0.0
      %9687 = vmatpush1.msra.mxu0 0.0
      %9688 = vmatprep.subr.mxu0 0.0
      %9689 = vmatpush1.msra.mxu0 0.0
      %9690 = vmatprep.subr.mxu0 0.0
      %9691 = vmatpush1.msra.mxu0 0.0
      %9692 = vmatprep.subr.mxu0 0.0
      %9693 = vmatpush1.msra.mxu0 0.0
      %9694 = vmatprep.subr.mxu0 0.0
      %9695 = vmatpush1.msra.mxu0 0.0
      %9696 = vmatprep.subr.mxu0 0.0
      %9697 = vmatpush1.msra.mxu0 0.0
      %9698 = vmatprep.subr.mxu0 0.0
      %9699 = vmatpush1.msra.mxu0 0.0
      %9700 = vmatprep.subr.mxu0 0.0
      %9701 = vmatpush1.msra.mxu0 0.0
      %9702 = vmatprep.subr.mxu0 0.0
      %9703 = vmatpush1.msra.mxu0 0.0
      %9704 = vmatprep.subr.mxu0 0.0
      %9705 = vmatpush1.msra.mxu0 0.0
      %9706 = vmatprep.subr.mxu0 0.0
      %9707 = vmatpush1.msra.mxu0 0.0
      %9708 = vmatprep.subr.mxu0 0.0
      %9709 = vmatpush1.msra.mxu0 0.0
      %9710 = vmatprep.subr.mxu0 0.0
      %9711 = vmatpush1.msra.mxu0 0.0
      %9712 = vmatprep.subr.mxu0 0.0
      %9713 = vmatpush1.msra.mxu0 0.0
      %9714 = vmatprep.subr.mxu0 0.0
      %9715 = vmatpush1.msra.mxu0 0.0
      %9716 = vmatprep.subr.mxu0 0.0
      %9717 = vmatpush1.msra.mxu0 0.0
      %9718 = vmatprep.subr.mxu0 0.0
      %9719 = vmatpush1.msra.mxu0 0.0
      %9720 = vmatprep.subr.mxu0 0.0
      %9721 = vmatpush1.msra.mxu0 0.0
      %9722 = vmatprep.subr.mxu0 0.0
      %9723 = vmatpush1.msra.mxu0 0.0
      %9724 = vmatprep.mubr.f32.mxu0 0.0
      %9725 = vmatmul.mubr.f32.gmra.mrb[0].mxu0 %v8806
      %v9726 = vpop.f32.mrb[0].mxu0
      %v9727 = vadd.f32 0.0, %v9726
      %v9728 = vpop.f32.mrb[0].mxu0
      %v9729 = vadd.f32 0.0, %v9728
      %9730 = vdwg.mxu0
      %9731 = vmatprep.subr.mxu0 %v6182
      %9732 = vmatpush1.msra.mxu0 %v6181
      %9733 = vmatprep.subr.mxu0 %v6216
      %9734 = vmatpush1.msra.mxu0 %v6215
      %9735 = vmatprep.subr.mxu0 %v6250
      %9736 = vmatpush1.msra.mxu0 %v6249
      %9737 = vmatprep.subr.mxu0 0.0
      %9738 = vmatpush1.msra.mxu0 0.0
      %9739 = vmatprep.subr.mxu0 0.0
      %9740 = vmatpush1.msra.mxu0 0.0
      %9741 = vmatprep.subr.mxu0 0.0
      %9742 = vmatpush1.msra.mxu0 0.0
      %9743 = vmatprep.subr.mxu0 0.0
      %9744 = vmatpush1.msra.mxu0 0.0
      %9745 = vmatprep.subr.mxu0 0.0
      %9746 = vmatpush1.msra.mxu0 0.0
      %9747 = vmatprep.subr.mxu0 0.0
      %9748 = vmatpush1.msra.mxu0 0.0
      %9749 = vmatprep.subr.mxu0 0.0
      %9750 = vmatpush1.msra.mxu0 0.0
      %9751 = vmatprep.subr.mxu0 0.0
      %9752 = vmatpush1.msra.mxu0 0.0
      %9753 = vmatprep.subr.mxu0 0.0
      %9754 = vmatpush1.msra.mxu0 0.0
      %9755 = vmatprep.subr.mxu0 0.0
      %9756 = vmatpush1.msra.mxu0 0.0
      %9757 = vmatprep.subr.mxu0 0.0
      %9758 = vmatpush1.msra.mxu0 0.0
      %9759 = vmatprep.subr.mxu0 0.0
      %9760 = vmatpush1.msra.mxu0 0.0
      %9761 = vmatprep.subr.mxu0 0.0
      %9762 = vmatpush1.msra.mxu0 0.0
      %9763 = vmatprep.subr.mxu0 0.0
      %9764 = vmatpush1.msra.mxu0 0.0
      %9765 = vmatprep.subr.mxu0 0.0
      %9766 = vmatpush1.msra.mxu0 0.0
      %9767 = vmatprep.subr.mxu0 0.0
      %9768 = vmatpush1.msra.mxu0 0.0
      %9769 = vmatprep.subr.mxu0 0.0
      %9770 = vmatpush1.msra.mxu0 0.0
      %9771 = vmatprep.subr.mxu0 0.0
      %9772 = vmatpush1.msra.mxu0 0.0
      %9773 = vmatprep.subr.mxu0 0.0
      %9774 = vmatpush1.msra.mxu0 0.0
      %9775 = vmatprep.subr.mxu0 0.0
      %9776 = vmatpush1.msra.mxu0 0.0
      %9777 = vmatprep.subr.mxu0 0.0
      %9778 = vmatpush1.msra.mxu0 0.0
      %9779 = vmatprep.subr.mxu0 0.0
      %9780 = vmatpush1.msra.mxu0 0.0
      %9781 = vmatprep.subr.mxu0 0.0
      %9782 = vmatpush1.msra.mxu0 0.0
      %9783 = vmatprep.subr.mxu0 0.0
      %9784 = vmatpush1.msra.mxu0 0.0
      %9785 = vmatprep.subr.mxu0 0.0
      %9786 = vmatpush1.msra.mxu0 0.0
      %9787 = vmatprep.subr.mxu0 0.0
      %9788 = vmatpush1.msra.mxu0 0.0
      %9789 = vmatprep.subr.mxu0 0.0
      %9790 = vmatpush1.msra.mxu0 0.0
      %9791 = vmatprep.subr.mxu0 0.0
      %9792 = vmatpush1.msra.mxu0 0.0
      %9793 = vmatprep.subr.mxu0 0.0
      %9794 = vmatpush1.msra.mxu0 0.0
      %9795 = vmatprep.mubr.f32.mxu0 0.0
      %9796 = vmatmul.mubr.f32.gmra.mrb[0].mxu0 %v8806
      %v9797 = vpop.f32.mrb[0].mxu0
      %v9798 = vadd.f32 0.0, %v9797
      %v9799 = vpop.f32.mrb[0].mxu0
      %v9800 = vadd.f32 0.0, %v9799
      %9801 = vdwg.mxu0
      %9802 = vmatprep.subr.mxu0 %v6184
      %9803 = vmatpush1.msra.mxu0 %v6183
      %9804 = vmatprep.subr.mxu0 %v6218
      %9805 = vmatpush1.msra.mxu0 %v6217
      %9806 = vmatprep.subr.mxu0 %v6252
      %9807 = vmatpush1.msra.mxu0 %v6251
      %9808 = vmatprep.subr.mxu0 0.0
      %9809 = vmatpush1.msra.mxu0 0.0
      %9810 = vmatprep.subr.mxu0 0.0
      %9811 = vmatpush1.msra.mxu0 0.0
      %9812 = vmatprep.subr.mxu0 0.0
      %9813 = vmatpush1.msra.mxu0 0.0
      %9814 = vmatprep.subr.mxu0 0.0
      %9815 = vmatpush1.msra.mxu0 0.0
      %9816 = vmatprep.subr.mxu0 0.0
      %9817 = vmatpush1.msra.mxu0 0.0
      %9818 = vmatprep.subr.mxu0 0.0
      %9819 = vmatpush1.msra.mxu0 0.0
      %9820 = vmatprep.subr.mxu0 0.0
      %9821 = vmatpush1.msra.mxu0 0.0
      %9822 = vmatprep.subr.mxu0 0.0
      %9823 = vmatpush1.msra.mxu0 0.0
      %9824 = vmatprep.subr.mxu0 0.0
      %9825 = vmatpush1.msra.mxu0 0.0
      %9826 = vmatprep.subr.mxu0 0.0
      %9827 = vmatpush1.msra.mxu0 0.0
      %9828 = vmatprep.subr.mxu0 0.0
      %9829 = vmatpush1.msra.mxu0 0.0
      %9830 = vmatprep.subr.mxu0 0.0
      %9831 = vmatpush1.msra.mxu0 0.0
      %9832 = vmatprep.subr.mxu0 0.0
      %9833 = vmatpush1.msra.mxu0 0.0
      %9834 = vmatprep.subr.mxu0 0.0
      %9835 = vmatpush1.msra.mxu0 0.0
      %9836 = vmatprep.subr.mxu0 0.0
      %9837 = vmatpush1.msra.mxu0 0.0
      %9838 = vmatprep.subr.mxu0 0.0
      %9839 = vmatpush1.msra.mxu0 0.0
      %9840 = vmatprep.subr.mxu0 0.0
      %9841 = vmatpush1.msra.mxu0 0.0
      %9842 = vmatprep.subr.mxu0 0.0
      %9843 = vmatpush1.msra.mxu0 0.0
      %9844 = vmatprep.subr.mxu0 0.0
      %9845 = vmatpush1.msra.mxu0 0.0
      %9846 = vmatprep.subr.mxu0 0.0
      %9847 = vmatpush1.msra.mxu0 0.0
      %9848 = vmatprep.subr.mxu0 0.0
      %9849 = vmatpush1.msra.mxu0 0.0
      %9850 = vmatprep.subr.mxu0 0.0
      %9851 = vmatpush1.msra.mxu0 0.0
      %9852 = vmatprep.subr.mxu0 0.0
      %9853 = vmatpush1.msra.mxu0 0.0
      %9854 = vmatprep.subr.mxu0 0.0
      %9855 = vmatpush1.msra.mxu0 0.0
      %9856 = vmatprep.subr.mxu0 0.0
      %9857 = vmatpush1.msra.mxu0 0.0
      %9858 = vmatprep.subr.mxu0 0.0
      %9859 = vmatpush1.msra.mxu0 0.0
      %9860 = vmatprep.subr.mxu0 0.0
      %9861 = vmatpush1.msra.mxu0 0.0
      %9862 = vmatprep.subr.mxu0 0.0
      %9863 = vmatpush1.msra.mxu0 0.0
      %9864 = vmatprep.subr.mxu0 0.0
      %9865 = vmatpush1.msra.mxu0 0.0
      %9866 = vmatprep.mubr.f32.mxu0 0.0
      %9867 = vmatmul.mubr.f32.gmra.mrb[0].mxu0 %v8806
      %v9868 = vpop.f32.mrb[0].mxu0
      %v9869 = vadd.f32 0.0, %v9868
      %v9870 = vpop.f32.mrb[0].mxu0
      %v9871 = vadd.f32 0.0, %v9870
      %9872 = vdwg.mxu0
      %9873 = vmatprep.subr.mxu0 %v6186
      %9874 = vmatpush1.msra.mxu0 %v6185
      %9875 = vmatprep.subr.mxu0 %v6220
      %9876 = vmatpush1.msra.mxu0 %v6219
      %9877 = vmatprep.subr.mxu0 %v6254
      %9878 = vmatpush1.msra.mxu0 %v6253
      %9879 = vmatprep.subr.mxu0 0.0
      %9880 = vmatpush1.msra.mxu0 0.0
      %9881 = vmatprep.subr.mxu0 0.0
      %9882 = vmatpush1.msra.mxu0 0.0
      %9883 = vmatprep.subr.mxu0 0.0
      %9884 = vmatpush1.msra.mxu0 0.0
      %9885 = vmatprep.subr.mxu0 0.0
      %9886 = vmatpush1.msra.mxu0 0.0
      %9887 = vmatprep.subr.mxu0 0.0
      %9888 = vmatpush1.msra.mxu0 0.0
      %9889 = vmatprep.subr.mxu0 0.0
      %9890 = vmatpush1.msra.mxu0 0.0
      %9891 = vmatprep.subr.mxu0 0.0
      %9892 = vmatpush1.msra.mxu0 0.0
      %9893 = vmatprep.subr.mxu0 0.0
      %9894 = vmatpush1.msra.mxu0 0.0
      %9895 = vmatprep.subr.mxu0 0.0
      %9896 = vmatpush1.msra.mxu0 0.0
      %9897 = vmatprep.subr.mxu0 0.0
      %9898 = vmatpush1.msra.mxu0 0.0
      %9899 = vmatprep.subr.mxu0 0.0
      %9900 = vmatpush1.msra.mxu0 0.0
      %9901 = vmatprep.subr.mxu0 0.0
      %9902 = vmatpush1.msra.mxu0 0.0
      %9903 = vmatprep.subr.mxu0 0.0
      %9904 = vmatpush1.msra.mxu0 0.0
      %9905 = vmatprep.subr.mxu0 0.0
      %9906 = vmatpush1.msra.mxu0 0.0
      %9907 = vmatprep.subr.mxu0 0.0
      %9908 = vmatpush1.msra.mxu0 0.0
      %9909 = vmatprep.subr.mxu0 0.0
      %9910 = vmatpush1.msra.mxu0 0.0
      %9911 = vmatprep.subr.mxu0 0.0
      %9912 = vmatpush1.msra.mxu0 0.0
      %9913 = vmatprep.subr.mxu0 0.0
      %9914 = vmatpush1.msra.mxu0 0.0
      %9915 = vmatprep.subr.mxu0 0.0
      %9916 = vmatpush1.msra.mxu0 0.0
      %9917 = vmatprep.subr.mxu0 0.0
      %9918 = vmatpush1.msra.mxu0 0.0
      %9919 = vmatprep.subr.mxu0 0.0
      %9920 = vmatpush1.msra.mxu0 0.0
      %9921 = vmatprep.subr.mxu0 0.0
      %9922 = vmatpush1.msra.mxu0 0.0
      %9923 = vmatprep.subr.mxu0 0.0
      %9924 = vmatpush1.msra.mxu0 0.0
      %9925 = vmatprep.subr.mxu0 0.0
      %9926 = vmatpush1.msra.mxu0 0.0
      %9927 = vmatprep.subr.mxu0 0.0
      %9928 = vmatpush1.msra.mxu0 0.0
      %9929 = vmatprep.subr.mxu0 0.0
      %9930 = vmatpush1.msra.mxu0 0.0
      %9931 = vmatprep.subr.mxu0 0.0
      %9932 = vmatpush1.msra.mxu0 0.0
      %9933 = vmatprep.subr.mxu0 0.0
      %9934 = vmatpush1.msra.mxu0 0.0
      %9935 = vmatprep.subr.mxu0 0.0
      %9936 = vmatpush1.msra.mxu0 0.0
      %9937 = vmatprep.mubr.f32.mxu0 0.0
      %9938 = vmatmul.mubr.f32.gmra.mrb[0].mxu0 %v8806
      %v9939 = vpop.f32.mrb[0].mxu0
      %v9940 = vadd.f32 0.0, %v9939
      %v9941 = vpop.f32.mrb[0].mxu0
      %v9942 = vadd.f32 0.0, %v9941
      %9943 = vdwg.mxu0
      %9944 = vmatprep.subr.mxu0 %v8799
      %9945 = vmatpush1.msra.mxu0 %v6187
      %9946 = vmatprep.subr.mxu0 %v8800
      %9947 = vmatpush1.msra.mxu0 %v6221
      %9948 = vmatprep.subr.mxu0 %v8801
      %9949 = vmatpush1.msra.mxu0 %v6255
      %9950 = vmatprep.subr.mxu0 0.0
      %9951 = vmatpush1.msra.mxu0 0.0
      %9952 = vmatprep.subr.mxu0 0.0
      %9953 = vmatpush1.msra.mxu0 0.0
      %9954 = vmatprep.subr.mxu0 0.0
      %9955 = vmatpush1.msra.mxu0 0.0
      %9956 = vmatprep.subr.mxu0 0.0
      %9957 = vmatpush1.msra.mxu0 0.0
      %9958 = vmatprep.subr.mxu0 0.0
      %9959 = vmatpush1.msra.mxu0 0.0
      %9960 = vmatprep.subr.mxu0 0.0
      %9961 = vmatpush1.msra.mxu0 0.0
      %9962 = vmatprep.subr.mxu0 0.0
      %9963 = vmatpush1.msra.mxu0 0.0
      %9964 = vmatprep.subr.mxu0 0.0
      %9965 = vmatpush1.msra.mxu0 0.0
      %9966 = vmatprep.subr.mxu0 0.0
      %9967 = vmatpush1.msra.mxu0 0.0
      %9968 = vmatprep.subr.mxu0 0.0
      %9969 = vmatpush1.msra.mxu0 0.0
      %9970 = vmatprep.subr.mxu0 0.0
      %9971 = vmatpush1.msra.mxu0 0.0
      %9972 = vmatprep.subr.mxu0 0.0
      %9973 = vmatpush1.msra.mxu0 0.0
      %9974 = vmatprep.subr.mxu0 0.0
      %9975 = vmatpush1.msra.mxu0 0.0
      %9976 = vmatprep.subr.mxu0 0.0
      %9977 = vmatpush1.msra.mxu0 0.0
      %9978 = vmatprep.subr.mxu0 0.0
      %9979 = vmatpush1.msra.mxu0 0.0
      %9980 = vmatprep.subr.mxu0 0.0
      %9981 = vmatpush1.msra.mxu0 0.0
      %9982 = vmatprep.subr.mxu0 0.0
      %9983 = vmatpush1.msra.mxu0 0.0
      %9984 = vmatprep.subr.mxu0 0.0
      %9985 = vmatpush1.msra.mxu0 0.0
      %9986 = vmatprep.subr.mxu0 0.0
      %9987 = vmatpush1.msra.mxu0 0.0
      %9988 = vmatprep.subr.mxu0 0.0
      %9989 = vmatpush1.msra.mxu0 0.0
      %9990 = vmatprep.subr.mxu0 0.0
      %9991 = vmatpush1.msra.mxu0 0.0
      %9992 = vmatprep.subr.mxu0 0.0
      %9993 = vmatpush1.msra.mxu0 0.0
      %9994 = vmatprep.subr.mxu0 0.0
      %9995 = vmatpush1.msra.mxu0 0.0
      %9996 = vmatprep.subr.mxu0 0.0
      %9997 = vmatpush1.msra.mxu0 0.0
      %9998 = vmatprep.subr.mxu0 0.0
      %9999 = vmatpush1.msra.mxu0 0.0
      %10000 = vmatprep.subr.mxu0 0.0
      %10001 = vmatpush1.msra.mxu0 0.0
      %10002 = vmatprep.subr.mxu0 0.0
      %10003 = vmatpush1.msra.mxu0 0.0
      %10004 = vmatprep.subr.mxu0 0.0
      %10005 = vmatpush1.msra.mxu0 0.0
      %10006 = vmatprep.subr.mxu0 0.0
      %10007 = vmatpush1.msra.mxu0 0.0
      %10008 = vmatprep.mubr.f32.mxu0 0.0
      %10009 = vmatmul.mubr.f32.gmra.mrb[0].mxu0 %v8806
      %v10010 = vpop.f32.mrb[0].mxu0
      %v10011 = vadd.f32 0.0, %v10010
      %v10012 = vpop.f32.mrb[0].mxu0
      %v10013 = vadd.f32 0.0, %v10012
      %10014 = vdwg.mxu0
      %v10015 = vadd.f32 %v7651, %v8875
      %v10016 = vadd.f32 %v7653, %v8877
      %v10017 = vadd.f32 %v7722, %v8946
      %v10018 = vadd.f32 %v7724, %v8948
      %v10019 = vadd.f32 %v7793, %v9017
      %v10020 = vadd.f32 %v7795, %v9019
      %v10021 = vadd.f32 %v7864, %v9088
      %v10022 = vadd.f32 %v7866, %v9090
      %v10023 = vadd.f32 %v7935, %v9159
      %v10024 = vadd.f32 %v7937, %v9161
      %v10025 = vadd.f32 %v8006, %v9230
      %v10026 = vadd.f32 %v8008, %v9232
      %v10027 = vadd.f32 %v8077, %v9301
      %v10028 = vadd.f32 %v8079, %v9303
      %v10029 = vadd.f32 %v8148, %v9372
      %v10030 = vadd.f32 %v8150, %v9374
      %v10031 = vadd.f32 %v8219, %v9443
      %v10032 = vadd.f32 %v8221, %v9445
      %v10033 = vadd.f32 %v8290, %v9514
      %v10034 = vadd.f32 %v8292, %v9516
      %v10035 = vadd.f32 %v8361, %v9585
      %v10036 = vadd.f32 %v8363, %v9587
      %v10037 = vadd.f32 %v8432, %v9656
      %v10038 = vadd.f32 %v8434, %v9658
      %v10039 = vadd.f32 %v8503, %v9727
      %v10040 = vadd.f32 %v8505, %v9729
      %v10041 = vadd.f32 %v8574, %v9798
      %v10042 = vadd.f32 %v8576, %v9800
      %v10043 = vadd.f32 %v8645, %v9869
      %v10044 = vadd.f32 %v8647, %v9871
      %v10045 = vadd.f32 %v8716, %v9940
      %v10046 = vadd.f32 %v8718, %v9942
      %v10047 = vadd.f32 %v8787, %v10011
      %v10048 = vadd.f32 %v8789, %v10013
      %s10049 = scalar_lea.vmem %s283, 1
      %v10050 = vld [vmem:[%s10049] ss:$2 sm:$0xff]
      %s10051 = scalar_lea.vmem %s283, 17
      %v10052 = vld [vmem:[%s10051] ss:$2 sm:$0xff]
      %s10053 = scalar_lea.vmem %s283, 33
      %v10054 = vld [vmem:[%s10053] ss:$2 sm:$0xff]
      %s10055 = scalar_lea.vmem %s283, 49
      %v10056 = vld [vmem:[%s10055] ss:$2 sm:$0xff]
      %s10057 = scalar_lea.vmem %s283, 65
      %v10058 = vld [vmem:[%s10057] ss:$2 sm:$0x3]
      %10059 = vset.pattern.permute.xlu0 4
      %10060 = vperm.xlu0 %10059, %v294
      %v10061 = vpop.permute.xlu0 %10060
      %v10063 = vadd.f32 %v10015, %v10061
      %v10064 = vadd.f32 %v10016, %v10061
      %v10065 = vadd.f32 %v10017, %v10061
      %v10066 = vadd.f32 %v10018, %v10061
      %v10067 = vadd.f32 %v10019, %v10061
      %v10068 = vadd.f32 %v10020, %v10061
      %v10069 = vadd.f32 %v10021, %v10061
      %v10070 = vadd.f32 %v10022, %v10061
      %v10071 = vadd.f32 %v10023, %v10061
      %v10072 = vadd.f32 %v10024, %v10061
      %v10073 = vadd.f32 %v10025, %v10061
      %v10074 = vadd.f32 %v10026, %v10061
      %v10075 = vadd.f32 %v10027, %v10061
      %v10076 = vadd.f32 %v10028, %v10061
      %v10077 = vadd.f32 %v10029, %v10061
      %v10078 = vadd.f32 %v10030, %v10061
      %v10079 = vadd.f32 %v10031, %v10061
      %v10080 = vadd.f32 %v10032, %v10061
      %v10081 = vadd.f32 %v10033, %v10061
      %v10082 = vadd.f32 %v10034, %v10061
      %v10083 = vadd.f32 %v10035, %v10061
      %v10084 = vadd.f32 %v10036, %v10061
      %v10085 = vadd.f32 %v10037, %v10061
      %v10086 = vadd.f32 %v10038, %v10061
      %v10087 = vadd.f32 %v10039, %v10061
      %v10088 = vadd.f32 %v10040, %v10061
      %v10089 = vadd.f32 %v10041, %v10061
      %v10090 = vadd.f32 %v10042, %v10061
      %v10091 = vadd.f32 %v10043, %v10061
      %v10092 = vadd.f32 %v10044, %v10061
      %v10093 = vadd.f32 %v10045, %v10061
      %v10094 = vadd.f32 %v10046, %v10061
      %v10095 = vadd.f32 %v10047, %v10061
      %v10096 = vadd.f32 %v10048, %v10061
      %10097 = vset.pattern.permute.xlu0 5
      %10098 = vperm.xlu0 %10097, %v294
      %v10099 = vpop.permute.xlu0 %10098
      %v10106 = vlaneseq
      %v10107 = vshrl.u32 %v10106, 7
      %v10108 = vsub.s32 0, %v10107
      %v10109 = vrot.slane %v10050, %v10108
      %v10110 = vlaneseq
      %v10111 = vshrl.u32 %v10110, 7
      %v10112 = vsub.s32 1, %v10111
      %v10113 = vrot.slane %v10050, %v10112
      %v10114 = vlaneseq
      %v10115 = vshrl.u32 %v10114, 7
      %v10116 = vsub.s32 2, %v10115
      %v10117 = vrot.slane %v10050, %v10116
      %v10118 = vlaneseq
      %v10119 = vshrl.u32 %v10118, 7
      %v10120 = vsub.s32 3, %v10119
      %v10121 = vrot.slane %v10050, %v10120
      %v10122 = vlaneseq
      %v10123 = vshrl.u32 %v10122, 7
      %v10124 = vsub.s32 4, %v10123
      %v10125 = vrot.slane %v10050, %v10124
      %v10126 = vlaneseq
      %v10127 = vshrl.u32 %v10126, 7
      %v10128 = vsub.s32 5, %v10127
      %v10129 = vrot.slane %v10050, %v10128
      %v10130 = vlaneseq
      %v10131 = vshrl.u32 %v10130, 7
      %v10132 = vsub.s32 6, %v10131
      %v10133 = vrot.slane %v10050, %v10132
      %v10134 = vlaneseq
      %v10135 = vshrl.u32 %v10134, 7
      %v10136 = vsub.s32 7, %v10135
      %v10137 = vrot.slane %v10050, %v10136
      %v10138 = vlaneseq
      %v10139 = vshrl.u32 %v10138, 7
      %v10140 = vsub.s32 0, %v10139
      %v10141 = vrot.slane %v10052, %v10140
      %v10142 = vlaneseq
      %v10143 = vshrl.u32 %v10142, 7
      %v10144 = vsub.s32 1, %v10143
      %v10145 = vrot.slane %v10052, %v10144
      %v10146 = vlaneseq
      %v10147 = vshrl.u32 %v10146, 7
      %v10148 = vsub.s32 2, %v10147
      %v10149 = vrot.slane %v10052, %v10148
      %v10150 = vlaneseq
      %v10151 = vshrl.u32 %v10150, 7
      %v10152 = vsub.s32 3, %v10151
      %v10153 = vrot.slane %v10052, %v10152
      %v10154 = vlaneseq
      %v10155 = vshrl.u32 %v10154, 7
      %v10156 = vsub.s32 4, %v10155
      %v10157 = vrot.slane %v10052, %v10156
      %v10158 = vlaneseq
      %v10159 = vshrl.u32 %v10158, 7
      %v10160 = vsub.s32 5, %v10159
      %v10161 = vrot.slane %v10052, %v10160
      %v10162 = vlaneseq
      %v10163 = vshrl.u32 %v10162, 7
      %v10164 = vsub.s32 6, %v10163
      %v10165 = vrot.slane %v10052, %v10164
      %v10166 = vlaneseq
      %v10167 = vshrl.u32 %v10166, 7
      %v10168 = vsub.s32 7, %v10167
      %v10169 = vrot.slane %v10052, %v10168
      %v10170 = vlaneseq
      %v10171 = vshrl.u32 %v10170, 7
      %v10172 = vsub.s32 0, %v10171
      %v10173 = vrot.slane %v10054, %v10172
      %v10174 = vlaneseq
      %v10175 = vshrl.u32 %v10174, 7
      %v10176 = vsub.s32 1, %v10175
      %v10177 = vrot.slane %v10054, %v10176
      %v10178 = vlaneseq
      %v10179 = vshrl.u32 %v10178, 7
      %v10180 = vsub.s32 2, %v10179
      %v10181 = vrot.slane %v10054, %v10180
      %v10182 = vlaneseq
      %v10183 = vshrl.u32 %v10182, 7
      %v10184 = vsub.s32 3, %v10183
      %v10185 = vrot.slane %v10054, %v10184
      %v10186 = vlaneseq
      %v10187 = vshrl.u32 %v10186, 7
      %v10188 = vsub.s32 4, %v10187
      %v10189 = vrot.slane %v10054, %v10188
      %v10190 = vlaneseq
      %v10191 = vshrl.u32 %v10190, 7
      %v10192 = vsub.s32 5, %v10191
      %v10193 = vrot.slane %v10054, %v10192
      %v10194 = vlaneseq
      %v10195 = vshrl.u32 %v10194, 7
      %v10196 = vsub.s32 6, %v10195
      %v10197 = vrot.slane %v10054, %v10196
      %v10198 = vlaneseq
      %v10199 = vshrl.u32 %v10198, 7
      %v10200 = vsub.s32 7, %v10199
      %v10201 = vrot.slane %v10054, %v10200
      %v10202 = vlaneseq
      %v10203 = vshrl.u32 %v10202, 7
      %v10204 = vsub.s32 0, %v10203
      %v10205 = vrot.slane %v10056, %v10204
      %v10206 = vlaneseq
      %v10207 = vshrl.u32 %v10206, 7
      %v10208 = vsub.s32 1, %v10207
      %v10209 = vrot.slane %v10056, %v10208
      %v10210 = vlaneseq
      %v10211 = vshrl.u32 %v10210, 7
      %v10212 = vsub.s32 2, %v10211
      %v10213 = vrot.slane %v10056, %v10212
      %v10214 = vlaneseq
      %v10215 = vshrl.u32 %v10214, 7
      %v10216 = vsub.s32 3, %v10215
      %v10217 = vrot.slane %v10056, %v10216
      %v10218 = vlaneseq
      %v10219 = vshrl.u32 %v10218, 7
      %v10220 = vsub.s32 4, %v10219
      %v10221 = vrot.slane %v10056, %v10220
      %v10222 = vlaneseq
      %v10223 = vshrl.u32 %v10222, 7
      %v10224 = vsub.s32 5, %v10223
      %v10225 = vrot.slane %v10056, %v10224
      %v10226 = vlaneseq
      %v10227 = vshrl.u32 %v10226, 7
      %v10228 = vsub.s32 6, %v10227
      %v10229 = vrot.slane %v10056, %v10228
      %v10230 = vlaneseq
      %v10231 = vshrl.u32 %v10230, 7
      %v10232 = vsub.s32 7, %v10231
      %v10233 = vrot.slane %v10056, %v10232
      %v10234 = vlaneseq
      %v10235 = vshrl.u32 %v10234, 7
      %v10236 = vsub.s32 0, %v10235
      %v10237 = vrot.slane %v10058, %v10236
      %v10238 = vlaneseq
      %v10239 = vshrl.u32 %v10238, 7
      %v10240 = vsub.s32 1, %v10239
      %v10241 = vrot.slane %v10058, %v10240
      %v10276 = vmul.f32 %v10099, %v10109
      %v10277 = vmul.f32 %v10099, %v10113
      %v10278 = vmul.f32 %v10099, %v10117
      %v10279 = vmul.f32 %v10099, %v10121
      %v10280 = vmul.f32 %v10099, %v10125
      %v10281 = vmul.f32 %v10099, %v10129
      %v10282 = vmul.f32 %v10099, %v10133
      %v10283 = vmul.f32 %v10099, %v10137
      %v10284 = vmul.f32 %v10099, %v10141
      %v10285 = vmul.f32 %v10099, %v10145
      %v10286 = vmul.f32 %v10099, %v10149
      %v10287 = vmul.f32 %v10099, %v10153
      %v10288 = vmul.f32 %v10099, %v10157
      %v10289 = vmul.f32 %v10099, %v10161
      %v10290 = vmul.f32 %v10099, %v10165
      %v10291 = vmul.f32 %v10099, %v10169
      %v10292 = vmul.f32 %v10099, %v10173
      %v10293 = vmul.f32 %v10099, %v10177
      %v10294 = vmul.f32 %v10099, %v10181
      %v10295 = vmul.f32 %v10099, %v10185
      %v10296 = vmul.f32 %v10099, %v10189
      %v10297 = vmul.f32 %v10099, %v10193
      %v10298 = vmul.f32 %v10099, %v10197
      %v10299 = vmul.f32 %v10099, %v10201
      %v10300 = vmul.f32 %v10099, %v10205
      %v10301 = vmul.f32 %v10099, %v10209
      %v10302 = vmul.f32 %v10099, %v10213
      %v10303 = vmul.f32 %v10099, %v10217
      %v10304 = vmul.f32 %v10099, %v10221
      %v10305 = vmul.f32 %v10099, %v10225
      %v10306 = vmul.f32 %v10099, %v10229
      %v10307 = vmul.f32 %v10099, %v10233
      %v10308 = vmul.f32 %v10099, %v10237
      %v10309 = vmul.f32 %v10099, %v10241
      %v10310 = vadd.f32 %v10063, %v10276
      %v10311 = vadd.f32 %v10064, %v10277
      %v10312 = vadd.f32 %v10065, %v10278
      %v10313 = vadd.f32 %v10066, %v10279
      %v10314 = vadd.f32 %v10067, %v10280
      %v10315 = vadd.f32 %v10068, %v10281
      %v10316 = vadd.f32 %v10069, %v10282
      %v10317 = vadd.f32 %v10070, %v10283
      %v10318 = vadd.f32 %v10071, %v10284
      %v10319 = vadd.f32 %v10072, %v10285
      %v10320 = vadd.f32 %v10073, %v10286
      %v10321 = vadd.f32 %v10074, %v10287
      %v10322 = vadd.f32 %v10075, %v10288
      %v10323 = vadd.f32 %v10076, %v10289
      %v10324 = vadd.f32 %v10077, %v10290
      %v10325 = vadd.f32 %v10078, %v10291
      %v10326 = vadd.f32 %v10079, %v10292
      %v10327 = vadd.f32 %v10080, %v10293
      %v10328 = vadd.f32 %v10081, %v10294
      %v10329 = vadd.f32 %v10082, %v10295
      %v10330 = vadd.f32 %v10083, %v10296
      %v10331 = vadd.f32 %v10084, %v10297
      %v10332 = vadd.f32 %v10085, %v10298
      %v10333 = vadd.f32 %v10086, %v10299
      %v10334 = vadd.f32 %v10087, %v10300
      %v10335 = vadd.f32 %v10088, %v10301
      %v10336 = vadd.f32 %v10089, %v10302
      %v10337 = vadd.f32 %v10090, %v10303
      %v10338 = vadd.f32 %v10091, %v10304
      %v10339 = vadd.f32 %v10092, %v10305
      %v10340 = vadd.f32 %v10093, %v10306
      %v10341 = vadd.f32 %v10094, %v10307
      %v10342 = vadd.f32 %v10095, %v10308
      %v10343 = vadd.f32 %v10096, %v10309
      %v10344 = vmax.f32 %v10310, 0.0
      %v10345 = vmax.f32 %v10311, 0.0
      %v10346 = vmax.f32 %v10312, 0.0
      %v10347 = vmax.f32 %v10313, 0.0
      %v10348 = vmax.f32 %v10314, 0.0
      %v10349 = vmax.f32 %v10315, 0.0
      %v10350 = vmax.f32 %v10316, 0.0
      %v10351 = vmax.f32 %v10317, 0.0
      %v10352 = vmax.f32 %v10318, 0.0
      %v10353 = vmax.f32 %v10319, 0.0
      %v10354 = vmax.f32 %v10320, 0.0
      %v10355 = vmax.f32 %v10321, 0.0
      %v10356 = vmax.f32 %v10322, 0.0
      %v10357 = vmax.f32 %v10323, 0.0
      %v10358 = vmax.f32 %v10324, 0.0
      %v10359 = vmax.f32 %v10325, 0.0
      %v10360 = vmax.f32 %v10326, 0.0
      %v10361 = vmax.f32 %v10327, 0.0
      %v10362 = vmax.f32 %v10328, 0.0
      %v10363 = vmax.f32 %v10329, 0.0
      %v10364 = vmax.f32 %v10330, 0.0
      %v10365 = vmax.f32 %v10331, 0.0
      %v10366 = vmax.f32 %v10332, 0.0
      %v10367 = vmax.f32 %v10333, 0.0
      %v10368 = vmax.f32 %v10334, 0.0
      %v10369 = vmax.f32 %v10335, 0.0
      %v10370 = vmax.f32 %v10336, 0.0
      %v10371 = vmax.f32 %v10337, 0.0
      %v10372 = vmax.f32 %v10338, 0.0
      %v10373 = vmax.f32 %v10339, 0.0
      %v10374 = vmax.f32 %v10340, 0.0
      %v10375 = vmax.f32 %v10341, 0.0
      %v10376 = vmax.f32 %v10342, 0.0
      %v10377 = vmax.f32 %v10343, 0.0
      %v10378 = vmul.f32 %v10344, %v5108
      %v10379 = vmul.f32 %v10345, %v5112
      %v10380 = vmul.f32 %v10346, %v5116
      %v10381 = vmul.f32 %v10347, %v5120
      %v10382 = vmul.f32 %v10348, %v5124
      %v10383 = vmul.f32 %v10349, %v5128
      %v10384 = vmul.f32 %v10350, %v5132
      %v10385 = vmul.f32 %v10351, %v5136
      %v10386 = vmul.f32 %v10352, %v5140
      %v10387 = vmul.f32 %v10353, %v5144
      %v10388 = vmul.f32 %v10354, %v5148
      %v10389 = vmul.f32 %v10355, %v5152
      %v10390 = vmul.f32 %v10356, %v5156
      %v10391 = vmul.f32 %v10357, %v5160
      %v10392 = vmul.f32 %v10358, %v5164
      %v10393 = vmul.f32 %v10359, %v5168
      %v10394 = vmul.f32 %v10360, %v5172
      %v10395 = vmul.f32 %v10361, %v5176
      %v10396 = vmul.f32 %v10362, %v5180
      %v10397 = vmul.f32 %v10363, %v5184
      %v10398 = vmul.f32 %v10364, %v5188
      %v10399 = vmul.f32 %v10365, %v5192
      %v10400 = vmul.f32 %v10366, %v5196
      %v10401 = vmul.f32 %v10367, %v5200
      %v10402 = vmul.f32 %v10368, %v5204
      %v10403 = vmul.f32 %v10369, %v5208
      %v10404 = vmul.f32 %v10370, %v5212
      %v10405 = vmul.f32 %v10371, %v5216
      %v10406 = vmul.f32 %v10372, %v5220
      %v10407 = vmul.f32 %v10373, %v5224
      %v10408 = vmul.f32 %v10374, %v5228
      %v10409 = vmul.f32 %v10375, %v5232
      %v10410 = vmul.f32 %v10376, %v5236
      %v10411 = vmul.f32 %v10377, %v5240
      %v10412 = vadd.f32 %v10378, %v10379
      %v10413 = vadd.f32 %v10412, %v10380
      %v10414 = vadd.f32 %v10413, %v10381
      %v10415 = vadd.f32 %v10414, %v10382
      %v10416 = vadd.f32 %v10415, %v10383
      %v10417 = vadd.f32 %v10416, %v10384
      %v10418 = vadd.f32 %v10417, %v10385
      %v10419 = vadd.f32 %v10418, %v10386
      %v10420 = vadd.f32 %v10419, %v10387
      %v10421 = vadd.f32 %v10420, %v10388
      %v10422 = vadd.f32 %v10421, %v10389
      %v10423 = vadd.f32 %v10422, %v10390
      %v10424 = vadd.f32 %v10423, %v10391
      %v10425 = vadd.f32 %v10424, %v10392
      %v10426 = vadd.f32 %v10425, %v10393
      %v10427 = vadd.f32 %v10426, %v10394
      %v10428 = vadd.f32 %v10427, %v10395
      %v10429 = vadd.f32 %v10428, %v10396
      %v10430 = vadd.f32 %v10429, %v10397
      %v10431 = vadd.f32 %v10430, %v10398
      %v10432 = vadd.f32 %v10431, %v10399
      %v10433 = vadd.f32 %v10432, %v10400
      %v10434 = vadd.f32 %v10433, %v10401
      %v10435 = vadd.f32 %v10434, %v10402
      %v10436 = vadd.f32 %v10435, %v10403
      %v10437 = vadd.f32 %v10436, %v10404
      %v10438 = vadd.f32 %v10437, %v10405
      %v10439 = vadd.f32 %v10438, %v10406
      %v10440 = vadd.f32 %v10439, %v10407
      %v10441 = vadd.f32 %v10440, %v10408
      %v10442 = vadd.f32 %v10441, %v10409
      %v10443 = vadd.f32 %v10442, %v10410
      %v10444 = vadd.f32 %v10443, %v10411
      %10445 = vadd.xlane.f32.xlu0 %v10444
      %v10446 = vpop.xlane.xlu0 %10445
      %v10447 = vmul.f32 %v10378, %v10378
      %v10448 = vmul.f32 %v10379, %v10379
      %v10449 = vmul.f32 %v10380, %v10380
      %v10450 = vmul.f32 %v10381, %v10381
      %v10451 = vmul.f32 %v10382, %v10382
      %v10452 = vmul.f32 %v10383, %v10383
      %v10453 = vmul.f32 %v10384, %v10384
      %v10454 = vmul.f32 %v10385, %v10385
      %v10455 = vmul.f32 %v10386, %v10386
      %v10456 = vmul.f32 %v10387, %v10387
      %v10457 = vmul.f32 %v10388, %v10388
      %v10458 = vmul.f32 %v10389, %v10389
      %v10459 = vmul.f32 %v10390, %v10390
      %v10460 = vmul.f32 %v10391, %v10391
      %v10461 = vmul.f32 %v10392, %v10392
      %v10462 = vmul.f32 %v10393, %v10393
      %v10463 = vmul.f32 %v10394, %v10394
      %v10464 = vmul.f32 %v10395, %v10395
      %v10465 = vmul.f32 %v10396, %v10396
      %v10466 = vmul.f32 %v10397, %v10397
      %v10467 = vmul.f32 %v10398, %v10398
      %v10468 = vmul.f32 %v10399, %v10399
      %v10469 = vmul.f32 %v10400, %v10400
      %v10470 = vmul.f32 %v10401, %v10401
      %v10471 = vmul.f32 %v10402, %v10402
      %v10472 = vmul.f32 %v10403, %v10403
      %v10473 = vmul.f32 %v10404, %v10404
      %v10474 = vmul.f32 %v10405, %v10405
      %v10475 = vmul.f32 %v10406, %v10406
      %v10476 = vmul.f32 %v10407, %v10407
      %v10477 = vmul.f32 %v10408, %v10408
      %v10478 = vmul.f32 %v10409, %v10409
      %v10479 = vmul.f32 %v10410, %v10410
      %v10480 = vmul.f32 %v10411, %v10411
      %v10481 = vadd.f32 %v10447, %v10448
      %v10482 = vadd.f32 %v10481, %v10449
      %v10483 = vadd.f32 %v10482, %v10450
      %v10484 = vadd.f32 %v10483, %v10451
      %v10485 = vadd.f32 %v10484, %v10452
      %v10486 = vadd.f32 %v10485, %v10453
      %v10487 = vadd.f32 %v10486, %v10454
      %v10488 = vadd.f32 %v10487, %v10455
      %v10489 = vadd.f32 %v10488, %v10456
      %v10490 = vadd.f32 %v10489, %v10457
      %v10491 = vadd.f32 %v10490, %v10458
      %v10492 = vadd.f32 %v10491, %v10459
      %v10493 = vadd.f32 %v10492, %v10460
      %v10494 = vadd.f32 %v10493, %v10461
      %v10495 = vadd.f32 %v10494, %v10462
      %v10496 = vadd.f32 %v10495, %v10463
      %v10497 = vadd.f32 %v10496, %v10464
      %v10498 = vadd.f32 %v10497, %v10465
      %v10499 = vadd.f32 %v10498, %v10466
      %v10500 = vadd.f32 %v10499, %v10467
      %v10501 = vadd.f32 %v10500, %v10468
      %v10502 = vadd.f32 %v10501, %v10469
      %v10503 = vadd.f32 %v10502, %v10470
      %v10504 = vadd.f32 %v10503, %v10471
      %v10505 = vadd.f32 %v10504, %v10472
      %v10506 = vadd.f32 %v10505, %v10473
      %v10507 = vadd.f32 %v10506, %v10474
      %v10508 = vadd.f32 %v10507, %v10475
      %v10509 = vadd.f32 %v10508, %v10476
      %v10510 = vadd.f32 %v10509, %v10477
      %v10511 = vadd.f32 %v10510, %v10478
      %v10512 = vadd.f32 %v10511, %v10479
      %v10513 = vadd.f32 %v10512, %v10480
      %10514 = vadd.xlane.f32.xlu0 %v10513
      %v10515 = vpop.xlane.xlu0 %10514
      %v10516 = vmul.f32 %v10446, 0.0009765625
      %v10517 = vmul.f32 %v10515, 0.0009765625
      %v10518 = vmul.f32 %v10516, %v10516
      %v10519 = vsub.f32 %v10517, %v10518
      %v10520 = vmax.f32 %v10519, 0.0
      %v10521 = vadd.f32 %v10520, 1e-05
      %v10522 = vrsqrt.pop %v10521
      %v10523 = vmul.f32 %v294, %v10522
      %v10524 = vmul.f32 %v10516, %v10523
      %10526 = vrot.lane.b32.xlu0 %v10524, 1
      %v10527 = vpop.permute.xlu0 %10526
      %v10529 = vsub.f32 %v294, %v10527
      %10531 = vset.pattern.permute.xlu0 6
      %10532 = vperm.xlu0 %10531, %v10523
      %v10533 = vpop.permute.xlu0 %10532
      %v10535 = vmul.f32 %v10345, %v10533
      %v10536 = vmul.f32 %v10346, %v10533
      %v10537 = vmul.f32 %v10347, %v10533
      %v10538 = vmul.f32 %v10348, %v10533
      %v10539 = vmul.f32 %v10349, %v10533
      %v10540 = vmul.f32 %v10350, %v10533
      %v10541 = vmul.f32 %v10351, %v10533
      %v10542 = vmul.f32 %v10352, %v10533
      %v10543 = vmul.f32 %v10353, %v10533
      %v10544 = vmul.f32 %v10354, %v10533
      %v10545 = vmul.f32 %v10355, %v10533
      %v10546 = vmul.f32 %v10356, %v10533
      %v10547 = vmul.f32 %v10357, %v10533
      %v10548 = vmul.f32 %v10358, %v10533
      %v10549 = vmul.f32 %v10359, %v10533
      %v10550 = vmul.f32 %v10360, %v10533
      %v10551 = vmul.f32 %v10361, %v10533
      %v10552 = vmul.f32 %v10362, %v10533
      %v10553 = vmul.f32 %v10363, %v10533
      %v10554 = vmul.f32 %v10364, %v10533
      %v10555 = vmul.f32 %v10365, %v10533
      %v10556 = vmul.f32 %v10366, %v10533
      %v10557 = vmul.f32 %v10367, %v10533
      %v10558 = vmul.f32 %v10368, %v10533
      %v10559 = vmul.f32 %v10369, %v10533
      %v10560 = vmul.f32 %v10370, %v10533
      %v10561 = vmul.f32 %v10371, %v10533
      %v10562 = vmul.f32 %v10372, %v10533
      %v10563 = vmul.f32 %v10373, %v10533
      %v10564 = vmul.f32 %v10374, %v10533
      %v10565 = vmul.f32 %v10375, %v10533
      %v10566 = vmul.f32 %v10376, %v10533
      %10568 = vset.pattern.permute.xlu0 7
      %10569 = vperm.xlu0 %10568, %v10529
      %v10570 = vpop.permute.xlu0 %10569
      %v10572 = vadd.f32 %v10535, %v10570
      %v10573 = vadd.f32 %v10536, %v10570
      %v10574 = vadd.f32 %v10537, %v10570
      %v10575 = vadd.f32 %v10538, %v10570
      %v10576 = vadd.f32 %v10539, %v10570
      %v10577 = vadd.f32 %v10540, %v10570
      %v10578 = vadd.f32 %v10541, %v10570
      %v10579 = vadd.f32 %v10542, %v10570
      %v10580 = vadd.f32 %v10543, %v10570
      %v10581 = vadd.f32 %v10544, %v10570
      %v10582 = vadd.f32 %v10545, %v10570
      %v10583 = vadd.f32 %v10546, %v10570
      %v10584 = vadd.f32 %v10547, %v10570
      %v10585 = vadd.f32 %v10548, %v10570
      %v10586 = vadd.f32 %v10549, %v10570
      %v10587 = vadd.f32 %v10550, %v10570
      %v10588 = vadd.f32 %v10551, %v10570
      %v10589 = vadd.f32 %v10552, %v10570
      %v10590 = vadd.f32 %v10553, %v10570
      %v10591 = vadd.f32 %v10554, %v10570
      %v10592 = vadd.f32 %v10555, %v10570
      %v10593 = vadd.f32 %v10556, %v10570
      %v10594 = vadd.f32 %v10557, %v10570
      %v10595 = vadd.f32 %v10558, %v10570
      %v10596 = vadd.f32 %v10559, %v10570
      %v10597 = vadd.f32 %v10560, %v10570
      %v10598 = vadd.f32 %v10561, %v10570
      %v10599 = vadd.f32 %v10562, %v10570
      %v10600 = vadd.f32 %v10563, %v10570
      %v10601 = vadd.f32 %v10564, %v10570
      %v10602 = vadd.f32 %v10565, %v10570
      %v10603 = vadd.f32 %v10566, %v10570
      %10604 = vst [vmem:[%s288] sm:$0xff] %v10572
      %10605 = vst [vmem:[%s288 + $0x8] sm:$0xff] %v10573
      %10606 = vst [vmem:[%s288 + $0x10] sm:$0xff] %v10574
      %10607 = vst [vmem:[%s288 + $0x18] sm:$0xff] %v10575
      %10608 = vst [vmem:[%s288 + $0x20] sm:$0xff] %v10576
      %10609 = vst [vmem:[%s288 + $0x28] sm:$0xff] %v10577
      %10610 = vst [vmem:[%s288 + $0x30] sm:$0xff] %v10578
      %10611 = vst [vmem:[%s288 + $0x38] sm:$0xff] %v10579
      %10612 = vst [vmem:[%s288 + $0x40] sm:$0xff] %v10580
      %10613 = vst [vmem:[%s288 + $0x48] sm:$0xff] %v10581
      %10614 = vst [vmem:[%s288 + $0x50] sm:$0xff] %v10582
      %10615 = vst [vmem:[%s288 + $0x58] sm:$0xff] %v10583
      %10616 = vst [vmem:[%s288 + $0x60] sm:$0xff] %v10584
      %10617 = vst [vmem:[%s288 + $0x68] sm:$0xff] %v10585
      %10618 = vst [vmem:[%s288 + $0x70] sm:$0xff] %v10586
      %10619 = vst [vmem:[%s288 + $0x78] sm:$0xff] %v10587
      %10620 = vst [vmem:[%s288 + $0x80] sm:$0xff] %v10588
      %10621 = vst [vmem:[%s288 + $0x88] sm:$0xff] %v10589
      %10622 = vst [vmem:[%s288 + $0x90] sm:$0xff] %v10590
      %10623 = vst [vmem:[%s288 + $0x98] sm:$0xff] %v10591
      %10624 = vst [vmem:[%s288 + $0xa0] sm:$0xff] %v10592
      %10625 = vst [vmem:[%s288 + $0xa8] sm:$0xff] %v10593
      %10626 = vst [vmem:[%s288 + $0xb0] sm:$0xff] %v10594
      %10627 = vst [vmem:[%s288 + $0xb8] sm:$0xff] %v10595
      %10628 = vst [vmem:[%s288 + $0xc0] sm:$0xff] %v10596
      %10629 = vst [vmem:[%s288 + $0xc8] sm:$0xff] %v10597
      %10630 = vst [vmem:[%s288 + $0xd0] sm:$0xff] %v10598
      %10631 = vst [vmem:[%s288 + $0xd8] sm:$0xff] %v10599
      %10632 = vst [vmem:[%s288 + $0xe0] sm:$0xff] %v10600
      %10633 = vst [vmem:[%s288 + $0xe8] sm:$0xff] %v10601
      %10634 = vst [vmem:[%s288 + $0xf0] sm:$0xff] %v10602
      %10635 = vst [vmem:[%s288 + $0xf8] sm:$0xff] %v10603
      %p10636 = scmp.lt.s32.totalorder %s17, 1
      %s10637 = scalar_select %p10636, %s17, 1
      %s10638 = smul.addr %s10637, 32
      %s10639 = smul.addr %s10638, 8
      %s10640 = scalar_lea.vmem %s6, %s10639
      // Predicated region
      $region45: #{gsynthesis_block.1} parent=43 // pred_check
        %p10641 = pneg %p176
      $region46: #{gsynthesis_block.1} parent=43 // pred_check_branch
        %10643 = sbr.rel (%p10641) target = $region48
      $region47: #{gsynthesis_block.1} parent=43 // pred_region
        _
      $region48: #{gsynthesis_block.1} parent=43 // pred_fallthru
        _
    $region44: #{gsynthesis_block.1} parent=5 // pred_fallthru
      _
    %p10644 = scmp.le.s32.totalorder 2, %s12
    // Predicated region
    $region49: #{gsynthesis_block.1} parent=5 // pred_check
      %p10645 = pneg %p10644
    $region50: #{gsynthesis_block.1} parent=5 // pred_check_branch
      %10647 = sbr.rel (%p10645) target = $region52
    $region51: #{gsynthesis_block.1} parent=5 // pred_region
      %s10648 = ssub.s32 %s12, 2
      // Predicated region
      $region53: #{gsynthesis_block.1} parent=51 // pred_check
        %p10649 = pneg %p182
      $region54: #{gsynthesis_block.1} parent=51 // pred_check_branch
        %10651 = sbr.rel (%p10649) target = $region56
      $region55: #{gsynthesis_block.1} parent=51 // pred_region
        %p10652 = scmp.lt.s32.totalorder %s18, 1
        %s10653 = scalar_select %p10652, %s18, 1
        %s10654 = smul.addr %s10653, 32
        %s10655 = smul.addr %s10654, 8
        %s10656 = scalar_lea.vmem %s6, %s10655
      $region56: #{gsynthesis_block.1} parent=51 // pred_fallthru
        _
    $region52: #{gsynthesis_block.1} parent=5 // pred_fallthru
      _
  $region6: #{gsynthesis_block.1} parent=0 // loop_footer
    %s16 = sadd.s32 1, %s12
  $region7: #{gsynthesis_block.1} parent=0 // loop_footer_branch
    %11 = sbr.rel target = $region3
  $region8: #{gsynthesis_block.1} parent=0 // loop_exit
    _

</llo_original>
